<compile_context>
chip_gen: v7x
topology: tpu7x:2x2x1
jax: 0.10.0
libtpu: 0.0.40
codegen_flags: <defaults>
</compile_context>

<pallas_src>
import functools

import jax
import jax.numpy as jnp
from jax.experimental import pallas as pl
from jax.experimental.pallas import tpu as pltpu

ACT_DTYPE = jnp.bfloat16   # inter-layer activation / MXU operand dtype (f32 accumulation)
CPAD = 128                 # every activation / weight is padded to 128 lanes
BASE = 16
STAGES = [(BASE, 1), (BASE * 2, 2), (BASE * 4, 2), (BASE * 8, 2)]

TM_MM = 512                # row-tile cap for im2col matmuls
TM_S1 = 512                # row-tile cap for plane-flat (stride-1) kernels
MIN_SPLIT_ROWS = 128       # split a row grid into >=2 steps only above this extent


# ----------------------------------------------------------------------------- utils
def _round_up(x, m):
    return (x + m - 1) // m * m


def _row_tile(n, cap):
    """Row tile: >=2 grid steps when the extent is big enough (both v7x TensorCores
    get work); otherwise a single whole-extent step (avoids per-step overhead on the
    tiny tail-of-network kernels)."""
    n8 = _round_up(max(n, 1), 8)
    if n8 >= MIN_SPLIT_ROWS:
        return min(cap, _round_up(pl.cdiv(n8, 2), 8))
    return min(cap, n8)


def _parallel():
    return pltpu.CompilerParams(dimension_semantics=("parallel",))


# ----------------------------------------------------------- plane-flat layout helpers
# An activation (N, H, W, C) is stored as an (Mp, CPAD) bf16 array whose row
# n*Hp*Wp + h*Wp + w holds activation[n, h, w, :] (zero-padded to 128 lanes) for
# h < H, w < W; every other row (padding ring / round-up slack) is exactly zero.
# Hp = H + 2 and Wp = round_up(W + 2, 8), so the 3x3 tap row-offsets i*Wp are
# sublane-aligned.  With `lead = Wp + 1` zero rows prepended, output row r of a
# same-padded 3x3 stencil is a function of x_lin[r + i*Wp + j], i, j in 0..2.

def s1_geometry(N, H, W):
    Hp = H + 2
    Wp = _round_up(W + 2, 8)
    Mv = N * Hp * Wp
    tm = _row_tile(Mv, TM_S1)
    Mp = _round_up(Mv, tm)
    return Hp, Wp, Mv, Mp, tm


def to_plane_flat(x_dense, Hp, Wp, Mp):
    """(N, H, W, C<=CPAD) -> (Mp, CPAD) bf16; pad ring / slack rows / pad lanes zero."""
    N, H, W, C = x_dense.shape
    xp = jnp.pad(x_dense.astype(ACT_DTYPE),
                 ((0, 0), (0, Hp - H), (0, Wp - W), (0, CPAD - C)))
    xf = xp.reshape(N * Hp * Wp, CPAD)
    return jnp.pad(xf, ((0, Mp - N * Hp * Wp), (0, 0)))


def flat_rows_to_plane_flat(y_flat, N, H, W, Hp, Wp, Mp):
    """(N*H*W, CPAD) row-major matmul output -> plane-flat (Mp, CPAD)."""
    return to_plane_flat(y_flat.reshape(N, H, W, CPAD), Hp, Wp, Mp)


def _shift_window_setup(z_pf, Mp, Wp, tm):
    """Common setup for the shifted-window (3x3/p1/s1) kernels."""
    lead = Wp + 1
    off_max = 2 * Wp + 2
    size_big = tm + _round_up(off_max, 8)
    Lin = Mp + _round_up(off_max, 8)
    x_lin = jnp.pad(z_pf, ((lead, Lin - lead - Mp), (0, 0)))
    offsets = tuple(i * Wp + j for i in range(3) for j in range(3))
    return x_lin, Lin, size_big, offsets


# ---------------------------------------------- stem matmul + BN(+ReLU) fused kernel
def _mm_bn_kernel(a_ref, b_ref, s_ref, c_ref, o_ref, *, relu):
    y = jnp.dot(a_ref[...], b_ref[...], preferred_element_type=jnp.float32)
    y = y * s_ref[...] + c_ref[...]
    if relu:
        y = jnp.maximum(y, 0.0)
    o_ref[...] = y.astype(o_ref.dtype)


def matmul_bn_act(a, b, scale, bias, relu):
    """a: (M, K) bf16, b: (K, CPAD) bf16 -> (M, CPAD) bf16 with fused BN(+ReLU)."""
    M, K = a.shape
    tm = _row_tile(M, TM_MM)
    Mp = _round_up(M, tm)
    a_p = jnp.pad(a, ((0, Mp - M), (0, 0)))
    out = pl.pallas_call(
        functools.partial(_mm_bn_kernel, relu=relu),
        out_shape=jax.ShapeDtypeStruct((Mp, CPAD), ACT_DTYPE),
        grid=(Mp // tm,),
        in_specs=[pl.BlockSpec((tm, K), lambda i: (i, 0)),
                  pl.BlockSpec((K, CPAD), lambda i: (0, 0)),
                  pl.BlockSpec((1, CPAD), lambda i: (0, 0)),
                  pl.BlockSpec((1, CPAD), lambda i: (0, 0))],
        out_specs=pl.BlockSpec((tm, CPAD), lambda i: (i, 0)),
        compiler_params=_parallel(),
    )(a_p, b, scale, bias)
    return out[:M]


def im2col_7x7_s2_p3(x):
    """Stem im2col (Cin=3, K=147) built in XLA; operands emitted directly in bf16."""
    N, H, W, Cin = x.shape
    kh = kw = 7
    stride, padding = 2, 3
    Ho = (H + 2 * padding - kh) // stride + 1
    Wo = (W + 2 * padding - kw) // stride + 1
    xp = jnp.pad(x, ((0, 0), (padding, padding), (padding, padding), (0, 0)))
    xp = xp.astype(ACT_DTYPE)
    cols = [xp[:, i:i + stride * Ho:stride, j:j + stride * Wo:stride, :]
            for i in range(kh) for j in range(kw)]
    a = jnp.concatenate(cols, axis=-1).reshape(N * Ho * Wo, kh * kw * Cin)
    return a, Ho, Wo


# --------------------------- fused strided stage entry: 3x3/s2 conv1 + 1x1/s2 downsample
def _mm_dual_kernel(a_ref, w1_ref, s1_ref, c1_ref, w2_ref, s2_ref, c2_ref,
                    o1_ref, o2_ref, *, cin_pad):
    a = a_ref[...]                                              # (tm, 9*CPAD) bf16
    y1 = jnp.dot(a, w1_ref[...], preferred_element_type=jnp.float32)
    y1 = jnp.maximum(y1 * s1_ref[...] + c1_ref[...], 0.0)      # conv1 + BN + ReLU
    o1_ref[...] = y1.astype(o1_ref.dtype)
    ac = a[:, 4 * cin_pad:5 * cin_pad]                          # centre tap == 1x1/s2 input
    y2 = jnp.dot(ac, w2_ref[...], preferred_element_type=jnp.float32)
    o2_ref[...] = (y2 * s2_ref[...] + c2_ref[...]).astype(o2_ref.dtype)   # downsample + BN


def conv_s2_entry_fused(a, w1, s1, c1, w2, s2, c2):
    """a: (M, 9*CPAD) bf16 im2col of the 3x3/s2/p1 conv.
    Returns (conv1+BN+ReLU output, downsample+BN output), both (M, CPAD) bf16, from a
    single im2col read (one pallas_call instead of two)."""
    M, K = a.shape
    tm = _row_tile(M, TM_MM)
    Mp = _round_up(M, tm)
    a_p = jnp.pad(a, ((0, Mp - M), (0, 0)))
    out1, idn = pl.pallas_call(
        functools.partial(_mm_dual_kernel, cin_pad=CPAD),
        out_shape=(jax.ShapeDtypeStruct((Mp, CPAD), ACT_DTYPE),
                   jax.ShapeDtypeStruct((Mp, CPAD), ACT_DTYPE)),
        grid=(Mp // tm,),
        in_specs=[pl.BlockSpec((tm, K), lambda i: (i, 0)),
                  pl.BlockSpec((K, CPAD), lambda i: (0, 0)),
                  pl.BlockSpec((1, CPAD), lambda i: (0, 0)),
                  pl.BlockSpec((1, CPAD), lambda i: (0, 0)),
                  pl.BlockSpec((CPAD, CPAD), lambda i: (0, 0)),
                  pl.BlockSpec((1, CPAD), lambda i: (0, 0)),
                  pl.BlockSpec((1, CPAD), lambda i: (0, 0))],
        out_specs=(pl.BlockSpec((tm, CPAD), lambda i: (i, 0)),
                   pl.BlockSpec((tm, CPAD), lambda i: (i, 0))),
        compiler_params=_parallel(),
    )(a_p, w1, s1, c1, w2, s2, c2)
    return out1[:M], idn[:M]


def im2col_3x3_s2_from_pf(x_pf, N, H, W):
    """Build the 3x3/s2/p1 im2col (tap-major, 128-lane channel blocks) directly from a
    plane-flat input (its bottom/right zero pad is reused; only the top/left ring is
    added)."""
    Hp, Wp, _, _, _ = s1_geometry(N, H, W)
    dense = x_pf[:N * Hp * Wp].reshape(N, Hp, Wp, CPAD)
    Ho = (H - 1) // 2 + 1
    Wo = (W - 1) // 2 + 1
    xp = jnp.pad(dense[:, :H + 1, :W + 1, :], ((0, 0), (1, 0), (1, 0), (0, 0)))
    cols = [xp[:, i:i + 2 * Ho:2, j:j + 2 * Wo:2, :]
            for i in range(3) for j in range(3)]
    a = jnp.concatenate(cols, axis=-1).reshape(N * Ho * Wo, 9 * CPAD)
    return a, Ho, Wo


# ----------------------------------- direct stride-1 3x3 conv (merged K = 9*128 matmul)
def _conv_s1_kernel(x_ref, w_ref, s_ref, c_ref, m_ref, *rest,
                    tm, size_big, offsets, relu, has_res):
    if has_res:
        r_ref, o_ref = rest
    else:
        (o_ref,) = rest
    base = pl.multiple_of(pl.program_id(0) * tm, tm)
    # One aligned dynamic window of the VMEM-resident input; the 9 taps are static
    # row shifts of it, concatenated along lanes -> a single K=9*CPAD MXU matmul
    # (no per-tap accumulation adds, full MXU depth).
    a_big = x_ref[pl.ds(base, size_big), :]
    a = jnp.concatenate([a_big[off:off + tm, :] for off in offsets], axis=-1)
    y = jnp.dot(a, w_ref[...], preferred_element_type=jnp.float32)
    y = y * s_ref[...] + c_ref[...]            # folded BatchNorm
    if has_res:
        y = y + r_ref[...].astype(jnp.float32)  # fused residual add
    if relu:
        y = jnp.maximum(y, 0.0)
    y = y * m_ref[...]                         # zero the padding-ring / slack rows
    o_ref[...] = y.astype(o_ref.dtype)


def conv3x3_s1_fused(z_pf, w_pk, scale, bias, *, N, H, W, relu, residual_pf=None):
    """3x3 stride-1 same-padded conv on a plane-flat (Mp, CPAD) bf16 input with fused
    BN(+residual)(+ReLU); returns a plane-flat (Mp, CPAD) bf16 output."""
    Hp, Wp, Mv, Mp, tm = s1_geometry(N, H, W)
    assert z_pf.shape == (Mp, CPAD), (z_pf.shape, (Mp, CPAD))
    x_lin, Lin, size_big, offsets = _shift_window_setup(z_pf, Mp, Wp, tm)

    # Validity mask: 1.0 where the flat row maps to a real (n, h<H, w<W) position.
    r = jnp.arange(Mp, dtype=jnp.int32)
    rr = r % (Hp * Wp)
    mask = ((r < Mv) & (rr // Wp < H) & (rr % Wp < W)).astype(jnp.float32)[:, None]

    has_res = residual_pf is not None
    in_specs = [
        pl.BlockSpec((Lin, CPAD), lambda i: (0, 0)),            # VMEM-resident input
        pl.BlockSpec((9 * CPAD, CPAD), lambda i: (0, 0)),
        pl.BlockSpec((1, CPAD), lambda i: (0, 0)),
        pl.BlockSpec((1, CPAD), lambda i: (0, 0)),
        pl.BlockSpec((tm, 1), lambda i: (i, 0)),
    ]
    args = [x_lin, w_pk, scale, bias, mask]
    if has_res:
        in_specs.append(pl.BlockSpec((tm, CPAD), lambda i: (i, 0)))
        args.append(residual_pf)

    return pl.pallas_call(
        functools.partial(_conv_s1_kernel, tm=tm, size_big=size_big,
                          offsets=offsets, relu=relu, has_res=has_res),
        out_shape=jax.ShapeDtypeStruct((Mp, CPAD), ACT_DTYPE),
        grid=(Mp // tm,),
        in_specs=in_specs,
        out_specs=pl.BlockSpec((tm, CPAD), lambda i: (i, 0)),
        compiler_params=_parallel(),
    )(*args)


# ------------------------------------------------------------------------- max pooling
def _max9_kernel(x_ref, o_ref, *, tm, size_big, offsets):
    base = pl.multiple_of(pl.program_id(0) * tm, tm)
    a_big = x_ref[pl.ds(base, size_big), :]
    m = a_big[offsets[0]:offsets[0] + tm, :]
    for off in offsets[1:]:
        m = jnp.maximum(m, a_big[off:off + tm, :])
    o_ref[...] = m


def maxpool3x3_s1_pf(z_pf, *, N, H, W):
    """3x3 stride-1 same-padded max on a plane-flat input (one read + one write).
    Zero padding equals PyTorch's -inf padding here because the input is post-ReLU
    (>= 0).  The stride-2 subsample is done by the caller in XLA."""
    Hp, Wp, Mv, Mp, tm = s1_geometry(N, H, W)
    assert z_pf.shape == (Mp, CPAD)
    x_lin, Lin, size_big, offsets = _shift_window_setup(z_pf, Mp, Wp, tm)
    return pl.pallas_call(
        functools.partial(_max9_kernel, tm=tm, size_big=size_big, offsets=offsets),
        out_shape=jax.ShapeDtypeStruct((Mp, CPAD), ACT_DTYPE),
        grid=(Mp // tm,),
        in_specs=[pl.BlockSpec((Lin, CPAD), lambda i: (0, 0))],
        out_specs=pl.BlockSpec((tm, CPAD), lambda i: (i, 0)),
        compiler_params=_parallel(),
    )(x_lin)


# --------------------------------------------------------------------------- parameters
def init_params(key):
    keys = iter(jax.random.split(key, 64))

    def conv_w(kh, kw, cin, cout):
        k = next(keys)
        fan_in = kh * kw * cin
        return (jax.random.normal(k, (kh, kw, cin, cout), jnp.float32)
                * jnp.sqrt(2.0 / fan_in))

    def bn(c):
        k1, k2, k3, k4 = jax.random.split(next(keys), 4)
        gamma = 1.0 + 0.1 * jax.random.normal(k1, (c,), jnp.float32)
        beta = 0.1 * jax.random.normal(k2, (c,), jnp.float32)
        mean = 0.1 * jax.random.normal(k3, (c,), jnp.float32)
        var = 1.0 + 0.1 * jax.random.uniform(k4, (c,), jnp.float32)
        scale = gamma * jax.lax.rsqrt(var + 1e-5)
        bias = beta - mean * scale
        return scale, bias

    def pad_sb(sb):
        s, b = sb
        c = s.shape[0]
        return (jnp.pad(s, (0, CPAD - c)).reshape(1, CPAD),
                jnp.pad(b, (0, CPAD - c)).reshape(1, CPAD))

    def pack3x3(w):
        # (3,3,cin,cout) -> (9*CPAD, CPAD) bf16, tap-major rows (matches the in-kernel
        # lane concatenation order); zero rows/cols for the padded channels.
        _, _, cin, cout = w.shape
        wp = jnp.pad(w, ((0, 0), (0, 0), (0, CPAD - cin), (0, CPAD - cout)))
        return wp.reshape(9 * CPAD, CPAD).astype(ACT_DTYPE)

    def pack1x1(w):
        _, _, cin, cout = w.shape
        wp = jnp.pad(w[0, 0], ((0, CPAD - cin), (0, CPAD - cout)))
        return wp.astype(ACT_DTYPE)

    w = conv_w(7, 7, 3, BASE)
    ss, bb = pad_sb(bn(BASE))
    params = {
        "stem_w": jnp.pad(w.reshape(7 * 7 * 3, BASE),
                          ((0, 0), (0, CPAD - BASE))).astype(ACT_DTYPE),
        "stem_s": ss, "stem_b": bb, "stages": [],
    }
    cin = BASE
    for cout, stride in STAGES:
        s1, b1 = pad_sb(bn(cout))
        s2, b2 = pad_sb(bn(cout))
        blk = {"stride": stride,
               "w1": pack3x3(conv_w(3, 3, cin, cout)), "s1": s1, "b1": b1,
               "w2": pack3x3(conv_w(3, 3, cout, cout)), "s2": s2, "b2": b2}
        if stride != 1 or cin != cout:
            sd, bd = pad_sb(bn(cout))
            blk["wd"] = pack1x1(conv_w(1, 1, cin, cout))
            blk["sd"] = sd
            blk["bd"] = bd
        params["stages"].append(blk)
        cin = cout
    return params


# ------------------------------------------------------------------------- forward pass
def basic_block(x_pf, p, N, H, W):
    if "wd" not in p:
        # Identity block: two plane-flat stride-1 convs; the block input is the fused
        # residual of conv2 (no extra copy).
        out1 = conv3x3_s1_fused(x_pf, p["w1"], p["s1"], p["b1"],
                                N=N, H=H, W=W, relu=True)
        out2 = conv3x3_s1_fused(out1, p["w2"], p["s2"], p["b2"],
                                N=N, H=H, W=W, relu=True, residual_pf=x_pf)
        return out2, H, W

    # Strided block: one fused kernel computes conv1 (3x3/s2 + BN + ReLU) and the
    # 1x1/s2 downsample (+BN) from a single im2col read; conv2 (3x3/s1) then fuses
    # BN + residual + ReLU in the plane-flat kernel.
    a, Ho, Wo = im2col_3x3_s2_from_pf(x_pf, N, H, W)
    out1, idn = conv_s2_entry_fused(a, p["w1"], p["s1"], p["b1"],
                                    p["wd"], p["sd"], p["bd"])
    Hp, Wp, _, Mp, _ = s1_geometry(N, Ho, Wo)
    out1_pf = flat_rows_to_plane_flat(out1, N, Ho, Wo, Hp, Wp, Mp)
    idn_pf = flat_rows_to_plane_flat(idn, N, Ho, Wo, Hp, Wp, Mp)
    out2 = conv3x3_s1_fused(out1_pf, p["w2"], p["s2"], p["b2"],
                            N=N, H=Ho, W=Wo, relu=True, residual_pf=idn_pf)
    return out2, Ho, Wo


def resnet_embedding_forward(params, x_nchw):
    """x_nchw: (N, 3, H, W) -> (N, BASE*8) == torch.flatten(features(x), 1)."""
    x = jnp.transpose(x_nchw.astype(jnp.float32), (0, 2, 3, 1))   # NCHW -> NHWC
    N = x.shape[0]

    # Stem: 7x7/s2/p3 conv + BN + ReLU (im2col matmul, bf16 operands, 128-lane output).
    a, Ho, Wo = im2col_7x7_s2_p3(x)
    y = matmul_bn_act(a, params["stem_w"], params["stem_s"], params["stem_b"], relu=True)

    # MaxPool 3x3/s2/p1: 3x3 stride-1 max in one shifted-window kernel, then the
    # stride-2 subsample + stage-1 plane-flat conversion as a single small XLA pass.
    Hp0, Wp0, _, Mp0, _ = s1_geometry(N, Ho, Wo)
    y_pf = flat_rows_to_plane_flat(y, N, Ho, Wo, Hp0, Wp0, Mp0)
    pooled_pf = maxpool3x3_s1_pf(y_pf, N=N, H=Ho, W=Wo)
    H1 = (Ho - 1) // 2 + 1
    W1 = (Wo - 1) // 2 + 1
    pooled = pooled_pf[:N * Hp0 * Wp0].reshape(N, Hp0, Wp0, CPAD)
    pooled = pooled[:, 0:2 * H1:2, 0:2 * W1:2, :]                 # (N, H1, W1, CPAD)
    Hp1, Wp1, _, Mp1, _ = s1_geometry(N, H1, W1)
    x_pf = to_plane_flat(pooled, Hp1, Wp1, Mp1)

    # Residual stages (all activations stay plane-flat, bf16, 128 lanes).
    Hc, Wc = H1, W1
    for blk in params["stages"]:
        x_pf, Hc, Wc = basic_block(x_pf, blk, N, Hc, Wc)

    # Global average pool (== AdaptiveAvgPool2d(1)) + flatten: padding-ring / slack
    # rows are exact zeros, so this is a plain per-image row-sum (no extra kernel).
    Hp, Wp, Mv, _, _ = s1_geometry(N, Hc, Wc)
    emb = x_pf[:Mv].astype(jnp.float32).reshape(N, Hp * Wp, CPAD).sum(axis=1)
    return emb / float(Hc * Wc)


if __name__ == "__main__":
    x = jax.random.normal(jax.random.PRNGKey(0), (2, 3, 32, 32), jnp.float32)
    params = init_params(jax.random.PRNGKey(42))

    fwd = jax.jit(functools.partial(resnet_embedding_forward, params))
    emb = jax.block_until_ready(fwd(x))

    assert emb.shape == (2, BASE * 8), emb.shape
    assert bool(jnp.all(jnp.isfinite(emb)))
    print("KERNEL_OK")
</pallas_src>

<mosaic_0001>
module attributes {stable_mosaic.version = 11 : i64} {
  func.func @_max9_kernel(%arg0: i32, %arg1: memref<920x128xbf16, #tpu.memory_space<vmem>>, %arg2: memref<432x128xbf16, #tpu.memory_space<vmem>>) attributes {dimension_semantics = [#tpu.dimension_semantics<parallel>], iteration_bounds = array<i64: 2>, scalar_prefetch = 0 : i64, scratch_operands = 0 : i64, tpu.core_type = #tpu.core_type<tc>, window_params = [{pipeline_mode = #tpu.pipeline_mode<synchronous>, transform_indices = @transform_0, window_bounds = array<i64: 920, 128>}, {transform_indices = @transform_1, window_bounds = array<i64: 432, 128>}]} {
    %c432_i32 = arith.constant 432 : i32
    %0 = arith.muli %arg0, %c432_i32 : i32
    %1 = tpu.assume_multiple %0, 432 : i32
    %2 = arith.index_cast %1 : i32 to index
    %c0 = arith.constant 0 : index
    %3 = vector.load %arg1[%2, %c0] : memref<920x128xbf16, #tpu.memory_space<vmem>>, vector<488x128xbf16>
    %4 = vector.extract_strided_slice %3 {offsets = [0, 0], sizes = [432, 128], strides = [1, 1]} : vector<488x128xbf16> to vector<432x128xbf16>
    %5 = vector.extract_strided_slice %3 {offsets = [1, 0], sizes = [432, 128], strides = [1, 1]} : vector<488x128xbf16> to vector<432x128xbf16>
    %6 = arith.maximumf %4, %5 : vector<432x128xbf16>
    %7 = vector.extract_strided_slice %3 {offsets = [2, 0], sizes = [432, 128], strides = [1, 1]} : vector<488x128xbf16> to vector<432x128xbf16>
    %8 = arith.maximumf %6, %7 : vector<432x128xbf16>
    %9 = vector.extract_strided_slice %3 {offsets = [24, 0], sizes = [432, 128], strides = [1, 1]} : vector<488x128xbf16> to vector<432x128xbf16>
    %10 = arith.maximumf %8, %9 : vector<432x128xbf16>
    %11 = vector.extract_strided_slice %3 {offsets = [25, 0], sizes = [432, 128], strides = [1, 1]} : vector<488x128xbf16> to vector<432x128xbf16>
    %12 = arith.maximumf %10, %11 : vector<432x128xbf16>
    %13 = vector.extract_strided_slice %3 {offsets = [26, 0], sizes = [432, 128], strides = [1, 1]} : vector<488x128xbf16> to vector<432x128xbf16>
    %14 = arith.maximumf %12, %13 : vector<432x128xbf16>
    %15 = vector.extract_strided_slice %3 {offsets = [48, 0], sizes = [432, 128], strides = [1, 1]} : vector<488x128xbf16> to vector<432x128xbf16>
    %16 = arith.maximumf %14, %15 : vector<432x128xbf16>
    %17 = vector.extract_strided_slice %3 {offsets = [49, 0], sizes = [432, 128], strides = [1, 1]} : vector<488x128xbf16> to vector<432x128xbf16>
    %18 = arith.maximumf %16, %17 : vector<432x128xbf16>
    %19 = vector.extract_strided_slice %3 {offsets = [50, 0], sizes = [432, 128], strides = [1, 1]} : vector<488x128xbf16> to vector<432x128xbf16>
    %20 = arith.maximumf %18, %19 : vector<432x128xbf16>
    %c0_0 = arith.constant 0 : index
    %c0_1 = arith.constant 0 : index
    %21 = vector.load %arg2[%c0_0, %c0_1] : memref<432x128xbf16, #tpu.memory_space<vmem>>, vector<432x128xbf16>
    tpu.vector_store %arg2[%c0_0, %c0_1], %20 {strides = array<i32>} : memref<432x128xbf16, #tpu.memory_space<vmem>>, vector<432x128xbf16>,
    return
  }
  func.func @transform_0(%arg0: i32) -> (i32, i32) {
    %c0_i32 = arith.constant 0 : i32
    %c0_i32_0 = arith.constant 0 : i32
    %c0_i32_1 = arith.constant 0 : i32
    return %c0_i32, %c0_i32_0 : i32, i32
  }
  func.func @transform_1(%arg0: i32) -> (i32, i32) {
    %c0_i32 = arith.constant 0 : i32
    %c0_i32_0 = arith.constant 0 : i32
    return %arg0, %c0_i32 : i32, i32
  }
}

module attributes {stable_mosaic.version = 11 : i64} {
  func.func @_mm_bn_kernel(%arg0: i32, %arg1: memref<256x147xbf16, #tpu.memory_space<vmem>>, %arg2: memref<147x128xbf16, #tpu.memory_space<vmem>>, %arg3: memref<1x128xf32, #tpu.memory_space<vmem>>, %arg4: memref<1x128xf32, #tpu.memory_space<vmem>>, %arg5: memref<256x128xbf16, #tpu.memory_space<vmem>>) attributes {dimension_semantics = [#tpu.dimension_semantics<parallel>], iteration_bounds = array<i64: 2>, scalar_prefetch = 0 : i64, scratch_operands = 0 : i64, tpu.core_type = #tpu.core_type<tc>, window_params = [{transform_indices = @transform_0, window_bounds = array<i64: 256, 147>}, {pipeline_mode = #tpu.pipeline_mode<synchronous>, transform_indices = @transform_1, window_bounds = array<i64: 147, 128>}, {pipeline_mode = #tpu.pipeline_mode<synchronous>, transform_indices = @transform_2, window_bounds = array<i64: 1, 128>}, {pipeline_mode = #tpu.pipeline_mode<synchronous>, transform_indices = @transform_3, window_bounds = array<i64: 1, 128>}, {transform_indices = @transform_4, window_bounds = array<i64: 256, 128>}]} {
    %c0 = arith.constant 0 : index
    %c0_0 = arith.constant 0 : index
    %0 = vector.load %arg1[%c0, %c0_0] : memref<256x147xbf16, #tpu.memory_space<vmem>>, vector<256x147xbf16>
    %c0_1 = arith.constant 0 : index
    %c0_2 = arith.constant 0 : index
    %1 = vector.load %arg2[%c0_1, %c0_2] : memref<147x128xbf16, #tpu.memory_space<vmem>>, vector<147x128xbf16>
    %cst = arith.constant dense<0.000000e+00> : vector<256x128xf32>
    %2 = tpu.matmul %0, %1, %cst {dimension_numbers = #tpu.dot_dimension_numbers<[1], [0], [0], [1], [0, 0, 1, 1], [], []>} : vector<256x147xbf16>, vector<147x128xbf16>, vector<256x128xf32> -> vector<256x128xf32>
    %c0_3 = arith.constant 0 : index
    %c0_4 = arith.constant 0 : index
    %3 = vector.load %arg3[%c0_3, %c0_4] : memref<1x128xf32, #tpu.memory_space<vmem>>, vector<1x128xf32>
    %4 = vector.broadcast %3 : vector<1x128xf32> to vector<256x128xf32>
    %5 = arith.mulf %2, %4 : vector<256x128xf32>
    %c0_5 = arith.constant 0 : index
    %c0_6 = arith.constant 0 : index
    %6 = vector.load %arg4[%c0_5, %c0_6] : memref<1x128xf32, #tpu.memory_space<vmem>>, vector<1x128xf32>
    %7 = vector.broadcast %6 : vector<1x128xf32> to vector<256x128xf32>
    %8 = arith.addf %5, %7 : vector<256x128xf32>
    %cst_7 = arith.constant 0.000000e+00 : f32
    %9 = vector.broadcast %cst_7 : f32 to vector<256x128xf32>
    %10 = arith.maximumf %8, %9 : vector<256x128xf32>
    %11 = arith.truncf %10 : vector<256x128xf32> to vector<256x128xbf16>
    %c0_8 = arith.constant 0 : index
    %c0_9 = arith.constant 0 : index
    %12 = vector.load %arg5[%c0_8, %c0_9] : memref<256x128xbf16, #tpu.memory_space<vmem>>, vector<256x128xbf16>
    tpu.vector_store %arg5[%c0_8, %c0_9], %11 {strides = array<i32>} : memref<256x128xbf16, #tpu.memory_space<vmem>>, vector<256x128xbf16>,
    return
  }
  func.func @transform_0(%arg0: i32) -> (i32, i32) {
    %c0_i32 = arith.constant 0 : i32
    %c0_i32_0 = arith.constant 0 : i32
    return %arg0, %c0_i32 : i32, i32
  }
  func.func @transform_1(%arg0: i32) -> (i32, i32) {
    %c0_i32 = arith.constant 0 : i32
    %c0_i32_0 = arith.constant 0 : i32
    %c0_i32_1 = arith.constant 0 : i32
    return %c0_i32, %c0_i32_0 : i32, i32
  }
  func.func @transform_2(%arg0: i32) -> (i32, i32) {
    %c0_i32 = arith.constant 0 : i32
    %c0_i32_0 = arith.constant 0 : i32
    %c0_i32_1 = arith.constant 0 : i32
    return %c0_i32, %c0_i32_0 : i32, i32
  }
  func.func @transform_3(%arg0: i32) -> (i32, i32) {
    %c0_i32 = arith.constant 0 : i32
    %c0_i32_0 = arith.constant 0 : i32
    %c0_i32_1 = arith.constant 0 : i32
    return %c0_i32, %c0_i32_0 : i32, i32
  }
  func.func @transform_4(%arg0: i32) -> (i32, i32) {
    %c0_i32 = arith.constant 0 : i32
    %c0_i32_0 = arith.constant 0 : i32
    return %arg0, %c0_i32 : i32, i32
  }
}

module attributes {stable_mosaic.version = 11 : i64} {
  func.func @_conv_s1_kernel(%arg0: i32, %arg1: memref<360x128xbf16, #tpu.memory_space<vmem>>, %arg2: memref<1152x128xbf16, #tpu.memory_space<vmem>>, %arg3: memref<1x128xf32, #tpu.memory_space<vmem>>, %arg4: memref<1x128xf32, #tpu.memory_space<vmem>>, %arg5: memref<160x1xf32, #tpu.memory_space<vmem>>, %arg6: memref<160x128xbf16, #tpu.memory_space<vmem>>) attributes {dimension_semantics = [#tpu.dimension_semantics<parallel>], iteration_bounds = array<i64: 2>, scalar_prefetch = 0 : i64, scratch_operands = 0 : i64, tpu.core_type = #tpu.core_type<tc>, window_params = [{pipeline_mode = #tpu.pipeline_mode<synchronous>, transform_indices = @transform_0, window_bounds = array<i64: 360, 128>}, {pipeline_mode = #tpu.pipeline_mode<synchronous>, transform_indices = @transform_1, window_bounds = array<i64: 1152, 128>}, {pipeline_mode = #tpu.pipeline_mode<synchronous>, transform_indices = @transform_2, window_bounds = array<i64: 1, 128>}, {pipeline_mode = #tpu.pipeline_mode<synchronous>, transform_indices = @transform_3, window_bounds = array<i64: 1, 128>}, {transform_indices = @transform_4, window_bounds = array<i64: 160, 1>}, {transform_indices = @transform_5, window_bounds = array<i64: 160, 128>}]} {
    %c160_i32 = arith.constant 160 : i32
    %0 = arith.muli %arg0, %c160_i32 : i32
    %1 = tpu.assume_multiple %0, 160 : i32
    %2 = arith.index_cast %1 : i32 to index
    %c0 = arith.constant 0 : index
    %3 = vector.load %arg1[%2, %c0] : memref<360x128xbf16, #tpu.memory_space<vmem>>, vector<200x128xbf16>
    %4 = vector.extract_strided_slice %3 {offsets = [0, 0], sizes = [160, 128], strides = [1, 1]} : vector<200x128xbf16> to vector<160x128xbf16>
    %5 = vector.extract_strided_slice %3 {offsets = [1, 0], sizes = [160, 128], strides = [1, 1]} : vector<200x128xbf16> to vector<160x128xbf16>
    %6 = vector.extract_strided_slice %3 {offsets = [2, 0], sizes = [160, 128], strides = [1, 1]} : vector<200x128xbf16> to vector<160x128xbf16>
    %7 = vector.extract_strided_slice %3 {offsets = [16, 0], sizes = [160, 128], strides = [1, 1]} : vector<200x128xbf16> to vector<160x128xbf16>
    %8 = vector.extract_strided_slice %3 {offsets = [17, 0], sizes = [160, 128], strides = [1, 1]} : vector<200x128xbf16> to vector<160x128xbf16>
    %9 = vector.extract_strided_slice %3 {offsets = [18, 0], sizes = [160, 128], strides = [1, 1]} : vector<200x128xbf16> to vector<160x128xbf16>
    %10 = vector.extract_strided_slice %3 {offsets = [32, 0], sizes = [160, 128], strides = [1, 1]} : vector<200x128xbf16> to vector<160x128xbf16>
    %11 = vector.extract_strided_slice %3 {offsets = [33, 0], sizes = [160, 128], strides = [1, 1]} : vector<200x128xbf16> to vector<160x128xbf16>
    %12 = vector.extract_strided_slice %3 {offsets = [34, 0], sizes = [160, 128], strides = [1, 1]} : vector<200x128xbf16> to vector<160x128xbf16>
    %13 = tpu.concatenate %4, %5, %6, %7, %8, %9, %10, %11, %12 in 1 : vector<160x128xbf16>, vector<160x128xbf16>, vector<160x128xbf16>, vector<160x128xbf16>, vector<160x128xbf16>, vector<160x128xbf16>, vector<160x128xbf16>, vector<160x128xbf16>, vector<160x128xbf16> -> vector<160x1152xbf16>
    %c0_0 = arith.constant 0 : index
    %c0_1 = arith.constant 0 : index
    %14 = vector.load %arg2[%c0_0, %c0_1] : memref<1152x128xbf16, #tpu.memory_space<vmem>>, vector<1152x128xbf16>
    %cst = arith.constant dense<0.000000e+00> : vector<160x128xf32>
    %15 = tpu.matmul %13, %14, %cst {dimension_numbers = #tpu.dot_dimension_numbers<[1], [0], [0], [1], [0, 0, 1, 1], [], []>} : vector<160x1152xbf16>, vector<1152x128xbf16>, vector<160x128xf32> -> vector<160x128xf32>
    %c0_2 = arith.constant 0 : index
    %c0_3 = arith.constant 0 : index
    %16 = vector.load %arg3[%c0_2, %c0_3] : memref<1x128xf32, #tpu.memory_space<vmem>>, vector<1x128xf32>
    %17 = vector.broadcast %16 : vector<1x128xf32> to vector<160x128xf32>
    %18 = arith.mulf %15, %17 : vector<160x128xf32>
    %c0_4 = arith.constant 0 : index
    %c0_5 = arith.constant 0 : index
    %19 = vector.load %arg4[%c0_4, %c0_5] : memref<1x128xf32, #tpu.memory_space<vmem>>, vector<1x128xf32>
    %20 = vector.broadcast %19 : vector<1x128xf32> to vector<160x128xf32>
    %21 = arith.addf %18, %20 : vector<160x128xf32>
    %cst_6 = arith.constant 0.000000e+00 : f32
    %22 = vector.broadcast %cst_6 : f32 to vector<160x128xf32>
    %23 = arith.maximumf %21, %22 : vector<160x128xf32>
    %c0_7 = arith.constant 0 : index
    %c0_8 = arith.constant 0 : index
    %24 = vector.load %arg5[%c0_7, %c0_8] : memref<160x1xf32, #tpu.memory_space<vmem>>, vector<160x1xf32>
    %25 = vector.broadcast %24 : vector<160x1xf32> to vector<160x128xf32>
    %26 = arith.mulf %23, %25 : vector<160x128xf32>
    %27 = arith.truncf %26 : vector<160x128xf32> to vector<160x128xbf16>
    %c0_9 = arith.constant 0 : index
    %c0_10 = arith.constant 0 : index
    %28 = vector.load %arg6[%c0_9, %c0_10] : memref<160x128xbf16, #tpu.memory_space<vmem>>, vector<160x128xbf16>
    tpu.vector_store %arg6[%c0_9, %c0_10], %27 {strides = array<i32>} : memref<160x128xbf16, #tpu.memory_space<vmem>>, vector<160x128xbf16>,
    return
  }
  func.func @transform_0(%arg0: i32) -> (i32, i32) {
    %c0_i32 = arith.constant 0 : i32
    %c0_i32_0 = arith.constant 0 : i32
    %c0_i32_1 = arith.constant 0 : i32
    return %c0_i32, %c0_i32_0 : i32, i32
  }
  func.func @transform_1(%arg0: i32) -> (i32, i32) {
    %c0_i32 = arith.constant 0 : i32
    %c0_i32_0 = arith.constant 0 : i32
    %c0_i32_1 = arith.constant 0 : i32
    return %c0_i32, %c0_i32_0 : i32, i32
  }
  func.func @transform_2(%arg0: i32) -> (i32, i32) {
    %c0_i32 = arith.constant 0 : i32
    %c0_i32_0 = arith.constant 0 : i32
    %c0_i32_1 = arith.constant 0 : i32
    return %c0_i32, %c0_i32_0 : i32, i32
  }
  func.func @transform_3(%arg0: i32) -> (i32, i32) {
    %c0_i32 = arith.constant 0 : i32
    %c0_i32_0 = arith.constant 0 : i32
    %c0_i32_1 = arith.constant 0 : i32
    return %c0_i32, %c0_i32_0 : i32, i32
  }
  func.func @transform_4(%arg0: i32) -> (i32, i32) {
    %c0_i32 = arith.constant 0 : i32
    %c0_i32_0 = arith.constant 0 : i32
    return %arg0, %c0_i32 : i32, i32
  }
  func.func @transform_5(%arg0: i32) -> (i32, i32) {
    %c0_i32 = arith.constant 0 : i32
    %c0_i32_0 = arith.constant 0 : i32
    return %arg0, %c0_i32 : i32, i32
  }
}

module attributes {stable_mosaic.version = 11 : i64} {
  func.func @_conv_s1_kernel(%arg0: i32, %arg1: memref<360x128xbf16, #tpu.memory_space<vmem>>, %arg2: memref<1152x128xbf16, #tpu.memory_space<vmem>>, %arg3: memref<1x128xf32, #tpu.memory_space<vmem>>, %arg4: memref<1x128xf32, #tpu.memory_space<vmem>>, %arg5: memref<160x1xf32, #tpu.memory_space<vmem>>, %arg6: memref<160x128xbf16, #tpu.memory_space<vmem>>, %arg7: memref<160x128xbf16, #tpu.memory_space<vmem>>) attributes {dimension_semantics = [#tpu.dimension_semantics<parallel>], iteration_bounds = array<i64: 2>, scalar_prefetch = 0 : i64, scratch_operands = 0 : i64, tpu.core_type = #tpu.core_type<tc>, window_params = [{pipeline_mode = #tpu.pipeline_mode<synchronous>, transform_indices = @transform_0, window_bounds = array<i64: 360, 128>}, {pipeline_mode = #tpu.pipeline_mode<synchronous>, transform_indices = @transform_1, window_bounds = array<i64: 1152, 128>}, {pipeline_mode = #tpu.pipeline_mode<synchronous>, transform_indices = @transform_2, window_bounds = array<i64: 1, 128>}, {pipeline_mode = #tpu.pipeline_mode<synchronous>, transform_indices = @transform_3, window_bounds = array<i64: 1, 128>}, {transform_indices = @transform_4, window_bounds = array<i64: 160, 1>}, {transform_indices = @transform_5, window_bounds = array<i64: 160, 128>}, {transform_indices = @transform_6, window_bounds = array<i64: 160, 128>}]} {
    %c160_i32 = arith.constant 160 : i32
    %0 = arith.muli %arg0, %c160_i32 : i32
    %1 = tpu.assume_multiple %0, 160 : i32
    %2 = arith.index_cast %1 : i32 to index
    %c0 = arith.constant 0 : index
    %3 = vector.load %arg1[%2, %c0] : memref<360x128xbf16, #tpu.memory_space<vmem>>, vector<200x128xbf16>
    %4 = vector.extract_strided_slice %3 {offsets = [0, 0], sizes = [160, 128], strides = [1, 1]} : vector<200x128xbf16> to vector<160x128xbf16>
    %5 = vector.extract_strided_slice %3 {offsets = [1, 0], sizes = [160, 128], strides = [1, 1]} : vector<200x128xbf16> to vector<160x128xbf16>
    %6 = vector.extract_strided_slice %3 {offsets = [2, 0], sizes = [160, 128], strides = [1, 1]} : vector<200x128xbf16> to vector<160x128xbf16>
    %7 = vector.extract_strided_slice %3 {offsets = [16, 0], sizes = [160, 128], strides = [1, 1]} : vector<200x128xbf16> to vector<160x128xbf16>
    %8 = vector.extract_strided_slice %3 {offsets = [17, 0], sizes = [160, 128], strides = [1, 1]} : vector<200x128xbf16> to vector<160x128xbf16>
    %9 = vector.extract_strided_slice %3 {offsets = [18, 0], sizes = [160, 128], strides = [1, 1]} : vector<200x128xbf16> to vector<160x128xbf16>
    %10 = vector.extract_strided_slice %3 {offsets = [32, 0], sizes = [160, 128], strides = [1, 1]} : vector<200x128xbf16> to vector<160x128xbf16>
    %11 = vector.extract_strided_slice %3 {offsets = [33, 0], sizes = [160, 128], strides = [1, 1]} : vector<200x128xbf16> to vector<160x128xbf16>
    %12 = vector.extract_strided_slice %3 {offsets = [34, 0], sizes = [160, 128], strides = [1, 1]} : vector<200x128xbf16> to vector<160x128xbf16>
    %13 = tpu.concatenate %4, %5, %6, %7, %8, %9, %10, %11, %12 in 1 : vector<160x128xbf16>, vector<160x128xbf16>, vector<160x128xbf16>, vector<160x128xbf16>, vector<160x128xbf16>, vector<160x128xbf16>, vector<160x128xbf16>, vector<160x128xbf16>, vector<160x128xbf16> -> vector<160x1152xbf16>
    %c0_0 = arith.constant 0 : index
    %c0_1 = arith.constant 0 : index
    %14 = vector.load %arg2[%c0_0, %c0_1] : memref<1152x128xbf16, #tpu.memory_space<vmem>>, vector<1152x128xbf16>
    %cst = arith.constant dense<0.000000e+00> : vector<160x128xf32>
    %15 = tpu.matmul %13, %14, %cst {dimension_numbers = #tpu.dot_dimension_numbers<[1], [0], [0], [1], [0, 0, 1, 1], [], []>} : vector<160x1152xbf16>, vector<1152x128xbf16>, vector<160x128xf32> -> vector<160x128xf32>
    %c0_2 = arith.constant 0 : index
    %c0_3 = arith.constant 0 : index
    %16 = vector.load %arg3[%c0_2, %c0_3] : memref<1x128xf32, #tpu.memory_space<vmem>>, vector<1x128xf32>
    %17 = vector.broadcast %16 : vector<1x128xf32> to vector<160x128xf32>
    %18 = arith.mulf %15, %17 : vector<160x128xf32>
    %c0_4 = arith.constant 0 : index
    %c0_5 = arith.constant 0 : index
    %19 = vector.load %arg4[%c0_4, %c0_5] : memref<1x128xf32, #tpu.memory_space<vmem>>, vector<1x128xf32>
    %20 = vector.broadcast %19 : vector<1x128xf32> to vector<160x128xf32>
    %21 = arith.addf %18, %20 : vector<160x128xf32>
    %c0_6 = arith.constant 0 : index
    %c0_7 = arith.constant 0 : index
    %22 = vector.load %arg6[%c0_6, %c0_7] : memref<160x128xbf16, #tpu.memory_space<vmem>>, vector<160x128xbf16>
    %23 = arith.extf %22 : vector<160x128xbf16> to vector<160x128xf32>
    %24 = arith.addf %21, %23 : vector<160x128xf32>
    %cst_8 = arith.constant 0.000000e+00 : f32
    %25 = vector.broadcast %cst_8 : f32 to vector<160x128xf32>
    %26 = arith.maximumf %24, %25 : vector<160x128xf32>
    %c0_9 = arith.constant 0 : index
    %c0_10 = arith.constant 0 : index
    %27 = vector.load %arg5[%c0_9, %c0_10] : memref<160x1xf32, #tpu.memory_space<vmem>>, vector<160x1xf32>
    %28 = vector.broadcast %27 : vector<160x1xf32> to vector<160x128xf32>
    %29 = arith.mulf %26, %28 : vector<160x128xf32>
    %30 = arith.truncf %29 : vector<160x128xf32> to vector<160x128xbf16>
    %c0_11 = arith.constant 0 : index
    %c0_12 = arith.constant 0 : index
    %31 = vector.load %arg7[%c0_11, %c0_12] : memref<160x128xbf16, #tpu.memory_space<vmem>>, vector<160x128xbf16>
    tpu.vector_store %arg7[%c0_11, %c0_12], %30 {strides = array<i32>} : memref<160x128xbf16, #tpu.memory_space<vmem>>, vector<160x128xbf16>,
    return
  }
  func.func @transform_0(%arg0: i32) -> (i32, i32) {
    %c0_i32 = arith.constant 0 : i32
    %c0_i32_0 = arith.constant 0 : i32
    %c0_i32_1 = arith.constant 0 : i32
    return %c0_i32, %c0_i32_0 : i32, i32
  }
  func.func @transform_1(%arg0: i32) -> (i32, i32) {
    %c0_i32 = arith.constant 0 : i32
    %c0_i32_0 = arith.constant 0 : i32
    %c0_i32_1 = arith.constant 0 : i32
    return %c0_i32, %c0_i32_0 : i32, i32
  }
  func.func @transform_2(%arg0: i32) -> (i32, i32) {
    %c0_i32 = arith.constant 0 : i32
    %c0_i32_0 = arith.constant 0 : i32
    %c0_i32_1 = arith.constant 0 : i32
    return %c0_i32, %c0_i32_0 : i32, i32
  }
  func.func @transform_3(%arg0: i32) -> (i32, i32) {
    %c0_i32 = arith.constant 0 : i32
    %c0_i32_0 = arith.constant 0 : i32
    %c0_i32_1 = arith.constant 0 : i32
    return %c0_i32, %c0_i32_0 : i32, i32
  }
  func.func @transform_4(%arg0: i32) -> (i32, i32) {
    %c0_i32 = arith.constant 0 : i32
    %c0_i32_0 = arith.constant 0 : i32
    return %arg0, %c0_i32 : i32, i32
  }
  func.func @transform_5(%arg0: i32) -> (i32, i32) {
    %c0_i32 = arith.constant 0 : i32
    %c0_i32_0 = arith.constant 0 : i32
    return %arg0, %c0_i32 : i32, i32
  }
  func.func @transform_6(%arg0: i32) -> (i32, i32) {
    %c0_i32 = arith.constant 0 : i32
    %c0_i32_0 = arith.constant 0 : i32
    return %arg0, %c0_i32 : i32, i32
  }
}

module attributes {stable_mosaic.version = 11 : i64} {
  func.func @_conv_s1_kernel(%arg0: i32, %arg1: memref<120x128xbf16, #tpu.memory_space<vmem>>, %arg2: memref<1152x128xbf16, #tpu.memory_space<vmem>>, %arg3: memref<1x128xf32, #tpu.memory_space<vmem>>, %arg4: memref<1x128xf32, #tpu.memory_space<vmem>>, %arg5: memref<96x1xf32, #tpu.memory_space<vmem>>, %arg6: memref<96x128xbf16, #tpu.memory_space<vmem>>, %arg7: memref<96x128xbf16, #tpu.memory_space<vmem>>) attributes {dimension_semantics = [#tpu.dimension_semantics<parallel>], iteration_bounds = array<i64: 1>, scalar_prefetch = 0 : i64, scratch_operands = 0 : i64, tpu.core_type = #tpu.core_type<tc>, window_params = [{pipeline_mode = #tpu.pipeline_mode<synchronous>, transform_indices = @transform_0, window_bounds = array<i64: 120, 128>}, {pipeline_mode = #tpu.pipeline_mode<synchronous>, transform_indices = @transform_1, window_bounds = array<i64: 1152, 128>}, {pipeline_mode = #tpu.pipeline_mode<synchronous>, transform_indices = @transform_2, window_bounds = array<i64: 1, 128>}, {pipeline_mode = #tpu.pipeline_mode<synchronous>, transform_indices = @transform_3, window_bounds = array<i64: 1, 128>}, {transform_indices = @transform_4, window_bounds = array<i64: 96, 1>}, {transform_indices = @transform_5, window_bounds = array<i64: 96, 128>}, {transform_indices = @transform_6, window_bounds = array<i64: 96, 128>}]} {
    %c96_i32 = arith.constant 96 : i32
    %0 = arith.muli %arg0, %c96_i32 : i32
    %1 = tpu.assume_multiple %0, 96 : i32
    %2 = arith.index_cast %1 : i32 to index
    %c0 = arith.constant 0 : index
    %3 = vector.load %arg1[%2, %c0] : memref<120x128xbf16, #tpu.memory_space<vmem>>, vector<120x128xbf16>
    %4 = vector.extract_strided_slice %3 {offsets = [0, 0], sizes = [96, 128], strides = [1, 1]} : vector<120x128xbf16> to vector<96x128xbf16>
    %5 = vector.extract_strided_slice %3 {offsets = [1, 0], sizes = [96, 128], strides = [1, 1]} : vector<120x128xbf16> to vector<96x128xbf16>
    %6 = vector.extract_strided_slice %3 {offsets = [2, 0], sizes = [96, 128], strides = [1, 1]} : vector<120x128xbf16> to vector<96x128xbf16>
    %7 = vector.extract_strided_slice %3 {offsets = [8, 0], sizes = [96, 128], strides = [1, 1]} : vector<120x128xbf16> to vector<96x128xbf16>
    %8 = vector.extract_strided_slice %3 {offsets = [9, 0], sizes = [96, 128], strides = [1, 1]} : vector<120x128xbf16> to vector<96x128xbf16>
    %9 = vector.extract_strided_slice %3 {offsets = [10, 0], sizes = [96, 128], strides = [1, 1]} : vector<120x128xbf16> to vector<96x128xbf16>
    %10 = vector.extract_strided_slice %3 {offsets = [16, 0], sizes = [96, 128], strides = [1, 1]} : vector<120x128xbf16> to vector<96x128xbf16>
    %11 = vector.extract_strided_slice %3 {offsets = [17, 0], sizes = [96, 128], strides = [1, 1]} : vector<120x128xbf16> to vector<96x128xbf16>
    %12 = vector.extract_strided_slice %3 {offsets = [18, 0], sizes = [96, 128], strides = [1, 1]} : vector<120x128xbf16> to vector<96x128xbf16>
    %13 = tpu.concatenate %4, %5, %6, %7, %8, %9, %10, %11, %12 in 1 : vector<96x128xbf16>, vector<96x128xbf16>, vector<96x128xbf16>, vector<96x128xbf16>, vector<96x128xbf16>, vector<96x128xbf16>, vector<96x128xbf16>, vector<96x128xbf16>, vector<96x128xbf16> -> vector<96x1152xbf16>
    %c0_0 = arith.constant 0 : index
    %c0_1 = arith.constant 0 : index
    %14 = vector.load %arg2[%c0_0, %c0_1] : memref<1152x128xbf16, #tpu.memory_space<vmem>>, vector<1152x128xbf16>
    %cst = arith.constant dense<0.000000e+00> : vector<96x128xf32>
    %15 = tpu.matmul %13, %14, %cst {dimension_numbers = #tpu.dot_dimension_numbers<[1], [0], [0], [1], [0, 0, 1, 1], [], []>} : vector<96x1152xbf16>, vector<1152x128xbf16>, vector<96x128xf32> -> vector<96x128xf32>
    %c0_2 = arith.constant 0 : index
    %c0_3 = arith.constant 0 : index
    %16 = vector.load %arg3[%c0_2, %c0_3] : memref<1x128xf32, #tpu.memory_space<vmem>>, vector<1x128xf32>
    %17 = vector.broadcast %16 : vector<1x128xf32> to vector<96x128xf32>
    %18 = arith.mulf %15, %17 : vector<96x128xf32>
    %c0_4 = arith.constant 0 : index
    %c0_5 = arith.constant 0 : index
    %19 = vector.load %arg4[%c0_4, %c0_5] : memref<1x128xf32, #tpu.memory_space<vmem>>, vector<1x128xf32>
    %20 = vector.broadcast %19 : vector<1x128xf32> to vector<96x128xf32>
    %21 = arith.addf %18, %20 : vector<96x128xf32>
    %c0_6 = arith.constant 0 : index
    %c0_7 = arith.constant 0 : index
    %22 = vector.load %arg6[%c0_6, %c0_7] : memref<96x128xbf16, #tpu.memory_space<vmem>>, vector<96x128xbf16>
    %23 = arith.extf %22 : vector<96x128xbf16> to vector<96x128xf32>
    %24 = arith.addf %21, %23 : vector<96x128xf32>
    %cst_8 = arith.constant 0.000000e+00 : f32
    %25 = vector.broadcast %cst_8 : f32 to vector<96x128xf32>
    %26 = arith.maximumf %24, %25 : vector<96x128xf32>
    %c0_9 = arith.constant 0 : index
    %c0_10 = arith.constant 0 : index
    %27 = vector.load %arg5[%c0_9, %c0_10] : memref<96x1xf32, #tpu.memory_space<vmem>>, vector<96x1xf32>
    %28 = vector.broadcast %27 : vector<96x1xf32> to vector<96x128xf32>
    %29 = arith.mulf %26, %28 : vector<96x128xf32>
    %30 = arith.truncf %29 : vector<96x128xf32> to vector<96x128xbf16>
    %c0_11 = arith.constant 0 : index
    %c0_12 = arith.constant 0 : index
    %31 = vector.load %arg7[%c0_11, %c0_12] : memref<96x128xbf16, #tpu.memory_space<vmem>>, vector<96x128xbf16>
    tpu.vector_store %arg7[%c0_11, %c0_12], %30 {strides = array<i32>} : memref<96x128xbf16, #tpu.memory_space<vmem>>, vector<96x128xbf16>,
    return
  }
  func.func @transform_0(%arg0: i32) -> (i32, i32) {
    %c0_i32 = arith.constant 0 : i32
    %c0_i32_0 = arith.constant 0 : i32
    %c0_i32_1 = arith.constant 0 : i32
    return %c0_i32, %c0_i32_0 : i32, i32
  }
  func.func @transform_1(%arg0: i32) -> (i32, i32) {
    %c0_i32 = arith.constant 0 : i32
    %c0_i32_0 = arith.constant 0 : i32
    %c0_i32_1 = arith.constant 0 : i32
    return %c0_i32, %c0_i32_0 : i32, i32
  }
  func.func @transform_2(%arg0: i32) -> (i32, i32) {
    %c0_i32 = arith.constant 0 : i32
    %c0_i32_0 = arith.constant 0 : i32
    %c0_i32_1 = arith.constant 0 : i32
    return %c0_i32, %c0_i32_0 : i32, i32
  }
  func.func @transform_3(%arg0: i32) -> (i32, i32) {
    %c0_i32 = arith.constant 0 : i32
    %c0_i32_0 = arith.constant 0 : i32
    %c0_i32_1 = arith.constant 0 : i32
    return %c0_i32, %c0_i32_0 : i32, i32
  }
  func.func @transform_4(%arg0: i32) -> (i32, i32) {
    %c0_i32 = arith.constant 0 : i32
    %c0_i32_0 = arith.constant 0 : i32
    return %arg0, %c0_i32 : i32, i32
  }
  func.func @transform_5(%arg0: i32) -> (i32, i32) {
    %c0_i32 = arith.constant 0 : i32
    %c0_i32_0 = arith.constant 0 : i32
    return %arg0, %c0_i32 : i32, i32
  }
  func.func @transform_6(%arg0: i32) -> (i32, i32) {
    %c0_i32 = arith.constant 0 : i32
    %c0_i32_0 = arith.constant 0 : i32
    return %arg0, %c0_i32 : i32, i32
  }
}

module attributes {stable_mosaic.version = 11 : i64} {
  func.func @_mm_dual_kernel(%arg0: i32, %arg1: memref<32x1152xbf16, #tpu.memory_space<vmem>>, %arg2: memref<1152x128xbf16, #tpu.memory_space<vmem>>, %arg3: memref<1x128xf32, #tpu.memory_space<vmem>>, %arg4: memref<1x128xf32, #tpu.memory_space<vmem>>, %arg5: memref<128x128xbf16, #tpu.memory_space<vmem>>, %arg6: memref<1x128xf32, #tpu.memory_space<vmem>>, %arg7: memref<1x128xf32, #tpu.memory_space<vmem>>, %arg8: memref<32x128xbf16, #tpu.memory_space<vmem>>, %arg9: memref<32x128xbf16, #tpu.memory_space<vmem>>) attributes {dimension_semantics = [#tpu.dimension_semantics<parallel>], iteration_bounds = array<i64: 1>, scalar_prefetch = 0 : i64, scratch_operands = 0 : i64, tpu.core_type = #tpu.core_type<tc>, window_params = [{transform_indices = @transform_0, window_bounds = array<i64: 32, 1152>}, {pipeline_mode = #tpu.pipeline_mode<synchronous>, transform_indices = @transform_1, window_bounds = array<i64: 1152, 128>}, {pipeline_mode = #tpu.pipeline_mode<synchronous>, transform_indices = @transform_2, window_bounds = array<i64: 1, 128>}, {pipeline_mode = #tpu.pipeline_mode<synchronous>, transform_indices = @transform_3, window_bounds = array<i64: 1, 128>}, {pipeline_mode = #tpu.pipeline_mode<synchronous>, transform_indices = @transform_4, window_bounds = array<i64: 128, 128>}, {pipeline_mode = #tpu.pipeline_mode<synchronous>, transform_indices = @transform_5, window_bounds = array<i64: 1, 128>}, {pipeline_mode = #tpu.pipeline_mode<synchronous>, transform_indices = @transform_6, window_bounds = array<i64: 1, 128>}, {transform_indices = @transform_7, window_bounds = array<i64: 32, 128>}, {transform_indices = @transform_8, window_bounds = array<i64: 32, 128>}]} {
    %c0 = arith.constant 0 : index
    %c0_0 = arith.constant 0 : index
    %0 = vector.load %arg1[%c0, %c0_0] : memref<32x1152xbf16, #tpu.memory_space<vmem>>, vector<32x1152xbf16>
    %c0_1 = arith.constant 0 : index
    %c0_2 = arith.constant 0 : index
    %1 = vector.load %arg2[%c0_1, %c0_2] : memref<1152x128xbf16, #tpu.memory_space<vmem>>, vector<1152x128xbf16>
    %cst = arith.constant dense<0.000000e+00> : vector<32x128xf32>
    %2 = tpu.matmul %0, %1, %cst {dimension_numbers = #tpu.dot_dimension_numbers<[1], [0], [0], [1], [0, 0, 1, 1], [], []>} : vector<32x1152xbf16>, vector<1152x128xbf16>, vector<32x128xf32> -> vector<32x128xf32>
    %c0_3 = arith.constant 0 : index
    %c0_4 = arith.constant 0 : index
    %3 = vector.load %arg3[%c0_3, %c0_4] : memref<1x128xf32, #tpu.memory_space<vmem>>, vector<1x128xf32>
    %4 = vector.broadcast %3 : vector<1x128xf32> to vector<32x128xf32>
    %5 = arith.mulf %2, %4 : vector<32x128xf32>
    %c0_5 = arith.constant 0 : index
    %c0_6 = arith.constant 0 : index
    %6 = vector.load %arg4[%c0_5, %c0_6] : memref<1x128xf32, #tpu.memory_space<vmem>>, vector<1x128xf32>
    %7 = vector.broadcast %6 : vector<1x128xf32> to vector<32x128xf32>
    %8 = arith.addf %5, %7 : vector<32x128xf32>
    %cst_7 = arith.constant 0.000000e+00 : f32
    %9 = vector.broadcast %cst_7 : f32 to vector<32x128xf32>
    %10 = arith.maximumf %8, %9 : vector<32x128xf32>
    %11 = arith.truncf %10 : vector<32x128xf32> to vector<32x128xbf16>
    %c0_8 = arith.constant 0 : index
    %c0_9 = arith.constant 0 : index
    %12 = vector.load %arg8[%c0_8, %c0_9] : memref<32x128xbf16, #tpu.memory_space<vmem>>, vector<32x128xbf16>
    tpu.vector_store %arg8[%c0_8, %c0_9], %11 {strides = array<i32>} : memref<32x128xbf16, #tpu.memory_space<vmem>>, vector<32x128xbf16>,
    %13 = vector.extract_strided_slice %0 {offsets = [0, 512], sizes = [32, 128], strides = [1, 1]} : vector<32x1152xbf16> to vector<32x128xbf16>
    %c0_10 = arith.constant 0 : index
    %c0_11 = arith.constant 0 : index
    %14 = vector.load %arg5[%c0_10, %c0_11] : memref<128x128xbf16, #tpu.memory_space<vmem>>, vector<128x128xbf16>
    %cst_12 = arith.constant dense<0.000000e+00> : vector<32x128xf32>
    %15 = tpu.matmul %13, %14, %cst_12 {dimension_numbers = #tpu.dot_dimension_numbers<[1], [0], [0], [1], [0, 0, 1, 1], [], []>} : vector<32x128xbf16>, vector<128x128xbf16>, vector<32x128xf32> -> vector<32x128xf32>
    %c0_13 = arith.constant 0 : index
    %c0_14 = arith.constant 0 : index
    %16 = vector.load %arg6[%c0_13, %c0_14] : memref<1x128xf32, #tpu.memory_space<vmem>>, vector<1x128xf32>
    %17 = vector.broadcast %16 : vector<1x128xf32> to vector<32x128xf32>
    %18 = arith.mulf %15, %17 : vector<32x128xf32>
    %c0_15 = arith.constant 0 : index
    %c0_16 = arith.constant 0 : index
    %19 = vector.load %arg7[%c0_15, %c0_16] : memref<1x128xf32, #tpu.memory_space<vmem>>, vector<1x128xf32>
    %20 = vector.broadcast %19 : vector<1x128xf32> to vector<32x128xf32>
    %21 = arith.addf %18, %20 : vector<32x128xf32>
    %22 = arith.truncf %21 : vector<32x128xf32> to vector<32x128xbf16>
    %c0_17 = arith.constant 0 : index
    %c0_18 = arith.constant 0 : index
    %23 = vector.load %arg9[%c0_17, %c0_18] : memref<32x128xbf16, #tpu.memory_space<vmem>>, vector<32x128xbf16>
    tpu.vector_store %arg9[%c0_17, %c0_18], %22 {strides = array<i32>} : memref<32x128xbf16, #tpu.memory_space<vmem>>, vector<32x128xbf16>,
    return
  }
  func.func @transform_0(%arg0: i32) -> (i32, i32) {
    %c0_i32 = arith.constant 0 : i32
    %c0_i32_0 = arith.constant 0 : i32
    return %arg0, %c0_i32 : i32, i32
  }
  func.func @transform_1(%arg0: i32) -> (i32, i32) {
    %c0_i32 = arith.constant 0 : i32
    %c0_i32_0 = arith.constant 0 : i32
    %c0_i32_1 = arith.constant 0 : i32
    return %c0_i32, %c0_i32_0 : i32, i32
  }
  func.func @transform_2(%arg0: i32) -> (i32, i32) {
    %c0_i32 = arith.constant 0 : i32
    %c0_i32_0 = arith.constant 0 : i32
    %c0_i32_1 = arith.constant 0 : i32
    return %c0_i32, %c0_i32_0 : i32, i32
  }
  func.func @transform_3(%arg0: i32) -> (i32, i32) {
    %c0_i32 = arith.constant 0 : i32
    %c0_i32_0 = arith.constant 0 : i32
    %c0_i32_1 = arith.constant 0 : i32
    return %c0_i32, %c0_i32_0 : i32, i32
  }
  func.func @transform_4(%arg0: i32) -> (i32, i32) {
    %c0_i32 = arith.constant 0 : i32
    %c0_i32_0 = arith.constant 0 : i32
    %c0_i32_1 = arith.constant 0 : i32
    return %c0_i32, %c0_i32_0 : i32, i32
  }
  func.func @transform_5(%arg0: i32) -> (i32, i32) {
    %c0_i32 = arith.constant 0 : i32
    %c0_i32_0 = arith.constant 0 : i32
    %c0_i32_1 = arith.constant 0 : i32
    return %c0_i32, %c0_i32_0 : i32, i32
  }
  func.func @transform_6(%arg0: i32) -> (i32, i32) {
    %c0_i32 = arith.constant 0 : i32
    %c0_i32_0 = arith.constant 0 : i32
    %c0_i32_1 = arith.constant 0 : i32
    return %c0_i32, %c0_i32_0 : i32, i32
  }
  func.func @transform_7(%arg0: i32) -> (i32, i32) {
    %c0_i32 = arith.constant 0 : i32
    %c0_i32_0 = arith.constant 0 : i32
    return %arg0, %c0_i32 : i32, i32
  }
  func.func @transform_8(%arg0: i32) -> (i32, i32) {
    %c0_i32 = arith.constant 0 : i32
    %c0_i32_0 = arith.constant 0 : i32
    return %arg0, %c0_i32 : i32, i32
  }
}

module attributes {stable_mosaic.version = 11 : i64} {
  func.func @_mm_dual_kernel(%arg0: i32, %arg1: memref<8x1152xbf16, #tpu.memory_space<vmem>>, %arg2: memref<1152x128xbf16, #tpu.memory_space<vmem>>, %arg3: memref<1x128xf32, #tpu.memory_space<vmem>>, %arg4: memref<1x128xf32, #tpu.memory_space<vmem>>, %arg5: memref<128x128xbf16, #tpu.memory_space<vmem>>, %arg6: memref<1x128xf32, #tpu.memory_space<vmem>>, %arg7: memref<1x128xf32, #tpu.memory_space<vmem>>, %arg8: memref<8x128xbf16, #tpu.memory_space<vmem>>, %arg9: memref<8x128xbf16, #tpu.memory_space<vmem>>) attributes {dimension_semantics = [#tpu.dimension_semantics<parallel>], iteration_bounds = array<i64: 1>, scalar_prefetch = 0 : i64, scratch_operands = 0 : i64, tpu.core_type = #tpu.core_type<tc>, window_params = [{transform_indices = @transform_0, window_bounds = array<i64: 8, 1152>}, {pipeline_mode = #tpu.pipeline_mode<synchronous>, transform_indices = @transform_1, window_bounds = array<i64: 1152, 128>}, {pipeline_mode = #tpu.pipeline_mode<synchronous>, transform_indices = @transform_2, window_bounds = array<i64: 1, 128>}, {pipeline_mode = #tpu.pipeline_mode<synchronous>, transform_indices = @transform_3, window_bounds = array<i64: 1, 128>}, {pipeline_mode = #tpu.pipeline_mode<synchronous>, transform_indices = @transform_4, window_bounds = array<i64: 128, 128>}, {pipeline_mode = #tpu.pipeline_mode<synchronous>, transform_indices = @transform_5, window_bounds = array<i64: 1, 128>}, {pipeline_mode = #tpu.pipeline_mode<synchronous>, transform_indices = @transform_6, window_bounds = array<i64: 1, 128>}, {transform_indices = @transform_7, window_bounds = array<i64: 8, 128>}, {transform_indices = @transform_8, window_bounds = array<i64: 8, 128>}]} {
    %c0 = arith.constant 0 : index
    %c0_0 = arith.constant 0 : index
    %0 = vector.load %arg1[%c0, %c0_0] : memref<8x1152xbf16, #tpu.memory_space<vmem>>, vector<8x1152xbf16>
    %c0_1 = arith.constant 0 : index
    %c0_2 = arith.constant 0 : index
    %1 = vector.load %arg2[%c0_1, %c0_2] : memref<1152x128xbf16, #tpu.memory_space<vmem>>, vector<1152x128xbf16>
    %cst = arith.constant dense<0.000000e+00> : vector<8x128xf32>
    %2 = tpu.matmul %0, %1, %cst {dimension_numbers = #tpu.dot_dimension_numbers<[1], [0], [0], [1], [0, 0, 1, 1], [], []>} : vector<8x1152xbf16>, vector<1152x128xbf16>, vector<8x128xf32> -> vector<8x128xf32>
    %c0_3 = arith.constant 0 : index
    %c0_4 = arith.constant 0 : index
    %3 = vector.load %arg3[%c0_3, %c0_4] : memref<1x128xf32, #tpu.memory_space<vmem>>, vector<1x128xf32>
    %4 = vector.broadcast %3 : vector<1x128xf32> to vector<8x128xf32>
    %5 = arith.mulf %2, %4 : vector<8x128xf32>
    %c0_5 = arith.constant 0 : index
    %c0_6 = arith.constant 0 : index
    %6 = vector.load %arg4[%c0_5, %c0_6] : memref<1x128xf32, #tpu.memory_space<vmem>>, vector<1x128xf32>
    %7 = vector.broadcast %6 : vector<1x128xf32> to vector<8x128xf32>
    %8 = arith.addf %5, %7 : vector<8x128xf32>
    %cst_7 = arith.constant 0.000000e+00 : f32
    %9 = vector.broadcast %cst_7 : f32 to vector<8x128xf32>
    %10 = arith.maximumf %8, %9 : vector<8x128xf32>
    %11 = arith.truncf %10 : vector<8x128xf32> to vector<8x128xbf16>
    %c0_8 = arith.constant 0 : index
    %c0_9 = arith.constant 0 : index
    %12 = vector.load %arg8[%c0_8, %c0_9] : memref<8x128xbf16, #tpu.memory_space<vmem>>, vector<8x128xbf16>
    tpu.vector_store %arg8[%c0_8, %c0_9], %11 {strides = array<i32>} : memref<8x128xbf16, #tpu.memory_space<vmem>>, vector<8x128xbf16>,
    %13 = vector.extract_strided_slice %0 {offsets = [0, 512], sizes = [8, 128], strides = [1, 1]} : vector<8x1152xbf16> to vector<8x128xbf16>
    %c0_10 = arith.constant 0 : index
    %c0_11 = arith.constant 0 : index
    %14 = vector.load %arg5[%c0_10, %c0_11] : memref<128x128xbf16, #tpu.memory_space<vmem>>, vector<128x128xbf16>
    %cst_12 = arith.constant dense<0.000000e+00> : vector<8x128xf32>
    %15 = tpu.matmul %13, %14, %cst_12 {dimension_numbers = #tpu.dot_dimension_numbers<[1], [0], [0], [1], [0, 0, 1, 1], [], []>} : vector<8x128xbf16>, vector<128x128xbf16>, vector<8x128xf32> -> vector<8x128xf32>
    %c0_13 = arith.constant 0 : index
    %c0_14 = arith.constant 0 : index
    %16 = vector.load %arg6[%c0_13, %c0_14] : memref<1x128xf32, #tpu.memory_space<vmem>>, vector<1x128xf32>
    %17 = vector.broadcast %16 : vector<1x128xf32> to vector<8x128xf32>
    %18 = arith.mulf %15, %17 : vector<8x128xf32>
    %c0_15 = arith.constant 0 : index
    %c0_16 = arith.constant 0 : index
    %19 = vector.load %arg7[%c0_15, %c0_16] : memref<1x128xf32, #tpu.memory_space<vmem>>, vector<1x128xf32>
    %20 = vector.broadcast %19 : vector<1x128xf32> to vector<8x128xf32>
    %21 = arith.addf %18, %20 : vector<8x128xf32>
    %22 = arith.truncf %21 : vector<8x128xf32> to vector<8x128xbf16>
    %c0_17 = arith.constant 0 : index
    %c0_18 = arith.constant 0 : index
    %23 = vector.load %arg9[%c0_17, %c0_18] : memref<8x128xbf16, #tpu.memory_space<vmem>>, vector<8x128xbf16>
    tpu.vector_store %arg9[%c0_17, %c0_18], %22 {strides = array<i32>} : memref<8x128xbf16, #tpu.memory_space<vmem>>, vector<8x128xbf16>,
    return
  }
  func.func @transform_0(%arg0: i32) -> (i32, i32) {
    %c0_i32 = arith.constant 0 : i32
    %c0_i32_0 = arith.constant 0 : i32
    return %arg0, %c0_i32 : i32, i32
  }
  func.func @transform_1(%arg0: i32) -> (i32, i32) {
    %c0_i32 = arith.constant 0 : i32
    %c0_i32_0 = arith.constant 0 : i32
    %c0_i32_1 = arith.constant 0 : i32
    return %c0_i32, %c0_i32_0 : i32, i32
  }
  func.func @transform_2(%arg0: i32) -> (i32, i32) {
    %c0_i32 = arith.constant 0 : i32
    %c0_i32_0 = arith.constant 0 : i32
    %c0_i32_1 = arith.constant 0 : i32
    return %c0_i32, %c0_i32_0 : i32, i32
  }
  func.func @transform_3(%arg0: i32) -> (i32, i32) {
    %c0_i32 = arith.constant 0 : i32
    %c0_i32_0 = arith.constant 0 : i32
    %c0_i32_1 = arith.constant 0 : i32
    return %c0_i32, %c0_i32_0 : i32, i32
  }
  func.func @transform_4(%arg0: i32) -> (i32, i32) {
    %c0_i32 = arith.constant 0 : i32
    %c0_i32_0 = arith.constant 0 : i32
    %c0_i32_1 = arith.constant 0 : i32
    return %c0_i32, %c0_i32_0 : i32, i32
  }
  func.func @transform_5(%arg0: i32) -> (i32, i32) {
    %c0_i32 = arith.constant 0 : i32
    %c0_i32_0 = arith.constant 0 : i32
    %c0_i32_1 = arith.constant 0 : i32
    return %c0_i32, %c0_i32_0 : i32, i32
  }
  func.func @transform_6(%arg0: i32) -> (i32, i32) {
    %c0_i32 = arith.constant 0 : i32
    %c0_i32_0 = arith.constant 0 : i32
    %c0_i32_1 = arith.constant 0 : i32
    return %c0_i32, %c0_i32_0 : i32, i32
  }
  func.func @transform_7(%arg0: i32) -> (i32, i32) {
    %c0_i32 = arith.constant 0 : i32
    %c0_i32_0 = arith.constant 0 : i32
    return %arg0, %c0_i32 : i32, i32
  }
  func.func @transform_8(%arg0: i32) -> (i32, i32) {
    %c0_i32 = arith.constant 0 : i32
    %c0_i32_0 = arith.constant 0 : i32
    return %arg0, %c0_i32 : i32, i32
  }
}

module attributes {stable_mosaic.version = 11 : i64} {
  func.func @_conv_s1_kernel(%arg0: i32, %arg1: memref<88x128xbf16, #tpu.memory_space<vmem>>, %arg2: memref<1152x128xbf16, #tpu.memory_space<vmem>>, %arg3: memref<1x128xf32, #tpu.memory_space<vmem>>, %arg4: memref<1x128xf32, #tpu.memory_space<vmem>>, %arg5: memref<64x1xf32, #tpu.memory_space<vmem>>, %arg6: memref<64x128xbf16, #tpu.memory_space<vmem>>, %arg7: memref<64x128xbf16, #tpu.memory_space<vmem>>) attributes {dimension_semantics = [#tpu.dimension_semantics<parallel>], iteration_bounds = array<i64: 1>, scalar_prefetch = 0 : i64, scratch_operands = 0 : i64, tpu.core_type = #tpu.core_type<tc>, window_params = [{pipeline_mode = #tpu.pipeline_mode<synchronous>, transform_indices = @transform_0, window_bounds = array<i64: 88, 128>}, {pipeline_mode = #tpu.pipeline_mode<synchronous>, transform_indices = @transform_1, window_bounds = array<i64: 1152, 128>}, {pipeline_mode = #tpu.pipeline_mode<synchronous>, transform_indices = @transform_2, window_bounds = array<i64: 1, 128>}, {pipeline_mode = #tpu.pipeline_mode<synchronous>, transform_indices = @transform_3, window_bounds = array<i64: 1, 128>}, {transform_indices = @transform_4, window_bounds = array<i64: 64, 1>}, {transform_indices = @transform_5, window_bounds = array<i64: 64, 128>}, {transform_indices = @transform_6, window_bounds = array<i64: 64, 128>}]} {
    %c64_i32 = arith.constant 64 : i32
    %0 = arith.muli %arg0, %c64_i32 : i32
    %1 = tpu.assume_multiple %0, 64 : i32
    %2 = arith.index_cast %1 : i32 to index
    %c0 = arith.constant 0 : index
    %3 = vector.load %arg1[%2, %c0] : memref<88x128xbf16, #tpu.memory_space<vmem>>, vector<88x128xbf16>
    %4 = vector.extract_strided_slice %3 {offsets = [0, 0], sizes = [64, 128], strides = [1, 1]} : vector<88x128xbf16> to vector<64x128xbf16>
    %5 = vector.extract_strided_slice %3 {offsets = [1, 0], sizes = [64, 128], strides = [1, 1]} : vector<88x128xbf16> to vector<64x128xbf16>
    %6 = vector.extract_strided_slice %3 {offsets = [2, 0], sizes = [64, 128], strides = [1, 1]} : vector<88x128xbf16> to vector<64x128xbf16>
    %7 = vector.extract_strided_slice %3 {offsets = [8, 0], sizes = [64, 128], strides = [1, 1]} : vector<88x128xbf16> to vector<64x128xbf16>
    %8 = vector.extract_strided_slice %3 {offsets = [9, 0], sizes = [64, 128], strides = [1, 1]} : vector<88x128xbf16> to vector<64x128xbf16>
    %9 = vector.extract_strided_slice %3 {offsets = [10, 0], sizes = [64, 128], strides = [1, 1]} : vector<88x128xbf16> to vector<64x128xbf16>
    %10 = vector.extract_strided_slice %3 {offsets = [16, 0], sizes = [64, 128], strides = [1, 1]} : vector<88x128xbf16> to vector<64x128xbf16>
    %11 = vector.extract_strided_slice %3 {offsets = [17, 0], sizes = [64, 128], strides = [1, 1]} : vector<88x128xbf16> to vector<64x128xbf16>
    %12 = vector.extract_strided_slice %3 {offsets = [18, 0], sizes = [64, 128], strides = [1, 1]} : vector<88x128xbf16> to vector<64x128xbf16>
    %13 = tpu.concatenate %4, %5, %6, %7, %8, %9, %10, %11, %12 in 1 : vector<64x128xbf16>, vector<64x128xbf16>, vector<64x128xbf16>, vector<64x128xbf16>, vector<64x128xbf16>, vector<64x128xbf16>, vector<64x128xbf16>, vector<64x128xbf16>, vector<64x128xbf16> -> vector<64x1152xbf16>
    %c0_0 = arith.constant 0 : index
    %c0_1 = arith.constant 0 : index
    %14 = vector.load %arg2[%c0_0, %c0_1] : memref<1152x128xbf16, #tpu.memory_space<vmem>>, vector<1152x128xbf16>
    %cst = arith.constant dense<0.000000e+00> : vector<64x128xf32>
    %15 = tpu.matmul %13, %14, %cst {dimension_numbers = #tpu.dot_dimension_numbers<[1], [0], [0], [1], [0, 0, 1, 1], [], []>} : vector<64x1152xbf16>, vector<1152x128xbf16>, vector<64x128xf32> -> vector<64x128xf32>
    %c0_2 = arith.constant 0 : index
    %c0_3 = arith.constant 0 : index
    %16 = vector.load %arg3[%c0_2, %c0_3] : memref<1x128xf32, #tpu.memory_space<vmem>>, vector<1x128xf32>
    %17 = vector.broadcast %16 : vector<1x128xf32> to vector<64x128xf32>
    %18 = arith.mulf %15, %17 : vector<64x128xf32>
    %c0_4 = arith.constant 0 : index
    %c0_5 = arith.constant 0 : index
    %19 = vector.load %arg4[%c0_4, %c0_5] : memref<1x128xf32, #tpu.memory_space<vmem>>, vector<1x128xf32>
    %20 = vector.broadcast %19 : vector<1x128xf32> to vector<64x128xf32>
    %21 = arith.addf %18, %20 : vector<64x128xf32>
    %c0_6 = arith.constant 0 : index
    %c0_7 = arith.constant 0 : index
    %22 = vector.load %arg6[%c0_6, %c0_7] : memref<64x128xbf16, #tpu.memory_space<vmem>>, vector<64x128xbf16>
    %23 = arith.extf %22 : vector<64x128xbf16> to vector<64x128xf32>
    %24 = arith.addf %21, %23 : vector<64x128xf32>
    %cst_8 = arith.constant 0.000000e+00 : f32
    %25 = vector.broadcast %cst_8 : f32 to vector<64x128xf32>
    %26 = arith.maximumf %24, %25 : vector<64x128xf32>
    %c0_9 = arith.constant 0 : index
    %c0_10 = arith.constant 0 : index
    %27 = vector.load %arg5[%c0_9, %c0_10] : memref<64x1xf32, #tpu.memory_space<vmem>>, vector<64x1xf32>
    %28 = vector.broadcast %27 : vector<64x1xf32> to vector<64x128xf32>
    %29 = arith.mulf %26, %28 : vector<64x128xf32>
    %30 = arith.truncf %29 : vector<64x128xf32> to vector<64x128xbf16>
    %c0_11 = arith.constant 0 : index
    %c0_12 = arith.constant 0 : index
    %31 = vector.load %arg7[%c0_11, %c0_12] : memref<64x128xbf16, #tpu.memory_space<vmem>>, vector<64x128xbf16>
    tpu.vector_store %arg7[%c0_11, %c0_12], %30 {strides = array<i32>} : memref<64x128xbf16, #tpu.memory_space<vmem>>, vector<64x128xbf16>,
    return
  }
  func.func @transform_0(%arg0: i32) -> (i32, i32) {
    %c0_i32 = arith.constant 0 : i32
    %c0_i32_0 = arith.constant 0 : i32
    %c0_i32_1 = arith.constant 0 : i32
    return %c0_i32, %c0_i32_0 : i32, i32
  }
  func.func @transform_1(%arg0: i32) -> (i32, i32) {
    %c0_i32 = arith.constant 0 : i32
    %c0_i32_0 = arith.constant 0 : i32
    %c0_i32_1 = arith.constant 0 : i32
    return %c0_i32, %c0_i32_0 : i32, i32
  }
  func.func @transform_2(%arg0: i32) -> (i32, i32) {
    %c0_i32 = arith.constant 0 : i32
    %c0_i32_0 = arith.constant 0 : i32
    %c0_i32_1 = arith.constant 0 : i32
    return %c0_i32, %c0_i32_0 : i32, i32
  }
  func.func @transform_3(%arg0: i32) -> (i32, i32) {
    %c0_i32 = arith.constant 0 : i32
    %c0_i32_0 = arith.constant 0 : i32
    %c0_i32_1 = arith.constant 0 : i32
    return %c0_i32, %c0_i32_0 : i32, i32
  }
  func.func @transform_4(%arg0: i32) -> (i32, i32) {
    %c0_i32 = arith.constant 0 : i32
    %c0_i32_0 = arith.constant 0 : i32
    return %arg0, %c0_i32 : i32, i32
  }
  func.func @transform_5(%arg0: i32) -> (i32, i32) {
    %c0_i32 = arith.constant 0 : i32
    %c0_i32_0 = arith.constant 0 : i32
    return %arg0, %c0_i32 : i32, i32
  }
  func.func @transform_6(%arg0: i32) -> (i32, i32) {
    %c0_i32 = arith.constant 0 : i32
    %c0_i32_0 = arith.constant 0 : i32
    return %arg0, %c0_i32 : i32, i32
  }
}

module attributes {stable_mosaic.version = 11 : i64} {
  func.func @_conv_s1_kernel(%arg0: i32, %arg1: memref<72x128xbf16, #tpu.memory_space<vmem>>, %arg2: memref<1152x128xbf16, #tpu.memory_space<vmem>>, %arg3: memref<1x128xf32, #tpu.memory_space<vmem>>, %arg4: memref<1x128xf32, #tpu.memory_space<vmem>>, %arg5: memref<48x1xf32, #tpu.memory_space<vmem>>, %arg6: memref<48x128xbf16, #tpu.memory_space<vmem>>, %arg7: memref<48x128xbf16, #tpu.memory_space<vmem>>) attributes {dimension_semantics = [#tpu.dimension_semantics<parallel>], iteration_bounds = array<i64: 1>, scalar_prefetch = 0 : i64, scratch_operands = 0 : i64, tpu.core_type = #tpu.core_type<tc>, window_params = [{pipeline_mode = #tpu.pipeline_mode<synchronous>, transform_indices = @transform_0, window_bounds = array<i64: 72, 128>}, {pipeline_mode = #tpu.pipeline_mode<synchronous>, transform_indices = @transform_1, window_bounds = array<i64: 1152, 128>}, {pipeline_mode = #tpu.pipeline_mode<synchronous>, transform_indices = @transform_2, window_bounds = array<i64: 1, 128>}, {pipeline_mode = #tpu.pipeline_mode<synchronous>, transform_indices = @transform_3, window_bounds = array<i64: 1, 128>}, {transform_indices = @transform_4, window_bounds = array<i64: 48, 1>}, {transform_indices = @transform_5, window_bounds = array<i64: 48, 128>}, {transform_indices = @transform_6, window_bounds = array<i64: 48, 128>}]} {
    %c48_i32 = arith.constant 48 : i32
    %0 = arith.muli %arg0, %c48_i32 : i32
    %1 = tpu.assume_multiple %0, 48 : i32
    %2 = arith.index_cast %1 : i32 to index
    %c0 = arith.constant 0 : index
    %3 = vector.load %arg1[%2, %c0] : memref<72x128xbf16, #tpu.memory_space<vmem>>, vector<72x128xbf16>
    %4 = vector.extract_strided_slice %3 {offsets = [0, 0], sizes = [48, 128], strides = [1, 1]} : vector<72x128xbf16> to vector<48x128xbf16>
    %5 = vector.extract_strided_slice %3 {offsets = [1, 0], sizes = [48, 128], strides = [1, 1]} : vector<72x128xbf16> to vector<48x128xbf16>
    %6 = vector.extract_strided_slice %3 {offsets = [2, 0], sizes = [48, 128], strides = [1, 1]} : vector<72x128xbf16> to vector<48x128xbf16>
    %7 = vector.extract_strided_slice %3 {offsets = [8, 0], sizes = [48, 128], strides = [1, 1]} : vector<72x128xbf16> to vector<48x128xbf16>
    %8 = vector.extract_strided_slice %3 {offsets = [9, 0], sizes = [48, 128], strides = [1, 1]} : vector<72x128xbf16> to vector<48x128xbf16>
    %9 = vector.extract_strided_slice %3 {offsets = [10, 0], sizes = [48, 128], strides = [1, 1]} : vector<72x128xbf16> to vector<48x128xbf16>
    %10 = vector.extract_strided_slice %3 {offsets = [16, 0], sizes = [48, 128], strides = [1, 1]} : vector<72x128xbf16> to vector<48x128xbf16>
    %11 = vector.extract_strided_slice %3 {offsets = [17, 0], sizes = [48, 128], strides = [1, 1]} : vector<72x128xbf16> to vector<48x128xbf16>
    %12 = vector.extract_strided_slice %3 {offsets = [18, 0], sizes = [48, 128], strides = [1, 1]} : vector<72x128xbf16> to vector<48x128xbf16>
    %13 = tpu.concatenate %4, %5, %6, %7, %8, %9, %10, %11, %12 in 1 : vector<48x128xbf16>, vector<48x128xbf16>, vector<48x128xbf16>, vector<48x128xbf16>, vector<48x128xbf16>, vector<48x128xbf16>, vector<48x128xbf16>, vector<48x128xbf16>, vector<48x128xbf16> -> vector<48x1152xbf16>
    %c0_0 = arith.constant 0 : index
    %c0_1 = arith.constant 0 : index
    %14 = vector.load %arg2[%c0_0, %c0_1] : memref<1152x128xbf16, #tpu.memory_space<vmem>>, vector<1152x128xbf16>
    %cst = arith.constant dense<0.000000e+00> : vector<48x128xf32>
    %15 = tpu.matmul %13, %14, %cst {dimension_numbers = #tpu.dot_dimension_numbers<[1], [0], [0], [1], [0, 0, 1, 1], [], []>} : vector<48x1152xbf16>, vector<1152x128xbf16>, vector<48x128xf32> -> vector<48x128xf32>
    %c0_2 = arith.constant 0 : index
    %c0_3 = arith.constant 0 : index
    %16 = vector.load %arg3[%c0_2, %c0_3] : memref<1x128xf32, #tpu.memory_space<vmem>>, vector<1x128xf32>
    %17 = vector.broadcast %16 : vector<1x128xf32> to vector<48x128xf32>
    %18 = arith.mulf %15, %17 : vector<48x128xf32>
    %c0_4 = arith.constant 0 : index
    %c0_5 = arith.constant 0 : index
    %19 = vector.load %arg4[%c0_4, %c0_5] : memref<1x128xf32, #tpu.memory_space<vmem>>, vector<1x128xf32>
    %20 = vector.broadcast %19 : vector<1x128xf32> to vector<48x128xf32>
    %21 = arith.addf %18, %20 : vector<48x128xf32>
    %c0_6 = arith.constant 0 : index
    %c0_7 = arith.constant 0 : index
    %22 = vector.load %arg6[%c0_6, %c0_7] : memref<48x128xbf16, #tpu.memory_space<vmem>>, vector<48x128xbf16>
    %23 = arith.extf %22 : vector<48x128xbf16> to vector<48x128xf32>
    %24 = arith.addf %21, %23 : vector<48x128xf32>
    %cst_8 = arith.constant 0.000000e+00 : f32
    %25 = vector.broadcast %cst_8 : f32 to vector<48x128xf32>
    %26 = arith.maximumf %24, %25 : vector<48x128xf32>
    %c0_9 = arith.constant 0 : index
    %c0_10 = arith.constant 0 : index
    %27 = vector.load %arg5[%c0_9, %c0_10] : memref<48x1xf32, #tpu.memory_space<vmem>>, vector<48x1xf32>
    %28 = vector.broadcast %27 : vector<48x1xf32> to vector<48x128xf32>
    %29 = arith.mulf %26, %28 : vector<48x128xf32>
    %30 = arith.truncf %29 : vector<48x128xf32> to vector<48x128xbf16>
    %c0_11 = arith.constant 0 : index
    %c0_12 = arith.constant 0 : index
    %31 = vector.load %arg7[%c0_11, %c0_12] : memref<48x128xbf16, #tpu.memory_space<vmem>>, vector<48x128xbf16>
    tpu.vector_store %arg7[%c0_11, %c0_12], %30 {strides = array<i32>} : memref<48x128xbf16, #tpu.memory_space<vmem>>, vector<48x128xbf16>,
    return
  }
  func.func @transform_0(%arg0: i32) -> (i32, i32) {
    %c0_i32 = arith.constant 0 : i32
    %c0_i32_0 = arith.constant 0 : i32
    %c0_i32_1 = arith.constant 0 : i32
    return %c0_i32, %c0_i32_0 : i32, i32
  }
  func.func @transform_1(%arg0: i32) -> (i32, i32) {
    %c0_i32 = arith.constant 0 : i32
    %c0_i32_0 = arith.constant 0 : i32
    %c0_i32_1 = arith.constant 0 : i32
    return %c0_i32, %c0_i32_0 : i32, i32
  }
  func.func @transform_2(%arg0: i32) -> (i32, i32) {
    %c0_i32 = arith.constant 0 : i32
    %c0_i32_0 = arith.constant 0 : i32
    %c0_i32_1 = arith.constant 0 : i32
    return %c0_i32, %c0_i32_0 : i32, i32
  }
  func.func @transform_3(%arg0: i32) -> (i32, i32) {
    %c0_i32 = arith.constant 0 : i32
    %c0_i32_0 = arith.constant 0 : i32
    %c0_i32_1 = arith.constant 0 : i32
    return %c0_i32, %c0_i32_0 : i32, i32
  }
  func.func @transform_4(%arg0: i32) -> (i32, i32) {
    %c0_i32 = arith.constant 0 : i32
    %c0_i32_0 = arith.constant 0 : i32
    return %arg0, %c0_i32 : i32, i32
  }
  func.func @transform_5(%arg0: i32) -> (i32, i32) {
    %c0_i32 = arith.constant 0 : i32
    %c0_i32_0 = arith.constant 0 : i32
    return %arg0, %c0_i32 : i32, i32
  }
  func.func @transform_6(%arg0: i32) -> (i32, i32) {
    %c0_i32 = arith.constant 0 : i32
    %c0_i32_0 = arith.constant 0 : i32
    return %arg0, %c0_i32 : i32, i32
  }
}

</mosaic_0001>

<llo_original>
// kernel: resnet_embedding_forward.10
$region0: #{resnet_embedding_forward.10}
  #allocation0 [shape = 'u32[]', space=smem, size = 0x4, offset = 0x4, fixed_abs, tag = 'smem constant byte address 0x4 - core index']
  #allocation1 [shape = 'u32[144,128]{1,0:T(1,128)}', space=vmem, size = 0x12000, scoped, tag = 'internal scratch']
  %s0 = inlined_call_operand.vmem [shape: bf16[512,147], index: 0, kind: input, shape index: {}]
  %s1 = inlined_call_operand.vmem [shape: bf16[147,128], index: 1, kind: input, shape index: {}]
  %s2 = inlined_call_operand.vmem [shape: f32[1,128], index: 2, kind: input, shape index: {}]
  %s3 = inlined_call_operand.vmem [shape: f32[1,128], index: 3, kind: input, shape index: {}]
  %s4 = inlined_call_operand.vmem [shape: bf16[512,128], index: 4, kind: output, shape index: {}]
  %s5 = sld [smem:[#allocation0]]
  $region49: #{resnet_embedding_forward.10} parent=0
    _
  %s7 = ssub.s32 1, %s5
  %s8 = scalar_select 0, %s7, %s5
  loop: start=0, step=1, limit=4
  $region2: #{resnet_embedding_forward.10} parent=0 // loop_pre_header
    _
  $region3: #{resnet_embedding_forward.10} parent=0 // loop_header
    %s10 = sphi 0, %s14
    %p11 = scmp.ge.s32.totalorder %s10, 4
    %s20 = sphi 0, %s22
    %s23 = sphi 0, %s20
    %s24 = sphi 0, %s23
    %s40 = sphi 0, %s24
    %s44 = sphi 0, %s44
    %s46 = sphi 0, %s44
    %s47 = sphi 0, %s46
    %s61 = sphi 0, %s47
    %s65 = sphi 0, %s65
    %s67 = sphi 0, %s65
    %s68 = sphi 0, %s67
    %s82 = sphi 0, %s68
    %s86 = sphi 0, %s86
    %s88 = sphi 0, %s86
    %s89 = sphi 0, %s88
    %s103 = sphi 0, %s89
    %s109 = sphi 0, %s111
    %s112 = sphi 0, %s109
    %s113 = sphi 0, %s112
    %s129 = sphi 0, %s113
  $region4: #{resnet_embedding_forward.10} parent=0 // loop_header_branch
    %13 = sbr.rel (%p11) target = $region8
  $region5: #{resnet_embedding_forward.10} parent=0 // loop_body
    %s15 = ssub.s32 %s10, 1
    %s16 = ssub.s32 %s10, 2
    %s17 = sadd.s32 %s10, 1
    %s18 = ssub.s32 %s10, %s17
    %p19 = scmp.eq.s32.totalorder %s18, 0
    %s21 = sadd.s32 %s20, 1
    %s22 = scalar_select %p19, %s20, %s21
    %p25 = pneg %p19
    %p26 = scmp.eq.s32.totalorder %s10, 1
    %p27 = por %p25, %p26
    %p28 = scmp.ne.s32.totalorder %s20, %s23
    %p29 = scmp.eq.s32.totalorder %s10, 0
    %p30 = por %p28, %p29
    %p31 = scmp.ne.s32.totalorder %s20, %s23
    %p32 = scmp.eq.s32.totalorder %s15, 1
    %p33 = por %p31, %p32
    %p34 = scmp.ne.s32.totalorder %s23, %s24
    %p35 = scmp.eq.s32.totalorder %s15, 0
    %p36 = por %p34, %p35
    %p37 = scmp.ne.s32.totalorder %s23, %s24
    %p38 = scmp.eq.s32.totalorder %s16, 1
    %p39 = por %p37, %p38
    %p41 = scmp.ne.s32.totalorder %s24, %s40
    %p42 = scmp.eq.s32.totalorder %s16, 0
    %p43 = por %p41, %p42
    %s45 = sadd.s32 %s44, 1
    %p48 = scmp.eq.s32.totalorder %s10, 1
    %p49 = scmp.ne.s32.totalorder %s44, %s46
    %p50 = scmp.eq.s32.totalorder %s10, 0
    %p51 = por %p49, %p50
    %p52 = scmp.ne.s32.totalorder %s44, %s46
    %p53 = scmp.eq.s32.totalorder %s15, 1
    %p54 = por %p52, %p53
    %p55 = scmp.ne.s32.totalorder %s46, %s47
    %p56 = scmp.eq.s32.totalorder %s15, 0
    %p57 = por %p55, %p56
    %p58 = scmp.ne.s32.totalorder %s46, %s47
    %p59 = scmp.eq.s32.totalorder %s16, 1
    %p60 = por %p58, %p59
    %p62 = scmp.ne.s32.totalorder %s47, %s61
    %p63 = scmp.eq.s32.totalorder %s16, 0
    %p64 = por %p62, %p63
    %s66 = sadd.s32 %s65, 1
    %p69 = scmp.eq.s32.totalorder %s10, 1
    %p70 = scmp.ne.s32.totalorder %s65, %s67
    %p71 = scmp.eq.s32.totalorder %s10, 0
    %p72 = por %p70, %p71
    %p73 = scmp.ne.s32.totalorder %s65, %s67
    %p74 = scmp.eq.s32.totalorder %s15, 1
    %p75 = por %p73, %p74
    %p76 = scmp.ne.s32.totalorder %s67, %s68
    %p77 = scmp.eq.s32.totalorder %s15, 0
    %p78 = por %p76, %p77
    %p79 = scmp.ne.s32.totalorder %s67, %s68
    %p80 = scmp.eq.s32.totalorder %s16, 1
    %p81 = por %p79, %p80
    %p83 = scmp.ne.s32.totalorder %s68, %s82
    %p84 = scmp.eq.s32.totalorder %s16, 0
    %p85 = por %p83, %p84
    %s87 = sadd.s32 %s86, 1
    %p90 = scmp.eq.s32.totalorder %s10, 1
    %p91 = scmp.ne.s32.totalorder %s86, %s88
    %p92 = scmp.eq.s32.totalorder %s10, 0
    %p93 = por %p91, %p92
    %p94 = scmp.ne.s32.totalorder %s86, %s88
    %p95 = scmp.eq.s32.totalorder %s15, 1
    %p96 = por %p94, %p95
    %p97 = scmp.ne.s32.totalorder %s88, %s89
    %p98 = scmp.eq.s32.totalorder %s15, 0
    %p99 = por %p97, %p98
    %p100 = scmp.ne.s32.totalorder %s88, %s89
    %p101 = scmp.eq.s32.totalorder %s16, 1
    %p102 = por %p100, %p101
    %p104 = scmp.ne.s32.totalorder %s89, %s103
    %p105 = scmp.eq.s32.totalorder %s16, 0
    %p106 = por %p104, %p105
    %s107 = ssub.s32 %s10, %s17
    %p108 = scmp.eq.s32.totalorder %s107, 0
    %s110 = sadd.s32 %s109, 1
    %s111 = scalar_select %p108, %s109, %s110
    %p114 = pneg %p108
    %p115 = scmp.eq.s32.totalorder %s10, 1
    %p116 = por %p114, %p115
    %p117 = scmp.ne.s32.totalorder %s109, %s112
    %p118 = scmp.eq.s32.totalorder %s10, 0
    %p119 = por %p117, %p118
    %p120 = scmp.ne.s32.totalorder %s109, %s112
    %p121 = scmp.eq.s32.totalorder %s15, 1
    %p122 = por %p120, %p121
    %p123 = scmp.ne.s32.totalorder %s112, %s113
    %p124 = scmp.eq.s32.totalorder %s15, 0
    %p125 = por %p123, %p124
    %p126 = scmp.ne.s32.totalorder %s112, %s113
    %p127 = scmp.eq.s32.totalorder %s16, 1
    %p128 = por %p126, %p127
    %p130 = scmp.ne.s32.totalorder %s113, %s129
    %p131 = scmp.eq.s32.totalorder %s16, 0
    %p132 = por %p130, %p131
    %p133 = scmp.le.s32.totalorder 1, %s10
    %p134 = scmp.lt.s32.totalorder %s10, 3
    %p135 = pnand %p133, %p134
    %p136 = pneg %p135
    // Predicated region
    $region9: #{resnet_embedding_forward.10} parent=5 // pred_check
      _
    $region10: #{resnet_embedding_forward.10} parent=5 // pred_check_branch
      %138 = sbr.rel (%p135) target = $region12
    $region11: #{resnet_embedding_forward.10} parent=5 // pred_region
      %s139 = ssub.s32 %s10, 1
      // Predicated region
      $region13: #{resnet_embedding_forward.10} parent=11 // pred_check
        %p140 = pneg %p57
      $region14: #{resnet_embedding_forward.10} parent=11 // pred_check_branch
        %142 = sbr.rel (%p140) target = $region16
      $region15: #{resnet_embedding_forward.10} parent=11 // pred_region
        _
      $region16: #{resnet_embedding_forward.10} parent=11 // pred_fallthru
        _
      // Predicated region
      $region17: #{resnet_embedding_forward.10} parent=11 // pred_check
        %p143 = pneg %p78
      $region18: #{resnet_embedding_forward.10} parent=11 // pred_check_branch
        %145 = sbr.rel (%p143) target = $region20
      $region19: #{resnet_embedding_forward.10} parent=11 // pred_region
        _
      $region20: #{resnet_embedding_forward.10} parent=11 // pred_fallthru
        _
      // Predicated region
      $region21: #{resnet_embedding_forward.10} parent=11 // pred_check
        %p146 = pneg %p99
      $region22: #{resnet_embedding_forward.10} parent=11 // pred_check_branch
        %148 = sbr.rel (%p146) target = $region24
      $region23: #{resnet_embedding_forward.10} parent=11 // pred_region
        _
      $region24: #{resnet_embedding_forward.10} parent=11 // pred_fallthru
        _
    $region12: #{resnet_embedding_forward.10} parent=5 // pred_fallthru
      _
    %p149 = scmp.lt.s32.totalorder %s10, 2
    // Predicated region
    $region25: #{resnet_embedding_forward.10} parent=5 // pred_check
      %p150 = pneg %p149
    $region26: #{resnet_embedding_forward.10} parent=5 // pred_check_branch
      %152 = sbr.rel (%p150) target = $region28
    $region27: #{resnet_embedding_forward.10} parent=5 // pred_region
      // Predicated region
      $region29: #{resnet_embedding_forward.10} parent=27 // pred_check
        %p153 = pneg %p30
      $region30: #{resnet_embedding_forward.10} parent=27 // pred_check_branch
        %155 = sbr.rel (%p153) target = $region32
      $region31: #{resnet_embedding_forward.10} parent=27 // pred_region
        %s156 = smul.u32 32, %s10
        %p157 = scmp.lt.s32.totalorder %s156, 63
        %s158 = scalar_select %p157, %s156, 63
        %s159 = smul.addr %s158, 2
        %s160 = smul.addr %s159, 4
        %s161 = scalar_lea.vmem %s0, %s160
        %s162 = smul.u32 32, %s10
      $region32: #{resnet_embedding_forward.10} parent=27 // pred_fallthru
        _
    $region28: #{resnet_embedding_forward.10} parent=5 // pred_fallthru
      _
    %p163 = scmp.le.s32.totalorder 1, %s10
    %p164 = scmp.lt.s32.totalorder %s10, 3
    %p165 = pnand %p163, %p164
    %p166 = pneg %p165
    // Predicated region
    $region33: #{resnet_embedding_forward.10} parent=5 // pred_check
      _
    $region34: #{resnet_embedding_forward.10} parent=5 // pred_check_branch
      %168 = sbr.rel (%p165) target = $region36
    $region35: #{resnet_embedding_forward.10} parent=5 // pred_region
      %s169 = ssub.s32 %s10, 1
      %s170 = smul.u32 32, %s15
      %p171 = scmp.lt.s32.totalorder %s170, 63
      %s172 = scalar_select %p171, %s170, 63
      %s173 = smul.addr %s172, 2
      %s174 = smul.addr %s173, 4
      %s175 = scalar_lea.vmem %s0, %s174
      %p176 = pneg %p36
      %p177 = pneg %p33
      %p178 = pneg %p57
      %p179 = pneg %p54
      %p180 = pneg %p78
      %p181 = pneg %p75
      %p182 = pneg %p99
      %p183 = pneg %p96
      %p184 = pneg %p125
      %p185 = pneg %p122
      %s186 = smul.u32 32, %s15
      %p187 = scmp.lt.s32.totalorder %s186, 63
      %s188 = scalar_select %p187, %s186, 63
      %s189 = smul.addr %s188, 4
      %s190 = scalar_lea.vmem %s4, %s189
      %s191 = smul.u32 32, %s15
      %p192 = scmp.lt.s32.totalorder %s191, 63
      %s193 = scalar_select %p192, %s191, 63
      %s194 = smul.addr %s193, 2
      %s195 = smul.addr %s194, 4
      %s196 = scalar_lea.vmem %s0, %s195
      %s197 = smul.u32 32, %s15
      %s198 = smul.u32 32, %s15
      %p199 = scmp.lt.s32.totalorder %s198, 63
      %s200 = scalar_select %p199, %s198, 63
      %s201 = smul.addr %s200, 4
      %s202 = scalar_lea.vmem %s4, %s201
      %s203 = smul.u32 32, %s15
      %v205 = vld [vmem:[%s196] sm:$0xff]
      %v206 = vld [vmem:[%s196 + $0x8] sm:$0xff]
      %v207 = vld [vmem:[%s196 + $0x10] sm:$0xff]
      %v208 = vld [vmem:[%s196 + $0x18] sm:$0xff]
      %v209 = vld [vmem:[%s196 + $0x20] sm:$0xff]
      %v210 = vld [vmem:[%s196 + $0x28] sm:$0xff]
      %v211 = vld [vmem:[%s196 + $0x30] sm:$0xff]
      %v212 = vld [vmem:[%s196 + $0x38] sm:$0xff]
      %v213 = vld [vmem:[%s196 + $0x40] sm:$0xff]
      %v214 = vld [vmem:[%s196 + $0x48] sm:$0xff]
      %v215 = vld [vmem:[%s196 + $0x50] sm:$0xff]
      %v216 = vld [vmem:[%s196 + $0x58] sm:$0xff]
      %v217 = vld [vmem:[%s196 + $0x60] sm:$0xff]
      %v218 = vld [vmem:[%s196 + $0x68] sm:$0xff]
      %v219 = vld [vmem:[%s196 + $0x70] sm:$0xff]
      %v220 = vld [vmem:[%s196 + $0x78] sm:$0xff]
      %v221 = vld [vmem:[%s196 + $0x80] sm:$0xff]
      %v222 = vld [vmem:[%s196 + $0x88] sm:$0xff]
      %v223 = vld [vmem:[%s196 + $0x90] sm:$0xff]
      %v224 = vld [vmem:[%s196 + $0x98] sm:$0xff]
      %v225 = vld [vmem:[%s196 + $0xa0] sm:$0xff]
      %v226 = vld [vmem:[%s196 + $0xa8] sm:$0xff]
      %v227 = vld [vmem:[%s196 + $0xb0] sm:$0xff]
      %v228 = vld [vmem:[%s196 + $0xb8] sm:$0xff]
      %v229 = vld [vmem:[%s196 + $0xc0] sm:$0xff]
      %v230 = vld [vmem:[%s196 + $0xc8] sm:$0xff]
      %v231 = vld [vmem:[%s196 + $0xd0] sm:$0xff]
      %v232 = vld [vmem:[%s196 + $0xd8] sm:$0xff]
      %v233 = vld [vmem:[%s196 + $0xe0] sm:$0xff]
      %v234 = vld [vmem:[%s196 + $0xe8] sm:$0xff]
      %v235 = vld [vmem:[%s196 + $0xf0] sm:$0xff]
      %v236 = vld [vmem:[%s196 + $0xf8] sm:$0xff]
      %v237 = vld [vmem:[%s1] sm:$0xf]
      %v238 = vld [vmem:[%s1 + $0x4] sm:$0xf]
      %v239 = vld [vmem:[%s1 + $0x8] sm:$0xf]
      %v240 = vld [vmem:[%s1 + $0xc] sm:$0xf]
      %v241 = vld [vmem:[%s1 + $0x10] sm:$0xf]
      %v242 = vld [vmem:[%s1 + $0x14] sm:$0xf]
      %v243 = vld [vmem:[%s1 + $0x18] sm:$0xf]
      %v244 = vld [vmem:[%s1 + $0x1c] sm:$0xf]
      %v245 = vld [vmem:[%s1 + $0x20] sm:$0xf]
      %v246 = vld [vmem:[%s1 + $0x24] sm:$0xf]
      %v247 = vld [vmem:[%s1 + $0x28] sm:$0xf]
      %v248 = vld [vmem:[%s1 + $0x2c] sm:$0xf]
      %v249 = vld [vmem:[%s1 + $0x30] sm:$0xf]
      %v250 = vld [vmem:[%s1 + $0x34] sm:$0xf]
      %v251 = vld [vmem:[%s1 + $0x38] sm:$0xf]
      %v252 = vld [vmem:[%s1 + $0x3c] sm:$0xf]
      %v253 = vld [vmem:[%s1 + $0x40] sm:$0xf]
      %v254 = vld [vmem:[%s1 + $0x44] sm:$0xf]
      %v255 = vld [vmem:[%s1 + $0x48] sm:$0x3]
      %v288 = vunpack.c.l.b16 %v205
      %v289 = vunpack.c.h.b16 %v205
      %v290 = vunpack.c.l.b16 %v206
      %v291 = vunpack.c.h.b16 %v206
      %v292 = vunpack.c.l.b16 %v207
      %v293 = vunpack.c.h.b16 %v207
      %v294 = vunpack.c.l.b16 %v208
      %v295 = vunpack.c.h.b16 %v208
      %v296 = vunpack.c.l.b16 %v209
      %v297 = vunpack.c.h.b16 %v209
      %v298 = vunpack.c.l.b16 %v210
      %v299 = vunpack.c.h.b16 %v210
      %v300 = vunpack.c.l.b16 %v211
      %v301 = vunpack.c.h.b16 %v211
      %v302 = vunpack.c.l.b16 %v212
      %v303 = vunpack.c.h.b16 %v212
      %v304 = vunpack.c.l.b16 %v213
      %v305 = vunpack.c.h.b16 %v213
      %v306 = vunpack.c.l.b16 %v214
      %v307 = vunpack.c.h.b16 %v214
      %v308 = vunpack.c.l.b16 %v215
      %v309 = vunpack.c.h.b16 %v215
      %v310 = vunpack.c.l.b16 %v216
      %v311 = vunpack.c.h.b16 %v216
      %v312 = vunpack.c.l.b16 %v217
      %v313 = vunpack.c.h.b16 %v217
      %v314 = vunpack.c.l.b16 %v218
      %v315 = vunpack.c.h.b16 %v218
      %v316 = vunpack.c.l.b16 %v219
      %v317 = vunpack.c.h.b16 %v219
      %v318 = vunpack.c.l.b16 %v220
      %v319 = vunpack.c.h.b16 %v220
      %v320 = vunpack.c.l.b16 %v221
      %v321 = vunpack.c.h.b16 %v221
      %v322 = vunpack.c.l.b16 %v222
      %v323 = vunpack.c.h.b16 %v222
      %v324 = vunpack.c.l.b16 %v223
      %v325 = vunpack.c.h.b16 %v223
      %v326 = vunpack.c.l.b16 %v224
      %v327 = vunpack.c.h.b16 %v224
      %v328 = vunpack.c.l.b16 %v225
      %v329 = vunpack.c.h.b16 %v225
      %v330 = vunpack.c.l.b16 %v226
      %v331 = vunpack.c.h.b16 %v226
      %v332 = vunpack.c.l.b16 %v227
      %v333 = vunpack.c.h.b16 %v227
      %v334 = vunpack.c.l.b16 %v228
      %v335 = vunpack.c.h.b16 %v228
      %v336 = vunpack.c.l.b16 %v229
      %v337 = vunpack.c.h.b16 %v229
      %v338 = vunpack.c.l.b16 %v230
      %v339 = vunpack.c.h.b16 %v230
      %v340 = vunpack.c.l.b16 %v231
      %v341 = vunpack.c.h.b16 %v231
      %v342 = vunpack.c.l.b16 %v232
      %v343 = vunpack.c.h.b16 %v232
      %v344 = vunpack.c.l.b16 %v233
      %v345 = vunpack.c.h.b16 %v233
      %v346 = vunpack.c.l.b16 %v234
      %v347 = vunpack.c.h.b16 %v234
      %v348 = vunpack.c.l.b16 %v235
      %v349 = vunpack.c.h.b16 %v235
      %v350 = vunpack.c.l.b16 %v236
      %v351 = vunpack.c.h.b16 %v236
      %v352 = vpack.c.b16 %v290, %v288
      %v353 = vpack.c.b16 %v291, %v289
      %v354 = vpack.c.b16 %v294, %v292
      %v355 = vpack.c.b16 %v295, %v293
      %v356 = vpack.c.b16 %v298, %v296
      %v357 = vpack.c.b16 %v299, %v297
      %v358 = vpack.c.b16 %v302, %v300
      %v359 = vpack.c.b16 %v303, %v301
      %v360 = vpack.c.b16 %v306, %v304
      %v361 = vpack.c.b16 %v307, %v305
      %v362 = vpack.c.b16 %v310, %v308
      %v363 = vpack.c.b16 %v311, %v309
      %v364 = vpack.c.b16 %v314, %v312
      %v365 = vpack.c.b16 %v315, %v313
      %v366 = vpack.c.b16 %v318, %v316
      %v367 = vpack.c.b16 %v319, %v317
      %v368 = vpack.c.b16 %v322, %v320
      %v369 = vpack.c.b16 %v323, %v321
      %v370 = vpack.c.b16 %v326, %v324
      %v371 = vpack.c.b16 %v327, %v325
      %v372 = vpack.c.b16 %v330, %v328
      %v373 = vpack.c.b16 %v331, %v329
      %v374 = vpack.c.b16 %v334, %v332
      %v375 = vpack.c.b16 %v335, %v333
      %v376 = vpack.c.b16 %v338, %v336
      %v377 = vpack.c.b16 %v339, %v337
      %v378 = vpack.c.b16 %v342, %v340
      %v379 = vpack.c.b16 %v343, %v341
      %v380 = vpack.c.b16 %v346, %v344
      %v381 = vpack.c.b16 %v347, %v345
      %v382 = vpack.c.b16 %v350, %v348
      %v383 = vpack.c.b16 %v351, %v349
      %v419 = vunpack.c.l.b16 %v237
      %v420 = vunpack.c.l.b16 %v238
      %v421 = vunpack.c.l.b16 %v239
      %v422 = vunpack.c.l.b16 %v240
      %v423 = vunpack.c.l.b16 %v241
      %v424 = vunpack.c.l.b16 %v242
      %v425 = vunpack.c.l.b16 %v243
      %v426 = vunpack.c.l.b16 %v244
      %v427 = vunpack.c.l.b16 %v245
      %v428 = vunpack.c.l.b16 %v246
      %v429 = vunpack.c.l.b16 %v247
      %v430 = vunpack.c.l.b16 %v248
      %v431 = vunpack.c.l.b16 %v249
      %v432 = vunpack.c.l.b16 %v250
      %v433 = vunpack.c.l.b16 %v251
      %v434 = vunpack.c.l.b16 %v252
      %v435 = vunpack.c.l.b16 %v253
      %v436 = vunpack.c.l.b16 %v254
      %v437 = vunpack.c.l.b16 %v255
      %v438 = vpack.c.b16 %v420, %v419
      %v439 = vpack.c.b16 %v422, %v421
      %v440 = vpack.c.b16 %v424, %v423
      %v441 = vpack.c.b16 %v426, %v425
      %v442 = vpack.c.b16 %v428, %v427
      %v443 = vpack.c.b16 %v430, %v429
      %v444 = vpack.c.b16 %v432, %v431
      %v445 = vpack.c.b16 %v434, %v433
      %v446 = vpack.c.b16 %v436, %v435
      %v447 = vpack.c.b16 %v437, %v437
      %vm457 = vcmask 154624
      %v459 = vsel %vm457, %v353, 0
      %v462 = vsel %vm457, %v355, 0
      %v465 = vsel %vm457, %v357, 0
      %v468 = vsel %vm457, %v359, 0
      %v471 = vsel %vm457, %v361, 0
      %v474 = vsel %vm457, %v363, 0
      %v477 = vsel %vm457, %v365, 0
      %v480 = vsel %vm457, %v367, 0
      %v483 = vsel %vm457, %v369, 0
      %v486 = vsel %vm457, %v371, 0
      %v489 = vsel %vm457, %v373, 0
      %v492 = vsel %vm457, %v375, 0
      %v495 = vsel %vm457, %v377, 0
      %v498 = vsel %vm457, %v379, 0
      %v501 = vsel %vm457, %v381, 0
      %v504 = vsel %vm457, %v383, 0
      %vm506 = vcmask 1040384
      %vm507 = vcmask 1041408
      %v508 = vsel %vm506, 4294967295, 65535
      %v509 = vsel %vm507, %v508, 0
      %v511 = vand.u32 %v447, %v509
      %513 = vmatprep.subr.bf16.mxu0 0
      %514 = vmatpush1.bf16.msra.mxu0 %v438
      %515 = vmatprep.subr.bf16.mxu0 0
      %516 = vmatpush1.bf16.msra.mxu0 %v439
      %517 = vmatprep.subr.bf16.mxu0 0
      %518 = vmatpush1.bf16.msra.mxu0 %v440
      %519 = vmatprep.subr.bf16.mxu0 0
      %520 = vmatpush1.bf16.msra.mxu0 %v441
      %521 = vmatprep.subr.bf16.mxu0 0
      %522 = vmatpush1.bf16.msra.mxu0 %v442
      %523 = vmatprep.subr.bf16.mxu0 0
      %524 = vmatpush1.bf16.msra.mxu0 %v443
      %525 = vmatprep.subr.bf16.mxu0 0
      %526 = vmatpush1.bf16.msra.mxu0 %v444
      %527 = vmatprep.subr.bf16.mxu0 0
      %528 = vmatpush1.bf16.msra.mxu0 %v445
      %529 = vmatprep.subr.bf16.mxu0 0
      %530 = vmatpush1.bf16.msra.mxu0 %v446
      %531 = vmatprep.subr.bf16.mxu0 0
      %532 = vmatpush1.bf16.msra.mxu0 %v511
      %533 = vmatprep.subr.bf16.mxu0 0
      %534 = vmatpush1.bf16.msra.mxu0 0
      %535 = vmatprep.subr.bf16.mxu0 0
      %536 = vmatpush1.bf16.msra.mxu0 0
      %537 = vmatprep.subr.bf16.mxu0 0
      %538 = vmatpush1.bf16.msra.mxu0 0
      %539 = vmatprep.subr.bf16.mxu0 0
      %540 = vmatpush1.bf16.msra.mxu0 0
      %541 = vmatprep.subr.bf16.mxu0 0
      %542 = vmatpush1.bf16.msra.mxu0 0
      %543 = vmatprep.subr.bf16.mxu0 0
      %544 = vmatpush1.bf16.msra.mxu0 0
      %545 = vmatprep.mubr.bf16.mxu0 %v459
      %546 = vmatmul.mubr.bf16.gmra.mrb[0].mxu0 %v352
      %v547 = vpop.f32.mrb[0].mxu0
      %v548 = vadd.f32 0.0, %v547
      %v549 = vpop.f32.mrb[0].mxu0
      %v550 = vpop.f32.mrb[0].mxu0
      %v551 = vadd.f32 0.0, %v550
      %v552 = vpop.f32.mrb[0].mxu0
      %553 = vmatprep.mubr.bf16.mxu0 %v462
      %554 = vmatmul.mubr.bf16.gmra.mrb[0].mxu0 %v354
      %v555 = vpop.f32.mrb[0].mxu0
      %v556 = vadd.f32 0.0, %v555
      %v557 = vpop.f32.mrb[0].mxu0
      %v558 = vpop.f32.mrb[0].mxu0
      %v559 = vadd.f32 0.0, %v558
      %v560 = vpop.f32.mrb[0].mxu0
      %561 = vmatprep.mubr.bf16.mxu0 %v465
      %562 = vmatmul.mubr.bf16.gmra.mrb[0].mxu0 %v356
      %v563 = vpop.f32.mrb[0].mxu0
      %v564 = vadd.f32 0.0, %v563
      %v565 = vpop.f32.mrb[0].mxu0
      %v566 = vpop.f32.mrb[0].mxu0
      %v567 = vadd.f32 0.0, %v566
      %v568 = vpop.f32.mrb[0].mxu0
      %569 = vmatprep.mubr.bf16.mxu0 %v468
      %570 = vmatmul.mubr.bf16.gmra.mrb[0].mxu0 %v358
      %v571 = vpop.f32.mrb[0].mxu0
      %v572 = vadd.f32 0.0, %v571
      %v573 = vpop.f32.mrb[0].mxu0
      %v574 = vpop.f32.mrb[0].mxu0
      %v575 = vadd.f32 0.0, %v574
      %v576 = vpop.f32.mrb[0].mxu0
      %577 = vmatprep.mubr.bf16.mxu0 %v471
      %578 = vmatmul.mubr.bf16.gmra.mrb[0].mxu0 %v360
      %v579 = vpop.f32.mrb[0].mxu0
      %v580 = vadd.f32 0.0, %v579
      %v581 = vpop.f32.mrb[0].mxu0
      %v582 = vpop.f32.mrb[0].mxu0
      %v583 = vadd.f32 0.0, %v582
      %v584 = vpop.f32.mrb[0].mxu0
      %585 = vmatprep.mubr.bf16.mxu0 %v474
      %586 = vmatmul.mubr.bf16.gmra.mrb[0].mxu0 %v362
      %v587 = vpop.f32.mrb[0].mxu0
      %v588 = vadd.f32 0.0, %v587
      %v589 = vpop.f32.mrb[0].mxu0
      %v590 = vpop.f32.mrb[0].mxu0
      %v591 = vadd.f32 0.0, %v590
      %v592 = vpop.f32.mrb[0].mxu0
      %593 = vmatprep.mubr.bf16.mxu0 %v477
      %594 = vmatmul.mubr.bf16.gmra.mrb[0].mxu0 %v364
      %v595 = vpop.f32.mrb[0].mxu0
      %v596 = vadd.f32 0.0, %v595
      %v597 = vpop.f32.mrb[0].mxu0
      %v598 = vpop.f32.mrb[0].mxu0
      %v599 = vadd.f32 0.0, %v598
      %v600 = vpop.f32.mrb[0].mxu0
      %601 = vmatprep.mubr.bf16.mxu0 %v480
      %602 = vmatmul.mubr.bf16.gmra.mrb[0].mxu0 %v366
      %v603 = vpop.f32.mrb[0].mxu0
      %v604 = vadd.f32 0.0, %v603
      %v605 = vpop.f32.mrb[0].mxu0
      %v606 = vpop.f32.mrb[0].mxu0
      %v607 = vadd.f32 0.0, %v606
      %v608 = vpop.f32.mrb[0].mxu0
      %609 = vmatprep.mubr.bf16.mxu0 %v483
      %610 = vmatmul.mubr.bf16.gmra.mrb[0].mxu0 %v368
      %v611 = vpop.f32.mrb[0].mxu0
      %v612 = vadd.f32 0.0, %v611
      %v613 = vpop.f32.mrb[0].mxu0
      %v614 = vpop.f32.mrb[0].mxu0
      %v615 = vadd.f32 0.0, %v614
      %v616 = vpop.f32.mrb[0].mxu0
      %617 = vmatprep.mubr.bf16.mxu0 %v486
      %618 = vmatmul.mubr.bf16.gmra.mrb[0].mxu0 %v370
      %v619 = vpop.f32.mrb[0].mxu0
      %v620 = vadd.f32 0.0, %v619
      %v621 = vpop.f32.mrb[0].mxu0
      %v622 = vpop.f32.mrb[0].mxu0
      %v623 = vadd.f32 0.0, %v622
      %v624 = vpop.f32.mrb[0].mxu0
      %625 = vmatprep.mubr.bf16.mxu0 %v489
      %626 = vmatmul.mubr.bf16.gmra.mrb[0].mxu0 %v372
      %v627 = vpop.f32.mrb[0].mxu0
      %v628 = vadd.f32 0.0, %v627
      %v629 = vpop.f32.mrb[0].mxu0
      %v630 = vpop.f32.mrb[0].mxu0
      %v631 = vadd.f32 0.0, %v630
      %v632 = vpop.f32.mrb[0].mxu0
      %633 = vmatprep.mubr.bf16.mxu0 %v492
      %634 = vmatmul.mubr.bf16.gmra.mrb[0].mxu0 %v374
      %v635 = vpop.f32.mrb[0].mxu0
      %v636 = vadd.f32 0.0, %v635
      %v637 = vpop.f32.mrb[0].mxu0
      %v638 = vpop.f32.mrb[0].mxu0
      %v639 = vadd.f32 0.0, %v638
      %v640 = vpop.f32.mrb[0].mxu0
      %641 = vmatprep.mubr.bf16.mxu0 %v495
      %642 = vmatmul.mubr.bf16.gmra.mrb[0].mxu0 %v376
      %v643 = vpop.f32.mrb[0].mxu0
      %v644 = vadd.f32 0.0, %v643
      %v645 = vpop.f32.mrb[0].mxu0
      %v646 = vpop.f32.mrb[0].mxu0
      %v647 = vadd.f32 0.0, %v646
      %v648 = vpop.f32.mrb[0].mxu0
      %649 = vmatprep.mubr.bf16.mxu0 %v498
      %650 = vmatmul.mubr.bf16.gmra.mrb[0].mxu0 %v378
      %v651 = vpop.f32.mrb[0].mxu0
      %v652 = vadd.f32 0.0, %v651
      %v653 = vpop.f32.mrb[0].mxu0
      %v654 = vpop.f32.mrb[0].mxu0
      %v655 = vadd.f32 0.0, %v654
      %v656 = vpop.f32.mrb[0].mxu0
      %657 = vmatprep.mubr.bf16.mxu0 %v501
      %658 = vmatmul.mubr.bf16.gmra.mrb[0].mxu0 %v380
      %v659 = vpop.f32.mrb[0].mxu0
      %v660 = vadd.f32 0.0, %v659
      %v661 = vpop.f32.mrb[0].mxu0
      %v662 = vpop.f32.mrb[0].mxu0
      %v663 = vadd.f32 0.0, %v662
      %v664 = vpop.f32.mrb[0].mxu0
      %665 = vmatprep.mubr.bf16.mxu0 %v504
      %666 = vmatmul.mubr.bf16.gmra.mrb[0].mxu0 %v382
      %v667 = vpop.f32.mrb[0].mxu0
      %v668 = vadd.f32 0.0, %v667
      %v669 = vpop.f32.mrb[0].mxu0
      %v670 = vpop.f32.mrb[0].mxu0
      %v671 = vadd.f32 0.0, %v670
      %v672 = vpop.f32.mrb[0].mxu0
      %673 = vdwg.mxu0
      %v674 = vld [vmem:[%s2] sm:$0x1]
      %v676 = vlaneseq
      %v677 = vshrl.u32 %v676, 7
      %v678 = vsub.s32 0, %v677
      %v679 = vrot.slane %v674, %v678
      %v681 = vmul.f32 %v548, %v679
      %v682 = vmul.f32 %v551, %v679
      %v683 = vmul.f32 %v556, %v679
      %v684 = vmul.f32 %v559, %v679
      %v685 = vmul.f32 %v564, %v679
      %v686 = vmul.f32 %v567, %v679
      %v687 = vmul.f32 %v572, %v679
      %v688 = vmul.f32 %v575, %v679
      %v689 = vmul.f32 %v580, %v679
      %v690 = vmul.f32 %v583, %v679
      %v691 = vmul.f32 %v588, %v679
      %v692 = vmul.f32 %v591, %v679
      %v693 = vmul.f32 %v596, %v679
      %v694 = vmul.f32 %v599, %v679
      %v695 = vmul.f32 %v604, %v679
      %v696 = vmul.f32 %v607, %v679
      %v697 = vmul.f32 %v612, %v679
      %v698 = vmul.f32 %v615, %v679
      %v699 = vmul.f32 %v620, %v679
      %v700 = vmul.f32 %v623, %v679
      %v701 = vmul.f32 %v628, %v679
      %v702 = vmul.f32 %v631, %v679
      %v703 = vmul.f32 %v636, %v679
      %v704 = vmul.f32 %v639, %v679
      %v705 = vmul.f32 %v644, %v679
      %v706 = vmul.f32 %v647, %v679
      %v707 = vmul.f32 %v652, %v679
      %v708 = vmul.f32 %v655, %v679
      %v709 = vmul.f32 %v660, %v679
      %v710 = vmul.f32 %v663, %v679
      %v711 = vmul.f32 %v668, %v679
      %v712 = vmul.f32 %v671, %v679
      %v713 = vld [vmem:[%s3] sm:$0x1]
      %v715 = vlaneseq
      %v716 = vshrl.u32 %v715, 7
      %v717 = vsub.s32 0, %v716
      %v718 = vrot.slane %v713, %v717
      %v720 = vadd.f32 %v681, %v718
      %v721 = vadd.f32 %v682, %v718
      %v722 = vadd.f32 %v683, %v718
      %v723 = vadd.f32 %v684, %v718
      %v724 = vadd.f32 %v685, %v718
      %v725 = vadd.f32 %v686, %v718
      %v726 = vadd.f32 %v687, %v718
      %v727 = vadd.f32 %v688, %v718
      %v728 = vadd.f32 %v689, %v718
      %v729 = vadd.f32 %v690, %v718
      %v730 = vadd.f32 %v691, %v718
      %v731 = vadd.f32 %v692, %v718
      %v732 = vadd.f32 %v693, %v718
      %v733 = vadd.f32 %v694, %v718
      %v734 = vadd.f32 %v695, %v718
      %v735 = vadd.f32 %v696, %v718
      %v736 = vadd.f32 %v697, %v718
      %v737 = vadd.f32 %v698, %v718
      %v738 = vadd.f32 %v699, %v718
      %v739 = vadd.f32 %v700, %v718
      %v740 = vadd.f32 %v701, %v718
      %v741 = vadd.f32 %v702, %v718
      %v742 = vadd.f32 %v703, %v718
      %v743 = vadd.f32 %v704, %v718
      %v744 = vadd.f32 %v705, %v718
      %v745 = vadd.f32 %v706, %v718
      %v746 = vadd.f32 %v707, %v718
      %v747 = vadd.f32 %v708, %v718
      %v748 = vadd.f32 %v709, %v718
      %v749 = vadd.f32 %v710, %v718
      %v750 = vadd.f32 %v711, %v718
      %v751 = vadd.f32 %v712, %v718
      %v752 = vmax.f32 %v720, 0.0
      %v753 = vmax.f32 %v721, 0.0
      %v754 = vmax.f32 %v722, 0.0
      %v755 = vmax.f32 %v723, 0.0
      %v756 = vmax.f32 %v724, 0.0
      %v757 = vmax.f32 %v725, 0.0
      %v758 = vmax.f32 %v726, 0.0
      %v759 = vmax.f32 %v727, 0.0
      %v760 = vmax.f32 %v728, 0.0
      %v761 = vmax.f32 %v729, 0.0
      %v762 = vmax.f32 %v730, 0.0
      %v763 = vmax.f32 %v731, 0.0
      %v764 = vmax.f32 %v732, 0.0
      %v765 = vmax.f32 %v733, 0.0
      %v766 = vmax.f32 %v734, 0.0
      %v767 = vmax.f32 %v735, 0.0
      %v768 = vmax.f32 %v736, 0.0
      %v769 = vmax.f32 %v737, 0.0
      %v770 = vmax.f32 %v738, 0.0
      %v771 = vmax.f32 %v739, 0.0
      %v772 = vmax.f32 %v740, 0.0
      %v773 = vmax.f32 %v741, 0.0
      %v774 = vmax.f32 %v742, 0.0
      %v775 = vmax.f32 %v743, 0.0
      %v776 = vmax.f32 %v744, 0.0
      %v777 = vmax.f32 %v745, 0.0
      %v778 = vmax.f32 %v746, 0.0
      %v779 = vmax.f32 %v747, 0.0
      %v780 = vmax.f32 %v748, 0.0
      %v781 = vmax.f32 %v749, 0.0
      %v782 = vmax.f32 %v750, 0.0
      %v783 = vmax.f32 %v751, 0.0
      %v784 = vpack.c.bf16 %v753, %v752
      %v785 = vpack.c.bf16 %v755, %v754
      %v786 = vpack.c.bf16 %v757, %v756
      %v787 = vpack.c.bf16 %v759, %v758
      %v788 = vpack.c.bf16 %v761, %v760
      %v789 = vpack.c.bf16 %v763, %v762
      %v790 = vpack.c.bf16 %v765, %v764
      %v791 = vpack.c.bf16 %v767, %v766
      %v792 = vpack.c.bf16 %v769, %v768
      %v793 = vpack.c.bf16 %v771, %v770
      %v794 = vpack.c.bf16 %v773, %v772
      %v795 = vpack.c.bf16 %v775, %v774
      %v796 = vpack.c.bf16 %v777, %v776
      %v797 = vpack.c.bf16 %v779, %v778
      %v798 = vpack.c.bf16 %v781, %v780
      %v799 = vpack.c.bf16 %v783, %v782
      %v816 = vunpack.c.l.b16 %v784
      %v817 = vunpack.c.h.b16 %v784
      %v818 = vunpack.c.l.b16 %v785
      %v819 = vunpack.c.h.b16 %v785
      %v820 = vunpack.c.l.b16 %v786
      %v821 = vunpack.c.h.b16 %v786
      %v822 = vunpack.c.l.b16 %v787
      %v823 = vunpack.c.h.b16 %v787
      %v824 = vunpack.c.l.b16 %v788
      %v825 = vunpack.c.h.b16 %v788
      %v826 = vunpack.c.l.b16 %v789
      %v827 = vunpack.c.h.b16 %v789
      %v828 = vunpack.c.l.b16 %v790
      %v829 = vunpack.c.h.b16 %v790
      %v830 = vunpack.c.l.b16 %v791
      %v831 = vunpack.c.h.b16 %v791
      %v832 = vunpack.c.l.b16 %v792
      %v833 = vunpack.c.h.b16 %v792
      %v834 = vunpack.c.l.b16 %v793
      %v835 = vunpack.c.h.b16 %v793
      %v836 = vunpack.c.l.b16 %v794
      %v837 = vunpack.c.h.b16 %v794
      %v838 = vunpack.c.l.b16 %v795
      %v839 = vunpack.c.h.b16 %v795
      %v840 = vunpack.c.l.b16 %v796
      %v841 = vunpack.c.h.b16 %v796
      %v842 = vunpack.c.l.b16 %v797
      %v843 = vunpack.c.h.b16 %v797
      %v844 = vunpack.c.l.b16 %v798
      %v845 = vunpack.c.h.b16 %v798
      %v846 = vunpack.c.l.b16 %v799
      %v847 = vunpack.c.h.b16 %v799
      %v848 = vpack.c.b16 %v816, %v816
      %v849 = vpack.c.b16 %v817, %v817
      %v850 = vpack.c.b16 %v818, %v818
      %v851 = vpack.c.b16 %v819, %v819
      %v852 = vpack.c.b16 %v820, %v820
      %v853 = vpack.c.b16 %v821, %v821
      %v854 = vpack.c.b16 %v822, %v822
      %v855 = vpack.c.b16 %v823, %v823
      %v856 = vpack.c.b16 %v824, %v824
      %v857 = vpack.c.b16 %v825, %v825
      %v858 = vpack.c.b16 %v826, %v826
      %v859 = vpack.c.b16 %v827, %v827
      %v860 = vpack.c.b16 %v828, %v828
      %v861 = vpack.c.b16 %v829, %v829
      %v862 = vpack.c.b16 %v830, %v830
      %v863 = vpack.c.b16 %v831, %v831
      %v864 = vpack.c.b16 %v832, %v832
      %v865 = vpack.c.b16 %v833, %v833
      %v866 = vpack.c.b16 %v834, %v834
      %v867 = vpack.c.b16 %v835, %v835
      %v868 = vpack.c.b16 %v836, %v836
      %v869 = vpack.c.b16 %v837, %v837
      %v870 = vpack.c.b16 %v838, %v838
      %v871 = vpack.c.b16 %v839, %v839
      %v872 = vpack.c.b16 %v840, %v840
      %v873 = vpack.c.b16 %v841, %v841
      %v874 = vpack.c.b16 %v842, %v842
      %v875 = vpack.c.b16 %v843, %v843
      %v876 = vpack.c.b16 %v844, %v844
      %v877 = vpack.c.b16 %v845, %v845
      %v878 = vpack.c.b16 %v846, %v846
      %v879 = vpack.c.b16 %v847, %v847
      %912 = vst [vmem:[%s202] sm:$0xf] %v848
      %913 = vst [vmem:[%s202 + $0x4] sm:$0xf] %v849
      %914 = vst [vmem:[%s202 + $0x8] sm:$0xf] %v850
      %915 = vst [vmem:[%s202 + $0xc] sm:$0xf] %v851
      %916 = vst [vmem:[%s202 + $0x10] sm:$0xf] %v852
      %917 = vst [vmem:[%s202 + $0x14] sm:$0xf] %v853
      %918 = vst [vmem:[%s202 + $0x18] sm:$0xf] %v854
      %919 = vst [vmem:[%s202 + $0x1c] sm:$0xf] %v855
      %920 = vst [vmem:[%s202 + $0x20] sm:$0xf] %v856
      %921 = vst [vmem:[%s202 + $0x24] sm:$0xf] %v857
      %922 = vst [vmem:[%s202 + $0x28] sm:$0xf] %v858
      %923 = vst [vmem:[%s202 + $0x2c] sm:$0xf] %v859
      %924 = vst [vmem:[%s202 + $0x30] sm:$0xf] %v860
      %925 = vst [vmem:[%s202 + $0x34] sm:$0xf] %v861
      %926 = vst [vmem:[%s202 + $0x38] sm:$0xf] %v862
      %927 = vst [vmem:[%s202 + $0x3c] sm:$0xf] %v863
      %928 = vst [vmem:[%s202 + $0x40] sm:$0xf] %v864
      %929 = vst [vmem:[%s202 + $0x44] sm:$0xf] %v865
      %930 = vst [vmem:[%s202 + $0x48] sm:$0xf] %v866
      %931 = vst [vmem:[%s202 + $0x4c] sm:$0xf] %v867
      %932 = vst [vmem:[%s202 + $0x50] sm:$0xf] %v868
      %933 = vst [vmem:[%s202 + $0x54] sm:$0xf] %v869
      %934 = vst [vmem:[%s202 + $0x58] sm:$0xf] %v870
      %935 = vst [vmem:[%s202 + $0x5c] sm:$0xf] %v871
      %936 = vst [vmem:[%s202 + $0x60] sm:$0xf] %v872
      %937 = vst [vmem:[%s202 + $0x64] sm:$0xf] %v873
      %938 = vst [vmem:[%s202 + $0x68] sm:$0xf] %v874
      %939 = vst [vmem:[%s202 + $0x6c] sm:$0xf] %v875
      %940 = vst [vmem:[%s202 + $0x70] sm:$0xf] %v876
      %941 = vst [vmem:[%s202 + $0x74] sm:$0xf] %v877
      %942 = vst [vmem:[%s202 + $0x78] sm:$0xf] %v878
      %943 = vst [vmem:[%s202 + $0x7c] sm:$0xf] %v879
      %s944 = smul.u32 32, %s15
      %p945 = scmp.lt.s32.totalorder %s944, 63
      %s946 = scalar_select %p945, %s944, 63
      %s947 = smul.addr %s946, 4
      %s948 = scalar_lea.vmem %s4, %s947
      // Predicated region
      $region37: #{resnet_embedding_forward.10} parent=35 // pred_check
        %p949 = pneg %p122
      $region38: #{resnet_embedding_forward.10} parent=35 // pred_check_branch
        %951 = sbr.rel (%p949) target = $region40
      $region39: #{resnet_embedding_forward.10} parent=35 // pred_region
        %s952 = smul.u32 32, %s15
      $region40: #{resnet_embedding_forward.10} parent=35 // pred_fallthru
        _
    $region36: #{resnet_embedding_forward.10} parent=5 // pred_fallthru
      _
    %p953 = scmp.le.s32.totalorder 2, %s10
    // Predicated region
    $region41: #{resnet_embedding_forward.10} parent=5 // pred_check
      %p954 = pneg %p953
    $region42: #{resnet_embedding_forward.10} parent=5 // pred_check_branch
      %956 = sbr.rel (%p954) target = $region44
    $region43: #{resnet_embedding_forward.10} parent=5 // pred_region
      %s957 = ssub.s32 %s10, 2
      // Predicated region
      $region45: #{resnet_embedding_forward.10} parent=43 // pred_check
        %p958 = pneg %p128
      $region46: #{resnet_embedding_forward.10} parent=43 // pred_check_branch
        %960 = sbr.rel (%p958) target = $region48
      $region47: #{resnet_embedding_forward.10} parent=43 // pred_region
        %s961 = smul.u32 32, %s16
        %p962 = scmp.lt.s32.totalorder %s961, 63
        %s963 = scalar_select %p962, %s961, 63
        %s964 = smul.addr %s963, 4
        %s965 = scalar_lea.vmem %s4, %s964
      $region48: #{resnet_embedding_forward.10} parent=43 // pred_fallthru
        _
    $region44: #{resnet_embedding_forward.10} parent=5 // pred_fallthru
      _
  $region6: #{resnet_embedding_forward.10} parent=0 // loop_footer
    %s14 = sadd.s32 1, %s10
  $region7: #{resnet_embedding_forward.10} parent=0 // loop_footer_branch
    %9 = sbr.rel target = $region3
  $region8: #{resnet_embedding_forward.10} parent=0 // loop_exit
    _

// kernel: resnet_embedding_forward.11
$region0: #{resnet_embedding_forward.11}
  #allocation0 [shape = 'u32[]', space=smem, size = 0x4, offset = 0x4, fixed_abs, tag = 'smem constant byte address 0x4 - core index']
  #allocation1 [shape = 'u32[144,128]{1,0:T(1,128)}', space=vmem, size = 0x12000, scoped, tag = 'internal scratch']
  %s0 = inlined_call_operand.vmem [shape: bf16[920,128], index: 0, kind: input, shape index: {}]
  %s1 = inlined_call_operand.vmem [shape: bf16[864,128], index: 1, kind: output, shape index: {}]
  %s2 = sld [smem:[#allocation0]]
  $region37: #{resnet_embedding_forward.11} parent=0
    _
  %s4 = ssub.s32 1, %s2
  %s5 = scalar_select 0, %s4, %s2
  loop: start=0, step=1, limit=4
  $region2: #{resnet_embedding_forward.11} parent=0 // loop_pre_header
    _
  $region3: #{resnet_embedding_forward.11} parent=0 // loop_header
    %s7 = sphi 0, %s11
    %p8 = scmp.ge.s32.totalorder %s7, 4
    %s15 = sphi 0, %s15
    %s17 = sphi 0, %s15
    %s18 = sphi 0, %s17
    %s32 = sphi 0, %s18
    %s38 = sphi 0, %s40
    %s41 = sphi 0, %s38
    %s42 = sphi 0, %s41
    %s58 = sphi 0, %s42
  $region4: #{resnet_embedding_forward.11} parent=0 // loop_header_branch
    %10 = sbr.rel (%p8) target = $region8
  $region5: #{resnet_embedding_forward.11} parent=0 // loop_body
    %s12 = ssub.s32 %s7, 1
    %s13 = ssub.s32 %s7, 2
    %s14 = sadd.s32 %s7, 1
    %s16 = sadd.s32 %s15, 1
    %p19 = scmp.eq.s32.totalorder %s7, 1
    %p20 = scmp.ne.s32.totalorder %s15, %s17
    %p21 = scmp.eq.s32.totalorder %s7, 0
    %p22 = por %p20, %p21
    %p23 = scmp.ne.s32.totalorder %s15, %s17
    %p24 = scmp.eq.s32.totalorder %s12, 1
    %p25 = por %p23, %p24
    %p26 = scmp.ne.s32.totalorder %s17, %s18
    %p27 = scmp.eq.s32.totalorder %s12, 0
    %p28 = por %p26, %p27
    %p29 = scmp.ne.s32.totalorder %s17, %s18
    %p30 = scmp.eq.s32.totalorder %s13, 1
    %p31 = por %p29, %p30
    %p33 = scmp.ne.s32.totalorder %s18, %s32
    %p34 = scmp.eq.s32.totalorder %s13, 0
    %p35 = por %p33, %p34
    %s36 = ssub.s32 %s7, %s14
    %p37 = scmp.eq.s32.totalorder %s36, 0
    %s39 = sadd.s32 %s38, 1
    %s40 = scalar_select %p37, %s38, %s39
    %p43 = pneg %p37
    %p44 = scmp.eq.s32.totalorder %s7, 1
    %p45 = por %p43, %p44
    %p46 = scmp.ne.s32.totalorder %s38, %s41
    %p47 = scmp.eq.s32.totalorder %s7, 0
    %p48 = por %p46, %p47
    %p49 = scmp.ne.s32.totalorder %s38, %s41
    %p50 = scmp.eq.s32.totalorder %s12, 1
    %p51 = por %p49, %p50
    %p52 = scmp.ne.s32.totalorder %s41, %s42
    %p53 = scmp.eq.s32.totalorder %s12, 0
    %p54 = por %p52, %p53
    %p55 = scmp.ne.s32.totalorder %s41, %s42
    %p56 = scmp.eq.s32.totalorder %s13, 1
    %p57 = por %p55, %p56
    %p59 = scmp.ne.s32.totalorder %s42, %s58
    %p60 = scmp.eq.s32.totalorder %s13, 0
    %p61 = por %p59, %p60
    %p62 = scmp.le.s32.totalorder 1, %s7
    %p63 = scmp.lt.s32.totalorder %s7, 3
    %p64 = pnand %p62, %p63
    %p65 = pneg %p64
    // Predicated region
    $region9: #{resnet_embedding_forward.11} parent=5 // pred_check
      _
    $region10: #{resnet_embedding_forward.11} parent=5 // pred_check_branch
      %67 = sbr.rel (%p64) target = $region12
    $region11: #{resnet_embedding_forward.11} parent=5 // pred_region
      %s68 = ssub.s32 %s7, 1
      // Predicated region
      $region13: #{resnet_embedding_forward.11} parent=11 // pred_check
        %p69 = pneg %p28
      $region14: #{resnet_embedding_forward.11} parent=11 // pred_check_branch
        %71 = sbr.rel (%p69) target = $region16
      $region15: #{resnet_embedding_forward.11} parent=11 // pred_region
        _
      $region16: #{resnet_embedding_forward.11} parent=11 // pred_fallthru
        _
    $region12: #{resnet_embedding_forward.11} parent=5 // pred_fallthru
      _
    %p72 = scmp.lt.s32.totalorder %s7, 2
    // Predicated region
    $region17: #{resnet_embedding_forward.11} parent=5 // pred_check
      %p73 = pneg %p72
    $region18: #{resnet_embedding_forward.11} parent=5 // pred_check_branch
      %75 = sbr.rel (%p73) target = $region20
    $region19: #{resnet_embedding_forward.11} parent=5 // pred_region
      _
    $region20: #{resnet_embedding_forward.11} parent=5 // pred_fallthru
      _
    %p76 = scmp.le.s32.totalorder 1, %s7
    %p77 = scmp.lt.s32.totalorder %s7, 3
    %p78 = pnand %p76, %p77
    %p79 = pneg %p78
    // Predicated region
    $region21: #{resnet_embedding_forward.11} parent=5 // pred_check
      _
    $region22: #{resnet_embedding_forward.11} parent=5 // pred_check_branch
      %81 = sbr.rel (%p78) target = $region24
    $region23: #{resnet_embedding_forward.11} parent=5 // pred_region
      %s82 = ssub.s32 %s7, 1
      %p83 = pneg %p28
      %p84 = pneg %p25
      %p85 = pneg %p54
      %p86 = pneg %p51
      %s87 = smul.u32 54, %s12
      %p88 = scmp.lt.s32.totalorder %s87, 107
      %s89 = scalar_select %p88, %s87, 107
      %s90 = smul.addr %s89, 4
      %s91 = scalar_lea.vmem %s1, %s90
      %s92 = smul.u32 54, %s12
      %p93 = scmp.lt.s32.totalorder %s92, 107
      %s94 = scalar_select %p93, %s92, 107
      %s95 = smul.addr %s94, 4
      %s96 = scalar_lea.vmem %s1, %s95
      %s97 = smul.u32 54, %s12
      %s98 = smul.u32 %s12, 432
      %s99 = sshra.s32 %s98, 3
      %s100 = sand.u32 %s98, 7
      %s101 = smul.addr %s99, 4
      %s102 = scalar_lea.vmem %s0, %s101
      %v103 = vld [vmem:[%s102] sm:$0xf]
      %v104 = vld [vmem:[%s102 + $0x4] sm:$0xf]
      %v105 = vld [vmem:[%s102 + $0x8] sm:$0xf]
      %v106 = vld [vmem:[%s102 + $0xc] sm:$0xf]
      %v107 = vld [vmem:[%s102 + $0x10] sm:$0xf]
      %v108 = vld [vmem:[%s102 + $0x14] sm:$0xf]
      %v109 = vld [vmem:[%s102 + $0x18] sm:$0xf]
      %v110 = vld [vmem:[%s102 + $0x1c] sm:$0xf]
      %v111 = vld [vmem:[%s102 + $0x20] sm:$0xf]
      %v112 = vld [vmem:[%s102 + $0x24] sm:$0xf]
      %v113 = vld [vmem:[%s102 + $0x28] sm:$0xf]
      %v114 = vld [vmem:[%s102 + $0x2c] sm:$0xf]
      %v115 = vld [vmem:[%s102 + $0x30] sm:$0xf]
      %v116 = vld [vmem:[%s102 + $0x34] sm:$0xf]
      %v117 = vld [vmem:[%s102 + $0x38] sm:$0xf]
      %v118 = vld [vmem:[%s102 + $0x3c] sm:$0xf]
      %v119 = vld [vmem:[%s102 + $0x40] sm:$0xf]
      %v120 = vld [vmem:[%s102 + $0x44] sm:$0xf]
      %v121 = vld [vmem:[%s102 + $0x48] sm:$0xf]
      %v122 = vld [vmem:[%s102 + $0x4c] sm:$0xf]
      %v123 = vld [vmem:[%s102 + $0x50] sm:$0xf]
      %v124 = vld [vmem:[%s102 + $0x54] sm:$0xf]
      %v125 = vld [vmem:[%s102 + $0x58] sm:$0xf]
      %v126 = vld [vmem:[%s102 + $0x5c] sm:$0xf]
      %v127 = vld [vmem:[%s102 + $0x60] sm:$0xf]
      %v128 = vld [vmem:[%s102 + $0x64] sm:$0xf]
      %v129 = vld [vmem:[%s102 + $0x68] sm:$0xf]
      %v130 = vld [vmem:[%s102 + $0x6c] sm:$0xf]
      %v131 = vld [vmem:[%s102 + $0x70] sm:$0xf]
      %v132 = vld [vmem:[%s102 + $0x74] sm:$0xf]
      %v133 = vld [vmem:[%s102 + $0x78] sm:$0xf]
      %v134 = vld [vmem:[%s102 + $0x7c] sm:$0xf]
      %v135 = vld [vmem:[%s102 + $0x80] sm:$0xf]
      %v136 = vld [vmem:[%s102 + $0x84] sm:$0xf]
      %v137 = vld [vmem:[%s102 + $0x88] sm:$0xf]
      %v138 = vld [vmem:[%s102 + $0x8c] sm:$0xf]
      %v139 = vld [vmem:[%s102 + $0x90] sm:$0xf]
      %v140 = vld [vmem:[%s102 + $0x94] sm:$0xf]
      %v141 = vld [vmem:[%s102 + $0x98] sm:$0xf]
      %v142 = vld [vmem:[%s102 + $0x9c] sm:$0xf]
      %v143 = vld [vmem:[%s102 + $0xa0] sm:$0xf]
      %v144 = vld [vmem:[%s102 + $0xa4] sm:$0xf]
      %v145 = vld [vmem:[%s102 + $0xa8] sm:$0xf]
      %v146 = vld [vmem:[%s102 + $0xac] sm:$0xf]
      %v147 = vld [vmem:[%s102 + $0xb0] sm:$0xf]
      %v148 = vld [vmem:[%s102 + $0xb4] sm:$0xf]
      %v149 = vld [vmem:[%s102 + $0xb8] sm:$0xf]
      %v150 = vld [vmem:[%s102 + $0xbc] sm:$0xf]
      %v151 = vld [vmem:[%s102 + $0xc0] sm:$0xf]
      %v152 = vld [vmem:[%s102 + $0xc4] sm:$0xf]
      %v153 = vld [vmem:[%s102 + $0xc8] sm:$0xf]
      %v154 = vld [vmem:[%s102 + $0xcc] sm:$0xf]
      %v155 = vld [vmem:[%s102 + $0xd0] sm:$0xf]
      %v156 = vld [vmem:[%s102 + $0xd4] sm:$0xf]
      %v157 = vld [vmem:[%s102 + $0xd8] sm:$0xf]
      %v158 = vld [vmem:[%s102 + $0xdc] sm:$0xf]
      %v159 = vld [vmem:[%s102 + $0xe0] sm:$0xf]
      %v160 = vld [vmem:[%s102 + $0xe4] sm:$0xf]
      %v161 = vld [vmem:[%s102 + $0xe8] sm:$0xf]
      %v162 = vld [vmem:[%s102 + $0xec] sm:$0xf]
      %v163 = vld [vmem:[%s102 + $0xf0] sm:$0xf]
      %vm164 = vsmask.f32 3328
      %vm165 = vsmask.f32 7440
      %vm166 = vmor %vm164, %vm165
      %v168 = vshrl.u32 %v103, 16
      %v170 = vrot.slane %v168, 4
      %v171 = vshll.u32 %v103, 16
      %v173 = vrot.slane %v171, 5
      %v174 = vor.u32 %v170, %v173
      %v175 = vrot.slane %v174, 4
      %v177 = vshll.u32 %v104, 16
      %v179 = vrot.slane %v177, 5
      %v180 = vsel %vm166, %v175, %v179
      %v181 = vshrl.u32 %v104, 16
      %v183 = vrot.slane %v181, 4
      %v184 = vor.u32 %v183, %v179
      %v185 = vrot.slane %v184, 4
      %v187 = vshll.u32 %v105, 16
      %v189 = vrot.slane %v187, 5
      %v190 = vsel %vm166, %v185, %v189
      %v191 = vshrl.u32 %v105, 16
      %v193 = vrot.slane %v191, 4
      %v194 = vor.u32 %v193, %v189
      %v195 = vrot.slane %v194, 4
      %v197 = vshll.u32 %v106, 16
      %v199 = vrot.slane %v197, 5
      %v200 = vsel %vm166, %v195, %v199
      %v201 = vshrl.u32 %v106, 16
      %v203 = vrot.slane %v201, 4
      %v204 = vor.u32 %v203, %v199
      %v205 = vrot.slane %v204, 4
      %v207 = vshll.u32 %v107, 16
      %v209 = vrot.slane %v207, 5
      %v210 = vsel %vm166, %v205, %v209
      %v211 = vshrl.u32 %v107, 16
      %v213 = vrot.slane %v211, 4
      %v214 = vor.u32 %v213, %v209
      %v215 = vrot.slane %v214, 4
      %v217 = vshll.u32 %v108, 16
      %v219 = vrot.slane %v217, 5
      %v220 = vsel %vm166, %v215, %v219
      %v221 = vshrl.u32 %v108, 16
      %v223 = vrot.slane %v221, 4
      %v224 = vor.u32 %v223, %v219
      %v225 = vrot.slane %v224, 4
      %v227 = vshll.u32 %v109, 16
      %v229 = vrot.slane %v227, 5
      %v230 = vsel %vm166, %v225, %v229
      %v231 = vshrl.u32 %v109, 16
      %v233 = vrot.slane %v231, 4
      %v234 = vor.u32 %v233, %v229
      %v235 = vrot.slane %v234, 4
      %v237 = vshll.u32 %v110, 16
      %v239 = vrot.slane %v237, 5
      %v240 = vsel %vm166, %v235, %v239
      %v241 = vshrl.u32 %v110, 16
      %v243 = vrot.slane %v241, 4
      %v244 = vor.u32 %v243, %v239
      %v245 = vrot.slane %v244, 4
      %v247 = vshll.u32 %v111, 16
      %v249 = vrot.slane %v247, 5
      %v250 = vsel %vm166, %v245, %v249
      %v251 = vshrl.u32 %v111, 16
      %v253 = vrot.slane %v251, 4
      %v254 = vor.u32 %v253, %v249
      %v255 = vrot.slane %v254, 4
      %v257 = vshll.u32 %v112, 16
      %v259 = vrot.slane %v257, 5
      %v260 = vsel %vm166, %v255, %v259
      %v261 = vshrl.u32 %v112, 16
      %v263 = vrot.slane %v261, 4
      %v264 = vor.u32 %v263, %v259
      %v265 = vrot.slane %v264, 4
      %v267 = vshll.u32 %v113, 16
      %v269 = vrot.slane %v267, 5
      %v270 = vsel %vm166, %v265, %v269
      %v271 = vshrl.u32 %v113, 16
      %v273 = vrot.slane %v271, 4
      %v274 = vor.u32 %v273, %v269
      %v275 = vrot.slane %v274, 4
      %v277 = vshll.u32 %v114, 16
      %v279 = vrot.slane %v277, 5
      %v280 = vsel %vm166, %v275, %v279
      %v281 = vshrl.u32 %v114, 16
      %v283 = vrot.slane %v281, 4
      %v284 = vor.u32 %v283, %v279
      %v285 = vrot.slane %v284, 4
      %v287 = vshll.u32 %v115, 16
      %v289 = vrot.slane %v287, 5
      %v290 = vsel %vm166, %v285, %v289
      %v291 = vshrl.u32 %v115, 16
      %v293 = vrot.slane %v291, 4
      %v294 = vor.u32 %v293, %v289
      %v295 = vrot.slane %v294, 4
      %v297 = vshll.u32 %v116, 16
      %v299 = vrot.slane %v297, 5
      %v300 = vsel %vm166, %v295, %v299
      %v301 = vshrl.u32 %v116, 16
      %v303 = vrot.slane %v301, 4
      %v304 = vor.u32 %v303, %v299
      %v305 = vrot.slane %v304, 4
      %v307 = vshll.u32 %v117, 16
      %v309 = vrot.slane %v307, 5
      %v310 = vsel %vm166, %v305, %v309
      %v311 = vshrl.u32 %v117, 16
      %v313 = vrot.slane %v311, 4
      %v314 = vor.u32 %v313, %v309
      %v315 = vrot.slane %v314, 4
      %v317 = vshll.u32 %v118, 16
      %v319 = vrot.slane %v317, 5
      %v320 = vsel %vm166, %v315, %v319
      %v321 = vshrl.u32 %v118, 16
      %v323 = vrot.slane %v321, 4
      %v324 = vor.u32 %v323, %v319
      %v325 = vrot.slane %v324, 4
      %v327 = vshll.u32 %v119, 16
      %v329 = vrot.slane %v327, 5
      %v330 = vsel %vm166, %v325, %v329
      %v331 = vshrl.u32 %v119, 16
      %v333 = vrot.slane %v331, 4
      %v334 = vor.u32 %v333, %v329
      %v335 = vrot.slane %v334, 4
      %v337 = vshll.u32 %v120, 16
      %v339 = vrot.slane %v337, 5
      %v340 = vsel %vm166, %v335, %v339
      %v341 = vshrl.u32 %v120, 16
      %v343 = vrot.slane %v341, 4
      %v344 = vor.u32 %v343, %v339
      %v345 = vrot.slane %v344, 4
      %v347 = vshll.u32 %v121, 16
      %v349 = vrot.slane %v347, 5
      %v350 = vsel %vm166, %v345, %v349
      %v351 = vshrl.u32 %v121, 16
      %v353 = vrot.slane %v351, 4
      %v354 = vor.u32 %v353, %v349
      %v355 = vrot.slane %v354, 4
      %v357 = vshll.u32 %v122, 16
      %v359 = vrot.slane %v357, 5
      %v360 = vsel %vm166, %v355, %v359
      %v361 = vshrl.u32 %v122, 16
      %v363 = vrot.slane %v361, 4
      %v364 = vor.u32 %v363, %v359
      %v365 = vrot.slane %v364, 4
      %v367 = vshll.u32 %v123, 16
      %v369 = vrot.slane %v367, 5
      %v370 = vsel %vm166, %v365, %v369
      %v371 = vshrl.u32 %v123, 16
      %v373 = vrot.slane %v371, 4
      %v374 = vor.u32 %v373, %v369
      %v375 = vrot.slane %v374, 4
      %v377 = vshll.u32 %v124, 16
      %v379 = vrot.slane %v377, 5
      %v380 = vsel %vm166, %v375, %v379
      %v381 = vshrl.u32 %v124, 16
      %v383 = vrot.slane %v381, 4
      %v384 = vor.u32 %v383, %v379
      %v385 = vrot.slane %v384, 4
      %v387 = vshll.u32 %v125, 16
      %v389 = vrot.slane %v387, 5
      %v390 = vsel %vm166, %v385, %v389
      %v391 = vshrl.u32 %v125, 16
      %v393 = vrot.slane %v391, 4
      %v394 = vor.u32 %v393, %v389
      %v395 = vrot.slane %v394, 4
      %v397 = vshll.u32 %v126, 16
      %v399 = vrot.slane %v397, 5
      %v400 = vsel %vm166, %v395, %v399
      %v401 = vshrl.u32 %v126, 16
      %v403 = vrot.slane %v401, 4
      %v404 = vor.u32 %v403, %v399
      %v405 = vrot.slane %v404, 4
      %v407 = vshll.u32 %v127, 16
      %v409 = vrot.slane %v407, 5
      %v410 = vsel %vm166, %v405, %v409
      %v411 = vshrl.u32 %v127, 16
      %v413 = vrot.slane %v411, 4
      %v414 = vor.u32 %v413, %v409
      %v415 = vrot.slane %v414, 4
      %v417 = vshll.u32 %v128, 16
      %v419 = vrot.slane %v417, 5
      %v420 = vsel %vm166, %v415, %v419
      %v421 = vshrl.u32 %v128, 16
      %v423 = vrot.slane %v421, 4
      %v424 = vor.u32 %v423, %v419
      %v425 = vrot.slane %v424, 4
      %v427 = vshll.u32 %v129, 16
      %v429 = vrot.slane %v427, 5
      %v430 = vsel %vm166, %v425, %v429
      %v431 = vshrl.u32 %v129, 16
      %v433 = vrot.slane %v431, 4
      %v434 = vor.u32 %v433, %v429
      %v435 = vrot.slane %v434, 4
      %v437 = vshll.u32 %v130, 16
      %v439 = vrot.slane %v437, 5
      %v440 = vsel %vm166, %v435, %v439
      %v441 = vshrl.u32 %v130, 16
      %v443 = vrot.slane %v441, 4
      %v444 = vor.u32 %v443, %v439
      %v445 = vrot.slane %v444, 4
      %v447 = vshll.u32 %v131, 16
      %v449 = vrot.slane %v447, 5
      %v450 = vsel %vm166, %v445, %v449
      %v451 = vshrl.u32 %v131, 16
      %v453 = vrot.slane %v451, 4
      %v454 = vor.u32 %v453, %v449
      %v455 = vrot.slane %v454, 4
      %v457 = vshll.u32 %v132, 16
      %v459 = vrot.slane %v457, 5
      %v460 = vsel %vm166, %v455, %v459
      %v461 = vshrl.u32 %v132, 16
      %v463 = vrot.slane %v461, 4
      %v464 = vor.u32 %v463, %v459
      %v465 = vrot.slane %v464, 4
      %v467 = vshll.u32 %v133, 16
      %v469 = vrot.slane %v467, 5
      %v470 = vsel %vm166, %v465, %v469
      %v471 = vshrl.u32 %v133, 16
      %v473 = vrot.slane %v471, 4
      %v474 = vor.u32 %v473, %v469
      %v475 = vrot.slane %v474, 4
      %v477 = vshll.u32 %v134, 16
      %v479 = vrot.slane %v477, 5
      %v480 = vsel %vm166, %v475, %v479
      %v481 = vshrl.u32 %v134, 16
      %v483 = vrot.slane %v481, 4
      %v484 = vor.u32 %v483, %v479
      %v485 = vrot.slane %v484, 4
      %v487 = vshll.u32 %v135, 16
      %v489 = vrot.slane %v487, 5
      %v490 = vsel %vm166, %v485, %v489
      %v491 = vshrl.u32 %v135, 16
      %v493 = vrot.slane %v491, 4
      %v494 = vor.u32 %v493, %v489
      %v495 = vrot.slane %v494, 4
      %v497 = vshll.u32 %v136, 16
      %v499 = vrot.slane %v497, 5
      %v500 = vsel %vm166, %v495, %v499
      %v501 = vshrl.u32 %v136, 16
      %v503 = vrot.slane %v501, 4
      %v504 = vor.u32 %v503, %v499
      %v505 = vrot.slane %v504, 4
      %v507 = vshll.u32 %v137, 16
      %v509 = vrot.slane %v507, 5
      %v510 = vsel %vm166, %v505, %v509
      %v511 = vshrl.u32 %v137, 16
      %v513 = vrot.slane %v511, 4
      %v514 = vor.u32 %v513, %v509
      %v515 = vrot.slane %v514, 4
      %v517 = vshll.u32 %v138, 16
      %v519 = vrot.slane %v517, 5
      %v520 = vsel %vm166, %v515, %v519
      %v521 = vshrl.u32 %v138, 16
      %v523 = vrot.slane %v521, 4
      %v524 = vor.u32 %v523, %v519
      %v525 = vrot.slane %v524, 4
      %v527 = vshll.u32 %v139, 16
      %v529 = vrot.slane %v527, 5
      %v530 = vsel %vm166, %v525, %v529
      %v531 = vshrl.u32 %v139, 16
      %v533 = vrot.slane %v531, 4
      %v534 = vor.u32 %v533, %v529
      %v535 = vrot.slane %v534, 4
      %v537 = vshll.u32 %v140, 16
      %v539 = vrot.slane %v537, 5
      %v540 = vsel %vm166, %v535, %v539
      %v541 = vshrl.u32 %v140, 16
      %v543 = vrot.slane %v541, 4
      %v544 = vor.u32 %v543, %v539
      %v545 = vrot.slane %v544, 4
      %v547 = vshll.u32 %v141, 16
      %v549 = vrot.slane %v547, 5
      %v550 = vsel %vm166, %v545, %v549
      %v551 = vshrl.u32 %v141, 16
      %v553 = vrot.slane %v551, 4
      %v554 = vor.u32 %v553, %v549
      %v555 = vrot.slane %v554, 4
      %v557 = vshll.u32 %v142, 16
      %v559 = vrot.slane %v557, 5
      %v560 = vsel %vm166, %v555, %v559
      %v561 = vshrl.u32 %v142, 16
      %v563 = vrot.slane %v561, 4
      %v564 = vor.u32 %v563, %v559
      %v565 = vrot.slane %v564, 4
      %v567 = vshll.u32 %v143, 16
      %v569 = vrot.slane %v567, 5
      %v570 = vsel %vm166, %v565, %v569
      %v571 = vshrl.u32 %v143, 16
      %v573 = vrot.slane %v571, 4
      %v574 = vor.u32 %v573, %v569
      %v575 = vrot.slane %v574, 4
      %v577 = vshll.u32 %v144, 16
      %v579 = vrot.slane %v577, 5
      %v580 = vsel %vm166, %v575, %v579
      %v581 = vshrl.u32 %v144, 16
      %v583 = vrot.slane %v581, 4
      %v584 = vor.u32 %v583, %v579
      %v585 = vrot.slane %v584, 4
      %v587 = vshll.u32 %v145, 16
      %v589 = vrot.slane %v587, 5
      %v590 = vsel %vm166, %v585, %v589
      %v591 = vshrl.u32 %v145, 16
      %v593 = vrot.slane %v591, 4
      %v594 = vor.u32 %v593, %v589
      %v595 = vrot.slane %v594, 4
      %v597 = vshll.u32 %v146, 16
      %v599 = vrot.slane %v597, 5
      %v600 = vsel %vm166, %v595, %v599
      %v601 = vshrl.u32 %v146, 16
      %v603 = vrot.slane %v601, 4
      %v604 = vor.u32 %v603, %v599
      %v605 = vrot.slane %v604, 4
      %v607 = vshll.u32 %v147, 16
      %v609 = vrot.slane %v607, 5
      %v610 = vsel %vm166, %v605, %v609
      %v611 = vshrl.u32 %v147, 16
      %v613 = vrot.slane %v611, 4
      %v614 = vor.u32 %v613, %v609
      %v615 = vrot.slane %v614, 4
      %v617 = vshll.u32 %v148, 16
      %v619 = vrot.slane %v617, 5
      %v620 = vsel %vm166, %v615, %v619
      %v621 = vshrl.u32 %v148, 16
      %v623 = vrot.slane %v621, 4
      %v624 = vor.u32 %v623, %v619
      %v625 = vrot.slane %v624, 4
      %v627 = vshll.u32 %v149, 16
      %v629 = vrot.slane %v627, 5
      %v630 = vsel %vm166, %v625, %v629
      %v631 = vshrl.u32 %v149, 16
      %v633 = vrot.slane %v631, 4
      %v634 = vor.u32 %v633, %v629
      %v635 = vrot.slane %v634, 4
      %v637 = vshll.u32 %v150, 16
      %v639 = vrot.slane %v637, 5
      %v640 = vsel %vm166, %v635, %v639
      %v641 = vshrl.u32 %v150, 16
      %v643 = vrot.slane %v641, 4
      %v644 = vor.u32 %v643, %v639
      %v645 = vrot.slane %v644, 4
      %v647 = vshll.u32 %v151, 16
      %v649 = vrot.slane %v647, 5
      %v650 = vsel %vm166, %v645, %v649
      %v651 = vshrl.u32 %v151, 16
      %v653 = vrot.slane %v651, 4
      %v654 = vor.u32 %v653, %v649
      %v655 = vrot.slane %v654, 4
      %v657 = vshll.u32 %v152, 16
      %v659 = vrot.slane %v657, 5
      %v660 = vsel %vm166, %v655, %v659
      %v661 = vshrl.u32 %v152, 16
      %v663 = vrot.slane %v661, 4
      %v664 = vor.u32 %v663, %v659
      %v665 = vrot.slane %v664, 4
      %v667 = vshll.u32 %v153, 16
      %v669 = vrot.slane %v667, 5
      %v670 = vsel %vm166, %v665, %v669
      %v671 = vshrl.u32 %v153, 16
      %v673 = vrot.slane %v671, 4
      %v674 = vor.u32 %v673, %v669
      %v675 = vrot.slane %v674, 4
      %v677 = vshll.u32 %v154, 16
      %v679 = vrot.slane %v677, 5
      %v680 = vsel %vm166, %v675, %v679
      %v681 = vshrl.u32 %v154, 16
      %v683 = vrot.slane %v681, 4
      %v684 = vor.u32 %v683, %v679
      %v685 = vrot.slane %v684, 4
      %v687 = vshll.u32 %v155, 16
      %v689 = vrot.slane %v687, 5
      %v690 = vsel %vm166, %v685, %v689
      %v691 = vshrl.u32 %v155, 16
      %v693 = vrot.slane %v691, 4
      %v694 = vor.u32 %v693, %v689
      %v695 = vrot.slane %v694, 4
      %v697 = vshll.u32 %v156, 16
      %v699 = vrot.slane %v697, 5
      %v700 = vsel %vm166, %v695, %v699
      %v701 = vshrl.u32 %v156, 16
      %v703 = vrot.slane %v701, 4
      %v704 = vor.u32 %v703, %v699
      %v705 = vrot.slane %v704, 4
      %v707 = vshll.u32 %v157, 16
      %v709 = vrot.slane %v707, 5
      %v710 = vsel %vm166, %v705, %v709
      %v765 = vmax.bf16 %v103, %v180
      %v766 = vmax.bf16 %v104, %v190
      %v767 = vmax.bf16 %v105, %v200
      %v768 = vmax.bf16 %v106, %v210
      %v769 = vmax.bf16 %v107, %v220
      %v770 = vmax.bf16 %v108, %v230
      %v771 = vmax.bf16 %v109, %v240
      %v772 = vmax.bf16 %v110, %v250
      %v773 = vmax.bf16 %v111, %v260
      %v774 = vmax.bf16 %v112, %v270
      %v775 = vmax.bf16 %v113, %v280
      %v776 = vmax.bf16 %v114, %v290
      %v777 = vmax.bf16 %v115, %v300
      %v778 = vmax.bf16 %v116, %v310
      %v779 = vmax.bf16 %v117, %v320
      %v780 = vmax.bf16 %v118, %v330
      %v781 = vmax.bf16 %v119, %v340
      %v782 = vmax.bf16 %v120, %v350
      %v783 = vmax.bf16 %v121, %v360
      %v784 = vmax.bf16 %v122, %v370
      %v785 = vmax.bf16 %v123, %v380
      %v786 = vmax.bf16 %v124, %v390
      %v787 = vmax.bf16 %v125, %v400
      %v788 = vmax.bf16 %v126, %v410
      %v789 = vmax.bf16 %v127, %v420
      %v790 = vmax.bf16 %v128, %v430
      %v791 = vmax.bf16 %v129, %v440
      %v792 = vmax.bf16 %v130, %v450
      %v793 = vmax.bf16 %v131, %v460
      %v794 = vmax.bf16 %v132, %v470
      %v795 = vmax.bf16 %v133, %v480
      %v796 = vmax.bf16 %v134, %v490
      %v797 = vmax.bf16 %v135, %v500
      %v798 = vmax.bf16 %v136, %v510
      %v799 = vmax.bf16 %v137, %v520
      %v800 = vmax.bf16 %v138, %v530
      %v801 = vmax.bf16 %v139, %v540
      %v802 = vmax.bf16 %v140, %v550
      %v803 = vmax.bf16 %v141, %v560
      %v804 = vmax.bf16 %v142, %v570
      %v805 = vmax.bf16 %v143, %v580
      %v806 = vmax.bf16 %v144, %v590
      %v807 = vmax.bf16 %v145, %v600
      %v808 = vmax.bf16 %v146, %v610
      %v809 = vmax.bf16 %v147, %v620
      %v810 = vmax.bf16 %v148, %v630
      %v811 = vmax.bf16 %v149, %v640
      %v812 = vmax.bf16 %v150, %v650
      %v813 = vmax.bf16 %v151, %v660
      %v814 = vmax.bf16 %v152, %v670
      %v815 = vmax.bf16 %v153, %v680
      %v816 = vmax.bf16 %v154, %v690
      %v817 = vmax.bf16 %v155, %v700
      %v818 = vmax.bf16 %v156, %v710
      %vm874 = vcmask 1042432
      %vm875 = vcmask 1046532
      %vm876 = vmor %vm874, %vm875
      %v877 = vrot.slane %v103, 5
      %v878 = vrot.slane %v877, 4
      %v879 = vrot.slane %v104, 5
      %v880 = vsel %vm876, %v878, %v879
      %v881 = vrot.slane %v879, 4
      %v882 = vrot.slane %v105, 5
      %v883 = vsel %vm876, %v881, %v882
      %v884 = vrot.slane %v882, 4
      %v885 = vrot.slane %v106, 5
      %v886 = vsel %vm876, %v884, %v885
      %v887 = vrot.slane %v885, 4
      %v888 = vrot.slane %v107, 5
      %v889 = vsel %vm876, %v887, %v888
      %v890 = vrot.slane %v888, 4
      %v891 = vrot.slane %v108, 5
      %v892 = vsel %vm876, %v890, %v891
      %v893 = vrot.slane %v891, 4
      %v894 = vrot.slane %v109, 5
      %v895 = vsel %vm876, %v893, %v894
      %v896 = vrot.slane %v894, 4
      %v897 = vrot.slane %v110, 5
      %v898 = vsel %vm876, %v896, %v897
      %v899 = vrot.slane %v897, 4
      %v900 = vrot.slane %v111, 5
      %v901 = vsel %vm876, %v899, %v900
      %v902 = vrot.slane %v900, 4
      %v903 = vrot.slane %v112, 5
      %v904 = vsel %vm876, %v902, %v903
      %v905 = vrot.slane %v903, 4
      %v906 = vrot.slane %v113, 5
      %v907 = vsel %vm876, %v905, %v906
      %v908 = vrot.slane %v906, 4
      %v909 = vrot.slane %v114, 5
      %v910 = vsel %vm876, %v908, %v909
      %v911 = vrot.slane %v909, 4
      %v912 = vrot.slane %v115, 5
      %v913 = vsel %vm876, %v911, %v912
      %v914 = vrot.slane %v912, 4
      %v915 = vrot.slane %v116, 5
      %v916 = vsel %vm876, %v914, %v915
      %v917 = vrot.slane %v915, 4
      %v918 = vrot.slane %v117, 5
      %v919 = vsel %vm876, %v917, %v918
      %v920 = vrot.slane %v918, 4
      %v921 = vrot.slane %v118, 5
      %v922 = vsel %vm876, %v920, %v921
      %v923 = vrot.slane %v921, 4
      %v924 = vrot.slane %v119, 5
      %v925 = vsel %vm876, %v923, %v924
      %v926 = vrot.slane %v924, 4
      %v927 = vrot.slane %v120, 5
      %v928 = vsel %vm876, %v926, %v927
      %v929 = vrot.slane %v927, 4
      %v930 = vrot.slane %v121, 5
      %v931 = vsel %vm876, %v929, %v930
      %v932 = vrot.slane %v930, 4
      %v933 = vrot.slane %v122, 5
      %v934 = vsel %vm876, %v932, %v933
      %v935 = vrot.slane %v933, 4
      %v936 = vrot.slane %v123, 5
      %v937 = vsel %vm876, %v935, %v936
      %v938 = vrot.slane %v936, 4
      %v939 = vrot.slane %v124, 5
      %v940 = vsel %vm876, %v938, %v939
      %v941 = vrot.slane %v939, 4
      %v942 = vrot.slane %v125, 5
      %v943 = vsel %vm876, %v941, %v942
      %v944 = vrot.slane %v942, 4
      %v945 = vrot.slane %v126, 5
      %v946 = vsel %vm876, %v944, %v945
      %v947 = vrot.slane %v945, 4
      %v948 = vrot.slane %v127, 5
      %v949 = vsel %vm876, %v947, %v948
      %v950 = vrot.slane %v948, 4
      %v951 = vrot.slane %v128, 5
      %v952 = vsel %vm876, %v950, %v951
      %v953 = vrot.slane %v951, 4
      %v954 = vrot.slane %v129, 5
      %v955 = vsel %vm876, %v953, %v954
      %v956 = vrot.slane %v954, 4
      %v957 = vrot.slane %v130, 5
      %v958 = vsel %vm876, %v956, %v957
      %v959 = vrot.slane %v957, 4
      %v960 = vrot.slane %v131, 5
      %v961 = vsel %vm876, %v959, %v960
      %v962 = vrot.slane %v960, 4
      %v963 = vrot.slane %v132, 5
      %v964 = vsel %vm876, %v962, %v963
      %v965 = vrot.slane %v963, 4
      %v966 = vrot.slane %v133, 5
      %v967 = vsel %vm876, %v965, %v966
      %v968 = vrot.slane %v966, 4
      %v969 = vrot.slane %v134, 5
      %v970 = vsel %vm876, %v968, %v969
      %v971 = vrot.slane %v969, 4
      %v972 = vrot.slane %v135, 5
      %v973 = vsel %vm876, %v971, %v972
      %v974 = vrot.slane %v972, 4
      %v975 = vrot.slane %v136, 5
      %v976 = vsel %vm876, %v974, %v975
      %v977 = vrot.slane %v975, 4
      %v978 = vrot.slane %v137, 5
      %v979 = vsel %vm876, %v977, %v978
      %v980 = vrot.slane %v978, 4
      %v981 = vrot.slane %v138, 5
      %v982 = vsel %vm876, %v980, %v981
      %v983 = vrot.slane %v981, 4
      %v984 = vrot.slane %v139, 5
      %v985 = vsel %vm876, %v983, %v984
      %v986 = vrot.slane %v984, 4
      %v987 = vrot.slane %v140, 5
      %v988 = vsel %vm876, %v986, %v987
      %v989 = vrot.slane %v987, 4
      %v990 = vrot.slane %v141, 5
      %v991 = vsel %vm876, %v989, %v990
      %v992 = vrot.slane %v990, 4
      %v993 = vrot.slane %v142, 5
      %v994 = vsel %vm876, %v992, %v993
      %v995 = vrot.slane %v993, 4
      %v996 = vrot.slane %v143, 5
      %v997 = vsel %vm876, %v995, %v996
      %v998 = vrot.slane %v996, 4
      %v999 = vrot.slane %v144, 5
      %v1000 = vsel %vm876, %v998, %v999
      %v1001 = vrot.slane %v999, 4
      %v1002 = vrot.slane %v145, 5
      %v1003 = vsel %vm876, %v1001, %v1002
      %v1004 = vrot.slane %v1002, 4
      %v1005 = vrot.slane %v146, 5
      %v1006 = vsel %vm876, %v1004, %v1005
      %v1007 = vrot.slane %v1005, 4
      %v1008 = vrot.slane %v147, 5
      %v1009 = vsel %vm876, %v1007, %v1008
      %v1010 = vrot.slane %v1008, 4
      %v1011 = vrot.slane %v148, 5
      %v1012 = vsel %vm876, %v1010, %v1011
      %v1013 = vrot.slane %v1011, 4
      %v1014 = vrot.slane %v149, 5
      %v1015 = vsel %vm876, %v1013, %v1014
      %v1016 = vrot.slane %v1014, 4
      %v1017 = vrot.slane %v150, 5
      %v1018 = vsel %vm876, %v1016, %v1017
      %v1019 = vrot.slane %v1017, 4
      %v1020 = vrot.slane %v151, 5
      %v1021 = vsel %vm876, %v1019, %v1020
      %v1022 = vrot.slane %v1020, 4
      %v1023 = vrot.slane %v152, 5
      %v1024 = vsel %vm876, %v1022, %v1023
      %v1025 = vrot.slane %v1023, 4
      %v1026 = vrot.slane %v153, 5
      %v1027 = vsel %vm876, %v1025, %v1026
      %v1028 = vrot.slane %v1026, 4
      %v1029 = vrot.slane %v154, 5
      %v1030 = vsel %vm876, %v1028, %v1029
      %v1031 = vrot.slane %v1029, 4
      %v1032 = vrot.slane %v155, 5
      %v1033 = vsel %vm876, %v1031, %v1032
      %v1034 = vrot.slane %v1032, 4
      %v1035 = vrot.slane %v156, 5
      %v1036 = vsel %vm876, %v1034, %v1035
      %v1037 = vrot.slane %v1035, 4
      %v1038 = vrot.slane %v157, 5
      %v1039 = vsel %vm876, %v1037, %v1038
      %v1094 = vmax.bf16 %v765, %v880
      %v1095 = vmax.bf16 %v766, %v883
      %v1096 = vmax.bf16 %v767, %v886
      %v1097 = vmax.bf16 %v768, %v889
      %v1098 = vmax.bf16 %v769, %v892
      %v1099 = vmax.bf16 %v770, %v895
      %v1100 = vmax.bf16 %v771, %v898
      %v1101 = vmax.bf16 %v772, %v901
      %v1102 = vmax.bf16 %v773, %v904
      %v1103 = vmax.bf16 %v774, %v907
      %v1104 = vmax.bf16 %v775, %v910
      %v1105 = vmax.bf16 %v776, %v913
      %v1106 = vmax.bf16 %v777, %v916
      %v1107 = vmax.bf16 %v778, %v919
      %v1108 = vmax.bf16 %v779, %v922
      %v1109 = vmax.bf16 %v780, %v925
      %v1110 = vmax.bf16 %v781, %v928
      %v1111 = vmax.bf16 %v782, %v931
      %v1112 = vmax.bf16 %v783, %v934
      %v1113 = vmax.bf16 %v784, %v937
      %v1114 = vmax.bf16 %v785, %v940
      %v1115 = vmax.bf16 %v786, %v943
      %v1116 = vmax.bf16 %v787, %v946
      %v1117 = vmax.bf16 %v788, %v949
      %v1118 = vmax.bf16 %v789, %v952
      %v1119 = vmax.bf16 %v790, %v955
      %v1120 = vmax.bf16 %v791, %v958
      %v1121 = vmax.bf16 %v792, %v961
      %v1122 = vmax.bf16 %v793, %v964
      %v1123 = vmax.bf16 %v794, %v967
      %v1124 = vmax.bf16 %v795, %v970
      %v1125 = vmax.bf16 %v796, %v973
      %v1126 = vmax.bf16 %v797, %v976
      %v1127 = vmax.bf16 %v798, %v979
      %v1128 = vmax.bf16 %v799, %v982
      %v1129 = vmax.bf16 %v800, %v985
      %v1130 = vmax.bf16 %v801, %v988
      %v1131 = vmax.bf16 %v802, %v991
      %v1132 = vmax.bf16 %v803, %v994
      %v1133 = vmax.bf16 %v804, %v997
      %v1134 = vmax.bf16 %v805, %v1000
      %v1135 = vmax.bf16 %v806, %v1003
      %v1136 = vmax.bf16 %v807, %v1006
      %v1137 = vmax.bf16 %v808, %v1009
      %v1138 = vmax.bf16 %v809, %v1012
      %v1139 = vmax.bf16 %v810, %v1015
      %v1140 = vmax.bf16 %v811, %v1018
      %v1141 = vmax.bf16 %v812, %v1021
      %v1142 = vmax.bf16 %v813, %v1024
      %v1143 = vmax.bf16 %v814, %v1027
      %v1144 = vmax.bf16 %v815, %v1030
      %v1145 = vmax.bf16 %v816, %v1033
      %v1146 = vmax.bf16 %v817, %v1036
      %v1147 = vmax.bf16 %v818, %v1039
      %v1148 = vmax.bf16 %v1094, %v106
      %v1149 = vmax.bf16 %v1095, %v107
      %v1150 = vmax.bf16 %v1096, %v108
      %v1151 = vmax.bf16 %v1097, %v109
      %v1152 = vmax.bf16 %v1098, %v110
      %v1153 = vmax.bf16 %v1099, %v111
      %v1154 = vmax.bf16 %v1100, %v112
      %v1155 = vmax.bf16 %v1101, %v113
      %v1156 = vmax.bf16 %v1102, %v114
      %v1157 = vmax.bf16 %v1103, %v115
      %v1158 = vmax.bf16 %v1104, %v116
      %v1159 = vmax.bf16 %v1105, %v117
      %v1160 = vmax.bf16 %v1106, %v118
      %v1161 = vmax.bf16 %v1107, %v119
      %v1162 = vmax.bf16 %v1108, %v120
      %v1163 = vmax.bf16 %v1109, %v121
      %v1164 = vmax.bf16 %v1110, %v122
      %v1165 = vmax.bf16 %v1111, %v123
      %v1166 = vmax.bf16 %v1112, %v124
      %v1167 = vmax.bf16 %v1113, %v125
      %v1168 = vmax.bf16 %v1114, %v126
      %v1169 = vmax.bf16 %v1115, %v127
      %v1170 = vmax.bf16 %v1116, %v128
      %v1171 = vmax.bf16 %v1117, %v129
      %v1172 = vmax.bf16 %v1118, %v130
      %v1173 = vmax.bf16 %v1119, %v131
      %v1174 = vmax.bf16 %v1120, %v132
      %v1175 = vmax.bf16 %v1121, %v133
      %v1176 = vmax.bf16 %v1122, %v134
      %v1177 = vmax.bf16 %v1123, %v135
      %v1178 = vmax.bf16 %v1124, %v136
      %v1179 = vmax.bf16 %v1125, %v137
      %v1180 = vmax.bf16 %v1126, %v138
      %v1181 = vmax.bf16 %v1127, %v139
      %v1182 = vmax.bf16 %v1128, %v140
      %v1183 = vmax.bf16 %v1129, %v141
      %v1184 = vmax.bf16 %v1130, %v142
      %v1185 = vmax.bf16 %v1131, %v143
      %v1186 = vmax.bf16 %v1132, %v144
      %v1187 = vmax.bf16 %v1133, %v145
      %v1188 = vmax.bf16 %v1134, %v146
      %v1189 = vmax.bf16 %v1135, %v147
      %v1190 = vmax.bf16 %v1136, %v148
      %v1191 = vmax.bf16 %v1137, %v149
      %v1192 = vmax.bf16 %v1138, %v150
      %v1193 = vmax.bf16 %v1139, %v151
      %v1194 = vmax.bf16 %v1140, %v152
      %v1195 = vmax.bf16 %v1141, %v153
      %v1196 = vmax.bf16 %v1142, %v154
      %v1197 = vmax.bf16 %v1143, %v155
      %v1198 = vmax.bf16 %v1144, %v156
      %v1199 = vmax.bf16 %v1145, %v157
      %v1200 = vmax.bf16 %v1146, %v158
      %v1201 = vmax.bf16 %v1147, %v159
      %v1202 = vshrl.u32 %v157, 16
      %v1204 = vrot.slane %v1202, 4
      %v1205 = vor.u32 %v1204, %v709
      %v1206 = vrot.slane %v1205, 4
      %v1208 = vshll.u32 %v158, 16
      %v1210 = vrot.slane %v1208, 5
      %v1211 = vsel %vm166, %v1206, %v1210
      %v1212 = vshrl.u32 %v158, 16
      %v1214 = vrot.slane %v1212, 4
      %v1215 = vor.u32 %v1214, %v1210
      %v1216 = vrot.slane %v1215, 4
      %v1218 = vshll.u32 %v159, 16
      %v1220 = vrot.slane %v1218, 5
      %v1221 = vsel %vm166, %v1216, %v1220
      %v1222 = vshrl.u32 %v159, 16
      %v1224 = vrot.slane %v1222, 4
      %v1225 = vor.u32 %v1224, %v1220
      %v1226 = vrot.slane %v1225, 4
      %v1228 = vshll.u32 %v160, 16
      %v1230 = vrot.slane %v1228, 5
      %v1231 = vsel %vm166, %v1226, %v1230
      %v1235 = vmax.bf16 %v1148, %v210
      %v1236 = vmax.bf16 %v1149, %v220
      %v1237 = vmax.bf16 %v1150, %v230
      %v1238 = vmax.bf16 %v1151, %v240
      %v1239 = vmax.bf16 %v1152, %v250
      %v1240 = vmax.bf16 %v1153, %v260
      %v1241 = vmax.bf16 %v1154, %v270
      %v1242 = vmax.bf16 %v1155, %v280
      %v1243 = vmax.bf16 %v1156, %v290
      %v1244 = vmax.bf16 %v1157, %v300
      %v1245 = vmax.bf16 %v1158, %v310
      %v1246 = vmax.bf16 %v1159, %v320
      %v1247 = vmax.bf16 %v1160, %v330
      %v1248 = vmax.bf16 %v1161, %v340
      %v1249 = vmax.bf16 %v1162, %v350
      %v1250 = vmax.bf16 %v1163, %v360
      %v1251 = vmax.bf16 %v1164, %v370
      %v1252 = vmax.bf16 %v1165, %v380
      %v1253 = vmax.bf16 %v1166, %v390
      %v1254 = vmax.bf16 %v1167, %v400
      %v1255 = vmax.bf16 %v1168, %v410
      %v1256 = vmax.bf16 %v1169, %v420
      %v1257 = vmax.bf16 %v1170, %v430
      %v1258 = vmax.bf16 %v1171, %v440
      %v1259 = vmax.bf16 %v1172, %v450
      %v1260 = vmax.bf16 %v1173, %v460
      %v1261 = vmax.bf16 %v1174, %v470
      %v1262 = vmax.bf16 %v1175, %v480
      %v1263 = vmax.bf16 %v1176, %v490
      %v1264 = vmax.bf16 %v1177, %v500
      %v1265 = vmax.bf16 %v1178, %v510
      %v1266 = vmax.bf16 %v1179, %v520
      %v1267 = vmax.bf16 %v1180, %v530
      %v1268 = vmax.bf16 %v1181, %v540
      %v1269 = vmax.bf16 %v1182, %v550
      %v1270 = vmax.bf16 %v1183, %v560
      %v1271 = vmax.bf16 %v1184, %v570
      %v1272 = vmax.bf16 %v1185, %v580
      %v1273 = vmax.bf16 %v1186, %v590
      %v1274 = vmax.bf16 %v1187, %v600
      %v1275 = vmax.bf16 %v1188, %v610
      %v1276 = vmax.bf16 %v1189, %v620
      %v1277 = vmax.bf16 %v1190, %v630
      %v1278 = vmax.bf16 %v1191, %v640
      %v1279 = vmax.bf16 %v1192, %v650
      %v1280 = vmax.bf16 %v1193, %v660
      %v1281 = vmax.bf16 %v1194, %v670
      %v1282 = vmax.bf16 %v1195, %v680
      %v1283 = vmax.bf16 %v1196, %v690
      %v1284 = vmax.bf16 %v1197, %v700
      %v1285 = vmax.bf16 %v1198, %v710
      %v1286 = vmax.bf16 %v1199, %v1211
      %v1287 = vmax.bf16 %v1200, %v1221
      %v1288 = vmax.bf16 %v1201, %v1231
      %v1292 = vrot.slane %v1038, 4
      %v1293 = vrot.slane %v158, 5
      %v1294 = vsel %vm876, %v1292, %v1293
      %v1295 = vrot.slane %v1293, 4
      %v1296 = vrot.slane %v159, 5
      %v1297 = vsel %vm876, %v1295, %v1296
      %v1298 = vrot.slane %v1296, 4
      %v1299 = vrot.slane %v160, 5
      %v1300 = vsel %vm876, %v1298, %v1299
      %v1304 = vmax.bf16 %v1235, %v889
      %v1305 = vmax.bf16 %v1236, %v892
      %v1306 = vmax.bf16 %v1237, %v895
      %v1307 = vmax.bf16 %v1238, %v898
      %v1308 = vmax.bf16 %v1239, %v901
      %v1309 = vmax.bf16 %v1240, %v904
      %v1310 = vmax.bf16 %v1241, %v907
      %v1311 = vmax.bf16 %v1242, %v910
      %v1312 = vmax.bf16 %v1243, %v913
      %v1313 = vmax.bf16 %v1244, %v916
      %v1314 = vmax.bf16 %v1245, %v919
      %v1315 = vmax.bf16 %v1246, %v922
      %v1316 = vmax.bf16 %v1247, %v925
      %v1317 = vmax.bf16 %v1248, %v928
      %v1318 = vmax.bf16 %v1249, %v931
      %v1319 = vmax.bf16 %v1250, %v934
      %v1320 = vmax.bf16 %v1251, %v937
      %v1321 = vmax.bf16 %v1252, %v940
      %v1322 = vmax.bf16 %v1253, %v943
      %v1323 = vmax.bf16 %v1254, %v946
      %v1324 = vmax.bf16 %v1255, %v949
      %v1325 = vmax.bf16 %v1256, %v952
      %v1326 = vmax.bf16 %v1257, %v955
      %v1327 = vmax.bf16 %v1258, %v958
      %v1328 = vmax.bf16 %v1259, %v961
      %v1329 = vmax.bf16 %v1260, %v964
      %v1330 = vmax.bf16 %v1261, %v967
      %v1331 = vmax.bf16 %v1262, %v970
      %v1332 = vmax.bf16 %v1263, %v973
      %v1333 = vmax.bf16 %v1264, %v976
      %v1334 = vmax.bf16 %v1265, %v979
      %v1335 = vmax.bf16 %v1266, %v982
      %v1336 = vmax.bf16 %v1267, %v985
      %v1337 = vmax.bf16 %v1268, %v988
      %v1338 = vmax.bf16 %v1269, %v991
      %v1339 = vmax.bf16 %v1270, %v994
      %v1340 = vmax.bf16 %v1271, %v997
      %v1341 = vmax.bf16 %v1272, %v1000
      %v1342 = vmax.bf16 %v1273, %v1003
      %v1343 = vmax.bf16 %v1274, %v1006
      %v1344 = vmax.bf16 %v1275, %v1009
      %v1345 = vmax.bf16 %v1276, %v1012
      %v1346 = vmax.bf16 %v1277, %v1015
      %v1347 = vmax.bf16 %v1278, %v1018
      %v1348 = vmax.bf16 %v1279, %v1021
      %v1349 = vmax.bf16 %v1280, %v1024
      %v1350 = vmax.bf16 %v1281, %v1027
      %v1351 = vmax.bf16 %v1282, %v1030
      %v1352 = vmax.bf16 %v1283, %v1033
      %v1353 = vmax.bf16 %v1284, %v1036
      %v1354 = vmax.bf16 %v1285, %v1039
      %v1355 = vmax.bf16 %v1286, %v1294
      %v1356 = vmax.bf16 %v1287, %v1297
      %v1357 = vmax.bf16 %v1288, %v1300
      %v1358 = vmax.bf16 %v1304, %v109
      %v1359 = vmax.bf16 %v1305, %v110
      %v1360 = vmax.bf16 %v1306, %v111
      %v1361 = vmax.bf16 %v1307, %v112
      %v1362 = vmax.bf16 %v1308, %v113
      %v1363 = vmax.bf16 %v1309, %v114
      %v1364 = vmax.bf16 %v1310, %v115
      %v1365 = vmax.bf16 %v1311, %v116
      %v1366 = vmax.bf16 %v1312, %v117
      %v1367 = vmax.bf16 %v1313, %v118
      %v1368 = vmax.bf16 %v1314, %v119
      %v1369 = vmax.bf16 %v1315, %v120
      %v1370 = vmax.bf16 %v1316, %v121
      %v1371 = vmax.bf16 %v1317, %v122
      %v1372 = vmax.bf16 %v1318, %v123
      %v1373 = vmax.bf16 %v1319, %v124
      %v1374 = vmax.bf16 %v1320, %v125
      %v1375 = vmax.bf16 %v1321, %v126
      %v1376 = vmax.bf16 %v1322, %v127
      %v1377 = vmax.bf16 %v1323, %v128
      %v1378 = vmax.bf16 %v1324, %v129
      %v1379 = vmax.bf16 %v1325, %v130
      %v1380 = vmax.bf16 %v1326, %v131
      %v1381 = vmax.bf16 %v1327, %v132
      %v1382 = vmax.bf16 %v1328, %v133
      %v1383 = vmax.bf16 %v1329, %v134
      %v1384 = vmax.bf16 %v1330, %v135
      %v1385 = vmax.bf16 %v1331, %v136
      %v1386 = vmax.bf16 %v1332, %v137
      %v1387 = vmax.bf16 %v1333, %v138
      %v1388 = vmax.bf16 %v1334, %v139
      %v1389 = vmax.bf16 %v1335, %v140
      %v1390 = vmax.bf16 %v1336, %v141
      %v1391 = vmax.bf16 %v1337, %v142
      %v1392 = vmax.bf16 %v1338, %v143
      %v1393 = vmax.bf16 %v1339, %v144
      %v1394 = vmax.bf16 %v1340, %v145
      %v1395 = vmax.bf16 %v1341, %v146
      %v1396 = vmax.bf16 %v1342, %v147
      %v1397 = vmax.bf16 %v1343, %v148
      %v1398 = vmax.bf16 %v1344, %v149
      %v1399 = vmax.bf16 %v1345, %v150
      %v1400 = vmax.bf16 %v1346, %v151
      %v1401 = vmax.bf16 %v1347, %v152
      %v1402 = vmax.bf16 %v1348, %v153
      %v1403 = vmax.bf16 %v1349, %v154
      %v1404 = vmax.bf16 %v1350, %v155
      %v1405 = vmax.bf16 %v1351, %v156
      %v1406 = vmax.bf16 %v1352, %v157
      %v1407 = vmax.bf16 %v1353, %v158
      %v1408 = vmax.bf16 %v1354, %v159
      %v1409 = vmax.bf16 %v1355, %v160
      %v1410 = vmax.bf16 %v1356, %v161
      %v1411 = vmax.bf16 %v1357, %v162
      %v1412 = vshrl.u32 %v160, 16
      %v1414 = vrot.slane %v1412, 4
      %v1415 = vor.u32 %v1414, %v1230
      %v1416 = vrot.slane %v1415, 4
      %v1418 = vshll.u32 %v161, 16
      %v1420 = vrot.slane %v1418, 5
      %v1421 = vsel %vm166, %v1416, %v1420
      %v1422 = vshrl.u32 %v161, 16
      %v1424 = vrot.slane %v1422, 4
      %v1425 = vor.u32 %v1424, %v1420
      %v1426 = vrot.slane %v1425, 4
      %v1428 = vshll.u32 %v162, 16
      %v1430 = vrot.slane %v1428, 5
      %v1431 = vsel %vm166, %v1426, %v1430
      %v1432 = vshrl.u32 %v162, 16
      %v1434 = vrot.slane %v1432, 4
      %v1435 = vor.u32 %v1434, %v1430
      %v1436 = vrot.slane %v1435, 4
      %v1438 = vshll.u32 %v163, 16
      %v1440 = vrot.slane %v1438, 5
      %v1441 = vsel %vm166, %v1436, %v1440
      %v1445 = vmax.bf16 %v1358, %v240
      %v1446 = vmax.bf16 %v1359, %v250
      %v1447 = vmax.bf16 %v1360, %v260
      %v1448 = vmax.bf16 %v1361, %v270
      %v1449 = vmax.bf16 %v1362, %v280
      %v1450 = vmax.bf16 %v1363, %v290
      %v1451 = vmax.bf16 %v1364, %v300
      %v1452 = vmax.bf16 %v1365, %v310
      %v1453 = vmax.bf16 %v1366, %v320
      %v1454 = vmax.bf16 %v1367, %v330
      %v1455 = vmax.bf16 %v1368, %v340
      %v1456 = vmax.bf16 %v1369, %v350
      %v1457 = vmax.bf16 %v1370, %v360
      %v1458 = vmax.bf16 %v1371, %v370
      %v1459 = vmax.bf16 %v1372, %v380
      %v1460 = vmax.bf16 %v1373, %v390
      %v1461 = vmax.bf16 %v1374, %v400
      %v1462 = vmax.bf16 %v1375, %v410
      %v1463 = vmax.bf16 %v1376, %v420
      %v1464 = vmax.bf16 %v1377, %v430
      %v1465 = vmax.bf16 %v1378, %v440
      %v1466 = vmax.bf16 %v1379, %v450
      %v1467 = vmax.bf16 %v1380, %v460
      %v1468 = vmax.bf16 %v1381, %v470
      %v1469 = vmax.bf16 %v1382, %v480
      %v1470 = vmax.bf16 %v1383, %v490
      %v1471 = vmax.bf16 %v1384, %v500
      %v1472 = vmax.bf16 %v1385, %v510
      %v1473 = vmax.bf16 %v1386, %v520
      %v1474 = vmax.bf16 %v1387, %v530
      %v1475 = vmax.bf16 %v1388, %v540
      %v1476 = vmax.bf16 %v1389, %v550
      %v1477 = vmax.bf16 %v1390, %v560
      %v1478 = vmax.bf16 %v1391, %v570
      %v1479 = vmax.bf16 %v1392, %v580
      %v1480 = vmax.bf16 %v1393, %v590
      %v1481 = vmax.bf16 %v1394, %v600
      %v1482 = vmax.bf16 %v1395, %v610
      %v1483 = vmax.bf16 %v1396, %v620
      %v1484 = vmax.bf16 %v1397, %v630
      %v1485 = vmax.bf16 %v1398, %v640
      %v1486 = vmax.bf16 %v1399, %v650
      %v1487 = vmax.bf16 %v1400, %v660
      %v1488 = vmax.bf16 %v1401, %v670
      %v1489 = vmax.bf16 %v1402, %v680
      %v1490 = vmax.bf16 %v1403, %v690
      %v1491 = vmax.bf16 %v1404, %v700
      %v1492 = vmax.bf16 %v1405, %v710
      %v1493 = vmax.bf16 %v1406, %v1211
      %v1494 = vmax.bf16 %v1407, %v1221
      %v1495 = vmax.bf16 %v1408, %v1231
      %v1496 = vmax.bf16 %v1409, %v1421
      %v1497 = vmax.bf16 %v1410, %v1431
      %v1498 = vmax.bf16 %v1411, %v1441
      %v1502 = vrot.slane %v1299, 4
      %v1503 = vrot.slane %v161, 5
      %v1504 = vsel %vm876, %v1502, %v1503
      %v1505 = vrot.slane %v1503, 4
      %v1506 = vrot.slane %v162, 5
      %v1507 = vsel %vm876, %v1505, %v1506
      %v1508 = vrot.slane %v1506, 4
      %v1509 = vrot.slane %v163, 5
      %v1510 = vsel %vm876, %v1508, %v1509
      %v1514 = vmax.bf16 %v1445, %v898
      %v1515 = vmax.bf16 %v1446, %v901
      %v1516 = vmax.bf16 %v1447, %v904
      %v1517 = vmax.bf16 %v1448, %v907
      %v1518 = vmax.bf16 %v1449, %v910
      %v1519 = vmax.bf16 %v1450, %v913
      %v1520 = vmax.bf16 %v1451, %v916
      %v1521 = vmax.bf16 %v1452, %v919
      %v1522 = vmax.bf16 %v1453, %v922
      %v1523 = vmax.bf16 %v1454, %v925
      %v1524 = vmax.bf16 %v1455, %v928
      %v1525 = vmax.bf16 %v1456, %v931
      %v1526 = vmax.bf16 %v1457, %v934
      %v1527 = vmax.bf16 %v1458, %v937
      %v1528 = vmax.bf16 %v1459, %v940
      %v1529 = vmax.bf16 %v1460, %v943
      %v1530 = vmax.bf16 %v1461, %v946
      %v1531 = vmax.bf16 %v1462, %v949
      %v1532 = vmax.bf16 %v1463, %v952
      %v1533 = vmax.bf16 %v1464, %v955
      %v1534 = vmax.bf16 %v1465, %v958
      %v1535 = vmax.bf16 %v1466, %v961
      %v1536 = vmax.bf16 %v1467, %v964
      %v1537 = vmax.bf16 %v1468, %v967
      %v1538 = vmax.bf16 %v1469, %v970
      %v1539 = vmax.bf16 %v1470, %v973
      %v1540 = vmax.bf16 %v1471, %v976
      %v1541 = vmax.bf16 %v1472, %v979
      %v1542 = vmax.bf16 %v1473, %v982
      %v1543 = vmax.bf16 %v1474, %v985
      %v1544 = vmax.bf16 %v1475, %v988
      %v1545 = vmax.bf16 %v1476, %v991
      %v1546 = vmax.bf16 %v1477, %v994
      %v1547 = vmax.bf16 %v1478, %v997
      %v1548 = vmax.bf16 %v1479, %v1000
      %v1549 = vmax.bf16 %v1480, %v1003
      %v1550 = vmax.bf16 %v1481, %v1006
      %v1551 = vmax.bf16 %v1482, %v1009
      %v1552 = vmax.bf16 %v1483, %v1012
      %v1553 = vmax.bf16 %v1484, %v1015
      %v1554 = vmax.bf16 %v1485, %v1018
      %v1555 = vmax.bf16 %v1486, %v1021
      %v1556 = vmax.bf16 %v1487, %v1024
      %v1557 = vmax.bf16 %v1488, %v1027
      %v1558 = vmax.bf16 %v1489, %v1030
      %v1559 = vmax.bf16 %v1490, %v1033
      %v1560 = vmax.bf16 %v1491, %v1036
      %v1561 = vmax.bf16 %v1492, %v1039
      %v1562 = vmax.bf16 %v1493, %v1294
      %v1563 = vmax.bf16 %v1494, %v1297
      %v1564 = vmax.bf16 %v1495, %v1300
      %v1565 = vmax.bf16 %v1496, %v1504
      %v1566 = vmax.bf16 %v1497, %v1507
      %v1567 = vmax.bf16 %v1498, %v1510
      %1568 = vst [vmem:[%s96] sm:$0xf] %v1514
      %1569 = vst [vmem:[%s96 + $0x4] sm:$0xf] %v1515
      %1570 = vst [vmem:[%s96 + $0x8] sm:$0xf] %v1516
      %1571 = vst [vmem:[%s96 + $0xc] sm:$0xf] %v1517
      %1572 = vst [vmem:[%s96 + $0x10] sm:$0xf] %v1518
      %1573 = vst [vmem:[%s96 + $0x14] sm:$0xf] %v1519
      %1574 = vst [vmem:[%s96 + $0x18] sm:$0xf] %v1520
      %1575 = vst [vmem:[%s96 + $0x1c] sm:$0xf] %v1521
      %1576 = vst [vmem:[%s96 + $0x20] sm:$0xf] %v1522
      %1577 = vst [vmem:[%s96 + $0x24] sm:$0xf] %v1523
      %1578 = vst [vmem:[%s96 + $0x28] sm:$0xf] %v1524
      %1579 = vst [vmem:[%s96 + $0x2c] sm:$0xf] %v1525
      %1580 = vst [vmem:[%s96 + $0x30] sm:$0xf] %v1526
      %1581 = vst [vmem:[%s96 + $0x34] sm:$0xf] %v1527
      %1582 = vst [vmem:[%s96 + $0x38] sm:$0xf] %v1528
      %1583 = vst [vmem:[%s96 + $0x3c] sm:$0xf] %v1529
      %1584 = vst [vmem:[%s96 + $0x40] sm:$0xf] %v1530
      %1585 = vst [vmem:[%s96 + $0x44] sm:$0xf] %v1531
      %1586 = vst [vmem:[%s96 + $0x48] sm:$0xf] %v1532
      %1587 = vst [vmem:[%s96 + $0x4c] sm:$0xf] %v1533
      %1588 = vst [vmem:[%s96 + $0x50] sm:$0xf] %v1534
      %1589 = vst [vmem:[%s96 + $0x54] sm:$0xf] %v1535
      %1590 = vst [vmem:[%s96 + $0x58] sm:$0xf] %v1536
      %1591 = vst [vmem:[%s96 + $0x5c] sm:$0xf] %v1537
      %1592 = vst [vmem:[%s96 + $0x60] sm:$0xf] %v1538
      %1593 = vst [vmem:[%s96 + $0x64] sm:$0xf] %v1539
      %1594 = vst [vmem:[%s96 + $0x68] sm:$0xf] %v1540
      %1595 = vst [vmem:[%s96 + $0x6c] sm:$0xf] %v1541
      %1596 = vst [vmem:[%s96 + $0x70] sm:$0xf] %v1542
      %1597 = vst [vmem:[%s96 + $0x74] sm:$0xf] %v1543
      %1598 = vst [vmem:[%s96 + $0x78] sm:$0xf] %v1544
      %1599 = vst [vmem:[%s96 + $0x7c] sm:$0xf] %v1545
      %1600 = vst [vmem:[%s96 + $0x80] sm:$0xf] %v1546
      %1601 = vst [vmem:[%s96 + $0x84] sm:$0xf] %v1547
      %1602 = vst [vmem:[%s96 + $0x88] sm:$0xf] %v1548
      %1603 = vst [vmem:[%s96 + $0x8c] sm:$0xf] %v1549
      %1604 = vst [vmem:[%s96 + $0x90] sm:$0xf] %v1550
      %1605 = vst [vmem:[%s96 + $0x94] sm:$0xf] %v1551
      %1606 = vst [vmem:[%s96 + $0x98] sm:$0xf] %v1552
      %1607 = vst [vmem:[%s96 + $0x9c] sm:$0xf] %v1553
      %1608 = vst [vmem:[%s96 + $0xa0] sm:$0xf] %v1554
      %1609 = vst [vmem:[%s96 + $0xa4] sm:$0xf] %v1555
      %1610 = vst [vmem:[%s96 + $0xa8] sm:$0xf] %v1556
      %1611 = vst [vmem:[%s96 + $0xac] sm:$0xf] %v1557
      %1612 = vst [vmem:[%s96 + $0xb0] sm:$0xf] %v1558
      %1613 = vst [vmem:[%s96 + $0xb4] sm:$0xf] %v1559
      %1614 = vst [vmem:[%s96 + $0xb8] sm:$0xf] %v1560
      %1615 = vst [vmem:[%s96 + $0xbc] sm:$0xf] %v1561
      %1616 = vst [vmem:[%s96 + $0xc0] sm:$0xf] %v1562
      %1617 = vst [vmem:[%s96 + $0xc4] sm:$0xf] %v1563
      %1618 = vst [vmem:[%s96 + $0xc8] sm:$0xf] %v1564
      %1619 = vst [vmem:[%s96 + $0xcc] sm:$0xf] %v1565
      %1620 = vst [vmem:[%s96 + $0xd0] sm:$0xf] %v1566
      %1621 = vst [vmem:[%s96 + $0xd4] sm:$0xf] %v1567
      %s1622 = smul.u32 54, %s12
      %p1623 = scmp.lt.s32.totalorder %s1622, 107
      %s1624 = scalar_select %p1623, %s1622, 107
      %s1625 = smul.addr %s1624, 4
      %s1626 = scalar_lea.vmem %s1, %s1625
      // Predicated region
      $region25: #{resnet_embedding_forward.11} parent=23 // pred_check
        %p1627 = pneg %p51
      $region26: #{resnet_embedding_forward.11} parent=23 // pred_check_branch
        %1629 = sbr.rel (%p1627) target = $region28
      $region27: #{resnet_embedding_forward.11} parent=23 // pred_region
        %s1630 = smul.u32 54, %s12
      $region28: #{resnet_embedding_forward.11} parent=23 // pred_fallthru
        _
    $region24: #{resnet_embedding_forward.11} parent=5 // pred_fallthru
      _
    %p1631 = scmp.le.s32.totalorder 2, %s7
    // Predicated region
    $region29: #{resnet_embedding_forward.11} parent=5 // pred_check
      %p1632 = pneg %p1631
    $region30: #{resnet_embedding_forward.11} parent=5 // pred_check_branch
      %1634 = sbr.rel (%p1632) target = $region32
    $region31: #{resnet_embedding_forward.11} parent=5 // pred_region
      %s1635 = ssub.s32 %s7, 2
      // Predicated region
      $region33: #{resnet_embedding_forward.11} parent=31 // pred_check
        %p1636 = pneg %p57
      $region34: #{resnet_embedding_forward.11} parent=31 // pred_check_branch
        %1638 = sbr.rel (%p1636) target = $region36
      $region35: #{resnet_embedding_forward.11} parent=31 // pred_region
        %s1639 = smul.u32 54, %s13
        %p1640 = scmp.lt.s32.totalorder %s1639, 107
        %s1641 = scalar_select %p1640, %s1639, 107
        %s1642 = smul.addr %s1641, 4
        %s1643 = scalar_lea.vmem %s1, %s1642
      $region36: #{resnet_embedding_forward.11} parent=31 // pred_fallthru
        _
    $region32: #{resnet_embedding_forward.11} parent=5 // pred_fallthru
      _
  $region6: #{resnet_embedding_forward.11} parent=0 // loop_footer
    %s11 = sadd.s32 1, %s7
  $region7: #{resnet_embedding_forward.11} parent=0 // loop_footer_branch
    %6 = sbr.rel target = $region3
  $region8: #{resnet_embedding_forward.11} parent=0 // loop_exit
    _

// kernel: resnet_embedding_forward.12
$region0: #{resnet_embedding_forward.12}
  #allocation0 [shape = 'u32[]', space=smem, size = 0x4, offset = 0x4, fixed_abs, tag = 'smem constant byte address 0x4 - core index']
  #allocation1 [shape = 'u32[144,128]{1,0:T(1,128)}', space=vmem, size = 0x12000, scoped, tag = 'internal scratch']
  %s0 = inlined_call_operand.vmem [shape: bf16[360,128], index: 0, kind: input, shape index: {}]
  %s1 = inlined_call_operand.vmem [shape: bf16[1152,128], index: 1, kind: input, shape index: {}]
  %s2 = inlined_call_operand.vmem [shape: f32[1,128], index: 2, kind: input, shape index: {}]
  %s3 = inlined_call_operand.vmem [shape: f32[1,128], index: 3, kind: input, shape index: {}]
  %s4 = inlined_call_operand.vmem [shape: f32[320,1], index: 4, kind: input, shape index: {}]
  %s5 = inlined_call_operand.vmem [shape: bf16[320,128], index: 5, kind: output, shape index: {}]
  %s6 = sld [smem:[#allocation0]]
  $region53: #{resnet_embedding_forward.12} parent=0
    _
  %s8 = ssub.s32 1, %s6
  %s9 = scalar_select 0, %s8, %s6
  loop: start=0, step=1, limit=4
  $region2: #{resnet_embedding_forward.12} parent=0 // loop_pre_header
    _
  $region3: #{resnet_embedding_forward.12} parent=0 // loop_header
    %s11 = sphi 0, %s15
    %p12 = scmp.ge.s32.totalorder %s11, 4
    %s19 = sphi 0, %s19
    %s21 = sphi 0, %s19
    %s22 = sphi 0, %s21
    %s36 = sphi 0, %s22
    %s40 = sphi 0, %s40
    %s42 = sphi 0, %s40
    %s43 = sphi 0, %s42
    %s57 = sphi 0, %s43
    %s61 = sphi 0, %s61
    %s63 = sphi 0, %s61
    %s64 = sphi 0, %s63
    %s78 = sphi 0, %s64
    %s82 = sphi 0, %s82
    %s84 = sphi 0, %s82
    %s85 = sphi 0, %s84
    %s99 = sphi 0, %s85
    %s105 = sphi 0, %s107
    %s108 = sphi 0, %s105
    %s109 = sphi 0, %s108
    %s125 = sphi 0, %s109
    %s131 = sphi 0, %s133
    %s134 = sphi 0, %s131
    %s135 = sphi 0, %s134
    %s151 = sphi 0, %s135
  $region4: #{resnet_embedding_forward.12} parent=0 // loop_header_branch
    %14 = sbr.rel (%p12) target = $region8
  $region5: #{resnet_embedding_forward.12} parent=0 // loop_body
    %s16 = ssub.s32 %s11, 1
    %s17 = ssub.s32 %s11, 2
    %s18 = sadd.s32 %s11, 1
    %s20 = sadd.s32 %s19, 1
    %p23 = scmp.eq.s32.totalorder %s11, 1
    %p24 = scmp.ne.s32.totalorder %s19, %s21
    %p25 = scmp.eq.s32.totalorder %s11, 0
    %p26 = por %p24, %p25
    %p27 = scmp.ne.s32.totalorder %s19, %s21
    %p28 = scmp.eq.s32.totalorder %s16, 1
    %p29 = por %p27, %p28
    %p30 = scmp.ne.s32.totalorder %s21, %s22
    %p31 = scmp.eq.s32.totalorder %s16, 0
    %p32 = por %p30, %p31
    %p33 = scmp.ne.s32.totalorder %s21, %s22
    %p34 = scmp.eq.s32.totalorder %s17, 1
    %p35 = por %p33, %p34
    %p37 = scmp.ne.s32.totalorder %s22, %s36
    %p38 = scmp.eq.s32.totalorder %s17, 0
    %p39 = por %p37, %p38
    %s41 = sadd.s32 %s40, 1
    %p44 = scmp.eq.s32.totalorder %s11, 1
    %p45 = scmp.ne.s32.totalorder %s40, %s42
    %p46 = scmp.eq.s32.totalorder %s11, 0
    %p47 = por %p45, %p46
    %p48 = scmp.ne.s32.totalorder %s40, %s42
    %p49 = scmp.eq.s32.totalorder %s16, 1
    %p50 = por %p48, %p49
    %p51 = scmp.ne.s32.totalorder %s42, %s43
    %p52 = scmp.eq.s32.totalorder %s16, 0
    %p53 = por %p51, %p52
    %p54 = scmp.ne.s32.totalorder %s42, %s43
    %p55 = scmp.eq.s32.totalorder %s17, 1
    %p56 = por %p54, %p55
    %p58 = scmp.ne.s32.totalorder %s43, %s57
    %p59 = scmp.eq.s32.totalorder %s17, 0
    %p60 = por %p58, %p59
    %s62 = sadd.s32 %s61, 1
    %p65 = scmp.eq.s32.totalorder %s11, 1
    %p66 = scmp.ne.s32.totalorder %s61, %s63
    %p67 = scmp.eq.s32.totalorder %s11, 0
    %p68 = por %p66, %p67
    %p69 = scmp.ne.s32.totalorder %s61, %s63
    %p70 = scmp.eq.s32.totalorder %s16, 1
    %p71 = por %p69, %p70
    %p72 = scmp.ne.s32.totalorder %s63, %s64
    %p73 = scmp.eq.s32.totalorder %s16, 0
    %p74 = por %p72, %p73
    %p75 = scmp.ne.s32.totalorder %s63, %s64
    %p76 = scmp.eq.s32.totalorder %s17, 1
    %p77 = por %p75, %p76
    %p79 = scmp.ne.s32.totalorder %s64, %s78
    %p80 = scmp.eq.s32.totalorder %s17, 0
    %p81 = por %p79, %p80
    %s83 = sadd.s32 %s82, 1
    %p86 = scmp.eq.s32.totalorder %s11, 1
    %p87 = scmp.ne.s32.totalorder %s82, %s84
    %p88 = scmp.eq.s32.totalorder %s11, 0
    %p89 = por %p87, %p88
    %p90 = scmp.ne.s32.totalorder %s82, %s84
    %p91 = scmp.eq.s32.totalorder %s16, 1
    %p92 = por %p90, %p91
    %p93 = scmp.ne.s32.totalorder %s84, %s85
    %p94 = scmp.eq.s32.totalorder %s16, 0
    %p95 = por %p93, %p94
    %p96 = scmp.ne.s32.totalorder %s84, %s85
    %p97 = scmp.eq.s32.totalorder %s17, 1
    %p98 = por %p96, %p97
    %p100 = scmp.ne.s32.totalorder %s85, %s99
    %p101 = scmp.eq.s32.totalorder %s17, 0
    %p102 = por %p100, %p101
    %s103 = ssub.s32 %s11, %s18
    %p104 = scmp.eq.s32.totalorder %s103, 0
    %s106 = sadd.s32 %s105, 1
    %s107 = scalar_select %p104, %s105, %s106
    %p110 = pneg %p104
    %p111 = scmp.eq.s32.totalorder %s11, 1
    %p112 = por %p110, %p111
    %p113 = scmp.ne.s32.totalorder %s105, %s108
    %p114 = scmp.eq.s32.totalorder %s11, 0
    %p115 = por %p113, %p114
    %p116 = scmp.ne.s32.totalorder %s105, %s108
    %p117 = scmp.eq.s32.totalorder %s16, 1
    %p118 = por %p116, %p117
    %p119 = scmp.ne.s32.totalorder %s108, %s109
    %p120 = scmp.eq.s32.totalorder %s16, 0
    %p121 = por %p119, %p120
    %p122 = scmp.ne.s32.totalorder %s108, %s109
    %p123 = scmp.eq.s32.totalorder %s17, 1
    %p124 = por %p122, %p123
    %p126 = scmp.ne.s32.totalorder %s109, %s125
    %p127 = scmp.eq.s32.totalorder %s17, 0
    %p128 = por %p126, %p127
    %s129 = ssub.s32 %s11, %s18
    %p130 = scmp.eq.s32.totalorder %s129, 0
    %s132 = sadd.s32 %s131, 1
    %s133 = scalar_select %p130, %s131, %s132
    %p136 = pneg %p130
    %p137 = scmp.eq.s32.totalorder %s11, 1
    %p138 = por %p136, %p137
    %p139 = scmp.ne.s32.totalorder %s131, %s134
    %p140 = scmp.eq.s32.totalorder %s11, 0
    %p141 = por %p139, %p140
    %p142 = scmp.ne.s32.totalorder %s131, %s134
    %p143 = scmp.eq.s32.totalorder %s16, 1
    %p144 = por %p142, %p143
    %p145 = scmp.ne.s32.totalorder %s134, %s135
    %p146 = scmp.eq.s32.totalorder %s16, 0
    %p147 = por %p145, %p146
    %p148 = scmp.ne.s32.totalorder %s134, %s135
    %p149 = scmp.eq.s32.totalorder %s17, 1
    %p150 = por %p148, %p149
    %p152 = scmp.ne.s32.totalorder %s135, %s151
    %p153 = scmp.eq.s32.totalorder %s17, 0
    %p154 = por %p152, %p153
    %p155 = scmp.le.s32.totalorder 1, %s11
    %p156 = scmp.lt.s32.totalorder %s11, 3
    %p157 = pnand %p155, %p156
    %p158 = pneg %p157
    // Predicated region
    $region9: #{resnet_embedding_forward.12} parent=5 // pred_check
      _
    $region10: #{resnet_embedding_forward.12} parent=5 // pred_check_branch
      %160 = sbr.rel (%p157) target = $region12
    $region11: #{resnet_embedding_forward.12} parent=5 // pred_region
      %s161 = ssub.s32 %s11, 1
      // Predicated region
      $region13: #{resnet_embedding_forward.12} parent=11 // pred_check
        %p162 = pneg %p32
      $region14: #{resnet_embedding_forward.12} parent=11 // pred_check_branch
        %164 = sbr.rel (%p162) target = $region16
      $region15: #{resnet_embedding_forward.12} parent=11 // pred_region
        _
      $region16: #{resnet_embedding_forward.12} parent=11 // pred_fallthru
        _
      // Predicated region
      $region17: #{resnet_embedding_forward.12} parent=11 // pred_check
        %p165 = pneg %p53
      $region18: #{resnet_embedding_forward.12} parent=11 // pred_check_branch
        %167 = sbr.rel (%p165) target = $region20
      $region19: #{resnet_embedding_forward.12} parent=11 // pred_region
        _
      $region20: #{resnet_embedding_forward.12} parent=11 // pred_fallthru
        _
      // Predicated region
      $region21: #{resnet_embedding_forward.12} parent=11 // pred_check
        %p168 = pneg %p74
      $region22: #{resnet_embedding_forward.12} parent=11 // pred_check_branch
        %170 = sbr.rel (%p168) target = $region24
      $region23: #{resnet_embedding_forward.12} parent=11 // pred_region
        _
      $region24: #{resnet_embedding_forward.12} parent=11 // pred_fallthru
        _
      // Predicated region
      $region25: #{resnet_embedding_forward.12} parent=11 // pred_check
        %p171 = pneg %p95
      $region26: #{resnet_embedding_forward.12} parent=11 // pred_check_branch
        %173 = sbr.rel (%p171) target = $region28
      $region27: #{resnet_embedding_forward.12} parent=11 // pred_region
        _
      $region28: #{resnet_embedding_forward.12} parent=11 // pred_fallthru
        _
    $region12: #{resnet_embedding_forward.12} parent=5 // pred_fallthru
      _
    %p174 = scmp.lt.s32.totalorder %s11, 2
    // Predicated region
    $region29: #{resnet_embedding_forward.12} parent=5 // pred_check
      %p175 = pneg %p174
    $region30: #{resnet_embedding_forward.12} parent=5 // pred_check_branch
      %177 = sbr.rel (%p175) target = $region32
    $region31: #{resnet_embedding_forward.12} parent=5 // pred_region
      // Predicated region
      $region33: #{resnet_embedding_forward.12} parent=31 // pred_check
        %p178 = pneg %p115
      $region34: #{resnet_embedding_forward.12} parent=31 // pred_check_branch
        %180 = sbr.rel (%p178) target = $region36
      $region35: #{resnet_embedding_forward.12} parent=31 // pred_region
        %s181 = smul.u32 20, %s11
        %p182 = scmp.lt.s32.totalorder %s181, 39
        %s183 = scalar_select %p182, %s181, 39
        %s184 = smul.addr %s183, 8
        %s185 = scalar_lea.vmem %s4, %s184
        %s186 = smul.u32 20, %s11
      $region36: #{resnet_embedding_forward.12} parent=31 // pred_fallthru
        _
    $region32: #{resnet_embedding_forward.12} parent=5 // pred_fallthru
      _
    %p187 = scmp.le.s32.totalorder 1, %s11
    %p188 = scmp.lt.s32.totalorder %s11, 3
    %p189 = pnand %p187, %p188
    %p190 = pneg %p189
    // Predicated region
    $region37: #{resnet_embedding_forward.12} parent=5 // pred_check
      _
    $region38: #{resnet_embedding_forward.12} parent=5 // pred_check_branch
      %192 = sbr.rel (%p189) target = $region40
    $region39: #{resnet_embedding_forward.12} parent=5 // pred_region
      %s193 = ssub.s32 %s11, 1
      %p194 = pneg %p32
      %p195 = pneg %p29
      %p196 = pneg %p53
      %p197 = pneg %p50
      %p198 = pneg %p74
      %p199 = pneg %p71
      %p200 = pneg %p95
      %p201 = pneg %p92
      %s202 = smul.u32 20, %s16
      %p203 = scmp.lt.s32.totalorder %s202, 39
      %s204 = scalar_select %p203, %s202, 39
      %s205 = smul.addr %s204, 8
      %s206 = scalar_lea.vmem %s4, %s205
      %p207 = pneg %p121
      %p208 = pneg %p118
      %p209 = pneg %p147
      %p210 = pneg %p144
      %s211 = smul.u32 20, %s16
      %p212 = scmp.lt.s32.totalorder %s211, 39
      %s213 = scalar_select %p212, %s211, 39
      %s214 = smul.addr %s213, 4
      %s215 = scalar_lea.vmem %s5, %s214
      %s216 = smul.u32 20, %s16
      %p217 = scmp.lt.s32.totalorder %s216, 39
      %s218 = scalar_select %p217, %s216, 39
      %s219 = smul.addr %s218, 8
      %s220 = scalar_lea.vmem %s4, %s219
      %s221 = smul.u32 20, %s16
      %s222 = smul.u32 20, %s16
      %p223 = scmp.lt.s32.totalorder %s222, 39
      %s224 = scalar_select %p223, %s222, 39
      %s225 = smul.addr %s224, 4
      %s226 = scalar_lea.vmem %s5, %s225
      %s227 = smul.u32 20, %s16
      %s229 = smul.u32 %s16, 160
      %s230 = sshra.s32 %s229, 3
      %s231 = sand.u32 %s229, 7
      %s232 = smul.addr %s230, 4
      %s233 = scalar_lea.vmem %s0, %s232
      %v234 = vld [vmem:[%s233] sm:$0xf]
      %v235 = vld [vmem:[%s233 + $0x4] sm:$0xf]
      %v236 = vld [vmem:[%s233 + $0x8] sm:$0xf]
      %v237 = vld [vmem:[%s233 + $0xc] sm:$0xf]
      %v238 = vld [vmem:[%s233 + $0x10] sm:$0xf]
      %v239 = vld [vmem:[%s233 + $0x14] sm:$0xf]
      %v240 = vld [vmem:[%s233 + $0x18] sm:$0xf]
      %v241 = vld [vmem:[%s233 + $0x1c] sm:$0xf]
      %v242 = vld [vmem:[%s233 + $0x20] sm:$0xf]
      %v243 = vld [vmem:[%s233 + $0x24] sm:$0xf]
      %v244 = vld [vmem:[%s233 + $0x28] sm:$0xf]
      %v245 = vld [vmem:[%s233 + $0x2c] sm:$0xf]
      %v246 = vld [vmem:[%s233 + $0x30] sm:$0xf]
      %v247 = vld [vmem:[%s233 + $0x34] sm:$0xf]
      %v248 = vld [vmem:[%s233 + $0x38] sm:$0xf]
      %v249 = vld [vmem:[%s233 + $0x3c] sm:$0xf]
      %v250 = vld [vmem:[%s233 + $0x40] sm:$0xf]
      %v251 = vld [vmem:[%s233 + $0x44] sm:$0xf]
      %v252 = vld [vmem:[%s233 + $0x48] sm:$0xf]
      %v253 = vld [vmem:[%s233 + $0x4c] sm:$0xf]
      %v254 = vld [vmem:[%s233 + $0x50] sm:$0xf]
      %v255 = vld [vmem:[%s233 + $0x54] sm:$0xf]
      %v256 = vld [vmem:[%s233 + $0x58] sm:$0xf]
      %v257 = vld [vmem:[%s233 + $0x5c] sm:$0xf]
      %v258 = vld [vmem:[%s233 + $0x60] sm:$0xf]
      %v279 = vunpack.c.l.b16 %v234
      %v280 = vunpack.c.l.b16 %v235
      %v281 = vunpack.c.l.b16 %v236
      %v282 = vunpack.c.l.b16 %v237
      %v283 = vunpack.c.l.b16 %v238
      %v284 = vunpack.c.l.b16 %v239
      %v285 = vunpack.c.l.b16 %v240
      %v286 = vunpack.c.l.b16 %v241
      %v287 = vunpack.c.l.b16 %v242
      %v288 = vunpack.c.l.b16 %v243
      %v289 = vunpack.c.l.b16 %v244
      %v290 = vunpack.c.l.b16 %v245
      %v291 = vunpack.c.l.b16 %v246
      %v292 = vunpack.c.l.b16 %v247
      %v293 = vunpack.c.l.b16 %v248
      %v294 = vunpack.c.l.b16 %v249
      %v295 = vunpack.c.l.b16 %v250
      %v296 = vunpack.c.l.b16 %v251
      %v297 = vunpack.c.l.b16 %v252
      %v298 = vunpack.c.l.b16 %v253
      %v299 = vpack.c.b16 %v280, %v279
      %v300 = vpack.c.b16 %v282, %v281
      %v301 = vpack.c.b16 %v284, %v283
      %v302 = vpack.c.b16 %v286, %v285
      %v303 = vpack.c.b16 %v288, %v287
      %v304 = vpack.c.b16 %v290, %v289
      %v305 = vpack.c.b16 %v292, %v291
      %v306 = vpack.c.b16 %v294, %v293
      %v307 = vpack.c.b16 %v296, %v295
      %v308 = vpack.c.b16 %v298, %v297
      %v320 = vunpack.c.l.b16 %v254
      %v321 = vpack.c.b16 %v320, %v320
      %vm322 = vsmask.f32 7424
      %v324 = vshrl.u32 %v299, 16
      %v326 = vshll.u32 %v299, 16
      %v328 = vrot.slane %v326, 1
      %v329 = vor.u32 %v324, %v328
      %v331 = vshll.u32 %v300, 16
      %v333 = vrot.slane %v331, 1
      %v334 = vsel %vm322, %v329, %v333
      %v335 = vshrl.u32 %v300, 16
      %v337 = vor.u32 %v335, %v333
      %v339 = vshll.u32 %v301, 16
      %v341 = vrot.slane %v339, 1
      %v342 = vsel %vm322, %v337, %v341
      %v343 = vshrl.u32 %v301, 16
      %v345 = vor.u32 %v343, %v341
      %v347 = vshll.u32 %v302, 16
      %v349 = vrot.slane %v347, 1
      %v350 = vsel %vm322, %v345, %v349
      %v351 = vshrl.u32 %v302, 16
      %v353 = vor.u32 %v351, %v349
      %v355 = vshll.u32 %v303, 16
      %v357 = vrot.slane %v355, 1
      %v358 = vsel %vm322, %v353, %v357
      %v359 = vshrl.u32 %v303, 16
      %v361 = vor.u32 %v359, %v357
      %v363 = vshll.u32 %v304, 16
      %v365 = vrot.slane %v363, 1
      %v366 = vsel %vm322, %v361, %v365
      %v367 = vshrl.u32 %v304, 16
      %v369 = vor.u32 %v367, %v365
      %v371 = vshll.u32 %v305, 16
      %v373 = vrot.slane %v371, 1
      %v374 = vsel %vm322, %v369, %v373
      %v375 = vshrl.u32 %v305, 16
      %v377 = vor.u32 %v375, %v373
      %v379 = vshll.u32 %v306, 16
      %v381 = vrot.slane %v379, 1
      %v382 = vsel %vm322, %v377, %v381
      %v383 = vshrl.u32 %v306, 16
      %v385 = vor.u32 %v383, %v381
      %v387 = vshll.u32 %v307, 16
      %v389 = vrot.slane %v387, 1
      %v390 = vsel %vm322, %v385, %v389
      %v391 = vshrl.u32 %v307, 16
      %v393 = vor.u32 %v391, %v389
      %v395 = vshll.u32 %v308, 16
      %v397 = vrot.slane %v395, 1
      %v398 = vsel %vm322, %v393, %v397
      %v399 = vshrl.u32 %v308, 16
      %v401 = vor.u32 %v399, %v397
      %v403 = vshll.u32 %v321, 16
      %v405 = vrot.slane %v403, 1
      %v406 = vsel %vm322, %v401, %v405
      %vm417 = vcmask 1046528
      %v418 = vrot.slane %v299, 1
      %v419 = vrot.slane %v300, 1
      %v420 = vsel %vm417, %v418, %v419
      %v421 = vrot.slane %v301, 1
      %v422 = vsel %vm417, %v419, %v421
      %v423 = vrot.slane %v302, 1
      %v424 = vsel %vm417, %v421, %v423
      %v425 = vrot.slane %v303, 1
      %v426 = vsel %vm417, %v423, %v425
      %v427 = vrot.slane %v304, 1
      %v428 = vsel %vm417, %v425, %v427
      %v429 = vrot.slane %v305, 1
      %v430 = vsel %vm417, %v427, %v429
      %v431 = vrot.slane %v306, 1
      %v432 = vsel %vm417, %v429, %v431
      %v433 = vrot.slane %v307, 1
      %v434 = vsel %vm417, %v431, %v433
      %v435 = vrot.slane %v308, 1
      %v436 = vsel %vm417, %v433, %v435
      %v437 = vrot.slane %v321, 1
      %v438 = vsel %vm417, %v435, %v437
      %v450 = vunpack.c.l.b16 %v255
      %v451 = vpack.c.b16 %v450, %v320
      %v454 = vunpack.c.l.b16 %v256
      %v455 = vpack.c.b16 %v454, %v454
      %v457 = vshll.u32 %v451, 16
      %v459 = vrot.slane %v457, 1
      %v460 = vsel %vm322, %v401, %v459
      %v461 = vshrl.u32 %v451, 16
      %v463 = vor.u32 %v461, %v459
      %v465 = vshll.u32 %v455, 16
      %v467 = vrot.slane %v465, 1
      %v468 = vsel %vm322, %v463, %v467
      %v471 = vrot.slane %v451, 1
      %v472 = vsel %vm417, %v435, %v471
      %v473 = vrot.slane %v455, 1
      %v474 = vsel %vm417, %v471, %v473
      %v478 = vunpack.c.l.b16 %v257
      %v479 = vpack.c.b16 %v478, %v454
      %v482 = vunpack.c.l.b16 %v258
      %v483 = vpack.c.b16 %v482, %v482
      %v485 = vshll.u32 %v479, 16
      %v487 = vrot.slane %v485, 1
      %v488 = vsel %vm322, %v463, %v487
      %v489 = vshrl.u32 %v479, 16
      %v491 = vor.u32 %v489, %v487
      %v493 = vshll.u32 %v483, 16
      %v495 = vrot.slane %v493, 1
      %v496 = vsel %vm322, %v491, %v495
      %v499 = vrot.slane %v479, 1
      %v500 = vsel %vm417, %v471, %v499
      %v501 = vrot.slane %v483, 1
      %v502 = vsel %vm417, %v499, %v501
      %v505 = vld [vmem:[%s1] sm:$0xf]
      %v506 = vld [vmem:[%s1 + $0x4] sm:$0xf]
      %v507 = vld [vmem:[%s1 + $0x8] sm:$0xf]
      %v508 = vld [vmem:[%s1 + $0xc] sm:$0xf]
      %v509 = vld [vmem:[%s1 + $0x10] sm:$0xf]
      %v510 = vld [vmem:[%s1 + $0x14] sm:$0xf]
      %v511 = vld [vmem:[%s1 + $0x18] sm:$0xf]
      %v512 = vld [vmem:[%s1 + $0x1c] sm:$0xf]
      %v513 = vld [vmem:[%s1 + $0x20] sm:$0xf]
      %v514 = vld [vmem:[%s1 + $0x24] sm:$0xf]
      %v515 = vld [vmem:[%s1 + $0x28] sm:$0xf]
      %v516 = vld [vmem:[%s1 + $0x2c] sm:$0xf]
      %v517 = vld [vmem:[%s1 + $0x30] sm:$0xf]
      %v518 = vld [vmem:[%s1 + $0x34] sm:$0xf]
      %v519 = vld [vmem:[%s1 + $0x38] sm:$0xf]
      %v520 = vld [vmem:[%s1 + $0x3c] sm:$0xf]
      %v521 = vld [vmem:[%s1 + $0x40] sm:$0xf]
      %v522 = vld [vmem:[%s1 + $0x44] sm:$0xf]
      %v523 = vld [vmem:[%s1 + $0x48] sm:$0xf]
      %v524 = vld [vmem:[%s1 + $0x4c] sm:$0xf]
      %v525 = vld [vmem:[%s1 + $0x50] sm:$0xf]
      %v526 = vld [vmem:[%s1 + $0x54] sm:$0xf]
      %v527 = vld [vmem:[%s1 + $0x58] sm:$0xf]
      %v528 = vld [vmem:[%s1 + $0x5c] sm:$0xf]
      %v529 = vld [vmem:[%s1 + $0x60] sm:$0xf]
      %v530 = vld [vmem:[%s1 + $0x64] sm:$0xf]
      %v531 = vld [vmem:[%s1 + $0x68] sm:$0xf]
      %v532 = vld [vmem:[%s1 + $0x6c] sm:$0xf]
      %v533 = vld [vmem:[%s1 + $0x70] sm:$0xf]
      %v534 = vld [vmem:[%s1 + $0x74] sm:$0xf]
      %v535 = vld [vmem:[%s1 + $0x78] sm:$0xf]
      %v536 = vld [vmem:[%s1 + $0x7c] sm:$0xf]
      %v537 = vld [vmem:[%s1 + $0x80] sm:$0xf]
      %v538 = vld [vmem:[%s1 + $0x84] sm:$0xf]
      %v539 = vld [vmem:[%s1 + $0x88] sm:$0xf]
      %v540 = vld [vmem:[%s1 + $0x8c] sm:$0xf]
      %v541 = vld [vmem:[%s1 + $0x90] sm:$0xf]
      %v542 = vld [vmem:[%s1 + $0x94] sm:$0xf]
      %v543 = vld [vmem:[%s1 + $0x98] sm:$0xf]
      %v544 = vld [vmem:[%s1 + $0x9c] sm:$0xf]
      %v545 = vld [vmem:[%s1 + $0xa0] sm:$0xf]
      %v546 = vld [vmem:[%s1 + $0xa4] sm:$0xf]
      %v547 = vld [vmem:[%s1 + $0xa8] sm:$0xf]
      %v548 = vld [vmem:[%s1 + $0xac] sm:$0xf]
      %v549 = vld [vmem:[%s1 + $0xb0] sm:$0xf]
      %v550 = vld [vmem:[%s1 + $0xb4] sm:$0xf]
      %v551 = vld [vmem:[%s1 + $0xb8] sm:$0xf]
      %v552 = vld [vmem:[%s1 + $0xbc] sm:$0xf]
      %v553 = vld [vmem:[%s1 + $0xc0] sm:$0xf]
      %v554 = vld [vmem:[%s1 + $0xc4] sm:$0xf]
      %v555 = vld [vmem:[%s1 + $0xc8] sm:$0xf]
      %v556 = vld [vmem:[%s1 + $0xcc] sm:$0xf]
      %v557 = vld [vmem:[%s1 + $0xd0] sm:$0xf]
      %v558 = vld [vmem:[%s1 + $0xd4] sm:$0xf]
      %v559 = vld [vmem:[%s1 + $0xd8] sm:$0xf]
      %v560 = vld [vmem:[%s1 + $0xdc] sm:$0xf]
      %v561 = vld [vmem:[%s1 + $0xe0] sm:$0xf]
      %v562 = vld [vmem:[%s1 + $0xe4] sm:$0xf]
      %v563 = vld [vmem:[%s1 + $0xe8] sm:$0xf]
      %v564 = vld [vmem:[%s1 + $0xec] sm:$0xf]
      %v565 = vld [vmem:[%s1 + $0xf0] sm:$0xf]
      %v566 = vld [vmem:[%s1 + $0xf4] sm:$0xf]
      %v567 = vld [vmem:[%s1 + $0xf8] sm:$0xf]
      %v568 = vld [vmem:[%s1 + $0xfc] sm:$0xf]
      %v569 = vld [vmem:[%s1 + $0x100] sm:$0xf]
      %v570 = vld [vmem:[%s1 + $0x104] sm:$0xf]
      %v571 = vld [vmem:[%s1 + $0x108] sm:$0xf]
      %v572 = vld [vmem:[%s1 + $0x10c] sm:$0xf]
      %v573 = vld [vmem:[%s1 + $0x110] sm:$0xf]
      %v574 = vld [vmem:[%s1 + $0x114] sm:$0xf]
      %v575 = vld [vmem:[%s1 + $0x118] sm:$0xf]
      %v576 = vld [vmem:[%s1 + $0x11c] sm:$0xf]
      %v577 = vld [vmem:[%s1 + $0x120] sm:$0xf]
      %v578 = vld [vmem:[%s1 + $0x124] sm:$0xf]
      %v579 = vld [vmem:[%s1 + $0x128] sm:$0xf]
      %v580 = vld [vmem:[%s1 + $0x12c] sm:$0xf]
      %v581 = vld [vmem:[%s1 + $0x130] sm:$0xf]
      %v582 = vld [vmem:[%s1 + $0x134] sm:$0xf]
      %v583 = vld [vmem:[%s1 + $0x138] sm:$0xf]
      %v584 = vld [vmem:[%s1 + $0x13c] sm:$0xf]
      %v585 = vld [vmem:[%s1 + $0x140] sm:$0xf]
      %v586 = vld [vmem:[%s1 + $0x144] sm:$0xf]
      %v587 = vld [vmem:[%s1 + $0x148] sm:$0xf]
      %v588 = vld [vmem:[%s1 + $0x14c] sm:$0xf]
      %v589 = vld [vmem:[%s1 + $0x150] sm:$0xf]
      %v590 = vld [vmem:[%s1 + $0x154] sm:$0xf]
      %v591 = vld [vmem:[%s1 + $0x158] sm:$0xf]
      %v592 = vld [vmem:[%s1 + $0x15c] sm:$0xf]
      %v593 = vld [vmem:[%s1 + $0x160] sm:$0xf]
      %v594 = vld [vmem:[%s1 + $0x164] sm:$0xf]
      %v595 = vld [vmem:[%s1 + $0x168] sm:$0xf]
      %v596 = vld [vmem:[%s1 + $0x16c] sm:$0xf]
      %v597 = vld [vmem:[%s1 + $0x170] sm:$0xf]
      %v598 = vld [vmem:[%s1 + $0x174] sm:$0xf]
      %v599 = vld [vmem:[%s1 + $0x178] sm:$0xf]
      %v600 = vld [vmem:[%s1 + $0x17c] sm:$0xf]
      %v601 = vld [vmem:[%s1 + $0x180] sm:$0xf]
      %v602 = vld [vmem:[%s1 + $0x184] sm:$0xf]
      %v603 = vld [vmem:[%s1 + $0x188] sm:$0xf]
      %v604 = vld [vmem:[%s1 + $0x18c] sm:$0xf]
      %v605 = vld [vmem:[%s1 + $0x190] sm:$0xf]
      %v606 = vld [vmem:[%s1 + $0x194] sm:$0xf]
      %v607 = vld [vmem:[%s1 + $0x198] sm:$0xf]
      %v608 = vld [vmem:[%s1 + $0x19c] sm:$0xf]
      %v609 = vld [vmem:[%s1 + $0x1a0] sm:$0xf]
      %v610 = vld [vmem:[%s1 + $0x1a4] sm:$0xf]
      %v611 = vld [vmem:[%s1 + $0x1a8] sm:$0xf]
      %v612 = vld [vmem:[%s1 + $0x1ac] sm:$0xf]
      %v613 = vld [vmem:[%s1 + $0x1b0] sm:$0xf]
      %v614 = vld [vmem:[%s1 + $0x1b4] sm:$0xf]
      %v615 = vld [vmem:[%s1 + $0x1b8] sm:$0xf]
      %v616 = vld [vmem:[%s1 + $0x1bc] sm:$0xf]
      %v617 = vld [vmem:[%s1 + $0x1c0] sm:$0xf]
      %v618 = vld [vmem:[%s1 + $0x1c4] sm:$0xf]
      %v619 = vld [vmem:[%s1 + $0x1c8] sm:$0xf]
      %v620 = vld [vmem:[%s1 + $0x1cc] sm:$0xf]
      %v621 = vld [vmem:[%s1 + $0x1d0] sm:$0xf]
      %v622 = vld [vmem:[%s1 + $0x1d4] sm:$0xf]
      %v623 = vld [vmem:[%s1 + $0x1d8] sm:$0xf]
      %v624 = vld [vmem:[%s1 + $0x1dc] sm:$0xf]
      %v625 = vld [vmem:[%s1 + $0x1e0] sm:$0xf]
      %v626 = vld [vmem:[%s1 + $0x1e4] sm:$0xf]
      %v627 = vld [vmem:[%s1 + $0x1e8] sm:$0xf]
      %v628 = vld [vmem:[%s1 + $0x1ec] sm:$0xf]
      %v629 = vld [vmem:[%s1 + $0x1f0] sm:$0xf]
      %v630 = vld [vmem:[%s1 + $0x1f4] sm:$0xf]
      %v631 = vld [vmem:[%s1 + $0x1f8] sm:$0xf]
      %v632 = vld [vmem:[%s1 + $0x1fc] sm:$0xf]
      %v633 = vld [vmem:[%s1 + $0x200] sm:$0xf]
      %v634 = vld [vmem:[%s1 + $0x204] sm:$0xf]
      %v635 = vld [vmem:[%s1 + $0x208] sm:$0xf]
      %v636 = vld [vmem:[%s1 + $0x20c] sm:$0xf]
      %v637 = vld [vmem:[%s1 + $0x210] sm:$0xf]
      %v638 = vld [vmem:[%s1 + $0x214] sm:$0xf]
      %v639 = vld [vmem:[%s1 + $0x218] sm:$0xf]
      %v640 = vld [vmem:[%s1 + $0x21c] sm:$0xf]
      %v641 = vld [vmem:[%s1 + $0x220] sm:$0xf]
      %v642 = vld [vmem:[%s1 + $0x224] sm:$0xf]
      %v643 = vld [vmem:[%s1 + $0x228] sm:$0xf]
      %v644 = vld [vmem:[%s1 + $0x22c] sm:$0xf]
      %v645 = vld [vmem:[%s1 + $0x230] sm:$0xf]
      %v646 = vld [vmem:[%s1 + $0x234] sm:$0xf]
      %v647 = vld [vmem:[%s1 + $0x238] sm:$0xf]
      %v648 = vld [vmem:[%s1 + $0x23c] sm:$0xf]
      %v793 = vunpack.c.l.b16 %v505
      %v794 = vunpack.c.l.b16 %v506
      %v795 = vunpack.c.l.b16 %v507
      %v796 = vunpack.c.l.b16 %v508
      %v797 = vunpack.c.l.b16 %v509
      %v798 = vunpack.c.l.b16 %v510
      %v799 = vunpack.c.l.b16 %v511
      %v800 = vunpack.c.l.b16 %v512
      %v801 = vunpack.c.l.b16 %v513
      %v802 = vunpack.c.l.b16 %v514
      %v803 = vunpack.c.l.b16 %v515
      %v804 = vunpack.c.l.b16 %v516
      %v805 = vunpack.c.l.b16 %v517
      %v806 = vunpack.c.l.b16 %v518
      %v807 = vunpack.c.l.b16 %v519
      %v808 = vunpack.c.l.b16 %v520
      %v809 = vunpack.c.l.b16 %v521
      %v810 = vunpack.c.l.b16 %v522
      %v811 = vunpack.c.l.b16 %v523
      %v812 = vunpack.c.l.b16 %v524
      %v813 = vunpack.c.l.b16 %v525
      %v814 = vunpack.c.l.b16 %v526
      %v815 = vunpack.c.l.b16 %v527
      %v816 = vunpack.c.l.b16 %v528
      %v817 = vunpack.c.l.b16 %v529
      %v818 = vunpack.c.l.b16 %v530
      %v819 = vunpack.c.l.b16 %v531
      %v820 = vunpack.c.l.b16 %v532
      %v821 = vunpack.c.l.b16 %v533
      %v822 = vunpack.c.l.b16 %v534
      %v823 = vunpack.c.l.b16 %v535
      %v824 = vunpack.c.l.b16 %v536
      %v825 = vunpack.c.l.b16 %v537
      %v826 = vunpack.c.l.b16 %v538
      %v827 = vunpack.c.l.b16 %v539
      %v828 = vunpack.c.l.b16 %v540
      %v829 = vunpack.c.l.b16 %v541
      %v830 = vunpack.c.l.b16 %v542
      %v831 = vunpack.c.l.b16 %v543
      %v832 = vunpack.c.l.b16 %v544
      %v833 = vunpack.c.l.b16 %v545
      %v834 = vunpack.c.l.b16 %v546
      %v835 = vunpack.c.l.b16 %v547
      %v836 = vunpack.c.l.b16 %v548
      %v837 = vunpack.c.l.b16 %v549
      %v838 = vunpack.c.l.b16 %v550
      %v839 = vunpack.c.l.b16 %v551
      %v840 = vunpack.c.l.b16 %v552
      %v841 = vunpack.c.l.b16 %v553
      %v842 = vunpack.c.l.b16 %v554
      %v843 = vunpack.c.l.b16 %v555
      %v844 = vunpack.c.l.b16 %v556
      %v845 = vunpack.c.l.b16 %v557
      %v846 = vunpack.c.l.b16 %v558
      %v847 = vunpack.c.l.b16 %v559
      %v848 = vunpack.c.l.b16 %v560
      %v849 = vunpack.c.l.b16 %v561
      %v850 = vunpack.c.l.b16 %v562
      %v851 = vunpack.c.l.b16 %v563
      %v852 = vunpack.c.l.b16 %v564
      %v853 = vunpack.c.l.b16 %v565
      %v854 = vunpack.c.l.b16 %v566
      %v855 = vunpack.c.l.b16 %v567
      %v856 = vunpack.c.l.b16 %v568
      %v857 = vunpack.c.l.b16 %v569
      %v858 = vunpack.c.l.b16 %v570
      %v859 = vunpack.c.l.b16 %v571
      %v860 = vunpack.c.l.b16 %v572
      %v861 = vunpack.c.l.b16 %v573
      %v862 = vunpack.c.l.b16 %v574
      %v863 = vunpack.c.l.b16 %v575
      %v864 = vunpack.c.l.b16 %v576
      %v865 = vunpack.c.l.b16 %v577
      %v866 = vunpack.c.l.b16 %v578
      %v867 = vunpack.c.l.b16 %v579
      %v868 = vunpack.c.l.b16 %v580
      %v869 = vunpack.c.l.b16 %v581
      %v870 = vunpack.c.l.b16 %v582
      %v871 = vunpack.c.l.b16 %v583
      %v872 = vunpack.c.l.b16 %v584
      %v873 = vunpack.c.l.b16 %v585
      %v874 = vunpack.c.l.b16 %v586
      %v875 = vunpack.c.l.b16 %v587
      %v876 = vunpack.c.l.b16 %v588
      %v877 = vunpack.c.l.b16 %v589
      %v878 = vunpack.c.l.b16 %v590
      %v879 = vunpack.c.l.b16 %v591
      %v880 = vunpack.c.l.b16 %v592
      %v881 = vunpack.c.l.b16 %v593
      %v882 = vunpack.c.l.b16 %v594
      %v883 = vunpack.c.l.b16 %v595
      %v884 = vunpack.c.l.b16 %v596
      %v885 = vunpack.c.l.b16 %v597
      %v886 = vunpack.c.l.b16 %v598
      %v887 = vunpack.c.l.b16 %v599
      %v888 = vunpack.c.l.b16 %v600
      %v889 = vunpack.c.l.b16 %v601
      %v890 = vunpack.c.l.b16 %v602
      %v891 = vunpack.c.l.b16 %v603
      %v892 = vunpack.c.l.b16 %v604
      %v893 = vunpack.c.l.b16 %v605
      %v894 = vunpack.c.l.b16 %v606
      %v895 = vunpack.c.l.b16 %v607
      %v896 = vunpack.c.l.b16 %v608
      %v897 = vunpack.c.l.b16 %v609
      %v898 = vunpack.c.l.b16 %v610
      %v899 = vunpack.c.l.b16 %v611
      %v900 = vunpack.c.l.b16 %v612
      %v901 = vunpack.c.l.b16 %v613
      %v902 = vunpack.c.l.b16 %v614
      %v903 = vunpack.c.l.b16 %v615
      %v904 = vunpack.c.l.b16 %v616
      %v905 = vunpack.c.l.b16 %v617
      %v906 = vunpack.c.l.b16 %v618
      %v907 = vunpack.c.l.b16 %v619
      %v908 = vunpack.c.l.b16 %v620
      %v909 = vunpack.c.l.b16 %v621
      %v910 = vunpack.c.l.b16 %v622
      %v911 = vunpack.c.l.b16 %v623
      %v912 = vunpack.c.l.b16 %v624
      %v913 = vunpack.c.l.b16 %v625
      %v914 = vunpack.c.l.b16 %v626
      %v915 = vunpack.c.l.b16 %v627
      %v916 = vunpack.c.l.b16 %v628
      %v917 = vunpack.c.l.b16 %v629
      %v918 = vunpack.c.l.b16 %v630
      %v919 = vunpack.c.l.b16 %v631
      %v920 = vunpack.c.l.b16 %v632
      %v921 = vunpack.c.l.b16 %v633
      %v922 = vunpack.c.l.b16 %v634
      %v923 = vunpack.c.l.b16 %v635
      %v924 = vunpack.c.l.b16 %v636
      %v925 = vunpack.c.l.b16 %v637
      %v926 = vunpack.c.l.b16 %v638
      %v927 = vunpack.c.l.b16 %v639
      %v928 = vunpack.c.l.b16 %v640
      %v929 = vunpack.c.l.b16 %v641
      %v930 = vunpack.c.l.b16 %v642
      %v931 = vunpack.c.l.b16 %v643
      %v932 = vunpack.c.l.b16 %v644
      %v933 = vunpack.c.l.b16 %v645
      %v934 = vunpack.c.l.b16 %v646
      %v935 = vunpack.c.l.b16 %v647
      %v936 = vunpack.c.l.b16 %v648
      %v937 = vpack.c.b16 %v794, %v793
      %v938 = vpack.c.b16 %v796, %v795
      %v939 = vpack.c.b16 %v798, %v797
      %v940 = vpack.c.b16 %v800, %v799
      %v941 = vpack.c.b16 %v802, %v801
      %v942 = vpack.c.b16 %v804, %v803
      %v943 = vpack.c.b16 %v806, %v805
      %v944 = vpack.c.b16 %v808, %v807
      %v945 = vpack.c.b16 %v810, %v809
      %v946 = vpack.c.b16 %v812, %v811
      %v947 = vpack.c.b16 %v814, %v813
      %v948 = vpack.c.b16 %v816, %v815
      %v949 = vpack.c.b16 %v818, %v817
      %v950 = vpack.c.b16 %v820, %v819
      %v951 = vpack.c.b16 %v822, %v821
      %v952 = vpack.c.b16 %v824, %v823
      %v953 = vpack.c.b16 %v826, %v825
      %v954 = vpack.c.b16 %v828, %v827
      %v955 = vpack.c.b16 %v830, %v829
      %v956 = vpack.c.b16 %v832, %v831
      %v957 = vpack.c.b16 %v834, %v833
      %v958 = vpack.c.b16 %v836, %v835
      %v959 = vpack.c.b16 %v838, %v837
      %v960 = vpack.c.b16 %v840, %v839
      %v961 = vpack.c.b16 %v842, %v841
      %v962 = vpack.c.b16 %v844, %v843
      %v963 = vpack.c.b16 %v846, %v845
      %v964 = vpack.c.b16 %v848, %v847
      %v965 = vpack.c.b16 %v850, %v849
      %v966 = vpack.c.b16 %v852, %v851
      %v967 = vpack.c.b16 %v854, %v853
      %v968 = vpack.c.b16 %v856, %v855
      %v969 = vpack.c.b16 %v858, %v857
      %v970 = vpack.c.b16 %v860, %v859
      %v971 = vpack.c.b16 %v862, %v861
      %v972 = vpack.c.b16 %v864, %v863
      %v973 = vpack.c.b16 %v866, %v865
      %v974 = vpack.c.b16 %v868, %v867
      %v975 = vpack.c.b16 %v870, %v869
      %v976 = vpack.c.b16 %v872, %v871
      %v977 = vpack.c.b16 %v874, %v873
      %v978 = vpack.c.b16 %v876, %v875
      %v979 = vpack.c.b16 %v878, %v877
      %v980 = vpack.c.b16 %v880, %v879
      %v981 = vpack.c.b16 %v882, %v881
      %v982 = vpack.c.b16 %v884, %v883
      %v983 = vpack.c.b16 %v886, %v885
      %v984 = vpack.c.b16 %v888, %v887
      %v985 = vpack.c.b16 %v890, %v889
      %v986 = vpack.c.b16 %v892, %v891
      %v987 = vpack.c.b16 %v894, %v893
      %v988 = vpack.c.b16 %v896, %v895
      %v989 = vpack.c.b16 %v898, %v897
      %v990 = vpack.c.b16 %v900, %v899
      %v991 = vpack.c.b16 %v902, %v901
      %v992 = vpack.c.b16 %v904, %v903
      %v993 = vpack.c.b16 %v906, %v905
      %v994 = vpack.c.b16 %v908, %v907
      %v995 = vpack.c.b16 %v910, %v909
      %v996 = vpack.c.b16 %v912, %v911
      %v997 = vpack.c.b16 %v914, %v913
      %v998 = vpack.c.b16 %v916, %v915
      %v999 = vpack.c.b16 %v918, %v917
      %v1000 = vpack.c.b16 %v920, %v919
      %v1001 = vpack.c.b16 %v922, %v921
      %v1002 = vpack.c.b16 %v924, %v923
      %v1003 = vpack.c.b16 %v926, %v925
      %v1004 = vpack.c.b16 %v928, %v927
      %v1005 = vpack.c.b16 %v930, %v929
      %v1006 = vpack.c.b16 %v932, %v931
      %v1007 = vpack.c.b16 %v934, %v933
      %v1008 = vpack.c.b16 %v936, %v935
      %1081 = vmatprep.subr.bf16.mxu0 0
      %1082 = vmatpush1.bf16.msra.mxu0 %v937
      %1083 = vmatprep.subr.bf16.mxu0 0
      %1084 = vmatpush1.bf16.msra.mxu0 %v938
      %1085 = vmatprep.subr.bf16.mxu0 0
      %1086 = vmatpush1.bf16.msra.mxu0 %v939
      %1087 = vmatprep.subr.bf16.mxu0 0
      %1088 = vmatpush1.bf16.msra.mxu0 %v940
      %1089 = vmatprep.subr.bf16.mxu0 0
      %1090 = vmatpush1.bf16.msra.mxu0 %v941
      %1091 = vmatprep.subr.bf16.mxu0 0
      %1092 = vmatpush1.bf16.msra.mxu0 %v942
      %1093 = vmatprep.subr.bf16.mxu0 0
      %1094 = vmatpush1.bf16.msra.mxu0 %v943
      %1095 = vmatprep.subr.bf16.mxu0 0
      %1096 = vmatpush1.bf16.msra.mxu0 %v944
      %1097 = vmatprep.subr.bf16.mxu0 0
      %1098 = vmatpush1.bf16.msra.mxu0 %v945
      %1099 = vmatprep.subr.bf16.mxu0 0
      %1100 = vmatpush1.bf16.msra.mxu0 %v946
      %1101 = vmatprep.subr.bf16.mxu0 0
      %1102 = vmatpush1.bf16.msra.mxu0 %v947
      %1103 = vmatprep.subr.bf16.mxu0 0
      %1104 = vmatpush1.bf16.msra.mxu0 %v948
      %1105 = vmatprep.subr.bf16.mxu0 0
      %1106 = vmatpush1.bf16.msra.mxu0 %v949
      %1107 = vmatprep.subr.bf16.mxu0 0
      %1108 = vmatpush1.bf16.msra.mxu0 %v950
      %1109 = vmatprep.subr.bf16.mxu0 0
      %1110 = vmatpush1.bf16.msra.mxu0 %v951
      %1111 = vmatprep.subr.bf16.mxu0 0
      %1112 = vmatpush1.bf16.msra.mxu0 %v952
      %1113 = vmatprep.mubr.bf16.mxu0 %v334
      %1114 = vmatmul.mubr.bf16.gmra.mrb[0].mxu0 %v299
      %v1115 = vpop.f32.mrb[0].mxu0
      %v1116 = vadd.f32 0.0, %v1115
      %v1117 = vpop.f32.mrb[0].mxu0
      %v1118 = vpop.f32.mrb[0].mxu0
      %v1119 = vadd.f32 0.0, %v1118
      %v1120 = vpop.f32.mrb[0].mxu0
      %1121 = vmatprep.mubr.bf16.mxu0 %v342
      %1122 = vmatmul.mubr.bf16.gmra.mrb[0].mxu0 %v300
      %v1123 = vpop.f32.mrb[0].mxu0
      %v1124 = vadd.f32 0.0, %v1123
      %v1125 = vpop.f32.mrb[0].mxu0
      %v1126 = vpop.f32.mrb[0].mxu0
      %v1127 = vadd.f32 0.0, %v1126
      %v1128 = vpop.f32.mrb[0].mxu0
      %1129 = vmatprep.mubr.bf16.mxu0 %v350
      %1130 = vmatmul.mubr.bf16.gmra.mrb[0].mxu0 %v301
      %v1131 = vpop.f32.mrb[0].mxu0
      %v1132 = vadd.f32 0.0, %v1131
      %v1133 = vpop.f32.mrb[0].mxu0
      %v1134 = vpop.f32.mrb[0].mxu0
      %v1135 = vadd.f32 0.0, %v1134
      %v1136 = vpop.f32.mrb[0].mxu0
      %1137 = vmatprep.mubr.bf16.mxu0 %v358
      %1138 = vmatmul.mubr.bf16.gmra.mrb[0].mxu0 %v302
      %v1139 = vpop.f32.mrb[0].mxu0
      %v1140 = vadd.f32 0.0, %v1139
      %v1141 = vpop.f32.mrb[0].mxu0
      %v1142 = vpop.f32.mrb[0].mxu0
      %v1143 = vadd.f32 0.0, %v1142
      %v1144 = vpop.f32.mrb[0].mxu0
      %1145 = vmatprep.mubr.bf16.mxu0 %v366
      %1146 = vmatmul.mubr.bf16.gmra.mrb[0].mxu0 %v303
      %v1147 = vpop.f32.mrb[0].mxu0
      %v1148 = vadd.f32 0.0, %v1147
      %v1149 = vpop.f32.mrb[0].mxu0
      %v1150 = vpop.f32.mrb[0].mxu0
      %v1151 = vadd.f32 0.0, %v1150
      %v1152 = vpop.f32.mrb[0].mxu0
      %1153 = vmatprep.mubr.bf16.mxu0 %v374
      %1154 = vmatmul.mubr.bf16.gmra.mrb[0].mxu0 %v304
      %v1155 = vpop.f32.mrb[0].mxu0
      %v1156 = vadd.f32 0.0, %v1155
      %v1157 = vpop.f32.mrb[0].mxu0
      %v1158 = vpop.f32.mrb[0].mxu0
      %v1159 = vadd.f32 0.0, %v1158
      %v1160 = vpop.f32.mrb[0].mxu0
      %1161 = vmatprep.mubr.bf16.mxu0 %v382
      %1162 = vmatmul.mubr.bf16.gmra.mrb[0].mxu0 %v305
      %v1163 = vpop.f32.mrb[0].mxu0
      %v1164 = vadd.f32 0.0, %v1163
      %v1165 = vpop.f32.mrb[0].mxu0
      %v1166 = vpop.f32.mrb[0].mxu0
      %v1167 = vadd.f32 0.0, %v1166
      %v1168 = vpop.f32.mrb[0].mxu0
      %1169 = vmatprep.mubr.bf16.mxu0 %v390
      %1170 = vmatmul.mubr.bf16.gmra.mrb[0].mxu0 %v306
      %v1171 = vpop.f32.mrb[0].mxu0
      %v1172 = vadd.f32 0.0, %v1171
      %v1173 = vpop.f32.mrb[0].mxu0
      %v1174 = vpop.f32.mrb[0].mxu0
      %v1175 = vadd.f32 0.0, %v1174
      %v1176 = vpop.f32.mrb[0].mxu0
      %1177 = vmatprep.mubr.bf16.mxu0 %v398
      %1178 = vmatmul.mubr.bf16.gmra.mrb[0].mxu0 %v307
      %v1179 = vpop.f32.mrb[0].mxu0
      %v1180 = vadd.f32 0.0, %v1179
      %v1181 = vpop.f32.mrb[0].mxu0
      %v1182 = vpop.f32.mrb[0].mxu0
      %v1183 = vadd.f32 0.0, %v1182
      %v1184 = vpop.f32.mrb[0].mxu0
      %1185 = vmatprep.mubr.bf16.mxu0 %v406
      %1186 = vmatmul.mubr.bf16.gmra.mrb[0].mxu0 %v308
      %v1187 = vpop.f32.mrb[0].mxu0
      %v1188 = vadd.f32 0.0, %v1187
      %v1189 = vpop.f32.mrb[0].mxu0
      %v1190 = vpop.f32.mrb[0].mxu0
      %v1191 = vadd.f32 0.0, %v1190
      %v1192 = vpop.f32.mrb[0].mxu0
      %1193 = vdwg.mxu0
      %1194 = vmatprep.subr.bf16.mxu0 0
      %1195 = vmatpush1.bf16.msra.mxu0 %v953
      %1196 = vmatprep.subr.bf16.mxu0 0
      %1197 = vmatpush1.bf16.msra.mxu0 %v954
      %1198 = vmatprep.subr.bf16.mxu0 0
      %1199 = vmatpush1.bf16.msra.mxu0 %v955
      %1200 = vmatprep.subr.bf16.mxu0 0
      %1201 = vmatpush1.bf16.msra.mxu0 %v956
      %1202 = vmatprep.subr.bf16.mxu0 0
      %1203 = vmatpush1.bf16.msra.mxu0 %v957
      %1204 = vmatprep.subr.bf16.mxu0 0
      %1205 = vmatpush1.bf16.msra.mxu0 %v958
      %1206 = vmatprep.subr.bf16.mxu0 0
      %1207 = vmatpush1.bf16.msra.mxu0 %v959
      %1208 = vmatprep.subr.bf16.mxu0 0
      %1209 = vmatpush1.bf16.msra.mxu0 %v960
      %1210 = vmatprep.subr.bf16.mxu0 0
      %1211 = vmatpush1.bf16.msra.mxu0 %v961
      %1212 = vmatprep.subr.bf16.mxu0 0
      %1213 = vmatpush1.bf16.msra.mxu0 %v962
      %1214 = vmatprep.subr.bf16.mxu0 0
      %1215 = vmatpush1.bf16.msra.mxu0 %v963
      %1216 = vmatprep.subr.bf16.mxu0 0
      %1217 = vmatpush1.bf16.msra.mxu0 %v964
      %1218 = vmatprep.subr.bf16.mxu0 0
      %1219 = vmatpush1.bf16.msra.mxu0 %v965
      %1220 = vmatprep.subr.bf16.mxu0 0
      %1221 = vmatpush1.bf16.msra.mxu0 %v966
      %1222 = vmatprep.subr.bf16.mxu0 0
      %1223 = vmatpush1.bf16.msra.mxu0 %v967
      %1224 = vmatprep.subr.bf16.mxu0 0
      %1225 = vmatpush1.bf16.msra.mxu0 %v968
      %1226 = vmatprep.mubr.bf16.mxu0 %v300
      %1227 = vmatmul.mubr.bf16.gmra.mrb[0].mxu0 %v420
      %v1228 = vpop.f32.mrb[0].mxu0
      %v1229 = vadd.f32 %v1116, %v1228
      %v1230 = vpop.f32.mrb[0].mxu0
      %v1231 = vpop.f32.mrb[0].mxu0
      %v1232 = vadd.f32 %v1119, %v1231
      %v1233 = vpop.f32.mrb[0].mxu0
      %1234 = vmatprep.mubr.bf16.mxu0 %v301
      %1235 = vmatmul.mubr.bf16.gmra.mrb[0].mxu0 %v422
      %v1236 = vpop.f32.mrb[0].mxu0
      %v1237 = vadd.f32 %v1124, %v1236
      %v1238 = vpop.f32.mrb[0].mxu0
      %v1239 = vpop.f32.mrb[0].mxu0
      %v1240 = vadd.f32 %v1127, %v1239
      %v1241 = vpop.f32.mrb[0].mxu0
      %1242 = vmatprep.mubr.bf16.mxu0 %v302
      %1243 = vmatmul.mubr.bf16.gmra.mrb[0].mxu0 %v424
      %v1244 = vpop.f32.mrb[0].mxu0
      %v1245 = vadd.f32 %v1132, %v1244
      %v1246 = vpop.f32.mrb[0].mxu0
      %v1247 = vpop.f32.mrb[0].mxu0
      %v1248 = vadd.f32 %v1135, %v1247
      %v1249 = vpop.f32.mrb[0].mxu0
      %1250 = vmatprep.mubr.bf16.mxu0 %v303
      %1251 = vmatmul.mubr.bf16.gmra.mrb[0].mxu0 %v426
      %v1252 = vpop.f32.mrb[0].mxu0
      %v1253 = vadd.f32 %v1140, %v1252
      %v1254 = vpop.f32.mrb[0].mxu0
      %v1255 = vpop.f32.mrb[0].mxu0
      %v1256 = vadd.f32 %v1143, %v1255
      %v1257 = vpop.f32.mrb[0].mxu0
      %1258 = vmatprep.mubr.bf16.mxu0 %v304
      %1259 = vmatmul.mubr.bf16.gmra.mrb[0].mxu0 %v428
      %v1260 = vpop.f32.mrb[0].mxu0
      %v1261 = vadd.f32 %v1148, %v1260
      %v1262 = vpop.f32.mrb[0].mxu0
      %v1263 = vpop.f32.mrb[0].mxu0
      %v1264 = vadd.f32 %v1151, %v1263
      %v1265 = vpop.f32.mrb[0].mxu0
      %1266 = vmatprep.mubr.bf16.mxu0 %v305
      %1267 = vmatmul.mubr.bf16.gmra.mrb[0].mxu0 %v430
      %v1268 = vpop.f32.mrb[0].mxu0
      %v1269 = vadd.f32 %v1156, %v1268
      %v1270 = vpop.f32.mrb[0].mxu0
      %v1271 = vpop.f32.mrb[0].mxu0
      %v1272 = vadd.f32 %v1159, %v1271
      %v1273 = vpop.f32.mrb[0].mxu0
      %1274 = vmatprep.mubr.bf16.mxu0 %v306
      %1275 = vmatmul.mubr.bf16.gmra.mrb[0].mxu0 %v432
      %v1276 = vpop.f32.mrb[0].mxu0
      %v1277 = vadd.f32 %v1164, %v1276
      %v1278 = vpop.f32.mrb[0].mxu0
      %v1279 = vpop.f32.mrb[0].mxu0
      %v1280 = vadd.f32 %v1167, %v1279
      %v1281 = vpop.f32.mrb[0].mxu0
      %1282 = vmatprep.mubr.bf16.mxu0 %v307
      %1283 = vmatmul.mubr.bf16.gmra.mrb[0].mxu0 %v434
      %v1284 = vpop.f32.mrb[0].mxu0
      %v1285 = vadd.f32 %v1172, %v1284
      %v1286 = vpop.f32.mrb[0].mxu0
      %v1287 = vpop.f32.mrb[0].mxu0
      %v1288 = vadd.f32 %v1175, %v1287
      %v1289 = vpop.f32.mrb[0].mxu0
      %1290 = vmatprep.mubr.bf16.mxu0 %v308
      %1291 = vmatmul.mubr.bf16.gmra.mrb[0].mxu0 %v436
      %v1292 = vpop.f32.mrb[0].mxu0
      %v1293 = vadd.f32 %v1180, %v1292
      %v1294 = vpop.f32.mrb[0].mxu0
      %v1295 = vpop.f32.mrb[0].mxu0
      %v1296 = vadd.f32 %v1183, %v1295
      %v1297 = vpop.f32.mrb[0].mxu0
      %1298 = vmatprep.mubr.bf16.mxu0 %v451
      %1299 = vmatmul.mubr.bf16.gmra.mrb[0].mxu0 %v438
      %v1300 = vpop.f32.mrb[0].mxu0
      %v1301 = vadd.f32 %v1188, %v1300
      %v1302 = vpop.f32.mrb[0].mxu0
      %v1303 = vpop.f32.mrb[0].mxu0
      %v1304 = vadd.f32 %v1191, %v1303
      %v1305 = vpop.f32.mrb[0].mxu0
      %1306 = vdwg.mxu0
      %1307 = vmatprep.subr.bf16.mxu0 0
      %1308 = vmatpush1.bf16.msra.mxu0 %v969
      %1309 = vmatprep.subr.bf16.mxu0 0
      %1310 = vmatpush1.bf16.msra.mxu0 %v970
      %1311 = vmatprep.subr.bf16.mxu0 0
      %1312 = vmatpush1.bf16.msra.mxu0 %v971
      %1313 = vmatprep.subr.bf16.mxu0 0
      %1314 = vmatpush1.bf16.msra.mxu0 %v972
      %1315 = vmatprep.subr.bf16.mxu0 0
      %1316 = vmatpush1.bf16.msra.mxu0 %v973
      %1317 = vmatprep.subr.bf16.mxu0 0
      %1318 = vmatpush1.bf16.msra.mxu0 %v974
      %1319 = vmatprep.subr.bf16.mxu0 0
      %1320 = vmatpush1.bf16.msra.mxu0 %v975
      %1321 = vmatprep.subr.bf16.mxu0 0
      %1322 = vmatpush1.bf16.msra.mxu0 %v976
      %1323 = vmatprep.subr.bf16.mxu0 0
      %1324 = vmatpush1.bf16.msra.mxu0 %v977
      %1325 = vmatprep.subr.bf16.mxu0 0
      %1326 = vmatpush1.bf16.msra.mxu0 %v978
      %1327 = vmatprep.subr.bf16.mxu0 0
      %1328 = vmatpush1.bf16.msra.mxu0 %v979
      %1329 = vmatprep.subr.bf16.mxu0 0
      %1330 = vmatpush1.bf16.msra.mxu0 %v980
      %1331 = vmatprep.subr.bf16.mxu0 0
      %1332 = vmatpush1.bf16.msra.mxu0 %v981
      %1333 = vmatprep.subr.bf16.mxu0 0
      %1334 = vmatpush1.bf16.msra.mxu0 %v982
      %1335 = vmatprep.subr.bf16.mxu0 0
      %1336 = vmatpush1.bf16.msra.mxu0 %v983
      %1337 = vmatprep.subr.bf16.mxu0 0
      %1338 = vmatpush1.bf16.msra.mxu0 %v984
      %1339 = vmatprep.mubr.bf16.mxu0 %v422
      %1340 = vmatmul.mubr.bf16.gmra.mrb[0].mxu0 %v342
      %v1341 = vpop.f32.mrb[0].mxu0
      %v1342 = vadd.f32 %v1229, %v1341
      %v1343 = vpop.f32.mrb[0].mxu0
      %v1344 = vpop.f32.mrb[0].mxu0
      %v1345 = vadd.f32 %v1232, %v1344
      %v1346 = vpop.f32.mrb[0].mxu0
      %1347 = vmatprep.mubr.bf16.mxu0 %v424
      %1348 = vmatmul.mubr.bf16.gmra.mrb[0].mxu0 %v350
      %v1349 = vpop.f32.mrb[0].mxu0
      %v1350 = vadd.f32 %v1237, %v1349
      %v1351 = vpop.f32.mrb[0].mxu0
      %v1352 = vpop.f32.mrb[0].mxu0
      %v1353 = vadd.f32 %v1240, %v1352
      %v1354 = vpop.f32.mrb[0].mxu0
      %1355 = vmatprep.mubr.bf16.mxu0 %v426
      %1356 = vmatmul.mubr.bf16.gmra.mrb[0].mxu0 %v358
      %v1357 = vpop.f32.mrb[0].mxu0
      %v1358 = vadd.f32 %v1245, %v1357
      %v1359 = vpop.f32.mrb[0].mxu0
      %v1360 = vpop.f32.mrb[0].mxu0
      %v1361 = vadd.f32 %v1248, %v1360
      %v1362 = vpop.f32.mrb[0].mxu0
      %1363 = vmatprep.mubr.bf16.mxu0 %v428
      %1364 = vmatmul.mubr.bf16.gmra.mrb[0].mxu0 %v366
      %v1365 = vpop.f32.mrb[0].mxu0
      %v1366 = vadd.f32 %v1253, %v1365
      %v1367 = vpop.f32.mrb[0].mxu0
      %v1368 = vpop.f32.mrb[0].mxu0
      %v1369 = vadd.f32 %v1256, %v1368
      %v1370 = vpop.f32.mrb[0].mxu0
      %1371 = vmatprep.mubr.bf16.mxu0 %v430
      %1372 = vmatmul.mubr.bf16.gmra.mrb[0].mxu0 %v374
      %v1373 = vpop.f32.mrb[0].mxu0
      %v1374 = vadd.f32 %v1261, %v1373
      %v1375 = vpop.f32.mrb[0].mxu0
      %v1376 = vpop.f32.mrb[0].mxu0
      %v1377 = vadd.f32 %v1264, %v1376
      %v1378 = vpop.f32.mrb[0].mxu0
      %1379 = vmatprep.mubr.bf16.mxu0 %v432
      %1380 = vmatmul.mubr.bf16.gmra.mrb[0].mxu0 %v382
      %v1381 = vpop.f32.mrb[0].mxu0
      %v1382 = vadd.f32 %v1269, %v1381
      %v1383 = vpop.f32.mrb[0].mxu0
      %v1384 = vpop.f32.mrb[0].mxu0
      %v1385 = vadd.f32 %v1272, %v1384
      %v1386 = vpop.f32.mrb[0].mxu0
      %1387 = vmatprep.mubr.bf16.mxu0 %v434
      %1388 = vmatmul.mubr.bf16.gmra.mrb[0].mxu0 %v390
      %v1389 = vpop.f32.mrb[0].mxu0
      %v1390 = vadd.f32 %v1277, %v1389
      %v1391 = vpop.f32.mrb[0].mxu0
      %v1392 = vpop.f32.mrb[0].mxu0
      %v1393 = vadd.f32 %v1280, %v1392
      %v1394 = vpop.f32.mrb[0].mxu0
      %1395 = vmatprep.mubr.bf16.mxu0 %v436
      %1396 = vmatmul.mubr.bf16.gmra.mrb[0].mxu0 %v398
      %v1397 = vpop.f32.mrb[0].mxu0
      %v1398 = vadd.f32 %v1285, %v1397
      %v1399 = vpop.f32.mrb[0].mxu0
      %v1400 = vpop.f32.mrb[0].mxu0
      %v1401 = vadd.f32 %v1288, %v1400
      %v1402 = vpop.f32.mrb[0].mxu0
      %1403 = vmatprep.mubr.bf16.mxu0 %v472
      %1404 = vmatmul.mubr.bf16.gmra.mrb[0].mxu0 %v460
      %v1405 = vpop.f32.mrb[0].mxu0
      %v1406 = vadd.f32 %v1293, %v1405
      %v1407 = vpop.f32.mrb[0].mxu0
      %v1408 = vpop.f32.mrb[0].mxu0
      %v1409 = vadd.f32 %v1296, %v1408
      %v1410 = vpop.f32.mrb[0].mxu0
      %1411 = vmatprep.mubr.bf16.mxu0 %v474
      %1412 = vmatmul.mubr.bf16.gmra.mrb[0].mxu0 %v468
      %v1413 = vpop.f32.mrb[0].mxu0
      %v1414 = vadd.f32 %v1301, %v1413
      %v1415 = vpop.f32.mrb[0].mxu0
      %v1416 = vpop.f32.mrb[0].mxu0
      %v1417 = vadd.f32 %v1304, %v1416
      %v1418 = vpop.f32.mrb[0].mxu0
      %1419 = vdwg.mxu0
      %1420 = vmatprep.subr.bf16.mxu0 0
      %1421 = vmatpush1.bf16.msra.mxu0 %v985
      %1422 = vmatprep.subr.bf16.mxu0 0
      %1423 = vmatpush1.bf16.msra.mxu0 %v986
      %1424 = vmatprep.subr.bf16.mxu0 0
      %1425 = vmatpush1.bf16.msra.mxu0 %v987
      %1426 = vmatprep.subr.bf16.mxu0 0
      %1427 = vmatpush1.bf16.msra.mxu0 %v988
      %1428 = vmatprep.subr.bf16.mxu0 0
      %1429 = vmatpush1.bf16.msra.mxu0 %v989
      %1430 = vmatprep.subr.bf16.mxu0 0
      %1431 = vmatpush1.bf16.msra.mxu0 %v990
      %1432 = vmatprep.subr.bf16.mxu0 0
      %1433 = vmatpush1.bf16.msra.mxu0 %v991
      %1434 = vmatprep.subr.bf16.mxu0 0
      %1435 = vmatpush1.bf16.msra.mxu0 %v992
      %1436 = vmatprep.subr.bf16.mxu0 0
      %1437 = vmatpush1.bf16.msra.mxu0 %v993
      %1438 = vmatprep.subr.bf16.mxu0 0
      %1439 = vmatpush1.bf16.msra.mxu0 %v994
      %1440 = vmatprep.subr.bf16.mxu0 0
      %1441 = vmatpush1.bf16.msra.mxu0 %v995
      %1442 = vmatprep.subr.bf16.mxu0 0
      %1443 = vmatpush1.bf16.msra.mxu0 %v996
      %1444 = vmatprep.subr.bf16.mxu0 0
      %1445 = vmatpush1.bf16.msra.mxu0 %v997
      %1446 = vmatprep.subr.bf16.mxu0 0
      %1447 = vmatpush1.bf16.msra.mxu0 %v998
      %1448 = vmatprep.subr.bf16.mxu0 0
      %1449 = vmatpush1.bf16.msra.mxu0 %v999
      %1450 = vmatprep.subr.bf16.mxu0 0
      %1451 = vmatpush1.bf16.msra.mxu0 %v1000
      %1452 = vmatprep.mubr.bf16.mxu0 %v350
      %1453 = vmatmul.mubr.bf16.gmra.mrb[0].mxu0 %v301
      %v1454 = vpop.f32.mrb[0].mxu0
      %v1455 = vadd.f32 %v1342, %v1454
      %v1456 = vpop.f32.mrb[0].mxu0
      %v1457 = vpop.f32.mrb[0].mxu0
      %v1458 = vadd.f32 %v1345, %v1457
      %v1459 = vpop.f32.mrb[0].mxu0
      %1460 = vmatprep.mubr.bf16.mxu0 %v358
      %1461 = vmatmul.mubr.bf16.gmra.mrb[0].mxu0 %v302
      %v1462 = vpop.f32.mrb[0].mxu0
      %v1463 = vadd.f32 %v1350, %v1462
      %v1464 = vpop.f32.mrb[0].mxu0
      %v1465 = vpop.f32.mrb[0].mxu0
      %v1466 = vadd.f32 %v1353, %v1465
      %v1467 = vpop.f32.mrb[0].mxu0
      %1468 = vmatprep.mubr.bf16.mxu0 %v366
      %1469 = vmatmul.mubr.bf16.gmra.mrb[0].mxu0 %v303
      %v1470 = vpop.f32.mrb[0].mxu0
      %v1471 = vadd.f32 %v1358, %v1470
      %v1472 = vpop.f32.mrb[0].mxu0
      %v1473 = vpop.f32.mrb[0].mxu0
      %v1474 = vadd.f32 %v1361, %v1473
      %v1475 = vpop.f32.mrb[0].mxu0
      %1476 = vmatprep.mubr.bf16.mxu0 %v374
      %1477 = vmatmul.mubr.bf16.gmra.mrb[0].mxu0 %v304
      %v1478 = vpop.f32.mrb[0].mxu0
      %v1479 = vadd.f32 %v1366, %v1478
      %v1480 = vpop.f32.mrb[0].mxu0
      %v1481 = vpop.f32.mrb[0].mxu0
      %v1482 = vadd.f32 %v1369, %v1481
      %v1483 = vpop.f32.mrb[0].mxu0
      %1484 = vmatprep.mubr.bf16.mxu0 %v382
      %1485 = vmatmul.mubr.bf16.gmra.mrb[0].mxu0 %v305
      %v1486 = vpop.f32.mrb[0].mxu0
      %v1487 = vadd.f32 %v1374, %v1486
      %v1488 = vpop.f32.mrb[0].mxu0
      %v1489 = vpop.f32.mrb[0].mxu0
      %v1490 = vadd.f32 %v1377, %v1489
      %v1491 = vpop.f32.mrb[0].mxu0
      %1492 = vmatprep.mubr.bf16.mxu0 %v390
      %1493 = vmatmul.mubr.bf16.gmra.mrb[0].mxu0 %v306
      %v1494 = vpop.f32.mrb[0].mxu0
      %v1495 = vadd.f32 %v1382, %v1494
      %v1496 = vpop.f32.mrb[0].mxu0
      %v1497 = vpop.f32.mrb[0].mxu0
      %v1498 = vadd.f32 %v1385, %v1497
      %v1499 = vpop.f32.mrb[0].mxu0
      %1500 = vmatprep.mubr.bf16.mxu0 %v398
      %1501 = vmatmul.mubr.bf16.gmra.mrb[0].mxu0 %v307
      %v1502 = vpop.f32.mrb[0].mxu0
      %v1503 = vadd.f32 %v1390, %v1502
      %v1504 = vpop.f32.mrb[0].mxu0
      %v1505 = vpop.f32.mrb[0].mxu0
      %v1506 = vadd.f32 %v1393, %v1505
      %v1507 = vpop.f32.mrb[0].mxu0
      %1508 = vmatprep.mubr.bf16.mxu0 %v460
      %1509 = vmatmul.mubr.bf16.gmra.mrb[0].mxu0 %v308
      %v1510 = vpop.f32.mrb[0].mxu0
      %v1511 = vadd.f32 %v1398, %v1510
      %v1512 = vpop.f32.mrb[0].mxu0
      %v1513 = vpop.f32.mrb[0].mxu0
      %v1514 = vadd.f32 %v1401, %v1513
      %v1515 = vpop.f32.mrb[0].mxu0
      %1516 = vmatprep.mubr.bf16.mxu0 %v488
      %1517 = vmatmul.mubr.bf16.gmra.mrb[0].mxu0 %v451
      %v1518 = vpop.f32.mrb[0].mxu0
      %v1519 = vadd.f32 %v1406, %v1518
      %v1520 = vpop.f32.mrb[0].mxu0
      %v1521 = vpop.f32.mrb[0].mxu0
      %v1522 = vadd.f32 %v1409, %v1521
      %v1523 = vpop.f32.mrb[0].mxu0
      %1524 = vmatprep.mubr.bf16.mxu0 %v496
      %1525 = vmatmul.mubr.bf16.gmra.mrb[0].mxu0 %v479
      %v1526 = vpop.f32.mrb[0].mxu0
      %v1527 = vadd.f32 %v1414, %v1526
      %v1528 = vpop.f32.mrb[0].mxu0
      %v1529 = vpop.f32.mrb[0].mxu0
      %v1530 = vadd.f32 %v1417, %v1529
      %v1531 = vpop.f32.mrb[0].mxu0
      %1532 = vdwg.mxu0
      %1533 = vmatprep.subr.bf16.mxu0 0
      %1534 = vmatpush1.bf16.msra.mxu0 %v1001
      %1535 = vmatprep.subr.bf16.mxu0 0
      %1536 = vmatpush1.bf16.msra.mxu0 %v1002
      %1537 = vmatprep.subr.bf16.mxu0 0
      %1538 = vmatpush1.bf16.msra.mxu0 %v1003
      %1539 = vmatprep.subr.bf16.mxu0 0
      %1540 = vmatpush1.bf16.msra.mxu0 %v1004
      %1541 = vmatprep.subr.bf16.mxu0 0
      %1542 = vmatpush1.bf16.msra.mxu0 %v1005
      %1543 = vmatprep.subr.bf16.mxu0 0
      %1544 = vmatpush1.bf16.msra.mxu0 %v1006
      %1545 = vmatprep.subr.bf16.mxu0 0
      %1546 = vmatpush1.bf16.msra.mxu0 %v1007
      %1547 = vmatprep.subr.bf16.mxu0 0
      %1548 = vmatpush1.bf16.msra.mxu0 %v1008
      %1549 = vmatprep.subr.bf16.mxu0 0
      %1550 = vmatpush1.bf16.msra.mxu0 0
      %1551 = vmatprep.subr.bf16.mxu0 0
      %1552 = vmatpush1.bf16.msra.mxu0 0
      %1553 = vmatprep.subr.bf16.mxu0 0
      %1554 = vmatpush1.bf16.msra.mxu0 0
      %1555 = vmatprep.subr.bf16.mxu0 0
      %1556 = vmatpush1.bf16.msra.mxu0 0
      %1557 = vmatprep.subr.bf16.mxu0 0
      %1558 = vmatpush1.bf16.msra.mxu0 0
      %1559 = vmatprep.subr.bf16.mxu0 0
      %1560 = vmatpush1.bf16.msra.mxu0 0
      %1561 = vmatprep.subr.bf16.mxu0 0
      %1562 = vmatpush1.bf16.msra.mxu0 0
      %1563 = vmatprep.subr.bf16.mxu0 0
      %1564 = vmatpush1.bf16.msra.mxu0 0
      %1565 = vmatprep.mubr.bf16.mxu0 0
      %1566 = vmatmul.mubr.bf16.gmra.mrb[0].mxu0 %v424
      %v1567 = vpop.f32.mrb[0].mxu0
      %v1568 = vadd.f32 %v1455, %v1567
      %v1569 = vpop.f32.mrb[0].mxu0
      %v1570 = vpop.f32.mrb[0].mxu0
      %v1571 = vadd.f32 %v1458, %v1570
      %v1572 = vpop.f32.mrb[0].mxu0
      %1573 = vmatprep.mubr.bf16.mxu0 0
      %1574 = vmatmul.mubr.bf16.gmra.mrb[0].mxu0 %v426
      %v1575 = vpop.f32.mrb[0].mxu0
      %v1576 = vadd.f32 %v1463, %v1575
      %v1577 = vpop.f32.mrb[0].mxu0
      %v1578 = vpop.f32.mrb[0].mxu0
      %v1579 = vadd.f32 %v1466, %v1578
      %v1580 = vpop.f32.mrb[0].mxu0
      %1581 = vmatprep.mubr.bf16.mxu0 0
      %1582 = vmatmul.mubr.bf16.gmra.mrb[0].mxu0 %v428
      %v1583 = vpop.f32.mrb[0].mxu0
      %v1584 = vadd.f32 %v1471, %v1583
      %v1585 = vpop.f32.mrb[0].mxu0
      %v1586 = vpop.f32.mrb[0].mxu0
      %v1587 = vadd.f32 %v1474, %v1586
      %v1588 = vpop.f32.mrb[0].mxu0
      %1589 = vmatprep.mubr.bf16.mxu0 0
      %1590 = vmatmul.mubr.bf16.gmra.mrb[0].mxu0 %v430
      %v1591 = vpop.f32.mrb[0].mxu0
      %v1592 = vadd.f32 %v1479, %v1591
      %v1593 = vpop.f32.mrb[0].mxu0
      %v1594 = vpop.f32.mrb[0].mxu0
      %v1595 = vadd.f32 %v1482, %v1594
      %v1596 = vpop.f32.mrb[0].mxu0
      %1597 = vmatprep.mubr.bf16.mxu0 0
      %1598 = vmatmul.mubr.bf16.gmra.mrb[0].mxu0 %v432
      %v1599 = vpop.f32.mrb[0].mxu0
      %v1600 = vadd.f32 %v1487, %v1599
      %v1601 = vpop.f32.mrb[0].mxu0
      %v1602 = vpop.f32.mrb[0].mxu0
      %v1603 = vadd.f32 %v1490, %v1602
      %v1604 = vpop.f32.mrb[0].mxu0
      %1605 = vmatprep.mubr.bf16.mxu0 0
      %1606 = vmatmul.mubr.bf16.gmra.mrb[0].mxu0 %v434
      %v1607 = vpop.f32.mrb[0].mxu0
      %v1608 = vadd.f32 %v1495, %v1607
      %v1609 = vpop.f32.mrb[0].mxu0
      %v1610 = vpop.f32.mrb[0].mxu0
      %v1611 = vadd.f32 %v1498, %v1610
      %v1612 = vpop.f32.mrb[0].mxu0
      %1613 = vmatprep.mubr.bf16.mxu0 0
      %1614 = vmatmul.mubr.bf16.gmra.mrb[0].mxu0 %v436
      %v1615 = vpop.f32.mrb[0].mxu0
      %v1616 = vadd.f32 %v1503, %v1615
      %v1617 = vpop.f32.mrb[0].mxu0
      %v1618 = vpop.f32.mrb[0].mxu0
      %v1619 = vadd.f32 %v1506, %v1618
      %v1620 = vpop.f32.mrb[0].mxu0
      %1621 = vmatprep.mubr.bf16.mxu0 0
      %1622 = vmatmul.mubr.bf16.gmra.mrb[0].mxu0 %v472
      %v1623 = vpop.f32.mrb[0].mxu0
      %v1624 = vadd.f32 %v1511, %v1623
      %v1625 = vpop.f32.mrb[0].mxu0
      %v1626 = vpop.f32.mrb[0].mxu0
      %v1627 = vadd.f32 %v1514, %v1626
      %v1628 = vpop.f32.mrb[0].mxu0
      %1629 = vmatprep.mubr.bf16.mxu0 0
      %1630 = vmatmul.mubr.bf16.gmra.mrb[0].mxu0 %v500
      %v1631 = vpop.f32.mrb[0].mxu0
      %v1632 = vadd.f32 %v1519, %v1631
      %v1633 = vpop.f32.mrb[0].mxu0
      %v1634 = vpop.f32.mrb[0].mxu0
      %v1635 = vadd.f32 %v1522, %v1634
      %v1636 = vpop.f32.mrb[0].mxu0
      %1637 = vmatprep.mubr.bf16.mxu0 0
      %1638 = vmatmul.mubr.bf16.gmra.mrb[0].mxu0 %v502
      %v1639 = vpop.f32.mrb[0].mxu0
      %v1640 = vadd.f32 %v1527, %v1639
      %v1641 = vpop.f32.mrb[0].mxu0
      %v1642 = vpop.f32.mrb[0].mxu0
      %v1643 = vadd.f32 %v1530, %v1642
      %v1644 = vpop.f32.mrb[0].mxu0
      %1645 = vdwg.mxu0
      %v1646 = vld [vmem:[%s2] sm:$0x1]
      %v1648 = vlaneseq
      %v1649 = vshrl.u32 %v1648, 7
      %v1650 = vsub.s32 0, %v1649
      %v1651 = vrot.slane %v1646, %v1650
      %v1653 = vmul.f32 %v1568, %v1651
      %v1654 = vmul.f32 %v1571, %v1651
      %v1655 = vmul.f32 %v1576, %v1651
      %v1656 = vmul.f32 %v1579, %v1651
      %v1657 = vmul.f32 %v1584, %v1651
      %v1658 = vmul.f32 %v1587, %v1651
      %v1659 = vmul.f32 %v1592, %v1651
      %v1660 = vmul.f32 %v1595, %v1651
      %v1661 = vmul.f32 %v1600, %v1651
      %v1662 = vmul.f32 %v1603, %v1651
      %v1663 = vmul.f32 %v1608, %v1651
      %v1664 = vmul.f32 %v1611, %v1651
      %v1665 = vmul.f32 %v1616, %v1651
      %v1666 = vmul.f32 %v1619, %v1651
      %v1667 = vmul.f32 %v1624, %v1651
      %v1668 = vmul.f32 %v1627, %v1651
      %v1669 = vmul.f32 %v1632, %v1651
      %v1670 = vmul.f32 %v1635, %v1651
      %v1671 = vmul.f32 %v1640, %v1651
      %v1672 = vmul.f32 %v1643, %v1651
      %v1673 = vld [vmem:[%s3] sm:$0x1]
      %v1675 = vlaneseq
      %v1676 = vshrl.u32 %v1675, 7
      %v1677 = vsub.s32 0, %v1676
      %v1678 = vrot.slane %v1673, %v1677
      %v1680 = vadd.f32 %v1653, %v1678
      %v1681 = vadd.f32 %v1654, %v1678
      %v1682 = vadd.f32 %v1655, %v1678
      %v1683 = vadd.f32 %v1656, %v1678
      %v1684 = vadd.f32 %v1657, %v1678
      %v1685 = vadd.f32 %v1658, %v1678
      %v1686 = vadd.f32 %v1659, %v1678
      %v1687 = vadd.f32 %v1660, %v1678
      %v1688 = vadd.f32 %v1661, %v1678
      %v1689 = vadd.f32 %v1662, %v1678
      %v1690 = vadd.f32 %v1663, %v1678
      %v1691 = vadd.f32 %v1664, %v1678
      %v1692 = vadd.f32 %v1665, %v1678
      %v1693 = vadd.f32 %v1666, %v1678
      %v1694 = vadd.f32 %v1667, %v1678
      %v1695 = vadd.f32 %v1668, %v1678
      %v1696 = vadd.f32 %v1669, %v1678
      %v1697 = vadd.f32 %v1670, %v1678
      %v1698 = vadd.f32 %v1671, %v1678
      %v1699 = vadd.f32 %v1672, %v1678
      %v1700 = vmax.f32 %v1680, 0.0
      %v1701 = vmax.f32 %v1681, 0.0
      %v1702 = vmax.f32 %v1682, 0.0
      %v1703 = vmax.f32 %v1683, 0.0
      %v1704 = vmax.f32 %v1684, 0.0
      %v1705 = vmax.f32 %v1685, 0.0
      %v1706 = vmax.f32 %v1686, 0.0
      %v1707 = vmax.f32 %v1687, 0.0
      %v1708 = vmax.f32 %v1688, 0.0
      %v1709 = vmax.f32 %v1689, 0.0
      %v1710 = vmax.f32 %v1690, 0.0
      %v1711 = vmax.f32 %v1691, 0.0
      %v1712 = vmax.f32 %v1692, 0.0
      %v1713 = vmax.f32 %v1693, 0.0
      %v1714 = vmax.f32 %v1694, 0.0
      %v1715 = vmax.f32 %v1695, 0.0
      %v1716 = vmax.f32 %v1696, 0.0
      %v1717 = vmax.f32 %v1697, 0.0
      %v1718 = vmax.f32 %v1698, 0.0
      %v1719 = vmax.f32 %v1699, 0.0
      %v1720 = vld [vmem:[%s220] sm:$0xff]
      %v1721 = vld [vmem:[%s220 + $0x8] sm:$0xff]
      %v1722 = vld [vmem:[%s220 + $0x10] sm:$0xff]
      %v1723 = vld [vmem:[%s220 + $0x18] sm:$0xff]
      %v1724 = vld [vmem:[%s220 + $0x20] sm:$0xff]
      %v1725 = vld [vmem:[%s220 + $0x28] sm:$0xff]
      %v1726 = vld [vmem:[%s220 + $0x30] sm:$0xff]
      %v1727 = vld [vmem:[%s220 + $0x38] sm:$0xff]
      %v1728 = vld [vmem:[%s220 + $0x40] sm:$0xff]
      %v1729 = vld [vmem:[%s220 + $0x48] sm:$0xff]
      %v1730 = vld [vmem:[%s220 + $0x50] sm:$0xff]
      %v1731 = vld [vmem:[%s220 + $0x58] sm:$0xff]
      %v1732 = vld [vmem:[%s220 + $0x60] sm:$0xff]
      %v1733 = vld [vmem:[%s220 + $0x68] sm:$0xff]
      %v1734 = vld [vmem:[%s220 + $0x70] sm:$0xff]
      %v1735 = vld [vmem:[%s220 + $0x78] sm:$0xff]
      %v1736 = vld [vmem:[%s220 + $0x80] sm:$0xff]
      %v1737 = vld [vmem:[%s220 + $0x88] sm:$0xff]
      %v1738 = vld [vmem:[%s220 + $0x90] sm:$0xff]
      %v1739 = vld [vmem:[%s220 + $0x98] sm:$0xff]
      %1741 = vset.pattern.permute.xlu0 0
      %1742 = vperm.xlu0 %1741, %v1720
      %v1743 = vpop.permute.xlu0 %1742
      %1746 = vset.pattern.permute.xlu0 0
      %1747 = vperm.xlu0 %1746, %v1721
      %v1748 = vpop.permute.xlu0 %1747
      %1751 = vset.pattern.permute.xlu0 0
      %1752 = vperm.xlu0 %1751, %v1722
      %v1753 = vpop.permute.xlu0 %1752
      %1756 = vset.pattern.permute.xlu0 0
      %1757 = vperm.xlu0 %1756, %v1723
      %v1758 = vpop.permute.xlu0 %1757
      %1761 = vset.pattern.permute.xlu0 0
      %1762 = vperm.xlu0 %1761, %v1724
      %v1763 = vpop.permute.xlu0 %1762
      %1766 = vset.pattern.permute.xlu0 0
      %1767 = vperm.xlu0 %1766, %v1725
      %v1768 = vpop.permute.xlu0 %1767
      %1771 = vset.pattern.permute.xlu0 0
      %1772 = vperm.xlu0 %1771, %v1726
      %v1773 = vpop.permute.xlu0 %1772
      %1776 = vset.pattern.permute.xlu0 0
      %1777 = vperm.xlu0 %1776, %v1727
      %v1778 = vpop.permute.xlu0 %1777
      %1781 = vset.pattern.permute.xlu0 0
      %1782 = vperm.xlu0 %1781, %v1728
      %v1783 = vpop.permute.xlu0 %1782
      %1786 = vset.pattern.permute.xlu0 0
      %1787 = vperm.xlu0 %1786, %v1729
      %v1788 = vpop.permute.xlu0 %1787
      %1791 = vset.pattern.permute.xlu0 0
      %1792 = vperm.xlu0 %1791, %v1730
      %v1793 = vpop.permute.xlu0 %1792
      %1796 = vset.pattern.permute.xlu0 0
      %1797 = vperm.xlu0 %1796, %v1731
      %v1798 = vpop.permute.xlu0 %1797
      %1801 = vset.pattern.permute.xlu0 0
      %1802 = vperm.xlu0 %1801, %v1732
      %v1803 = vpop.permute.xlu0 %1802
      %1806 = vset.pattern.permute.xlu0 0
      %1807 = vperm.xlu0 %1806, %v1733
      %v1808 = vpop.permute.xlu0 %1807
      %1811 = vset.pattern.permute.xlu0 0
      %1812 = vperm.xlu0 %1811, %v1734
      %v1813 = vpop.permute.xlu0 %1812
      %1816 = vset.pattern.permute.xlu0 0
      %1817 = vperm.xlu0 %1816, %v1735
      %v1818 = vpop.permute.xlu0 %1817
      %1821 = vset.pattern.permute.xlu0 0
      %1822 = vperm.xlu0 %1821, %v1736
      %v1823 = vpop.permute.xlu0 %1822
      %1826 = vset.pattern.permute.xlu0 0
      %1827 = vperm.xlu0 %1826, %v1737
      %v1828 = vpop.permute.xlu0 %1827
      %1831 = vset.pattern.permute.xlu0 0
      %1832 = vperm.xlu0 %1831, %v1738
      %v1833 = vpop.permute.xlu0 %1832
      %1836 = vset.pattern.permute.xlu0 0
      %1837 = vperm.xlu0 %1836, %v1739
      %v1838 = vpop.permute.xlu0 %1837
      %v1840 = vmul.f32 %v1700, %v1743
      %v1841 = vmul.f32 %v1701, %v1748
      %v1842 = vmul.f32 %v1702, %v1753
      %v1843 = vmul.f32 %v1703, %v1758
      %v1844 = vmul.f32 %v1704, %v1763
      %v1845 = vmul.f32 %v1705, %v1768
      %v1846 = vmul.f32 %v1706, %v1773
      %v1847 = vmul.f32 %v1707, %v1778
      %v1848 = vmul.f32 %v1708, %v1783
      %v1849 = vmul.f32 %v1709, %v1788
      %v1850 = vmul.f32 %v1710, %v1793
      %v1851 = vmul.f32 %v1711, %v1798
      %v1852 = vmul.f32 %v1712, %v1803
      %v1853 = vmul.f32 %v1713, %v1808
      %v1854 = vmul.f32 %v1714, %v1813
      %v1855 = vmul.f32 %v1715, %v1818
      %v1856 = vmul.f32 %v1716, %v1823
      %v1857 = vmul.f32 %v1717, %v1828
      %v1858 = vmul.f32 %v1718, %v1833
      %v1859 = vmul.f32 %v1719, %v1838
      %v1860 = vpack.c.bf16 %v1841, %v1840
      %v1861 = vpack.c.bf16 %v1843, %v1842
      %v1862 = vpack.c.bf16 %v1845, %v1844
      %v1863 = vpack.c.bf16 %v1847, %v1846
      %v1864 = vpack.c.bf16 %v1849, %v1848
      %v1865 = vpack.c.bf16 %v1851, %v1850
      %v1866 = vpack.c.bf16 %v1853, %v1852
      %v1867 = vpack.c.bf16 %v1855, %v1854
      %v1868 = vpack.c.bf16 %v1857, %v1856
      %v1869 = vpack.c.bf16 %v1859, %v1858
      %v1880 = vunpack.c.l.b16 %v1860
      %v1881 = vunpack.c.h.b16 %v1860
      %v1882 = vunpack.c.l.b16 %v1861
      %v1883 = vunpack.c.h.b16 %v1861
      %v1884 = vunpack.c.l.b16 %v1862
      %v1885 = vunpack.c.h.b16 %v1862
      %v1886 = vunpack.c.l.b16 %v1863
      %v1887 = vunpack.c.h.b16 %v1863
      %v1888 = vunpack.c.l.b16 %v1864
      %v1889 = vunpack.c.h.b16 %v1864
      %v1890 = vunpack.c.l.b16 %v1865
      %v1891 = vunpack.c.h.b16 %v1865
      %v1892 = vunpack.c.l.b16 %v1866
      %v1893 = vunpack.c.h.b16 %v1866
      %v1894 = vunpack.c.l.b16 %v1867
      %v1895 = vunpack.c.h.b16 %v1867
      %v1896 = vunpack.c.l.b16 %v1868
      %v1897 = vunpack.c.h.b16 %v1868
      %v1898 = vunpack.c.l.b16 %v1869
      %v1899 = vunpack.c.h.b16 %v1869
      %v1900 = vpack.c.b16 %v1880, %v1880
      %v1901 = vpack.c.b16 %v1881, %v1881
      %v1902 = vpack.c.b16 %v1882, %v1882
      %v1903 = vpack.c.b16 %v1883, %v1883
      %v1904 = vpack.c.b16 %v1884, %v1884
      %v1905 = vpack.c.b16 %v1885, %v1885
      %v1906 = vpack.c.b16 %v1886, %v1886
      %v1907 = vpack.c.b16 %v1887, %v1887
      %v1908 = vpack.c.b16 %v1888, %v1888
      %v1909 = vpack.c.b16 %v1889, %v1889
      %v1910 = vpack.c.b16 %v1890, %v1890
      %v1911 = vpack.c.b16 %v1891, %v1891
      %v1912 = vpack.c.b16 %v1892, %v1892
      %v1913 = vpack.c.b16 %v1893, %v1893
      %v1914 = vpack.c.b16 %v1894, %v1894
      %v1915 = vpack.c.b16 %v1895, %v1895
      %v1916 = vpack.c.b16 %v1896, %v1896
      %v1917 = vpack.c.b16 %v1897, %v1897
      %v1918 = vpack.c.b16 %v1898, %v1898
      %v1919 = vpack.c.b16 %v1899, %v1899
      %1940 = vst [vmem:[%s226] sm:$0xf] %v1900
      %1941 = vst [vmem:[%s226 + $0x4] sm:$0xf] %v1901
      %1942 = vst [vmem:[%s226 + $0x8] sm:$0xf] %v1902
      %1943 = vst [vmem:[%s226 + $0xc] sm:$0xf] %v1903
      %1944 = vst [vmem:[%s226 + $0x10] sm:$0xf] %v1904
      %1945 = vst [vmem:[%s226 + $0x14] sm:$0xf] %v1905
      %1946 = vst [vmem:[%s226 + $0x18] sm:$0xf] %v1906
      %1947 = vst [vmem:[%s226 + $0x1c] sm:$0xf] %v1907
      %1948 = vst [vmem:[%s226 + $0x20] sm:$0xf] %v1908
      %1949 = vst [vmem:[%s226 + $0x24] sm:$0xf] %v1909
      %1950 = vst [vmem:[%s226 + $0x28] sm:$0xf] %v1910
      %1951 = vst [vmem:[%s226 + $0x2c] sm:$0xf] %v1911
      %1952 = vst [vmem:[%s226 + $0x30] sm:$0xf] %v1912
      %1953 = vst [vmem:[%s226 + $0x34] sm:$0xf] %v1913
      %1954 = vst [vmem:[%s226 + $0x38] sm:$0xf] %v1914
      %1955 = vst [vmem:[%s226 + $0x3c] sm:$0xf] %v1915
      %1956 = vst [vmem:[%s226 + $0x40] sm:$0xf] %v1916
      %1957 = vst [vmem:[%s226 + $0x44] sm:$0xf] %v1917
      %1958 = vst [vmem:[%s226 + $0x48] sm:$0xf] %v1918
      %1959 = vst [vmem:[%s226 + $0x4c] sm:$0xf] %v1919
      %s1960 = smul.u32 20, %s16
      %p1961 = scmp.lt.s32.totalorder %s1960, 39
      %s1962 = scalar_select %p1961, %s1960, 39
      %s1963 = smul.addr %s1962, 4
      %s1964 = scalar_lea.vmem %s5, %s1963
      // Predicated region
      $region41: #{resnet_embedding_forward.12} parent=39 // pred_check
        %p1965 = pneg %p144
      $region42: #{resnet_embedding_forward.12} parent=39 // pred_check_branch
        %1967 = sbr.rel (%p1965) target = $region44
      $region43: #{resnet_embedding_forward.12} parent=39 // pred_region
        %s1968 = smul.u32 20, %s16
      $region44: #{resnet_embedding_forward.12} parent=39 // pred_fallthru
        _
    $region40: #{resnet_embedding_forward.12} parent=5 // pred_fallthru
      _
    %p1969 = scmp.le.s32.totalorder 2, %s11
    // Predicated region
    $region45: #{resnet_embedding_forward.12} parent=5 // pred_check
      %p1970 = pneg %p1969
    $region46: #{resnet_embedding_forward.12} parent=5 // pred_check_branch
      %1972 = sbr.rel (%p1970) target = $region48
    $region47: #{resnet_embedding_forward.12} parent=5 // pred_region
      %s1973 = ssub.s32 %s11, 2
      // Predicated region
      $region49: #{resnet_embedding_forward.12} parent=47 // pred_check
        %p1974 = pneg %p150
      $region50: #{resnet_embedding_forward.12} parent=47 // pred_check_branch
        %1976 = sbr.rel (%p1974) target = $region52
      $region51: #{resnet_embedding_forward.12} parent=47 // pred_region
        %s1977 = smul.u32 20, %s17
        %p1978 = scmp.lt.s32.totalorder %s1977, 39
        %s1979 = scalar_select %p1978, %s1977, 39
        %s1980 = smul.addr %s1979, 4
        %s1981 = scalar_lea.vmem %s5, %s1980
      $region52: #{resnet_embedding_forward.12} parent=47 // pred_fallthru
        _
    $region48: #{resnet_embedding_forward.12} parent=5 // pred_fallthru
      _
  $region6: #{resnet_embedding_forward.12} parent=0 // loop_footer
    %s15 = sadd.s32 1, %s11
  $region7: #{resnet_embedding_forward.12} parent=0 // loop_footer_branch
    %10 = sbr.rel target = $region3
  $region8: #{resnet_embedding_forward.12} parent=0 // loop_exit
    _

// kernel: resnet_embedding_forward.13
$region0: #{resnet_embedding_forward.13}
  #allocation0 [shape = 'u32[]', space=smem, size = 0x4, offset = 0x4, fixed_abs, tag = 'smem constant byte address 0x4 - core index']
  #allocation1 [shape = 'u32[144,128]{1,0:T(1,128)}', space=vmem, size = 0x12000, scoped, tag = 'internal scratch']
  %s0 = inlined_call_operand.vmem [shape: bf16[360,128], index: 0, kind: input, shape index: {}]
  %s1 = inlined_call_operand.vmem [shape: bf16[1152,128], index: 1, kind: input, shape index: {}]
  %s2 = inlined_call_operand.vmem [shape: f32[1,128], index: 2, kind: input, shape index: {}]
  %s3 = inlined_call_operand.vmem [shape: f32[1,128], index: 3, kind: input, shape index: {}]
  %s4 = inlined_call_operand.vmem [shape: f32[320,1], index: 4, kind: input, shape index: {}]
  %s5 = inlined_call_operand.vmem [shape: bf16[320,128], index: 5, kind: input, shape index: {}]
  %s6 = inlined_call_operand.vmem [shape: bf16[320,128], index: 6, kind: output, shape index: {}]
  %s7 = sld [smem:[#allocation0]]
  $region57: #{resnet_embedding_forward.13} parent=0
    _
  %s9 = ssub.s32 1, %s7
  %s10 = scalar_select 0, %s9, %s7
  loop: start=0, step=1, limit=4
  $region2: #{resnet_embedding_forward.13} parent=0 // loop_pre_header
    _
  $region3: #{resnet_embedding_forward.13} parent=0 // loop_header
    %s12 = sphi 0, %s16
    %p13 = scmp.ge.s32.totalorder %s12, 4
    %s20 = sphi 0, %s20
    %s22 = sphi 0, %s20
    %s23 = sphi 0, %s22
    %s37 = sphi 0, %s23
    %s41 = sphi 0, %s41
    %s43 = sphi 0, %s41
    %s44 = sphi 0, %s43
    %s58 = sphi 0, %s44
    %s62 = sphi 0, %s62
    %s64 = sphi 0, %s62
    %s65 = sphi 0, %s64
    %s79 = sphi 0, %s65
    %s83 = sphi 0, %s83
    %s85 = sphi 0, %s83
    %s86 = sphi 0, %s85
    %s100 = sphi 0, %s86
    %s106 = sphi 0, %s108
    %s109 = sphi 0, %s106
    %s110 = sphi 0, %s109
    %s126 = sphi 0, %s110
    %s132 = sphi 0, %s134
    %s135 = sphi 0, %s132
    %s136 = sphi 0, %s135
    %s152 = sphi 0, %s136
    %s158 = sphi 0, %s160
    %s161 = sphi 0, %s158
    %s162 = sphi 0, %s161
    %s178 = sphi 0, %s162
  $region4: #{resnet_embedding_forward.13} parent=0 // loop_header_branch
    %15 = sbr.rel (%p13) target = $region8
  $region5: #{resnet_embedding_forward.13} parent=0 // loop_body
    %s17 = ssub.s32 %s12, 1
    %s18 = ssub.s32 %s12, 2
    %s19 = sadd.s32 %s12, 1
    %s21 = sadd.s32 %s20, 1
    %p24 = scmp.eq.s32.totalorder %s12, 1
    %p25 = scmp.ne.s32.totalorder %s20, %s22
    %p26 = scmp.eq.s32.totalorder %s12, 0
    %p27 = por %p25, %p26
    %p28 = scmp.ne.s32.totalorder %s20, %s22
    %p29 = scmp.eq.s32.totalorder %s17, 1
    %p30 = por %p28, %p29
    %p31 = scmp.ne.s32.totalorder %s22, %s23
    %p32 = scmp.eq.s32.totalorder %s17, 0
    %p33 = por %p31, %p32
    %p34 = scmp.ne.s32.totalorder %s22, %s23
    %p35 = scmp.eq.s32.totalorder %s18, 1
    %p36 = por %p34, %p35
    %p38 = scmp.ne.s32.totalorder %s23, %s37
    %p39 = scmp.eq.s32.totalorder %s18, 0
    %p40 = por %p38, %p39
    %s42 = sadd.s32 %s41, 1
    %p45 = scmp.eq.s32.totalorder %s12, 1
    %p46 = scmp.ne.s32.totalorder %s41, %s43
    %p47 = scmp.eq.s32.totalorder %s12, 0
    %p48 = por %p46, %p47
    %p49 = scmp.ne.s32.totalorder %s41, %s43
    %p50 = scmp.eq.s32.totalorder %s17, 1
    %p51 = por %p49, %p50
    %p52 = scmp.ne.s32.totalorder %s43, %s44
    %p53 = scmp.eq.s32.totalorder %s17, 0
    %p54 = por %p52, %p53
    %p55 = scmp.ne.s32.totalorder %s43, %s44
    %p56 = scmp.eq.s32.totalorder %s18, 1
    %p57 = por %p55, %p56
    %p59 = scmp.ne.s32.totalorder %s44, %s58
    %p60 = scmp.eq.s32.totalorder %s18, 0
    %p61 = por %p59, %p60
    %s63 = sadd.s32 %s62, 1
    %p66 = scmp.eq.s32.totalorder %s12, 1
    %p67 = scmp.ne.s32.totalorder %s62, %s64
    %p68 = scmp.eq.s32.totalorder %s12, 0
    %p69 = por %p67, %p68
    %p70 = scmp.ne.s32.totalorder %s62, %s64
    %p71 = scmp.eq.s32.totalorder %s17, 1
    %p72 = por %p70, %p71
    %p73 = scmp.ne.s32.totalorder %s64, %s65
    %p74 = scmp.eq.s32.totalorder %s17, 0
    %p75 = por %p73, %p74
    %p76 = scmp.ne.s32.totalorder %s64, %s65
    %p77 = scmp.eq.s32.totalorder %s18, 1
    %p78 = por %p76, %p77
    %p80 = scmp.ne.s32.totalorder %s65, %s79
    %p81 = scmp.eq.s32.totalorder %s18, 0
    %p82 = por %p80, %p81
    %s84 = sadd.s32 %s83, 1
    %p87 = scmp.eq.s32.totalorder %s12, 1
    %p88 = scmp.ne.s32.totalorder %s83, %s85
    %p89 = scmp.eq.s32.totalorder %s12, 0
    %p90 = por %p88, %p89
    %p91 = scmp.ne.s32.totalorder %s83, %s85
    %p92 = scmp.eq.s32.totalorder %s17, 1
    %p93 = por %p91, %p92
    %p94 = scmp.ne.s32.totalorder %s85, %s86
    %p95 = scmp.eq.s32.totalorder %s17, 0
    %p96 = por %p94, %p95
    %p97 = scmp.ne.s32.totalorder %s85, %s86
    %p98 = scmp.eq.s32.totalorder %s18, 1
    %p99 = por %p97, %p98
    %p101 = scmp.ne.s32.totalorder %s86, %s100
    %p102 = scmp.eq.s32.totalorder %s18, 0
    %p103 = por %p101, %p102
    %s104 = ssub.s32 %s12, %s19
    %p105 = scmp.eq.s32.totalorder %s104, 0
    %s107 = sadd.s32 %s106, 1
    %s108 = scalar_select %p105, %s106, %s107
    %p111 = pneg %p105
    %p112 = scmp.eq.s32.totalorder %s12, 1
    %p113 = por %p111, %p112
    %p114 = scmp.ne.s32.totalorder %s106, %s109
    %p115 = scmp.eq.s32.totalorder %s12, 0
    %p116 = por %p114, %p115
    %p117 = scmp.ne.s32.totalorder %s106, %s109
    %p118 = scmp.eq.s32.totalorder %s17, 1
    %p119 = por %p117, %p118
    %p120 = scmp.ne.s32.totalorder %s109, %s110
    %p121 = scmp.eq.s32.totalorder %s17, 0
    %p122 = por %p120, %p121
    %p123 = scmp.ne.s32.totalorder %s109, %s110
    %p124 = scmp.eq.s32.totalorder %s18, 1
    %p125 = por %p123, %p124
    %p127 = scmp.ne.s32.totalorder %s110, %s126
    %p128 = scmp.eq.s32.totalorder %s18, 0
    %p129 = por %p127, %p128
    %s130 = ssub.s32 %s12, %s19
    %p131 = scmp.eq.s32.totalorder %s130, 0
    %s133 = sadd.s32 %s132, 1
    %s134 = scalar_select %p131, %s132, %s133
    %p137 = pneg %p131
    %p138 = scmp.eq.s32.totalorder %s12, 1
    %p139 = por %p137, %p138
    %p140 = scmp.ne.s32.totalorder %s132, %s135
    %p141 = scmp.eq.s32.totalorder %s12, 0
    %p142 = por %p140, %p141
    %p143 = scmp.ne.s32.totalorder %s132, %s135
    %p144 = scmp.eq.s32.totalorder %s17, 1
    %p145 = por %p143, %p144
    %p146 = scmp.ne.s32.totalorder %s135, %s136
    %p147 = scmp.eq.s32.totalorder %s17, 0
    %p148 = por %p146, %p147
    %p149 = scmp.ne.s32.totalorder %s135, %s136
    %p150 = scmp.eq.s32.totalorder %s18, 1
    %p151 = por %p149, %p150
    %p153 = scmp.ne.s32.totalorder %s136, %s152
    %p154 = scmp.eq.s32.totalorder %s18, 0
    %p155 = por %p153, %p154
    %s156 = ssub.s32 %s12, %s19
    %p157 = scmp.eq.s32.totalorder %s156, 0
    %s159 = sadd.s32 %s158, 1
    %s160 = scalar_select %p157, %s158, %s159
    %p163 = pneg %p157
    %p164 = scmp.eq.s32.totalorder %s12, 1
    %p165 = por %p163, %p164
    %p166 = scmp.ne.s32.totalorder %s158, %s161
    %p167 = scmp.eq.s32.totalorder %s12, 0
    %p168 = por %p166, %p167
    %p169 = scmp.ne.s32.totalorder %s158, %s161
    %p170 = scmp.eq.s32.totalorder %s17, 1
    %p171 = por %p169, %p170
    %p172 = scmp.ne.s32.totalorder %s161, %s162
    %p173 = scmp.eq.s32.totalorder %s17, 0
    %p174 = por %p172, %p173
    %p175 = scmp.ne.s32.totalorder %s161, %s162
    %p176 = scmp.eq.s32.totalorder %s18, 1
    %p177 = por %p175, %p176
    %p179 = scmp.ne.s32.totalorder %s162, %s178
    %p180 = scmp.eq.s32.totalorder %s18, 0
    %p181 = por %p179, %p180
    %p182 = scmp.le.s32.totalorder 1, %s12
    %p183 = scmp.lt.s32.totalorder %s12, 3
    %p184 = pnand %p182, %p183
    %p185 = pneg %p184
    // Predicated region
    $region9: #{resnet_embedding_forward.13} parent=5 // pred_check
      _
    $region10: #{resnet_embedding_forward.13} parent=5 // pred_check_branch
      %187 = sbr.rel (%p184) target = $region12
    $region11: #{resnet_embedding_forward.13} parent=5 // pred_region
      %s188 = ssub.s32 %s12, 1
      // Predicated region
      $region13: #{resnet_embedding_forward.13} parent=11 // pred_check
        %p189 = pneg %p33
      $region14: #{resnet_embedding_forward.13} parent=11 // pred_check_branch
        %191 = sbr.rel (%p189) target = $region16
      $region15: #{resnet_embedding_forward.13} parent=11 // pred_region
        _
      $region16: #{resnet_embedding_forward.13} parent=11 // pred_fallthru
        _
      // Predicated region
      $region17: #{resnet_embedding_forward.13} parent=11 // pred_check
        %p192 = pneg %p54
      $region18: #{resnet_embedding_forward.13} parent=11 // pred_check_branch
        %194 = sbr.rel (%p192) target = $region20
      $region19: #{resnet_embedding_forward.13} parent=11 // pred_region
        _
      $region20: #{resnet_embedding_forward.13} parent=11 // pred_fallthru
        _
      // Predicated region
      $region21: #{resnet_embedding_forward.13} parent=11 // pred_check
        %p195 = pneg %p75
      $region22: #{resnet_embedding_forward.13} parent=11 // pred_check_branch
        %197 = sbr.rel (%p195) target = $region24
      $region23: #{resnet_embedding_forward.13} parent=11 // pred_region
        _
      $region24: #{resnet_embedding_forward.13} parent=11 // pred_fallthru
        _
      // Predicated region
      $region25: #{resnet_embedding_forward.13} parent=11 // pred_check
        %p198 = pneg %p96
      $region26: #{resnet_embedding_forward.13} parent=11 // pred_check_branch
        %200 = sbr.rel (%p198) target = $region28
      $region27: #{resnet_embedding_forward.13} parent=11 // pred_region
        _
      $region28: #{resnet_embedding_forward.13} parent=11 // pred_fallthru
        _
    $region12: #{resnet_embedding_forward.13} parent=5 // pred_fallthru
      _
    %p201 = scmp.lt.s32.totalorder %s12, 2
    // Predicated region
    $region29: #{resnet_embedding_forward.13} parent=5 // pred_check
      %p202 = pneg %p201
    $region30: #{resnet_embedding_forward.13} parent=5 // pred_check_branch
      %204 = sbr.rel (%p202) target = $region32
    $region31: #{resnet_embedding_forward.13} parent=5 // pred_region
      // Predicated region
      $region33: #{resnet_embedding_forward.13} parent=31 // pred_check
        %p205 = pneg %p116
      $region34: #{resnet_embedding_forward.13} parent=31 // pred_check_branch
        %207 = sbr.rel (%p205) target = $region36
      $region35: #{resnet_embedding_forward.13} parent=31 // pred_region
        %s208 = smul.u32 20, %s12
        %p209 = scmp.lt.s32.totalorder %s208, 39
        %s210 = scalar_select %p209, %s208, 39
        %s211 = smul.addr %s210, 8
        %s212 = scalar_lea.vmem %s4, %s211
        %s213 = smul.u32 20, %s12
      $region36: #{resnet_embedding_forward.13} parent=31 // pred_fallthru
        _
      // Predicated region
      $region37: #{resnet_embedding_forward.13} parent=31 // pred_check
        %p214 = pneg %p142
      $region38: #{resnet_embedding_forward.13} parent=31 // pred_check_branch
        %216 = sbr.rel (%p214) target = $region40
      $region39: #{resnet_embedding_forward.13} parent=31 // pred_region
        %s217 = smul.u32 20, %s12
        %p218 = scmp.lt.s32.totalorder %s217, 39
        %s219 = scalar_select %p218, %s217, 39
        %s220 = smul.addr %s219, 4
        %s221 = scalar_lea.vmem %s5, %s220
        %s222 = smul.u32 20, %s12
      $region40: #{resnet_embedding_forward.13} parent=31 // pred_fallthru
        _
    $region32: #{resnet_embedding_forward.13} parent=5 // pred_fallthru
      _
    %p223 = scmp.le.s32.totalorder 1, %s12
    %p224 = scmp.lt.s32.totalorder %s12, 3
    %p225 = pnand %p223, %p224
    %p226 = pneg %p225
    // Predicated region
    $region41: #{resnet_embedding_forward.13} parent=5 // pred_check
      _
    $region42: #{resnet_embedding_forward.13} parent=5 // pred_check_branch
      %228 = sbr.rel (%p225) target = $region44
    $region43: #{resnet_embedding_forward.13} parent=5 // pred_region
      %s229 = ssub.s32 %s12, 1
      %p230 = pneg %p33
      %p231 = pneg %p30
      %p232 = pneg %p54
      %p233 = pneg %p51
      %p234 = pneg %p75
      %p235 = pneg %p72
      %p236 = pneg %p96
      %p237 = pneg %p93
      %s238 = smul.u32 20, %s17
      %p239 = scmp.lt.s32.totalorder %s238, 39
      %s240 = scalar_select %p239, %s238, 39
      %s241 = smul.addr %s240, 8
      %s242 = scalar_lea.vmem %s4, %s241
      %p243 = pneg %p122
      %p244 = pneg %p119
      %s245 = smul.u32 20, %s17
      %p246 = scmp.lt.s32.totalorder %s245, 39
      %s247 = scalar_select %p246, %s245, 39
      %s248 = smul.addr %s247, 4
      %s249 = scalar_lea.vmem %s5, %s248
      %p250 = pneg %p148
      %p251 = pneg %p145
      %p252 = pneg %p174
      %p253 = pneg %p171
      %s254 = smul.u32 20, %s17
      %p255 = scmp.lt.s32.totalorder %s254, 39
      %s256 = scalar_select %p255, %s254, 39
      %s257 = smul.addr %s256, 4
      %s258 = scalar_lea.vmem %s6, %s257
      %s259 = smul.u32 20, %s17
      %p260 = scmp.lt.s32.totalorder %s259, 39
      %s261 = scalar_select %p260, %s259, 39
      %s262 = smul.addr %s261, 8
      %s263 = scalar_lea.vmem %s4, %s262
      %s264 = smul.u32 20, %s17
      %s265 = smul.u32 20, %s17
      %p266 = scmp.lt.s32.totalorder %s265, 39
      %s267 = scalar_select %p266, %s265, 39
      %s268 = smul.addr %s267, 4
      %s269 = scalar_lea.vmem %s5, %s268
      %s270 = smul.u32 20, %s17
      %s271 = smul.u32 20, %s17
      %p272 = scmp.lt.s32.totalorder %s271, 39
      %s273 = scalar_select %p272, %s271, 39
      %s274 = smul.addr %s273, 4
      %s275 = scalar_lea.vmem %s6, %s274
      %s276 = smul.u32 20, %s17
      %s278 = smul.u32 %s17, 160
      %s279 = sshra.s32 %s278, 3
      %s280 = sand.u32 %s278, 7
      %s281 = smul.addr %s279, 4
      %s282 = scalar_lea.vmem %s0, %s281
      %v283 = vld [vmem:[%s282] sm:$0xf]
      %v284 = vld [vmem:[%s282 + $0x4] sm:$0xf]
      %v285 = vld [vmem:[%s282 + $0x8] sm:$0xf]
      %v286 = vld [vmem:[%s282 + $0xc] sm:$0xf]
      %v287 = vld [vmem:[%s282 + $0x10] sm:$0xf]
      %v288 = vld [vmem:[%s282 + $0x14] sm:$0xf]
      %v289 = vld [vmem:[%s282 + $0x18] sm:$0xf]
      %v290 = vld [vmem:[%s282 + $0x1c] sm:$0xf]
      %v291 = vld [vmem:[%s282 + $0x20] sm:$0xf]
      %v292 = vld [vmem:[%s282 + $0x24] sm:$0xf]
      %v293 = vld [vmem:[%s282 + $0x28] sm:$0xf]
      %v294 = vld [vmem:[%s282 + $0x2c] sm:$0xf]
      %v295 = vld [vmem:[%s282 + $0x30] sm:$0xf]
      %v296 = vld [vmem:[%s282 + $0x34] sm:$0xf]
      %v297 = vld [vmem:[%s282 + $0x38] sm:$0xf]
      %v298 = vld [vmem:[%s282 + $0x3c] sm:$0xf]
      %v299 = vld [vmem:[%s282 + $0x40] sm:$0xf]
      %v300 = vld [vmem:[%s282 + $0x44] sm:$0xf]
      %v301 = vld [vmem:[%s282 + $0x48] sm:$0xf]
      %v302 = vld [vmem:[%s282 + $0x4c] sm:$0xf]
      %v303 = vld [vmem:[%s282 + $0x50] sm:$0xf]
      %v304 = vld [vmem:[%s282 + $0x54] sm:$0xf]
      %v305 = vld [vmem:[%s282 + $0x58] sm:$0xf]
      %v306 = vld [vmem:[%s282 + $0x5c] sm:$0xf]
      %v307 = vld [vmem:[%s282 + $0x60] sm:$0xf]
      %v328 = vunpack.c.l.b16 %v283
      %v329 = vunpack.c.l.b16 %v284
      %v330 = vunpack.c.l.b16 %v285
      %v331 = vunpack.c.l.b16 %v286
      %v332 = vunpack.c.l.b16 %v287
      %v333 = vunpack.c.l.b16 %v288
      %v334 = vunpack.c.l.b16 %v289
      %v335 = vunpack.c.l.b16 %v290
      %v336 = vunpack.c.l.b16 %v291
      %v337 = vunpack.c.l.b16 %v292
      %v338 = vunpack.c.l.b16 %v293
      %v339 = vunpack.c.l.b16 %v294
      %v340 = vunpack.c.l.b16 %v295
      %v341 = vunpack.c.l.b16 %v296
      %v342 = vunpack.c.l.b16 %v297
      %v343 = vunpack.c.l.b16 %v298
      %v344 = vunpack.c.l.b16 %v299
      %v345 = vunpack.c.l.b16 %v300
      %v346 = vunpack.c.l.b16 %v301
      %v347 = vunpack.c.l.b16 %v302
      %v348 = vpack.c.b16 %v329, %v328
      %v349 = vpack.c.b16 %v331, %v330
      %v350 = vpack.c.b16 %v333, %v332
      %v351 = vpack.c.b16 %v335, %v334
      %v352 = vpack.c.b16 %v337, %v336
      %v353 = vpack.c.b16 %v339, %v338
      %v354 = vpack.c.b16 %v341, %v340
      %v355 = vpack.c.b16 %v343, %v342
      %v356 = vpack.c.b16 %v345, %v344
      %v357 = vpack.c.b16 %v347, %v346
      %v369 = vunpack.c.l.b16 %v303
      %v370 = vpack.c.b16 %v369, %v369
      %vm371 = vsmask.f32 7424
      %v373 = vshrl.u32 %v348, 16
      %v375 = vshll.u32 %v348, 16
      %v377 = vrot.slane %v375, 1
      %v378 = vor.u32 %v373, %v377
      %v380 = vshll.u32 %v349, 16
      %v382 = vrot.slane %v380, 1
      %v383 = vsel %vm371, %v378, %v382
      %v384 = vshrl.u32 %v349, 16
      %v386 = vor.u32 %v384, %v382
      %v388 = vshll.u32 %v350, 16
      %v390 = vrot.slane %v388, 1
      %v391 = vsel %vm371, %v386, %v390
      %v392 = vshrl.u32 %v350, 16
      %v394 = vor.u32 %v392, %v390
      %v396 = vshll.u32 %v351, 16
      %v398 = vrot.slane %v396, 1
      %v399 = vsel %vm371, %v394, %v398
      %v400 = vshrl.u32 %v351, 16
      %v402 = vor.u32 %v400, %v398
      %v404 = vshll.u32 %v352, 16
      %v406 = vrot.slane %v404, 1
      %v407 = vsel %vm371, %v402, %v406
      %v408 = vshrl.u32 %v352, 16
      %v410 = vor.u32 %v408, %v406
      %v412 = vshll.u32 %v353, 16
      %v414 = vrot.slane %v412, 1
      %v415 = vsel %vm371, %v410, %v414
      %v416 = vshrl.u32 %v353, 16
      %v418 = vor.u32 %v416, %v414
      %v420 = vshll.u32 %v354, 16
      %v422 = vrot.slane %v420, 1
      %v423 = vsel %vm371, %v418, %v422
      %v424 = vshrl.u32 %v354, 16
      %v426 = vor.u32 %v424, %v422
      %v428 = vshll.u32 %v355, 16
      %v430 = vrot.slane %v428, 1
      %v431 = vsel %vm371, %v426, %v430
      %v432 = vshrl.u32 %v355, 16
      %v434 = vor.u32 %v432, %v430
      %v436 = vshll.u32 %v356, 16
      %v438 = vrot.slane %v436, 1
      %v439 = vsel %vm371, %v434, %v438
      %v440 = vshrl.u32 %v356, 16
      %v442 = vor.u32 %v440, %v438
      %v444 = vshll.u32 %v357, 16
      %v446 = vrot.slane %v444, 1
      %v447 = vsel %vm371, %v442, %v446
      %v448 = vshrl.u32 %v357, 16
      %v450 = vor.u32 %v448, %v446
      %v452 = vshll.u32 %v370, 16
      %v454 = vrot.slane %v452, 1
      %v455 = vsel %vm371, %v450, %v454
      %vm466 = vcmask 1046528
      %v467 = vrot.slane %v348, 1
      %v468 = vrot.slane %v349, 1
      %v469 = vsel %vm466, %v467, %v468
      %v470 = vrot.slane %v350, 1
      %v471 = vsel %vm466, %v468, %v470
      %v472 = vrot.slane %v351, 1
      %v473 = vsel %vm466, %v470, %v472
      %v474 = vrot.slane %v352, 1
      %v475 = vsel %vm466, %v472, %v474
      %v476 = vrot.slane %v353, 1
      %v477 = vsel %vm466, %v474, %v476
      %v478 = vrot.slane %v354, 1
      %v479 = vsel %vm466, %v476, %v478
      %v480 = vrot.slane %v355, 1
      %v481 = vsel %vm466, %v478, %v480
      %v482 = vrot.slane %v356, 1
      %v483 = vsel %vm466, %v480, %v482
      %v484 = vrot.slane %v357, 1
      %v485 = vsel %vm466, %v482, %v484
      %v486 = vrot.slane %v370, 1
      %v487 = vsel %vm466, %v484, %v486
      %v499 = vunpack.c.l.b16 %v304
      %v500 = vpack.c.b16 %v499, %v369
      %v503 = vunpack.c.l.b16 %v305
      %v504 = vpack.c.b16 %v503, %v503
      %v506 = vshll.u32 %v500, 16
      %v508 = vrot.slane %v506, 1
      %v509 = vsel %vm371, %v450, %v508
      %v510 = vshrl.u32 %v500, 16
      %v512 = vor.u32 %v510, %v508
      %v514 = vshll.u32 %v504, 16
      %v516 = vrot.slane %v514, 1
      %v517 = vsel %vm371, %v512, %v516
      %v520 = vrot.slane %v500, 1
      %v521 = vsel %vm466, %v484, %v520
      %v522 = vrot.slane %v504, 1
      %v523 = vsel %vm466, %v520, %v522
      %v527 = vunpack.c.l.b16 %v306
      %v528 = vpack.c.b16 %v527, %v503
      %v531 = vunpack.c.l.b16 %v307
      %v532 = vpack.c.b16 %v531, %v531
      %v534 = vshll.u32 %v528, 16
      %v536 = vrot.slane %v534, 1
      %v537 = vsel %vm371, %v512, %v536
      %v538 = vshrl.u32 %v528, 16
      %v540 = vor.u32 %v538, %v536
      %v542 = vshll.u32 %v532, 16
      %v544 = vrot.slane %v542, 1
      %v545 = vsel %vm371, %v540, %v544
      %v548 = vrot.slane %v528, 1
      %v549 = vsel %vm466, %v520, %v548
      %v550 = vrot.slane %v532, 1
      %v551 = vsel %vm466, %v548, %v550
      %v554 = vld [vmem:[%s1] sm:$0xf]
      %v555 = vld [vmem:[%s1 + $0x4] sm:$0xf]
      %v556 = vld [vmem:[%s1 + $0x8] sm:$0xf]
      %v557 = vld [vmem:[%s1 + $0xc] sm:$0xf]
      %v558 = vld [vmem:[%s1 + $0x10] sm:$0xf]
      %v559 = vld [vmem:[%s1 + $0x14] sm:$0xf]
      %v560 = vld [vmem:[%s1 + $0x18] sm:$0xf]
      %v561 = vld [vmem:[%s1 + $0x1c] sm:$0xf]
      %v562 = vld [vmem:[%s1 + $0x20] sm:$0xf]
      %v563 = vld [vmem:[%s1 + $0x24] sm:$0xf]
      %v564 = vld [vmem:[%s1 + $0x28] sm:$0xf]
      %v565 = vld [vmem:[%s1 + $0x2c] sm:$0xf]
      %v566 = vld [vmem:[%s1 + $0x30] sm:$0xf]
      %v567 = vld [vmem:[%s1 + $0x34] sm:$0xf]
      %v568 = vld [vmem:[%s1 + $0x38] sm:$0xf]
      %v569 = vld [vmem:[%s1 + $0x3c] sm:$0xf]
      %v570 = vld [vmem:[%s1 + $0x40] sm:$0xf]
      %v571 = vld [vmem:[%s1 + $0x44] sm:$0xf]
      %v572 = vld [vmem:[%s1 + $0x48] sm:$0xf]
      %v573 = vld [vmem:[%s1 + $0x4c] sm:$0xf]
      %v574 = vld [vmem:[%s1 + $0x50] sm:$0xf]
      %v575 = vld [vmem:[%s1 + $0x54] sm:$0xf]
      %v576 = vld [vmem:[%s1 + $0x58] sm:$0xf]
      %v577 = vld [vmem:[%s1 + $0x5c] sm:$0xf]
      %v578 = vld [vmem:[%s1 + $0x60] sm:$0xf]
      %v579 = vld [vmem:[%s1 + $0x64] sm:$0xf]
      %v580 = vld [vmem:[%s1 + $0x68] sm:$0xf]
      %v581 = vld [vmem:[%s1 + $0x6c] sm:$0xf]
      %v582 = vld [vmem:[%s1 + $0x70] sm:$0xf]
      %v583 = vld [vmem:[%s1 + $0x74] sm:$0xf]
      %v584 = vld [vmem:[%s1 + $0x78] sm:$0xf]
      %v585 = vld [vmem:[%s1 + $0x7c] sm:$0xf]
      %v586 = vld [vmem:[%s1 + $0x80] sm:$0xf]
      %v587 = vld [vmem:[%s1 + $0x84] sm:$0xf]
      %v588 = vld [vmem:[%s1 + $0x88] sm:$0xf]
      %v589 = vld [vmem:[%s1 + $0x8c] sm:$0xf]
      %v590 = vld [vmem:[%s1 + $0x90] sm:$0xf]
      %v591 = vld [vmem:[%s1 + $0x94] sm:$0xf]
      %v592 = vld [vmem:[%s1 + $0x98] sm:$0xf]
      %v593 = vld [vmem:[%s1 + $0x9c] sm:$0xf]
      %v594 = vld [vmem:[%s1 + $0xa0] sm:$0xf]
      %v595 = vld [vmem:[%s1 + $0xa4] sm:$0xf]
      %v596 = vld [vmem:[%s1 + $0xa8] sm:$0xf]
      %v597 = vld [vmem:[%s1 + $0xac] sm:$0xf]
      %v598 = vld [vmem:[%s1 + $0xb0] sm:$0xf]
      %v599 = vld [vmem:[%s1 + $0xb4] sm:$0xf]
      %v600 = vld [vmem:[%s1 + $0xb8] sm:$0xf]
      %v601 = vld [vmem:[%s1 + $0xbc] sm:$0xf]
      %v602 = vld [vmem:[%s1 + $0xc0] sm:$0xf]
      %v603 = vld [vmem:[%s1 + $0xc4] sm:$0xf]
      %v604 = vld [vmem:[%s1 + $0xc8] sm:$0xf]
      %v605 = vld [vmem:[%s1 + $0xcc] sm:$0xf]
      %v606 = vld [vmem:[%s1 + $0xd0] sm:$0xf]
      %v607 = vld [vmem:[%s1 + $0xd4] sm:$0xf]
      %v608 = vld [vmem:[%s1 + $0xd8] sm:$0xf]
      %v609 = vld [vmem:[%s1 + $0xdc] sm:$0xf]
      %v610 = vld [vmem:[%s1 + $0xe0] sm:$0xf]
      %v611 = vld [vmem:[%s1 + $0xe4] sm:$0xf]
      %v612 = vld [vmem:[%s1 + $0xe8] sm:$0xf]
      %v613 = vld [vmem:[%s1 + $0xec] sm:$0xf]
      %v614 = vld [vmem:[%s1 + $0xf0] sm:$0xf]
      %v615 = vld [vmem:[%s1 + $0xf4] sm:$0xf]
      %v616 = vld [vmem:[%s1 + $0xf8] sm:$0xf]
      %v617 = vld [vmem:[%s1 + $0xfc] sm:$0xf]
      %v618 = vld [vmem:[%s1 + $0x100] sm:$0xf]
      %v619 = vld [vmem:[%s1 + $0x104] sm:$0xf]
      %v620 = vld [vmem:[%s1 + $0x108] sm:$0xf]
      %v621 = vld [vmem:[%s1 + $0x10c] sm:$0xf]
      %v622 = vld [vmem:[%s1 + $0x110] sm:$0xf]
      %v623 = vld [vmem:[%s1 + $0x114] sm:$0xf]
      %v624 = vld [vmem:[%s1 + $0x118] sm:$0xf]
      %v625 = vld [vmem:[%s1 + $0x11c] sm:$0xf]
      %v626 = vld [vmem:[%s1 + $0x120] sm:$0xf]
      %v627 = vld [vmem:[%s1 + $0x124] sm:$0xf]
      %v628 = vld [vmem:[%s1 + $0x128] sm:$0xf]
      %v629 = vld [vmem:[%s1 + $0x12c] sm:$0xf]
      %v630 = vld [vmem:[%s1 + $0x130] sm:$0xf]
      %v631 = vld [vmem:[%s1 + $0x134] sm:$0xf]
      %v632 = vld [vmem:[%s1 + $0x138] sm:$0xf]
      %v633 = vld [vmem:[%s1 + $0x13c] sm:$0xf]
      %v634 = vld [vmem:[%s1 + $0x140] sm:$0xf]
      %v635 = vld [vmem:[%s1 + $0x144] sm:$0xf]
      %v636 = vld [vmem:[%s1 + $0x148] sm:$0xf]
      %v637 = vld [vmem:[%s1 + $0x14c] sm:$0xf]
      %v638 = vld [vmem:[%s1 + $0x150] sm:$0xf]
      %v639 = vld [vmem:[%s1 + $0x154] sm:$0xf]
      %v640 = vld [vmem:[%s1 + $0x158] sm:$0xf]
      %v641 = vld [vmem:[%s1 + $0x15c] sm:$0xf]
      %v642 = vld [vmem:[%s1 + $0x160] sm:$0xf]
      %v643 = vld [vmem:[%s1 + $0x164] sm:$0xf]
      %v644 = vld [vmem:[%s1 + $0x168] sm:$0xf]
      %v645 = vld [vmem:[%s1 + $0x16c] sm:$0xf]
      %v646 = vld [vmem:[%s1 + $0x170] sm:$0xf]
      %v647 = vld [vmem:[%s1 + $0x174] sm:$0xf]
      %v648 = vld [vmem:[%s1 + $0x178] sm:$0xf]
      %v649 = vld [vmem:[%s1 + $0x17c] sm:$0xf]
      %v650 = vld [vmem:[%s1 + $0x180] sm:$0xf]
      %v651 = vld [vmem:[%s1 + $0x184] sm:$0xf]
      %v652 = vld [vmem:[%s1 + $0x188] sm:$0xf]
      %v653 = vld [vmem:[%s1 + $0x18c] sm:$0xf]
      %v654 = vld [vmem:[%s1 + $0x190] sm:$0xf]
      %v655 = vld [vmem:[%s1 + $0x194] sm:$0xf]
      %v656 = vld [vmem:[%s1 + $0x198] sm:$0xf]
      %v657 = vld [vmem:[%s1 + $0x19c] sm:$0xf]
      %v658 = vld [vmem:[%s1 + $0x1a0] sm:$0xf]
      %v659 = vld [vmem:[%s1 + $0x1a4] sm:$0xf]
      %v660 = vld [vmem:[%s1 + $0x1a8] sm:$0xf]
      %v661 = vld [vmem:[%s1 + $0x1ac] sm:$0xf]
      %v662 = vld [vmem:[%s1 + $0x1b0] sm:$0xf]
      %v663 = vld [vmem:[%s1 + $0x1b4] sm:$0xf]
      %v664 = vld [vmem:[%s1 + $0x1b8] sm:$0xf]
      %v665 = vld [vmem:[%s1 + $0x1bc] sm:$0xf]
      %v666 = vld [vmem:[%s1 + $0x1c0] sm:$0xf]
      %v667 = vld [vmem:[%s1 + $0x1c4] sm:$0xf]
      %v668 = vld [vmem:[%s1 + $0x1c8] sm:$0xf]
      %v669 = vld [vmem:[%s1 + $0x1cc] sm:$0xf]
      %v670 = vld [vmem:[%s1 + $0x1d0] sm:$0xf]
      %v671 = vld [vmem:[%s1 + $0x1d4] sm:$0xf]
      %v672 = vld [vmem:[%s1 + $0x1d8] sm:$0xf]
      %v673 = vld [vmem:[%s1 + $0x1dc] sm:$0xf]
      %v674 = vld [vmem:[%s1 + $0x1e0] sm:$0xf]
      %v675 = vld [vmem:[%s1 + $0x1e4] sm:$0xf]
      %v676 = vld [vmem:[%s1 + $0x1e8] sm:$0xf]
      %v677 = vld [vmem:[%s1 + $0x1ec] sm:$0xf]
      %v678 = vld [vmem:[%s1 + $0x1f0] sm:$0xf]
      %v679 = vld [vmem:[%s1 + $0x1f4] sm:$0xf]
      %v680 = vld [vmem:[%s1 + $0x1f8] sm:$0xf]
      %v681 = vld [vmem:[%s1 + $0x1fc] sm:$0xf]
      %v682 = vld [vmem:[%s1 + $0x200] sm:$0xf]
      %v683 = vld [vmem:[%s1 + $0x204] sm:$0xf]
      %v684 = vld [vmem:[%s1 + $0x208] sm:$0xf]
      %v685 = vld [vmem:[%s1 + $0x20c] sm:$0xf]
      %v686 = vld [vmem:[%s1 + $0x210] sm:$0xf]
      %v687 = vld [vmem:[%s1 + $0x214] sm:$0xf]
      %v688 = vld [vmem:[%s1 + $0x218] sm:$0xf]
      %v689 = vld [vmem:[%s1 + $0x21c] sm:$0xf]
      %v690 = vld [vmem:[%s1 + $0x220] sm:$0xf]
      %v691 = vld [vmem:[%s1 + $0x224] sm:$0xf]
      %v692 = vld [vmem:[%s1 + $0x228] sm:$0xf]
      %v693 = vld [vmem:[%s1 + $0x22c] sm:$0xf]
      %v694 = vld [vmem:[%s1 + $0x230] sm:$0xf]
      %v695 = vld [vmem:[%s1 + $0x234] sm:$0xf]
      %v696 = vld [vmem:[%s1 + $0x238] sm:$0xf]
      %v697 = vld [vmem:[%s1 + $0x23c] sm:$0xf]
      %v842 = vunpack.c.l.b16 %v554
      %v843 = vunpack.c.l.b16 %v555
      %v844 = vunpack.c.l.b16 %v556
      %v845 = vunpack.c.l.b16 %v557
      %v846 = vunpack.c.l.b16 %v558
      %v847 = vunpack.c.l.b16 %v559
      %v848 = vunpack.c.l.b16 %v560
      %v849 = vunpack.c.l.b16 %v561
      %v850 = vunpack.c.l.b16 %v562
      %v851 = vunpack.c.l.b16 %v563
      %v852 = vunpack.c.l.b16 %v564
      %v853 = vunpack.c.l.b16 %v565
      %v854 = vunpack.c.l.b16 %v566
      %v855 = vunpack.c.l.b16 %v567
      %v856 = vunpack.c.l.b16 %v568
      %v857 = vunpack.c.l.b16 %v569
      %v858 = vunpack.c.l.b16 %v570
      %v859 = vunpack.c.l.b16 %v571
      %v860 = vunpack.c.l.b16 %v572
      %v861 = vunpack.c.l.b16 %v573
      %v862 = vunpack.c.l.b16 %v574
      %v863 = vunpack.c.l.b16 %v575
      %v864 = vunpack.c.l.b16 %v576
      %v865 = vunpack.c.l.b16 %v577
      %v866 = vunpack.c.l.b16 %v578
      %v867 = vunpack.c.l.b16 %v579
      %v868 = vunpack.c.l.b16 %v580
      %v869 = vunpack.c.l.b16 %v581
      %v870 = vunpack.c.l.b16 %v582
      %v871 = vunpack.c.l.b16 %v583
      %v872 = vunpack.c.l.b16 %v584
      %v873 = vunpack.c.l.b16 %v585
      %v874 = vunpack.c.l.b16 %v586
      %v875 = vunpack.c.l.b16 %v587
      %v876 = vunpack.c.l.b16 %v588
      %v877 = vunpack.c.l.b16 %v589
      %v878 = vunpack.c.l.b16 %v590
      %v879 = vunpack.c.l.b16 %v591
      %v880 = vunpack.c.l.b16 %v592
      %v881 = vunpack.c.l.b16 %v593
      %v882 = vunpack.c.l.b16 %v594
      %v883 = vunpack.c.l.b16 %v595
      %v884 = vunpack.c.l.b16 %v596
      %v885 = vunpack.c.l.b16 %v597
      %v886 = vunpack.c.l.b16 %v598
      %v887 = vunpack.c.l.b16 %v599
      %v888 = vunpack.c.l.b16 %v600
      %v889 = vunpack.c.l.b16 %v601
      %v890 = vunpack.c.l.b16 %v602
      %v891 = vunpack.c.l.b16 %v603
      %v892 = vunpack.c.l.b16 %v604
      %v893 = vunpack.c.l.b16 %v605
      %v894 = vunpack.c.l.b16 %v606
      %v895 = vunpack.c.l.b16 %v607
      %v896 = vunpack.c.l.b16 %v608
      %v897 = vunpack.c.l.b16 %v609
      %v898 = vunpack.c.l.b16 %v610
      %v899 = vunpack.c.l.b16 %v611
      %v900 = vunpack.c.l.b16 %v612
      %v901 = vunpack.c.l.b16 %v613
      %v902 = vunpack.c.l.b16 %v614
      %v903 = vunpack.c.l.b16 %v615
      %v904 = vunpack.c.l.b16 %v616
      %v905 = vunpack.c.l.b16 %v617
      %v906 = vunpack.c.l.b16 %v618
      %v907 = vunpack.c.l.b16 %v619
      %v908 = vunpack.c.l.b16 %v620
      %v909 = vunpack.c.l.b16 %v621
      %v910 = vunpack.c.l.b16 %v622
      %v911 = vunpack.c.l.b16 %v623
      %v912 = vunpack.c.l.b16 %v624
      %v913 = vunpack.c.l.b16 %v625
      %v914 = vunpack.c.l.b16 %v626
      %v915 = vunpack.c.l.b16 %v627
      %v916 = vunpack.c.l.b16 %v628
      %v917 = vunpack.c.l.b16 %v629
      %v918 = vunpack.c.l.b16 %v630
      %v919 = vunpack.c.l.b16 %v631
      %v920 = vunpack.c.l.b16 %v632
      %v921 = vunpack.c.l.b16 %v633
      %v922 = vunpack.c.l.b16 %v634
      %v923 = vunpack.c.l.b16 %v635
      %v924 = vunpack.c.l.b16 %v636
      %v925 = vunpack.c.l.b16 %v637
      %v926 = vunpack.c.l.b16 %v638
      %v927 = vunpack.c.l.b16 %v639
      %v928 = vunpack.c.l.b16 %v640
      %v929 = vunpack.c.l.b16 %v641
      %v930 = vunpack.c.l.b16 %v642
      %v931 = vunpack.c.l.b16 %v643
      %v932 = vunpack.c.l.b16 %v644
      %v933 = vunpack.c.l.b16 %v645
      %v934 = vunpack.c.l.b16 %v646
      %v935 = vunpack.c.l.b16 %v647
      %v936 = vunpack.c.l.b16 %v648
      %v937 = vunpack.c.l.b16 %v649
      %v938 = vunpack.c.l.b16 %v650
      %v939 = vunpack.c.l.b16 %v651
      %v940 = vunpack.c.l.b16 %v652
      %v941 = vunpack.c.l.b16 %v653
      %v942 = vunpack.c.l.b16 %v654
      %v943 = vunpack.c.l.b16 %v655
      %v944 = vunpack.c.l.b16 %v656
      %v945 = vunpack.c.l.b16 %v657
      %v946 = vunpack.c.l.b16 %v658
      %v947 = vunpack.c.l.b16 %v659
      %v948 = vunpack.c.l.b16 %v660
      %v949 = vunpack.c.l.b16 %v661
      %v950 = vunpack.c.l.b16 %v662
      %v951 = vunpack.c.l.b16 %v663
      %v952 = vunpack.c.l.b16 %v664
      %v953 = vunpack.c.l.b16 %v665
      %v954 = vunpack.c.l.b16 %v666
      %v955 = vunpack.c.l.b16 %v667
      %v956 = vunpack.c.l.b16 %v668
      %v957 = vunpack.c.l.b16 %v669
      %v958 = vunpack.c.l.b16 %v670
      %v959 = vunpack.c.l.b16 %v671
      %v960 = vunpack.c.l.b16 %v672
      %v961 = vunpack.c.l.b16 %v673
      %v962 = vunpack.c.l.b16 %v674
      %v963 = vunpack.c.l.b16 %v675
      %v964 = vunpack.c.l.b16 %v676
      %v965 = vunpack.c.l.b16 %v677
      %v966 = vunpack.c.l.b16 %v678
      %v967 = vunpack.c.l.b16 %v679
      %v968 = vunpack.c.l.b16 %v680
      %v969 = vunpack.c.l.b16 %v681
      %v970 = vunpack.c.l.b16 %v682
      %v971 = vunpack.c.l.b16 %v683
      %v972 = vunpack.c.l.b16 %v684
      %v973 = vunpack.c.l.b16 %v685
      %v974 = vunpack.c.l.b16 %v686
      %v975 = vunpack.c.l.b16 %v687
      %v976 = vunpack.c.l.b16 %v688
      %v977 = vunpack.c.l.b16 %v689
      %v978 = vunpack.c.l.b16 %v690
      %v979 = vunpack.c.l.b16 %v691
      %v980 = vunpack.c.l.b16 %v692
      %v981 = vunpack.c.l.b16 %v693
      %v982 = vunpack.c.l.b16 %v694
      %v983 = vunpack.c.l.b16 %v695
      %v984 = vunpack.c.l.b16 %v696
      %v985 = vunpack.c.l.b16 %v697
      %v986 = vpack.c.b16 %v843, %v842
      %v987 = vpack.c.b16 %v845, %v844
      %v988 = vpack.c.b16 %v847, %v846
      %v989 = vpack.c.b16 %v849, %v848
      %v990 = vpack.c.b16 %v851, %v850
      %v991 = vpack.c.b16 %v853, %v852
      %v992 = vpack.c.b16 %v855, %v854
      %v993 = vpack.c.b16 %v857, %v856
      %v994 = vpack.c.b16 %v859, %v858
      %v995 = vpack.c.b16 %v861, %v860
      %v996 = vpack.c.b16 %v863, %v862
      %v997 = vpack.c.b16 %v865, %v864
      %v998 = vpack.c.b16 %v867, %v866
      %v999 = vpack.c.b16 %v869, %v868
      %v1000 = vpack.c.b16 %v871, %v870
      %v1001 = vpack.c.b16 %v873, %v872
      %v1002 = vpack.c.b16 %v875, %v874
      %v1003 = vpack.c.b16 %v877, %v876
      %v1004 = vpack.c.b16 %v879, %v878
      %v1005 = vpack.c.b16 %v881, %v880
      %v1006 = vpack.c.b16 %v883, %v882
      %v1007 = vpack.c.b16 %v885, %v884
      %v1008 = vpack.c.b16 %v887, %v886
      %v1009 = vpack.c.b16 %v889, %v888
      %v1010 = vpack.c.b16 %v891, %v890
      %v1011 = vpack.c.b16 %v893, %v892
      %v1012 = vpack.c.b16 %v895, %v894
      %v1013 = vpack.c.b16 %v897, %v896
      %v1014 = vpack.c.b16 %v899, %v898
      %v1015 = vpack.c.b16 %v901, %v900
      %v1016 = vpack.c.b16 %v903, %v902
      %v1017 = vpack.c.b16 %v905, %v904
      %v1018 = vpack.c.b16 %v907, %v906
      %v1019 = vpack.c.b16 %v909, %v908
      %v1020 = vpack.c.b16 %v911, %v910
      %v1021 = vpack.c.b16 %v913, %v912
      %v1022 = vpack.c.b16 %v915, %v914
      %v1023 = vpack.c.b16 %v917, %v916
      %v1024 = vpack.c.b16 %v919, %v918
      %v1025 = vpack.c.b16 %v921, %v920
      %v1026 = vpack.c.b16 %v923, %v922
      %v1027 = vpack.c.b16 %v925, %v924
      %v1028 = vpack.c.b16 %v927, %v926
      %v1029 = vpack.c.b16 %v929, %v928
      %v1030 = vpack.c.b16 %v931, %v930
      %v1031 = vpack.c.b16 %v933, %v932
      %v1032 = vpack.c.b16 %v935, %v934
      %v1033 = vpack.c.b16 %v937, %v936
      %v1034 = vpack.c.b16 %v939, %v938
      %v1035 = vpack.c.b16 %v941, %v940
      %v1036 = vpack.c.b16 %v943, %v942
      %v1037 = vpack.c.b16 %v945, %v944
      %v1038 = vpack.c.b16 %v947, %v946
      %v1039 = vpack.c.b16 %v949, %v948
      %v1040 = vpack.c.b16 %v951, %v950
      %v1041 = vpack.c.b16 %v953, %v952
      %v1042 = vpack.c.b16 %v955, %v954
      %v1043 = vpack.c.b16 %v957, %v956
      %v1044 = vpack.c.b16 %v959, %v958
      %v1045 = vpack.c.b16 %v961, %v960
      %v1046 = vpack.c.b16 %v963, %v962
      %v1047 = vpack.c.b16 %v965, %v964
      %v1048 = vpack.c.b16 %v967, %v966
      %v1049 = vpack.c.b16 %v969, %v968
      %v1050 = vpack.c.b16 %v971, %v970
      %v1051 = vpack.c.b16 %v973, %v972
      %v1052 = vpack.c.b16 %v975, %v974
      %v1053 = vpack.c.b16 %v977, %v976
      %v1054 = vpack.c.b16 %v979, %v978
      %v1055 = vpack.c.b16 %v981, %v980
      %v1056 = vpack.c.b16 %v983, %v982
      %v1057 = vpack.c.b16 %v985, %v984
      %1130 = vmatprep.subr.bf16.mxu0 0
      %1131 = vmatpush1.bf16.msra.mxu0 %v986
      %1132 = vmatprep.subr.bf16.mxu0 0
      %1133 = vmatpush1.bf16.msra.mxu0 %v987
      %1134 = vmatprep.subr.bf16.mxu0 0
      %1135 = vmatpush1.bf16.msra.mxu0 %v988
      %1136 = vmatprep.subr.bf16.mxu0 0
      %1137 = vmatpush1.bf16.msra.mxu0 %v989
      %1138 = vmatprep.subr.bf16.mxu0 0
      %1139 = vmatpush1.bf16.msra.mxu0 %v990
      %1140 = vmatprep.subr.bf16.mxu0 0
      %1141 = vmatpush1.bf16.msra.mxu0 %v991
      %1142 = vmatprep.subr.bf16.mxu0 0
      %1143 = vmatpush1.bf16.msra.mxu0 %v992
      %1144 = vmatprep.subr.bf16.mxu0 0
      %1145 = vmatpush1.bf16.msra.mxu0 %v993
      %1146 = vmatprep.subr.bf16.mxu0 0
      %1147 = vmatpush1.bf16.msra.mxu0 %v994
      %1148 = vmatprep.subr.bf16.mxu0 0
      %1149 = vmatpush1.bf16.msra.mxu0 %v995
      %1150 = vmatprep.subr.bf16.mxu0 0
      %1151 = vmatpush1.bf16.msra.mxu0 %v996
      %1152 = vmatprep.subr.bf16.mxu0 0
      %1153 = vmatpush1.bf16.msra.mxu0 %v997
      %1154 = vmatprep.subr.bf16.mxu0 0
      %1155 = vmatpush1.bf16.msra.mxu0 %v998
      %1156 = vmatprep.subr.bf16.mxu0 0
      %1157 = vmatpush1.bf16.msra.mxu0 %v999
      %1158 = vmatprep.subr.bf16.mxu0 0
      %1159 = vmatpush1.bf16.msra.mxu0 %v1000
      %1160 = vmatprep.subr.bf16.mxu0 0
      %1161 = vmatpush1.bf16.msra.mxu0 %v1001
      %1162 = vmatprep.mubr.bf16.mxu0 %v383
      %1163 = vmatmul.mubr.bf16.gmra.mrb[0].mxu0 %v348
      %v1164 = vpop.f32.mrb[0].mxu0
      %v1165 = vadd.f32 0.0, %v1164
      %v1166 = vpop.f32.mrb[0].mxu0
      %v1167 = vpop.f32.mrb[0].mxu0
      %v1168 = vadd.f32 0.0, %v1167
      %v1169 = vpop.f32.mrb[0].mxu0
      %1170 = vmatprep.mubr.bf16.mxu0 %v391
      %1171 = vmatmul.mubr.bf16.gmra.mrb[0].mxu0 %v349
      %v1172 = vpop.f32.mrb[0].mxu0
      %v1173 = vadd.f32 0.0, %v1172
      %v1174 = vpop.f32.mrb[0].mxu0
      %v1175 = vpop.f32.mrb[0].mxu0
      %v1176 = vadd.f32 0.0, %v1175
      %v1177 = vpop.f32.mrb[0].mxu0
      %1178 = vmatprep.mubr.bf16.mxu0 %v399
      %1179 = vmatmul.mubr.bf16.gmra.mrb[0].mxu0 %v350
      %v1180 = vpop.f32.mrb[0].mxu0
      %v1181 = vadd.f32 0.0, %v1180
      %v1182 = vpop.f32.mrb[0].mxu0
      %v1183 = vpop.f32.mrb[0].mxu0
      %v1184 = vadd.f32 0.0, %v1183
      %v1185 = vpop.f32.mrb[0].mxu0
      %1186 = vmatprep.mubr.bf16.mxu0 %v407
      %1187 = vmatmul.mubr.bf16.gmra.mrb[0].mxu0 %v351
      %v1188 = vpop.f32.mrb[0].mxu0
      %v1189 = vadd.f32 0.0, %v1188
      %v1190 = vpop.f32.mrb[0].mxu0
      %v1191 = vpop.f32.mrb[0].mxu0
      %v1192 = vadd.f32 0.0, %v1191
      %v1193 = vpop.f32.mrb[0].mxu0
      %1194 = vmatprep.mubr.bf16.mxu0 %v415
      %1195 = vmatmul.mubr.bf16.gmra.mrb[0].mxu0 %v352
      %v1196 = vpop.f32.mrb[0].mxu0
      %v1197 = vadd.f32 0.0, %v1196
      %v1198 = vpop.f32.mrb[0].mxu0
      %v1199 = vpop.f32.mrb[0].mxu0
      %v1200 = vadd.f32 0.0, %v1199
      %v1201 = vpop.f32.mrb[0].mxu0
      %1202 = vmatprep.mubr.bf16.mxu0 %v423
      %1203 = vmatmul.mubr.bf16.gmra.mrb[0].mxu0 %v353
      %v1204 = vpop.f32.mrb[0].mxu0
      %v1205 = vadd.f32 0.0, %v1204
      %v1206 = vpop.f32.mrb[0].mxu0
      %v1207 = vpop.f32.mrb[0].mxu0
      %v1208 = vadd.f32 0.0, %v1207
      %v1209 = vpop.f32.mrb[0].mxu0
      %1210 = vmatprep.mubr.bf16.mxu0 %v431
      %1211 = vmatmul.mubr.bf16.gmra.mrb[0].mxu0 %v354
      %v1212 = vpop.f32.mrb[0].mxu0
      %v1213 = vadd.f32 0.0, %v1212
      %v1214 = vpop.f32.mrb[0].mxu0
      %v1215 = vpop.f32.mrb[0].mxu0
      %v1216 = vadd.f32 0.0, %v1215
      %v1217 = vpop.f32.mrb[0].mxu0
      %1218 = vmatprep.mubr.bf16.mxu0 %v439
      %1219 = vmatmul.mubr.bf16.gmra.mrb[0].mxu0 %v355
      %v1220 = vpop.f32.mrb[0].mxu0
      %v1221 = vadd.f32 0.0, %v1220
      %v1222 = vpop.f32.mrb[0].mxu0
      %v1223 = vpop.f32.mrb[0].mxu0
      %v1224 = vadd.f32 0.0, %v1223
      %v1225 = vpop.f32.mrb[0].mxu0
      %1226 = vmatprep.mubr.bf16.mxu0 %v447
      %1227 = vmatmul.mubr.bf16.gmra.mrb[0].mxu0 %v356
      %v1228 = vpop.f32.mrb[0].mxu0
      %v1229 = vadd.f32 0.0, %v1228
      %v1230 = vpop.f32.mrb[0].mxu0
      %v1231 = vpop.f32.mrb[0].mxu0
      %v1232 = vadd.f32 0.0, %v1231
      %v1233 = vpop.f32.mrb[0].mxu0
      %1234 = vmatprep.mubr.bf16.mxu0 %v455
      %1235 = vmatmul.mubr.bf16.gmra.mrb[0].mxu0 %v357
      %v1236 = vpop.f32.mrb[0].mxu0
      %v1237 = vadd.f32 0.0, %v1236
      %v1238 = vpop.f32.mrb[0].mxu0
      %v1239 = vpop.f32.mrb[0].mxu0
      %v1240 = vadd.f32 0.0, %v1239
      %v1241 = vpop.f32.mrb[0].mxu0
      %1242 = vdwg.mxu0
      %1243 = vmatprep.subr.bf16.mxu0 0
      %1244 = vmatpush1.bf16.msra.mxu0 %v1002
      %1245 = vmatprep.subr.bf16.mxu0 0
      %1246 = vmatpush1.bf16.msra.mxu0 %v1003
      %1247 = vmatprep.subr.bf16.mxu0 0
      %1248 = vmatpush1.bf16.msra.mxu0 %v1004
      %1249 = vmatprep.subr.bf16.mxu0 0
      %1250 = vmatpush1.bf16.msra.mxu0 %v1005
      %1251 = vmatprep.subr.bf16.mxu0 0
      %1252 = vmatpush1.bf16.msra.mxu0 %v1006
      %1253 = vmatprep.subr.bf16.mxu0 0
      %1254 = vmatpush1.bf16.msra.mxu0 %v1007
      %1255 = vmatprep.subr.bf16.mxu0 0
      %1256 = vmatpush1.bf16.msra.mxu0 %v1008
      %1257 = vmatprep.subr.bf16.mxu0 0
      %1258 = vmatpush1.bf16.msra.mxu0 %v1009
      %1259 = vmatprep.subr.bf16.mxu0 0
      %1260 = vmatpush1.bf16.msra.mxu0 %v1010
      %1261 = vmatprep.subr.bf16.mxu0 0
      %1262 = vmatpush1.bf16.msra.mxu0 %v1011
      %1263 = vmatprep.subr.bf16.mxu0 0
      %1264 = vmatpush1.bf16.msra.mxu0 %v1012
      %1265 = vmatprep.subr.bf16.mxu0 0
      %1266 = vmatpush1.bf16.msra.mxu0 %v1013
      %1267 = vmatprep.subr.bf16.mxu0 0
      %1268 = vmatpush1.bf16.msra.mxu0 %v1014
      %1269 = vmatprep.subr.bf16.mxu0 0
      %1270 = vmatpush1.bf16.msra.mxu0 %v1015
      %1271 = vmatprep.subr.bf16.mxu0 0
      %1272 = vmatpush1.bf16.msra.mxu0 %v1016
      %1273 = vmatprep.subr.bf16.mxu0 0
      %1274 = vmatpush1.bf16.msra.mxu0 %v1017
      %1275 = vmatprep.mubr.bf16.mxu0 %v349
      %1276 = vmatmul.mubr.bf16.gmra.mrb[0].mxu0 %v469
      %v1277 = vpop.f32.mrb[0].mxu0
      %v1278 = vadd.f32 %v1165, %v1277
      %v1279 = vpop.f32.mrb[0].mxu0
      %v1280 = vpop.f32.mrb[0].mxu0
      %v1281 = vadd.f32 %v1168, %v1280
      %v1282 = vpop.f32.mrb[0].mxu0
      %1283 = vmatprep.mubr.bf16.mxu0 %v350
      %1284 = vmatmul.mubr.bf16.gmra.mrb[0].mxu0 %v471
      %v1285 = vpop.f32.mrb[0].mxu0
      %v1286 = vadd.f32 %v1173, %v1285
      %v1287 = vpop.f32.mrb[0].mxu0
      %v1288 = vpop.f32.mrb[0].mxu0
      %v1289 = vadd.f32 %v1176, %v1288
      %v1290 = vpop.f32.mrb[0].mxu0
      %1291 = vmatprep.mubr.bf16.mxu0 %v351
      %1292 = vmatmul.mubr.bf16.gmra.mrb[0].mxu0 %v473
      %v1293 = vpop.f32.mrb[0].mxu0
      %v1294 = vadd.f32 %v1181, %v1293
      %v1295 = vpop.f32.mrb[0].mxu0
      %v1296 = vpop.f32.mrb[0].mxu0
      %v1297 = vadd.f32 %v1184, %v1296
      %v1298 = vpop.f32.mrb[0].mxu0
      %1299 = vmatprep.mubr.bf16.mxu0 %v352
      %1300 = vmatmul.mubr.bf16.gmra.mrb[0].mxu0 %v475
      %v1301 = vpop.f32.mrb[0].mxu0
      %v1302 = vadd.f32 %v1189, %v1301
      %v1303 = vpop.f32.mrb[0].mxu0
      %v1304 = vpop.f32.mrb[0].mxu0
      %v1305 = vadd.f32 %v1192, %v1304
      %v1306 = vpop.f32.mrb[0].mxu0
      %1307 = vmatprep.mubr.bf16.mxu0 %v353
      %1308 = vmatmul.mubr.bf16.gmra.mrb[0].mxu0 %v477
      %v1309 = vpop.f32.mrb[0].mxu0
      %v1310 = vadd.f32 %v1197, %v1309
      %v1311 = vpop.f32.mrb[0].mxu0
      %v1312 = vpop.f32.mrb[0].mxu0
      %v1313 = vadd.f32 %v1200, %v1312
      %v1314 = vpop.f32.mrb[0].mxu0
      %1315 = vmatprep.mubr.bf16.mxu0 %v354
      %1316 = vmatmul.mubr.bf16.gmra.mrb[0].mxu0 %v479
      %v1317 = vpop.f32.mrb[0].mxu0
      %v1318 = vadd.f32 %v1205, %v1317
      %v1319 = vpop.f32.mrb[0].mxu0
      %v1320 = vpop.f32.mrb[0].mxu0
      %v1321 = vadd.f32 %v1208, %v1320
      %v1322 = vpop.f32.mrb[0].mxu0
      %1323 = vmatprep.mubr.bf16.mxu0 %v355
      %1324 = vmatmul.mubr.bf16.gmra.mrb[0].mxu0 %v481
      %v1325 = vpop.f32.mrb[0].mxu0
      %v1326 = vadd.f32 %v1213, %v1325
      %v1327 = vpop.f32.mrb[0].mxu0
      %v1328 = vpop.f32.mrb[0].mxu0
      %v1329 = vadd.f32 %v1216, %v1328
      %v1330 = vpop.f32.mrb[0].mxu0
      %1331 = vmatprep.mubr.bf16.mxu0 %v356
      %1332 = vmatmul.mubr.bf16.gmra.mrb[0].mxu0 %v483
      %v1333 = vpop.f32.mrb[0].mxu0
      %v1334 = vadd.f32 %v1221, %v1333
      %v1335 = vpop.f32.mrb[0].mxu0
      %v1336 = vpop.f32.mrb[0].mxu0
      %v1337 = vadd.f32 %v1224, %v1336
      %v1338 = vpop.f32.mrb[0].mxu0
      %1339 = vmatprep.mubr.bf16.mxu0 %v357
      %1340 = vmatmul.mubr.bf16.gmra.mrb[0].mxu0 %v485
      %v1341 = vpop.f32.mrb[0].mxu0
      %v1342 = vadd.f32 %v1229, %v1341
      %v1343 = vpop.f32.mrb[0].mxu0
      %v1344 = vpop.f32.mrb[0].mxu0
      %v1345 = vadd.f32 %v1232, %v1344
      %v1346 = vpop.f32.mrb[0].mxu0
      %1347 = vmatprep.mubr.bf16.mxu0 %v500
      %1348 = vmatmul.mubr.bf16.gmra.mrb[0].mxu0 %v487
      %v1349 = vpop.f32.mrb[0].mxu0
      %v1350 = vadd.f32 %v1237, %v1349
      %v1351 = vpop.f32.mrb[0].mxu0
      %v1352 = vpop.f32.mrb[0].mxu0
      %v1353 = vadd.f32 %v1240, %v1352
      %v1354 = vpop.f32.mrb[0].mxu0
      %1355 = vdwg.mxu0
      %1356 = vmatprep.subr.bf16.mxu0 0
      %1357 = vmatpush1.bf16.msra.mxu0 %v1018
      %1358 = vmatprep.subr.bf16.mxu0 0
      %1359 = vmatpush1.bf16.msra.mxu0 %v1019
      %1360 = vmatprep.subr.bf16.mxu0 0
      %1361 = vmatpush1.bf16.msra.mxu0 %v1020
      %1362 = vmatprep.subr.bf16.mxu0 0
      %1363 = vmatpush1.bf16.msra.mxu0 %v1021
      %1364 = vmatprep.subr.bf16.mxu0 0
      %1365 = vmatpush1.bf16.msra.mxu0 %v1022
      %1366 = vmatprep.subr.bf16.mxu0 0
      %1367 = vmatpush1.bf16.msra.mxu0 %v1023
      %1368 = vmatprep.subr.bf16.mxu0 0
      %1369 = vmatpush1.bf16.msra.mxu0 %v1024
      %1370 = vmatprep.subr.bf16.mxu0 0
      %1371 = vmatpush1.bf16.msra.mxu0 %v1025
      %1372 = vmatprep.subr.bf16.mxu0 0
      %1373 = vmatpush1.bf16.msra.mxu0 %v1026
      %1374 = vmatprep.subr.bf16.mxu0 0
      %1375 = vmatpush1.bf16.msra.mxu0 %v1027
      %1376 = vmatprep.subr.bf16.mxu0 0
      %1377 = vmatpush1.bf16.msra.mxu0 %v1028
      %1378 = vmatprep.subr.bf16.mxu0 0
      %1379 = vmatpush1.bf16.msra.mxu0 %v1029
      %1380 = vmatprep.subr.bf16.mxu0 0
      %1381 = vmatpush1.bf16.msra.mxu0 %v1030
      %1382 = vmatprep.subr.bf16.mxu0 0
      %1383 = vmatpush1.bf16.msra.mxu0 %v1031
      %1384 = vmatprep.subr.bf16.mxu0 0
      %1385 = vmatpush1.bf16.msra.mxu0 %v1032
      %1386 = vmatprep.subr.bf16.mxu0 0
      %1387 = vmatpush1.bf16.msra.mxu0 %v1033
      %1388 = vmatprep.mubr.bf16.mxu0 %v471
      %1389 = vmatmul.mubr.bf16.gmra.mrb[0].mxu0 %v391
      %v1390 = vpop.f32.mrb[0].mxu0
      %v1391 = vadd.f32 %v1278, %v1390
      %v1392 = vpop.f32.mrb[0].mxu0
      %v1393 = vpop.f32.mrb[0].mxu0
      %v1394 = vadd.f32 %v1281, %v1393
      %v1395 = vpop.f32.mrb[0].mxu0
      %1396 = vmatprep.mubr.bf16.mxu0 %v473
      %1397 = vmatmul.mubr.bf16.gmra.mrb[0].mxu0 %v399
      %v1398 = vpop.f32.mrb[0].mxu0
      %v1399 = vadd.f32 %v1286, %v1398
      %v1400 = vpop.f32.mrb[0].mxu0
      %v1401 = vpop.f32.mrb[0].mxu0
      %v1402 = vadd.f32 %v1289, %v1401
      %v1403 = vpop.f32.mrb[0].mxu0
      %1404 = vmatprep.mubr.bf16.mxu0 %v475
      %1405 = vmatmul.mubr.bf16.gmra.mrb[0].mxu0 %v407
      %v1406 = vpop.f32.mrb[0].mxu0
      %v1407 = vadd.f32 %v1294, %v1406
      %v1408 = vpop.f32.mrb[0].mxu0
      %v1409 = vpop.f32.mrb[0].mxu0
      %v1410 = vadd.f32 %v1297, %v1409
      %v1411 = vpop.f32.mrb[0].mxu0
      %1412 = vmatprep.mubr.bf16.mxu0 %v477
      %1413 = vmatmul.mubr.bf16.gmra.mrb[0].mxu0 %v415
      %v1414 = vpop.f32.mrb[0].mxu0
      %v1415 = vadd.f32 %v1302, %v1414
      %v1416 = vpop.f32.mrb[0].mxu0
      %v1417 = vpop.f32.mrb[0].mxu0
      %v1418 = vadd.f32 %v1305, %v1417
      %v1419 = vpop.f32.mrb[0].mxu0
      %1420 = vmatprep.mubr.bf16.mxu0 %v479
      %1421 = vmatmul.mubr.bf16.gmra.mrb[0].mxu0 %v423
      %v1422 = vpop.f32.mrb[0].mxu0
      %v1423 = vadd.f32 %v1310, %v1422
      %v1424 = vpop.f32.mrb[0].mxu0
      %v1425 = vpop.f32.mrb[0].mxu0
      %v1426 = vadd.f32 %v1313, %v1425
      %v1427 = vpop.f32.mrb[0].mxu0
      %1428 = vmatprep.mubr.bf16.mxu0 %v481
      %1429 = vmatmul.mubr.bf16.gmra.mrb[0].mxu0 %v431
      %v1430 = vpop.f32.mrb[0].mxu0
      %v1431 = vadd.f32 %v1318, %v1430
      %v1432 = vpop.f32.mrb[0].mxu0
      %v1433 = vpop.f32.mrb[0].mxu0
      %v1434 = vadd.f32 %v1321, %v1433
      %v1435 = vpop.f32.mrb[0].mxu0
      %1436 = vmatprep.mubr.bf16.mxu0 %v483
      %1437 = vmatmul.mubr.bf16.gmra.mrb[0].mxu0 %v439
      %v1438 = vpop.f32.mrb[0].mxu0
      %v1439 = vadd.f32 %v1326, %v1438
      %v1440 = vpop.f32.mrb[0].mxu0
      %v1441 = vpop.f32.mrb[0].mxu0
      %v1442 = vadd.f32 %v1329, %v1441
      %v1443 = vpop.f32.mrb[0].mxu0
      %1444 = vmatprep.mubr.bf16.mxu0 %v485
      %1445 = vmatmul.mubr.bf16.gmra.mrb[0].mxu0 %v447
      %v1446 = vpop.f32.mrb[0].mxu0
      %v1447 = vadd.f32 %v1334, %v1446
      %v1448 = vpop.f32.mrb[0].mxu0
      %v1449 = vpop.f32.mrb[0].mxu0
      %v1450 = vadd.f32 %v1337, %v1449
      %v1451 = vpop.f32.mrb[0].mxu0
      %1452 = vmatprep.mubr.bf16.mxu0 %v521
      %1453 = vmatmul.mubr.bf16.gmra.mrb[0].mxu0 %v509
      %v1454 = vpop.f32.mrb[0].mxu0
      %v1455 = vadd.f32 %v1342, %v1454
      %v1456 = vpop.f32.mrb[0].mxu0
      %v1457 = vpop.f32.mrb[0].mxu0
      %v1458 = vadd.f32 %v1345, %v1457
      %v1459 = vpop.f32.mrb[0].mxu0
      %1460 = vmatprep.mubr.bf16.mxu0 %v523
      %1461 = vmatmul.mubr.bf16.gmra.mrb[0].mxu0 %v517
      %v1462 = vpop.f32.mrb[0].mxu0
      %v1463 = vadd.f32 %v1350, %v1462
      %v1464 = vpop.f32.mrb[0].mxu0
      %v1465 = vpop.f32.mrb[0].mxu0
      %v1466 = vadd.f32 %v1353, %v1465
      %v1467 = vpop.f32.mrb[0].mxu0
      %1468 = vdwg.mxu0
      %1469 = vmatprep.subr.bf16.mxu0 0
      %1470 = vmatpush1.bf16.msra.mxu0 %v1034
      %1471 = vmatprep.subr.bf16.mxu0 0
      %1472 = vmatpush1.bf16.msra.mxu0 %v1035
      %1473 = vmatprep.subr.bf16.mxu0 0
      %1474 = vmatpush1.bf16.msra.mxu0 %v1036
      %1475 = vmatprep.subr.bf16.mxu0 0
      %1476 = vmatpush1.bf16.msra.mxu0 %v1037
      %1477 = vmatprep.subr.bf16.mxu0 0
      %1478 = vmatpush1.bf16.msra.mxu0 %v1038
      %1479 = vmatprep.subr.bf16.mxu0 0
      %1480 = vmatpush1.bf16.msra.mxu0 %v1039
      %1481 = vmatprep.subr.bf16.mxu0 0
      %1482 = vmatpush1.bf16.msra.mxu0 %v1040
      %1483 = vmatprep.subr.bf16.mxu0 0
      %1484 = vmatpush1.bf16.msra.mxu0 %v1041
      %1485 = vmatprep.subr.bf16.mxu0 0
      %1486 = vmatpush1.bf16.msra.mxu0 %v1042
      %1487 = vmatprep.subr.bf16.mxu0 0
      %1488 = vmatpush1.bf16.msra.mxu0 %v1043
      %1489 = vmatprep.subr.bf16.mxu0 0
      %1490 = vmatpush1.bf16.msra.mxu0 %v1044
      %1491 = vmatprep.subr.bf16.mxu0 0
      %1492 = vmatpush1.bf16.msra.mxu0 %v1045
      %1493 = vmatprep.subr.bf16.mxu0 0
      %1494 = vmatpush1.bf16.msra.mxu0 %v1046
      %1495 = vmatprep.subr.bf16.mxu0 0
      %1496 = vmatpush1.bf16.msra.mxu0 %v1047
      %1497 = vmatprep.subr.bf16.mxu0 0
      %1498 = vmatpush1.bf16.msra.mxu0 %v1048
      %1499 = vmatprep.subr.bf16.mxu0 0
      %1500 = vmatpush1.bf16.msra.mxu0 %v1049
      %1501 = vmatprep.mubr.bf16.mxu0 %v399
      %1502 = vmatmul.mubr.bf16.gmra.mrb[0].mxu0 %v350
      %v1503 = vpop.f32.mrb[0].mxu0
      %v1504 = vadd.f32 %v1391, %v1503
      %v1505 = vpop.f32.mrb[0].mxu0
      %v1506 = vpop.f32.mrb[0].mxu0
      %v1507 = vadd.f32 %v1394, %v1506
      %v1508 = vpop.f32.mrb[0].mxu0
      %1509 = vmatprep.mubr.bf16.mxu0 %v407
      %1510 = vmatmul.mubr.bf16.gmra.mrb[0].mxu0 %v351
      %v1511 = vpop.f32.mrb[0].mxu0
      %v1512 = vadd.f32 %v1399, %v1511
      %v1513 = vpop.f32.mrb[0].mxu0
      %v1514 = vpop.f32.mrb[0].mxu0
      %v1515 = vadd.f32 %v1402, %v1514
      %v1516 = vpop.f32.mrb[0].mxu0
      %1517 = vmatprep.mubr.bf16.mxu0 %v415
      %1518 = vmatmul.mubr.bf16.gmra.mrb[0].mxu0 %v352
      %v1519 = vpop.f32.mrb[0].mxu0
      %v1520 = vadd.f32 %v1407, %v1519
      %v1521 = vpop.f32.mrb[0].mxu0
      %v1522 = vpop.f32.mrb[0].mxu0
      %v1523 = vadd.f32 %v1410, %v1522
      %v1524 = vpop.f32.mrb[0].mxu0
      %1525 = vmatprep.mubr.bf16.mxu0 %v423
      %1526 = vmatmul.mubr.bf16.gmra.mrb[0].mxu0 %v353
      %v1527 = vpop.f32.mrb[0].mxu0
      %v1528 = vadd.f32 %v1415, %v1527
      %v1529 = vpop.f32.mrb[0].mxu0
      %v1530 = vpop.f32.mrb[0].mxu0
      %v1531 = vadd.f32 %v1418, %v1530
      %v1532 = vpop.f32.mrb[0].mxu0
      %1533 = vmatprep.mubr.bf16.mxu0 %v431
      %1534 = vmatmul.mubr.bf16.gmra.mrb[0].mxu0 %v354
      %v1535 = vpop.f32.mrb[0].mxu0
      %v1536 = vadd.f32 %v1423, %v1535
      %v1537 = vpop.f32.mrb[0].mxu0
      %v1538 = vpop.f32.mrb[0].mxu0
      %v1539 = vadd.f32 %v1426, %v1538
      %v1540 = vpop.f32.mrb[0].mxu0
      %1541 = vmatprep.mubr.bf16.mxu0 %v439
      %1542 = vmatmul.mubr.bf16.gmra.mrb[0].mxu0 %v355
      %v1543 = vpop.f32.mrb[0].mxu0
      %v1544 = vadd.f32 %v1431, %v1543
      %v1545 = vpop.f32.mrb[0].mxu0
      %v1546 = vpop.f32.mrb[0].mxu0
      %v1547 = vadd.f32 %v1434, %v1546
      %v1548 = vpop.f32.mrb[0].mxu0
      %1549 = vmatprep.mubr.bf16.mxu0 %v447
      %1550 = vmatmul.mubr.bf16.gmra.mrb[0].mxu0 %v356
      %v1551 = vpop.f32.mrb[0].mxu0
      %v1552 = vadd.f32 %v1439, %v1551
      %v1553 = vpop.f32.mrb[0].mxu0
      %v1554 = vpop.f32.mrb[0].mxu0
      %v1555 = vadd.f32 %v1442, %v1554
      %v1556 = vpop.f32.mrb[0].mxu0
      %1557 = vmatprep.mubr.bf16.mxu0 %v509
      %1558 = vmatmul.mubr.bf16.gmra.mrb[0].mxu0 %v357
      %v1559 = vpop.f32.mrb[0].mxu0
      %v1560 = vadd.f32 %v1447, %v1559
      %v1561 = vpop.f32.mrb[0].mxu0
      %v1562 = vpop.f32.mrb[0].mxu0
      %v1563 = vadd.f32 %v1450, %v1562
      %v1564 = vpop.f32.mrb[0].mxu0
      %1565 = vmatprep.mubr.bf16.mxu0 %v537
      %1566 = vmatmul.mubr.bf16.gmra.mrb[0].mxu0 %v500
      %v1567 = vpop.f32.mrb[0].mxu0
      %v1568 = vadd.f32 %v1455, %v1567
      %v1569 = vpop.f32.mrb[0].mxu0
      %v1570 = vpop.f32.mrb[0].mxu0
      %v1571 = vadd.f32 %v1458, %v1570
      %v1572 = vpop.f32.mrb[0].mxu0
      %1573 = vmatprep.mubr.bf16.mxu0 %v545
      %1574 = vmatmul.mubr.bf16.gmra.mrb[0].mxu0 %v528
      %v1575 = vpop.f32.mrb[0].mxu0
      %v1576 = vadd.f32 %v1463, %v1575
      %v1577 = vpop.f32.mrb[0].mxu0
      %v1578 = vpop.f32.mrb[0].mxu0
      %v1579 = vadd.f32 %v1466, %v1578
      %v1580 = vpop.f32.mrb[0].mxu0
      %1581 = vdwg.mxu0
      %1582 = vmatprep.subr.bf16.mxu0 0
      %1583 = vmatpush1.bf16.msra.mxu0 %v1050
      %1584 = vmatprep.subr.bf16.mxu0 0
      %1585 = vmatpush1.bf16.msra.mxu0 %v1051
      %1586 = vmatprep.subr.bf16.mxu0 0
      %1587 = vmatpush1.bf16.msra.mxu0 %v1052
      %1588 = vmatprep.subr.bf16.mxu0 0
      %1589 = vmatpush1.bf16.msra.mxu0 %v1053
      %1590 = vmatprep.subr.bf16.mxu0 0
      %1591 = vmatpush1.bf16.msra.mxu0 %v1054
      %1592 = vmatprep.subr.bf16.mxu0 0
      %1593 = vmatpush1.bf16.msra.mxu0 %v1055
      %1594 = vmatprep.subr.bf16.mxu0 0
      %1595 = vmatpush1.bf16.msra.mxu0 %v1056
      %1596 = vmatprep.subr.bf16.mxu0 0
      %1597 = vmatpush1.bf16.msra.mxu0 %v1057
      %1598 = vmatprep.subr.bf16.mxu0 0
      %1599 = vmatpush1.bf16.msra.mxu0 0
      %1600 = vmatprep.subr.bf16.mxu0 0
      %1601 = vmatpush1.bf16.msra.mxu0 0
      %1602 = vmatprep.subr.bf16.mxu0 0
      %1603 = vmatpush1.bf16.msra.mxu0 0
      %1604 = vmatprep.subr.bf16.mxu0 0
      %1605 = vmatpush1.bf16.msra.mxu0 0
      %1606 = vmatprep.subr.bf16.mxu0 0
      %1607 = vmatpush1.bf16.msra.mxu0 0
      %1608 = vmatprep.subr.bf16.mxu0 0
      %1609 = vmatpush1.bf16.msra.mxu0 0
      %1610 = vmatprep.subr.bf16.mxu0 0
      %1611 = vmatpush1.bf16.msra.mxu0 0
      %1612 = vmatprep.subr.bf16.mxu0 0
      %1613 = vmatpush1.bf16.msra.mxu0 0
      %1614 = vmatprep.mubr.bf16.mxu0 0
      %1615 = vmatmul.mubr.bf16.gmra.mrb[0].mxu0 %v473
      %v1616 = vpop.f32.mrb[0].mxu0
      %v1617 = vadd.f32 %v1504, %v1616
      %v1618 = vpop.f32.mrb[0].mxu0
      %v1619 = vpop.f32.mrb[0].mxu0
      %v1620 = vadd.f32 %v1507, %v1619
      %v1621 = vpop.f32.mrb[0].mxu0
      %1622 = vmatprep.mubr.bf16.mxu0 0
      %1623 = vmatmul.mubr.bf16.gmra.mrb[0].mxu0 %v475
      %v1624 = vpop.f32.mrb[0].mxu0
      %v1625 = vadd.f32 %v1512, %v1624
      %v1626 = vpop.f32.mrb[0].mxu0
      %v1627 = vpop.f32.mrb[0].mxu0
      %v1628 = vadd.f32 %v1515, %v1627
      %v1629 = vpop.f32.mrb[0].mxu0
      %1630 = vmatprep.mubr.bf16.mxu0 0
      %1631 = vmatmul.mubr.bf16.gmra.mrb[0].mxu0 %v477
      %v1632 = vpop.f32.mrb[0].mxu0
      %v1633 = vadd.f32 %v1520, %v1632
      %v1634 = vpop.f32.mrb[0].mxu0
      %v1635 = vpop.f32.mrb[0].mxu0
      %v1636 = vadd.f32 %v1523, %v1635
      %v1637 = vpop.f32.mrb[0].mxu0
      %1638 = vmatprep.mubr.bf16.mxu0 0
      %1639 = vmatmul.mubr.bf16.gmra.mrb[0].mxu0 %v479
      %v1640 = vpop.f32.mrb[0].mxu0
      %v1641 = vadd.f32 %v1528, %v1640
      %v1642 = vpop.f32.mrb[0].mxu0
      %v1643 = vpop.f32.mrb[0].mxu0
      %v1644 = vadd.f32 %v1531, %v1643
      %v1645 = vpop.f32.mrb[0].mxu0
      %1646 = vmatprep.mubr.bf16.mxu0 0
      %1647 = vmatmul.mubr.bf16.gmra.mrb[0].mxu0 %v481
      %v1648 = vpop.f32.mrb[0].mxu0
      %v1649 = vadd.f32 %v1536, %v1648
      %v1650 = vpop.f32.mrb[0].mxu0
      %v1651 = vpop.f32.mrb[0].mxu0
      %v1652 = vadd.f32 %v1539, %v1651
      %v1653 = vpop.f32.mrb[0].mxu0
      %1654 = vmatprep.mubr.bf16.mxu0 0
      %1655 = vmatmul.mubr.bf16.gmra.mrb[0].mxu0 %v483
      %v1656 = vpop.f32.mrb[0].mxu0
      %v1657 = vadd.f32 %v1544, %v1656
      %v1658 = vpop.f32.mrb[0].mxu0
      %v1659 = vpop.f32.mrb[0].mxu0
      %v1660 = vadd.f32 %v1547, %v1659
      %v1661 = vpop.f32.mrb[0].mxu0
      %1662 = vmatprep.mubr.bf16.mxu0 0
      %1663 = vmatmul.mubr.bf16.gmra.mrb[0].mxu0 %v485
      %v1664 = vpop.f32.mrb[0].mxu0
      %v1665 = vadd.f32 %v1552, %v1664
      %v1666 = vpop.f32.mrb[0].mxu0
      %v1667 = vpop.f32.mrb[0].mxu0
      %v1668 = vadd.f32 %v1555, %v1667
      %v1669 = vpop.f32.mrb[0].mxu0
      %1670 = vmatprep.mubr.bf16.mxu0 0
      %1671 = vmatmul.mubr.bf16.gmra.mrb[0].mxu0 %v521
      %v1672 = vpop.f32.mrb[0].mxu0
      %v1673 = vadd.f32 %v1560, %v1672
      %v1674 = vpop.f32.mrb[0].mxu0
      %v1675 = vpop.f32.mrb[0].mxu0
      %v1676 = vadd.f32 %v1563, %v1675
      %v1677 = vpop.f32.mrb[0].mxu0
      %1678 = vmatprep.mubr.bf16.mxu0 0
      %1679 = vmatmul.mubr.bf16.gmra.mrb[0].mxu0 %v549
      %v1680 = vpop.f32.mrb[0].mxu0
      %v1681 = vadd.f32 %v1568, %v1680
      %v1682 = vpop.f32.mrb[0].mxu0
      %v1683 = vpop.f32.mrb[0].mxu0
      %v1684 = vadd.f32 %v1571, %v1683
      %v1685 = vpop.f32.mrb[0].mxu0
      %1686 = vmatprep.mubr.bf16.mxu0 0
      %1687 = vmatmul.mubr.bf16.gmra.mrb[0].mxu0 %v551
      %v1688 = vpop.f32.mrb[0].mxu0
      %v1689 = vadd.f32 %v1576, %v1688
      %v1690 = vpop.f32.mrb[0].mxu0
      %v1691 = vpop.f32.mrb[0].mxu0
      %v1692 = vadd.f32 %v1579, %v1691
      %v1693 = vpop.f32.mrb[0].mxu0
      %1694 = vdwg.mxu0
      %v1695 = vld [vmem:[%s2] sm:$0x1]
      %v1697 = vlaneseq
      %v1698 = vshrl.u32 %v1697, 7
      %v1699 = vsub.s32 0, %v1698
      %v1700 = vrot.slane %v1695, %v1699
      %v1702 = vmul.f32 %v1617, %v1700
      %v1703 = vmul.f32 %v1620, %v1700
      %v1704 = vmul.f32 %v1625, %v1700
      %v1705 = vmul.f32 %v1628, %v1700
      %v1706 = vmul.f32 %v1633, %v1700
      %v1707 = vmul.f32 %v1636, %v1700
      %v1708 = vmul.f32 %v1641, %v1700
      %v1709 = vmul.f32 %v1644, %v1700
      %v1710 = vmul.f32 %v1649, %v1700
      %v1711 = vmul.f32 %v1652, %v1700
      %v1712 = vmul.f32 %v1657, %v1700
      %v1713 = vmul.f32 %v1660, %v1700
      %v1714 = vmul.f32 %v1665, %v1700
      %v1715 = vmul.f32 %v1668, %v1700
      %v1716 = vmul.f32 %v1673, %v1700
      %v1717 = vmul.f32 %v1676, %v1700
      %v1718 = vmul.f32 %v1681, %v1700
      %v1719 = vmul.f32 %v1684, %v1700
      %v1720 = vmul.f32 %v1689, %v1700
      %v1721 = vmul.f32 %v1692, %v1700
      %v1722 = vld [vmem:[%s3] sm:$0x1]
      %v1724 = vlaneseq
      %v1725 = vshrl.u32 %v1724, 7
      %v1726 = vsub.s32 0, %v1725
      %v1727 = vrot.slane %v1722, %v1726
      %v1729 = vadd.f32 %v1702, %v1727
      %v1730 = vadd.f32 %v1703, %v1727
      %v1731 = vadd.f32 %v1704, %v1727
      %v1732 = vadd.f32 %v1705, %v1727
      %v1733 = vadd.f32 %v1706, %v1727
      %v1734 = vadd.f32 %v1707, %v1727
      %v1735 = vadd.f32 %v1708, %v1727
      %v1736 = vadd.f32 %v1709, %v1727
      %v1737 = vadd.f32 %v1710, %v1727
      %v1738 = vadd.f32 %v1711, %v1727
      %v1739 = vadd.f32 %v1712, %v1727
      %v1740 = vadd.f32 %v1713, %v1727
      %v1741 = vadd.f32 %v1714, %v1727
      %v1742 = vadd.f32 %v1715, %v1727
      %v1743 = vadd.f32 %v1716, %v1727
      %v1744 = vadd.f32 %v1717, %v1727
      %v1745 = vadd.f32 %v1718, %v1727
      %v1746 = vadd.f32 %v1719, %v1727
      %v1747 = vadd.f32 %v1720, %v1727
      %v1748 = vadd.f32 %v1721, %v1727
      %v1749 = vld [vmem:[%s269] sm:$0xf]
      %v1750 = vld [vmem:[%s269 + $0x4] sm:$0xf]
      %v1751 = vld [vmem:[%s269 + $0x8] sm:$0xf]
      %v1752 = vld [vmem:[%s269 + $0xc] sm:$0xf]
      %v1753 = vld [vmem:[%s269 + $0x10] sm:$0xf]
      %v1754 = vld [vmem:[%s269 + $0x14] sm:$0xf]
      %v1755 = vld [vmem:[%s269 + $0x18] sm:$0xf]
      %v1756 = vld [vmem:[%s269 + $0x1c] sm:$0xf]
      %v1757 = vld [vmem:[%s269 + $0x20] sm:$0xf]
      %v1758 = vld [vmem:[%s269 + $0x24] sm:$0xf]
      %v1759 = vld [vmem:[%s269 + $0x28] sm:$0xf]
      %v1760 = vld [vmem:[%s269 + $0x2c] sm:$0xf]
      %v1761 = vld [vmem:[%s269 + $0x30] sm:$0xf]
      %v1762 = vld [vmem:[%s269 + $0x34] sm:$0xf]
      %v1763 = vld [vmem:[%s269 + $0x38] sm:$0xf]
      %v1764 = vld [vmem:[%s269 + $0x3c] sm:$0xf]
      %v1765 = vld [vmem:[%s269 + $0x40] sm:$0xf]
      %v1766 = vld [vmem:[%s269 + $0x44] sm:$0xf]
      %v1767 = vld [vmem:[%s269 + $0x48] sm:$0xf]
      %v1768 = vld [vmem:[%s269 + $0x4c] sm:$0xf]
      %v1769 = vunpack.c.l.bf16 %v1749
      %v1770 = vunpack.c.l.bf16 %v1750
      %v1771 = vunpack.c.l.bf16 %v1751
      %v1772 = vunpack.c.l.bf16 %v1752
      %v1773 = vunpack.c.l.bf16 %v1753
      %v1774 = vunpack.c.l.bf16 %v1754
      %v1775 = vunpack.c.l.bf16 %v1755
      %v1776 = vunpack.c.l.bf16 %v1756
      %v1777 = vunpack.c.l.bf16 %v1757
      %v1778 = vunpack.c.l.bf16 %v1758
      %v1779 = vunpack.c.l.bf16 %v1759
      %v1780 = vunpack.c.l.bf16 %v1760
      %v1781 = vunpack.c.l.bf16 %v1761
      %v1782 = vunpack.c.l.bf16 %v1762
      %v1783 = vunpack.c.l.bf16 %v1763
      %v1784 = vunpack.c.l.bf16 %v1764
      %v1785 = vunpack.c.l.bf16 %v1765
      %v1786 = vunpack.c.l.bf16 %v1766
      %v1787 = vunpack.c.l.bf16 %v1767
      %v1788 = vunpack.c.l.bf16 %v1768
      %v1789 = vadd.f32 %v1729, %v1769
      %v1790 = vadd.f32 %v1730, %v1770
      %v1791 = vadd.f32 %v1731, %v1771
      %v1792 = vadd.f32 %v1732, %v1772
      %v1793 = vadd.f32 %v1733, %v1773
      %v1794 = vadd.f32 %v1734, %v1774
      %v1795 = vadd.f32 %v1735, %v1775
      %v1796 = vadd.f32 %v1736, %v1776
      %v1797 = vadd.f32 %v1737, %v1777
      %v1798 = vadd.f32 %v1738, %v1778
      %v1799 = vadd.f32 %v1739, %v1779
      %v1800 = vadd.f32 %v1740, %v1780
      %v1801 = vadd.f32 %v1741, %v1781
      %v1802 = vadd.f32 %v1742, %v1782
      %v1803 = vadd.f32 %v1743, %v1783
      %v1804 = vadd.f32 %v1744, %v1784
      %v1805 = vadd.f32 %v1745, %v1785
      %v1806 = vadd.f32 %v1746, %v1786
      %v1807 = vadd.f32 %v1747, %v1787
      %v1808 = vadd.f32 %v1748, %v1788
      %v1809 = vmax.f32 %v1789, 0.0
      %v1810 = vmax.f32 %v1790, 0.0
      %v1811 = vmax.f32 %v1791, 0.0
      %v1812 = vmax.f32 %v1792, 0.0
      %v1813 = vmax.f32 %v1793, 0.0
      %v1814 = vmax.f32 %v1794, 0.0
      %v1815 = vmax.f32 %v1795, 0.0
      %v1816 = vmax.f32 %v1796, 0.0
      %v1817 = vmax.f32 %v1797, 0.0
      %v1818 = vmax.f32 %v1798, 0.0
      %v1819 = vmax.f32 %v1799, 0.0
      %v1820 = vmax.f32 %v1800, 0.0
      %v1821 = vmax.f32 %v1801, 0.0
      %v1822 = vmax.f32 %v1802, 0.0
      %v1823 = vmax.f32 %v1803, 0.0
      %v1824 = vmax.f32 %v1804, 0.0
      %v1825 = vmax.f32 %v1805, 0.0
      %v1826 = vmax.f32 %v1806, 0.0
      %v1827 = vmax.f32 %v1807, 0.0
      %v1828 = vmax.f32 %v1808, 0.0
      %v1829 = vld [vmem:[%s263] sm:$0xff]
      %v1830 = vld [vmem:[%s263 + $0x8] sm:$0xff]
      %v1831 = vld [vmem:[%s263 + $0x10] sm:$0xff]
      %v1832 = vld [vmem:[%s263 + $0x18] sm:$0xff]
      %v1833 = vld [vmem:[%s263 + $0x20] sm:$0xff]
      %v1834 = vld [vmem:[%s263 + $0x28] sm:$0xff]
      %v1835 = vld [vmem:[%s263 + $0x30] sm:$0xff]
      %v1836 = vld [vmem:[%s263 + $0x38] sm:$0xff]
      %v1837 = vld [vmem:[%s263 + $0x40] sm:$0xff]
      %v1838 = vld [vmem:[%s263 + $0x48] sm:$0xff]
      %v1839 = vld [vmem:[%s263 + $0x50] sm:$0xff]
      %v1840 = vld [vmem:[%s263 + $0x58] sm:$0xff]
      %v1841 = vld [vmem:[%s263 + $0x60] sm:$0xff]
      %v1842 = vld [vmem:[%s263 + $0x68] sm:$0xff]
      %v1843 = vld [vmem:[%s263 + $0x70] sm:$0xff]
      %v1844 = vld [vmem:[%s263 + $0x78] sm:$0xff]
      %v1845 = vld [vmem:[%s263 + $0x80] sm:$0xff]
      %v1846 = vld [vmem:[%s263 + $0x88] sm:$0xff]
      %v1847 = vld [vmem:[%s263 + $0x90] sm:$0xff]
      %v1848 = vld [vmem:[%s263 + $0x98] sm:$0xff]
      %1850 = vset.pattern.permute.xlu0 0
      %1851 = vperm.xlu0 %1850, %v1829
      %v1852 = vpop.permute.xlu0 %1851
      %1855 = vset.pattern.permute.xlu0 0
      %1856 = vperm.xlu0 %1855, %v1830
      %v1857 = vpop.permute.xlu0 %1856
      %1860 = vset.pattern.permute.xlu0 0
      %1861 = vperm.xlu0 %1860, %v1831
      %v1862 = vpop.permute.xlu0 %1861
      %1865 = vset.pattern.permute.xlu0 0
      %1866 = vperm.xlu0 %1865, %v1832
      %v1867 = vpop.permute.xlu0 %1866
      %1870 = vset.pattern.permute.xlu0 0
      %1871 = vperm.xlu0 %1870, %v1833
      %v1872 = vpop.permute.xlu0 %1871
      %1875 = vset.pattern.permute.xlu0 0
      %1876 = vperm.xlu0 %1875, %v1834
      %v1877 = vpop.permute.xlu0 %1876
      %1880 = vset.pattern.permute.xlu0 0
      %1881 = vperm.xlu0 %1880, %v1835
      %v1882 = vpop.permute.xlu0 %1881
      %1885 = vset.pattern.permute.xlu0 0
      %1886 = vperm.xlu0 %1885, %v1836
      %v1887 = vpop.permute.xlu0 %1886
      %1890 = vset.pattern.permute.xlu0 0
      %1891 = vperm.xlu0 %1890, %v1837
      %v1892 = vpop.permute.xlu0 %1891
      %1895 = vset.pattern.permute.xlu0 0
      %1896 = vperm.xlu0 %1895, %v1838
      %v1897 = vpop.permute.xlu0 %1896
      %1900 = vset.pattern.permute.xlu0 0
      %1901 = vperm.xlu0 %1900, %v1839
      %v1902 = vpop.permute.xlu0 %1901
      %1905 = vset.pattern.permute.xlu0 0
      %1906 = vperm.xlu0 %1905, %v1840
      %v1907 = vpop.permute.xlu0 %1906
      %1910 = vset.pattern.permute.xlu0 0
      %1911 = vperm.xlu0 %1910, %v1841
      %v1912 = vpop.permute.xlu0 %1911
      %1915 = vset.pattern.permute.xlu0 0
      %1916 = vperm.xlu0 %1915, %v1842
      %v1917 = vpop.permute.xlu0 %1916
      %1920 = vset.pattern.permute.xlu0 0
      %1921 = vperm.xlu0 %1920, %v1843
      %v1922 = vpop.permute.xlu0 %1921
      %1925 = vset.pattern.permute.xlu0 0
      %1926 = vperm.xlu0 %1925, %v1844
      %v1927 = vpop.permute.xlu0 %1926
      %1930 = vset.pattern.permute.xlu0 0
      %1931 = vperm.xlu0 %1930, %v1845
      %v1932 = vpop.permute.xlu0 %1931
      %1935 = vset.pattern.permute.xlu0 0
      %1936 = vperm.xlu0 %1935, %v1846
      %v1937 = vpop.permute.xlu0 %1936
      %1940 = vset.pattern.permute.xlu0 0
      %1941 = vperm.xlu0 %1940, %v1847
      %v1942 = vpop.permute.xlu0 %1941
      %1945 = vset.pattern.permute.xlu0 0
      %1946 = vperm.xlu0 %1945, %v1848
      %v1947 = vpop.permute.xlu0 %1946
      %v1949 = vmul.f32 %v1809, %v1852
      %v1950 = vmul.f32 %v1810, %v1857
      %v1951 = vmul.f32 %v1811, %v1862
      %v1952 = vmul.f32 %v1812, %v1867
      %v1953 = vmul.f32 %v1813, %v1872
      %v1954 = vmul.f32 %v1814, %v1877
      %v1955 = vmul.f32 %v1815, %v1882
      %v1956 = vmul.f32 %v1816, %v1887
      %v1957 = vmul.f32 %v1817, %v1892
      %v1958 = vmul.f32 %v1818, %v1897
      %v1959 = vmul.f32 %v1819, %v1902
      %v1960 = vmul.f32 %v1820, %v1907
      %v1961 = vmul.f32 %v1821, %v1912
      %v1962 = vmul.f32 %v1822, %v1917
      %v1963 = vmul.f32 %v1823, %v1922
      %v1964 = vmul.f32 %v1824, %v1927
      %v1965 = vmul.f32 %v1825, %v1932
      %v1966 = vmul.f32 %v1826, %v1937
      %v1967 = vmul.f32 %v1827, %v1942
      %v1968 = vmul.f32 %v1828, %v1947
      %v1969 = vpack.c.bf16 %v1950, %v1949
      %v1970 = vpack.c.bf16 %v1952, %v1951
      %v1971 = vpack.c.bf16 %v1954, %v1953
      %v1972 = vpack.c.bf16 %v1956, %v1955
      %v1973 = vpack.c.bf16 %v1958, %v1957
      %v1974 = vpack.c.bf16 %v1960, %v1959
      %v1975 = vpack.c.bf16 %v1962, %v1961
      %v1976 = vpack.c.bf16 %v1964, %v1963
      %v1977 = vpack.c.bf16 %v1966, %v1965
      %v1978 = vpack.c.bf16 %v1968, %v1967
      %v1989 = vunpack.c.l.b16 %v1969
      %v1990 = vunpack.c.h.b16 %v1969
      %v1991 = vunpack.c.l.b16 %v1970
      %v1992 = vunpack.c.h.b16 %v1970
      %v1993 = vunpack.c.l.b16 %v1971
      %v1994 = vunpack.c.h.b16 %v1971
      %v1995 = vunpack.c.l.b16 %v1972
      %v1996 = vunpack.c.h.b16 %v1972
      %v1997 = vunpack.c.l.b16 %v1973
      %v1998 = vunpack.c.h.b16 %v1973
      %v1999 = vunpack.c.l.b16 %v1974
      %v2000 = vunpack.c.h.b16 %v1974
      %v2001 = vunpack.c.l.b16 %v1975
      %v2002 = vunpack.c.h.b16 %v1975
      %v2003 = vunpack.c.l.b16 %v1976
      %v2004 = vunpack.c.h.b16 %v1976
      %v2005 = vunpack.c.l.b16 %v1977
      %v2006 = vunpack.c.h.b16 %v1977
      %v2007 = vunpack.c.l.b16 %v1978
      %v2008 = vunpack.c.h.b16 %v1978
      %v2009 = vpack.c.b16 %v1989, %v1989
      %v2010 = vpack.c.b16 %v1990, %v1990
      %v2011 = vpack.c.b16 %v1991, %v1991
      %v2012 = vpack.c.b16 %v1992, %v1992
      %v2013 = vpack.c.b16 %v1993, %v1993
      %v2014 = vpack.c.b16 %v1994, %v1994
      %v2015 = vpack.c.b16 %v1995, %v1995
      %v2016 = vpack.c.b16 %v1996, %v1996
      %v2017 = vpack.c.b16 %v1997, %v1997
      %v2018 = vpack.c.b16 %v1998, %v1998
      %v2019 = vpack.c.b16 %v1999, %v1999
      %v2020 = vpack.c.b16 %v2000, %v2000
      %v2021 = vpack.c.b16 %v2001, %v2001
      %v2022 = vpack.c.b16 %v2002, %v2002
      %v2023 = vpack.c.b16 %v2003, %v2003
      %v2024 = vpack.c.b16 %v2004, %v2004
      %v2025 = vpack.c.b16 %v2005, %v2005
      %v2026 = vpack.c.b16 %v2006, %v2006
      %v2027 = vpack.c.b16 %v2007, %v2007
      %v2028 = vpack.c.b16 %v2008, %v2008
      %2049 = vst [vmem:[%s275] sm:$0xf] %v2009
      %2050 = vst [vmem:[%s275 + $0x4] sm:$0xf] %v2010
      %2051 = vst [vmem:[%s275 + $0x8] sm:$0xf] %v2011
      %2052 = vst [vmem:[%s275 + $0xc] sm:$0xf] %v2012
      %2053 = vst [vmem:[%s275 + $0x10] sm:$0xf] %v2013
      %2054 = vst [vmem:[%s275 + $0x14] sm:$0xf] %v2014
      %2055 = vst [vmem:[%s275 + $0x18] sm:$0xf] %v2015
      %2056 = vst [vmem:[%s275 + $0x1c] sm:$0xf] %v2016
      %2057 = vst [vmem:[%s275 + $0x20] sm:$0xf] %v2017
      %2058 = vst [vmem:[%s275 + $0x24] sm:$0xf] %v2018
      %2059 = vst [vmem:[%s275 + $0x28] sm:$0xf] %v2019
      %2060 = vst [vmem:[%s275 + $0x2c] sm:$0xf] %v2020
      %2061 = vst [vmem:[%s275 + $0x30] sm:$0xf] %v2021
      %2062 = vst [vmem:[%s275 + $0x34] sm:$0xf] %v2022
      %2063 = vst [vmem:[%s275 + $0x38] sm:$0xf] %v2023
      %2064 = vst [vmem:[%s275 + $0x3c] sm:$0xf] %v2024
      %2065 = vst [vmem:[%s275 + $0x40] sm:$0xf] %v2025
      %2066 = vst [vmem:[%s275 + $0x44] sm:$0xf] %v2026
      %2067 = vst [vmem:[%s275 + $0x48] sm:$0xf] %v2027
      %2068 = vst [vmem:[%s275 + $0x4c] sm:$0xf] %v2028
      %s2069 = smul.u32 20, %s17
      %p2070 = scmp.lt.s32.totalorder %s2069, 39
      %s2071 = scalar_select %p2070, %s2069, 39
      %s2072 = smul.addr %s2071, 4
      %s2073 = scalar_lea.vmem %s6, %s2072
      // Predicated region
      $region45: #{resnet_embedding_forward.13} parent=43 // pred_check
        %p2074 = pneg %p171
      $region46: #{resnet_embedding_forward.13} parent=43 // pred_check_branch
        %2076 = sbr.rel (%p2074) target = $region48
      $region47: #{resnet_embedding_forward.13} parent=43 // pred_region
        %s2077 = smul.u32 20, %s17
      $region48: #{resnet_embedding_forward.13} parent=43 // pred_fallthru
        _
    $region44: #{resnet_embedding_forward.13} parent=5 // pred_fallthru
      _
    %p2078 = scmp.le.s32.totalorder 2, %s12
    // Predicated region
    $region49: #{resnet_embedding_forward.13} parent=5 // pred_check
      %p2079 = pneg %p2078
    $region50: #{resnet_embedding_forward.13} parent=5 // pred_check_branch
      %2081 = sbr.rel (%p2079) target = $region52
    $region51: #{resnet_embedding_forward.13} parent=5 // pred_region
      %s2082 = ssub.s32 %s12, 2
      // Predicated region
      $region53: #{resnet_embedding_forward.13} parent=51 // pred_check
        %p2083 = pneg %p177
      $region54: #{resnet_embedding_forward.13} parent=51 // pred_check_branch
        %2085 = sbr.rel (%p2083) target = $region56
      $region55: #{resnet_embedding_forward.13} parent=51 // pred_region
        %s2086 = smul.u32 20, %s18
        %p2087 = scmp.lt.s32.totalorder %s2086, 39
        %s2088 = scalar_select %p2087, %s2086, 39
        %s2089 = smul.addr %s2088, 4
        %s2090 = scalar_lea.vmem %s6, %s2089
      $region56: #{resnet_embedding_forward.13} parent=51 // pred_fallthru
        _
    $region52: #{resnet_embedding_forward.13} parent=5 // pred_fallthru
      _
  $region6: #{resnet_embedding_forward.13} parent=0 // loop_footer
    %s16 = sadd.s32 1, %s12
  $region7: #{resnet_embedding_forward.13} parent=0 // loop_footer_branch
    %11 = sbr.rel target = $region3
  $region8: #{resnet_embedding_forward.13} parent=0 // loop_exit
    _

// kernel: resnet_embedding_forward.14
$region0: #{resnet_embedding_forward.14}
  #allocation0 [shape = 'u32[]', space=smem, size = 0x4, offset = 0x4, fixed_abs, tag = 'smem constant byte address 0x4 - core index']
  #allocation1 [shape = 'u32[144,128]{1,0:T(1,128)}', space=vmem, size = 0x12000, scoped, tag = 'internal scratch']
  %s0 = inlined_call_operand.vmem [shape: bf16[32,1152], index: 0, kind: input, shape index: {}]
  %s1 = inlined_call_operand.vmem [shape: bf16[1152,128], index: 1, kind: input, shape index: {}]
  %s2 = inlined_call_operand.vmem [shape: f32[1,128], index: 2, kind: input, shape index: {}]
  %s3 = inlined_call_operand.vmem [shape: f32[1,128], index: 3, kind: input, shape index: {}]
  %s4 = inlined_call_operand.vmem [shape: bf16[128,128], index: 4, kind: input, shape index: {}]
  %s5 = inlined_call_operand.vmem [shape: f32[1,128], index: 5, kind: input, shape index: {}]
  %s6 = inlined_call_operand.vmem [shape: f32[1,128], index: 6, kind: input, shape index: {}]
  %s7 = inlined_call_operand.vmem [shape: bf16[32,128], index: 7, kind: output, shape index: {0}]
  %s8 = inlined_call_operand.vmem [shape: bf16[32,128], index: 8, kind: output, shape index: {1}]
  %9 = xla_tuple %s7, %s8
  %s10 = sld [smem:[#allocation0]]
  $region46: #{resnet_embedding_forward.14} parent=0
    _
  %s12 = ssub.s32 1, %s10
  %s13 = scalar_select 0, %s12, %s10
  // Predicated region
  $region2: #{resnet_embedding_forward.14} parent=0 // pred_check
    _
  $region3: #{resnet_embedding_forward.14} parent=0 // pred_check_branch
    %15 = sbr.rel (0) target = $region5
  $region4: #{resnet_embedding_forward.14} parent=0 // pred_region
    _
  $region5: #{resnet_embedding_forward.14} parent=0 // pred_fallthru
    _
  // Predicated region
  $region6: #{resnet_embedding_forward.14} parent=0 // pred_check
    _
  $region7: #{resnet_embedding_forward.14} parent=0 // pred_check_branch
    %17 = sbr.rel (0) target = $region9
  $region8: #{resnet_embedding_forward.14} parent=0 // pred_region
    _
  $region9: #{resnet_embedding_forward.14} parent=0 // pred_fallthru
    _
  // Predicated region
  $region10: #{resnet_embedding_forward.14} parent=0 // pred_check
    _
  $region11: #{resnet_embedding_forward.14} parent=0 // pred_check_branch
    %19 = sbr.rel (0) target = $region13
  $region12: #{resnet_embedding_forward.14} parent=0 // pred_region
    _
  $region13: #{resnet_embedding_forward.14} parent=0 // pred_fallthru
    _
  // Predicated region
  $region14: #{resnet_embedding_forward.14} parent=0 // pred_check
    _
  $region15: #{resnet_embedding_forward.14} parent=0 // pred_check_branch
    %21 = sbr.rel (0) target = $region17
  $region16: #{resnet_embedding_forward.14} parent=0 // pred_region
    _
  $region17: #{resnet_embedding_forward.14} parent=0 // pred_fallthru
    _
  // Predicated region
  $region18: #{resnet_embedding_forward.14} parent=0 // pred_check
    _
  $region19: #{resnet_embedding_forward.14} parent=0 // pred_check_branch
    %23 = sbr.rel (0) target = $region21
  $region20: #{resnet_embedding_forward.14} parent=0 // pred_region
    _
  $region21: #{resnet_embedding_forward.14} parent=0 // pred_fallthru
    _
  // Predicated region
  $region22: #{resnet_embedding_forward.14} parent=0 // pred_check
    _
  $region23: #{resnet_embedding_forward.14} parent=0 // pred_check_branch
    %25 = sbr.rel (0) target = $region25
  $region24: #{resnet_embedding_forward.14} parent=0 // pred_region
    _
  $region25: #{resnet_embedding_forward.14} parent=0 // pred_fallthru
    _
  // Predicated region
  $region26: #{resnet_embedding_forward.14} parent=0 // pred_check
    _
  $region27: #{resnet_embedding_forward.14} parent=0 // pred_check_branch
    %27 = sbr.rel (0) target = $region29
  $region28: #{resnet_embedding_forward.14} parent=0 // pred_region
    _
  $region29: #{resnet_embedding_forward.14} parent=0 // pred_fallthru
    _
  %v29 = vld [vmem:[%s0] sm:$0xff]
  %v30 = vld [vmem:[%s0 + $0x8] sm:$0xff]
  %v31 = vld [vmem:[%s0 + $0x10] sm:$0xff]
  %v32 = vld [vmem:[%s0 + $0x18] sm:$0xff]
  %v33 = vld [vmem:[%s0 + $0x20] sm:$0xf]
  %v34 = vld [vmem:[%s0 + $0x24] sm:$0xff]
  %v35 = vld [vmem:[%s0 + $0x2c] sm:$0xff]
  %v36 = vld [vmem:[%s0 + $0x34] sm:$0xff]
  %v37 = vld [vmem:[%s0 + $0x3c] sm:$0xff]
  %v38 = vld [vmem:[%s0 + $0x44] sm:$0xf]
  %v39 = vld [vmem:[%s0 + $0x48] sm:$0xff]
  %v40 = vld [vmem:[%s0 + $0x50] sm:$0xff]
  %v41 = vld [vmem:[%s0 + $0x58] sm:$0xff]
  %v42 = vld [vmem:[%s0 + $0x60] sm:$0xff]
  %v43 = vld [vmem:[%s0 + $0x68] sm:$0xf]
  %v44 = vld [vmem:[%s0 + $0x6c] sm:$0xff]
  %v45 = vld [vmem:[%s0 + $0x74] sm:$0xff]
  %v46 = vld [vmem:[%s0 + $0x7c] sm:$0xff]
  %v47 = vld [vmem:[%s0 + $0x84] sm:$0xff]
  %v48 = vld [vmem:[%s0 + $0x8c] sm:$0xf]
  %v49 = vld [vmem:[%s1] sm:$0xf]
  %v50 = vld [vmem:[%s1 + $0x4] sm:$0xf]
  %v51 = vld [vmem:[%s1 + $0x8] sm:$0xf]
  %v52 = vld [vmem:[%s1 + $0xc] sm:$0xf]
  %v53 = vld [vmem:[%s1 + $0x10] sm:$0xf]
  %v54 = vld [vmem:[%s1 + $0x14] sm:$0xf]
  %v55 = vld [vmem:[%s1 + $0x18] sm:$0xf]
  %v56 = vld [vmem:[%s1 + $0x1c] sm:$0xf]
  %v57 = vld [vmem:[%s1 + $0x20] sm:$0xf]
  %v58 = vld [vmem:[%s1 + $0x24] sm:$0xf]
  %v59 = vld [vmem:[%s1 + $0x28] sm:$0xf]
  %v60 = vld [vmem:[%s1 + $0x2c] sm:$0xf]
  %v61 = vld [vmem:[%s1 + $0x30] sm:$0xf]
  %v62 = vld [vmem:[%s1 + $0x34] sm:$0xf]
  %v63 = vld [vmem:[%s1 + $0x38] sm:$0xf]
  %v64 = vld [vmem:[%s1 + $0x3c] sm:$0xf]
  %v65 = vld [vmem:[%s1 + $0x40] sm:$0xf]
  %v66 = vld [vmem:[%s1 + $0x44] sm:$0xf]
  %v67 = vld [vmem:[%s1 + $0x48] sm:$0xf]
  %v68 = vld [vmem:[%s1 + $0x4c] sm:$0xf]
  %v69 = vld [vmem:[%s1 + $0x50] sm:$0xf]
  %v70 = vld [vmem:[%s1 + $0x54] sm:$0xf]
  %v71 = vld [vmem:[%s1 + $0x58] sm:$0xf]
  %v72 = vld [vmem:[%s1 + $0x5c] sm:$0xf]
  %v73 = vld [vmem:[%s1 + $0x60] sm:$0xf]
  %v74 = vld [vmem:[%s1 + $0x64] sm:$0xf]
  %v75 = vld [vmem:[%s1 + $0x68] sm:$0xf]
  %v76 = vld [vmem:[%s1 + $0x6c] sm:$0xf]
  %v77 = vld [vmem:[%s1 + $0x70] sm:$0xf]
  %v78 = vld [vmem:[%s1 + $0x74] sm:$0xf]
  %v79 = vld [vmem:[%s1 + $0x78] sm:$0xf]
  %v80 = vld [vmem:[%s1 + $0x7c] sm:$0xf]
  %v81 = vld [vmem:[%s1 + $0x80] sm:$0xf]
  %v82 = vld [vmem:[%s1 + $0x84] sm:$0xf]
  %v83 = vld [vmem:[%s1 + $0x88] sm:$0xf]
  %v84 = vld [vmem:[%s1 + $0x8c] sm:$0xf]
  %v85 = vld [vmem:[%s1 + $0x90] sm:$0xf]
  %v86 = vld [vmem:[%s1 + $0x94] sm:$0xf]
  %v87 = vld [vmem:[%s1 + $0x98] sm:$0xf]
  %v88 = vld [vmem:[%s1 + $0x9c] sm:$0xf]
  %v89 = vld [vmem:[%s1 + $0xa0] sm:$0xf]
  %v90 = vld [vmem:[%s1 + $0xa4] sm:$0xf]
  %v91 = vld [vmem:[%s1 + $0xa8] sm:$0xf]
  %v92 = vld [vmem:[%s1 + $0xac] sm:$0xf]
  %v93 = vld [vmem:[%s1 + $0xb0] sm:$0xf]
  %v94 = vld [vmem:[%s1 + $0xb4] sm:$0xf]
  %v95 = vld [vmem:[%s1 + $0xb8] sm:$0xf]
  %v96 = vld [vmem:[%s1 + $0xbc] sm:$0xf]
  %v97 = vld [vmem:[%s1 + $0xc0] sm:$0xf]
  %v98 = vld [vmem:[%s1 + $0xc4] sm:$0xf]
  %v99 = vld [vmem:[%s1 + $0xc8] sm:$0xf]
  %v100 = vld [vmem:[%s1 + $0xcc] sm:$0xf]
  %v101 = vld [vmem:[%s1 + $0xd0] sm:$0xf]
  %v102 = vld [vmem:[%s1 + $0xd4] sm:$0xf]
  %v103 = vld [vmem:[%s1 + $0xd8] sm:$0xf]
  %v104 = vld [vmem:[%s1 + $0xdc] sm:$0xf]
  %v105 = vld [vmem:[%s1 + $0xe0] sm:$0xf]
  %v106 = vld [vmem:[%s1 + $0xe4] sm:$0xf]
  %v107 = vld [vmem:[%s1 + $0xe8] sm:$0xf]
  %v108 = vld [vmem:[%s1 + $0xec] sm:$0xf]
  %v109 = vld [vmem:[%s1 + $0xf0] sm:$0xf]
  %v110 = vld [vmem:[%s1 + $0xf4] sm:$0xf]
  %v111 = vld [vmem:[%s1 + $0xf8] sm:$0xf]
  %v112 = vld [vmem:[%s1 + $0xfc] sm:$0xf]
  %v113 = vld [vmem:[%s1 + $0x100] sm:$0xf]
  %v114 = vld [vmem:[%s1 + $0x104] sm:$0xf]
  %v115 = vld [vmem:[%s1 + $0x108] sm:$0xf]
  %v116 = vld [vmem:[%s1 + $0x10c] sm:$0xf]
  %v117 = vld [vmem:[%s1 + $0x110] sm:$0xf]
  %v118 = vld [vmem:[%s1 + $0x114] sm:$0xf]
  %v119 = vld [vmem:[%s1 + $0x118] sm:$0xf]
  %v120 = vld [vmem:[%s1 + $0x11c] sm:$0xf]
  %v121 = vld [vmem:[%s1 + $0x120] sm:$0xf]
  %v122 = vld [vmem:[%s1 + $0x124] sm:$0xf]
  %v123 = vld [vmem:[%s1 + $0x128] sm:$0xf]
  %v124 = vld [vmem:[%s1 + $0x12c] sm:$0xf]
  %v125 = vld [vmem:[%s1 + $0x130] sm:$0xf]
  %v126 = vld [vmem:[%s1 + $0x134] sm:$0xf]
  %v127 = vld [vmem:[%s1 + $0x138] sm:$0xf]
  %v128 = vld [vmem:[%s1 + $0x13c] sm:$0xf]
  %v129 = vld [vmem:[%s1 + $0x140] sm:$0xf]
  %v130 = vld [vmem:[%s1 + $0x144] sm:$0xf]
  %v131 = vld [vmem:[%s1 + $0x148] sm:$0xf]
  %v132 = vld [vmem:[%s1 + $0x14c] sm:$0xf]
  %v133 = vld [vmem:[%s1 + $0x150] sm:$0xf]
  %v134 = vld [vmem:[%s1 + $0x154] sm:$0xf]
  %v135 = vld [vmem:[%s1 + $0x158] sm:$0xf]
  %v136 = vld [vmem:[%s1 + $0x15c] sm:$0xf]
  %v137 = vld [vmem:[%s1 + $0x160] sm:$0xf]
  %v138 = vld [vmem:[%s1 + $0x164] sm:$0xf]
  %v139 = vld [vmem:[%s1 + $0x168] sm:$0xf]
  %v140 = vld [vmem:[%s1 + $0x16c] sm:$0xf]
  %v141 = vld [vmem:[%s1 + $0x170] sm:$0xf]
  %v142 = vld [vmem:[%s1 + $0x174] sm:$0xf]
  %v143 = vld [vmem:[%s1 + $0x178] sm:$0xf]
  %v144 = vld [vmem:[%s1 + $0x17c] sm:$0xf]
  %v145 = vld [vmem:[%s1 + $0x180] sm:$0xf]
  %v146 = vld [vmem:[%s1 + $0x184] sm:$0xf]
  %v147 = vld [vmem:[%s1 + $0x188] sm:$0xf]
  %v148 = vld [vmem:[%s1 + $0x18c] sm:$0xf]
  %v149 = vld [vmem:[%s1 + $0x190] sm:$0xf]
  %v150 = vld [vmem:[%s1 + $0x194] sm:$0xf]
  %v151 = vld [vmem:[%s1 + $0x198] sm:$0xf]
  %v152 = vld [vmem:[%s1 + $0x19c] sm:$0xf]
  %v153 = vld [vmem:[%s1 + $0x1a0] sm:$0xf]
  %v154 = vld [vmem:[%s1 + $0x1a4] sm:$0xf]
  %v155 = vld [vmem:[%s1 + $0x1a8] sm:$0xf]
  %v156 = vld [vmem:[%s1 + $0x1ac] sm:$0xf]
  %v157 = vld [vmem:[%s1 + $0x1b0] sm:$0xf]
  %v158 = vld [vmem:[%s1 + $0x1b4] sm:$0xf]
  %v159 = vld [vmem:[%s1 + $0x1b8] sm:$0xf]
  %v160 = vld [vmem:[%s1 + $0x1bc] sm:$0xf]
  %v161 = vld [vmem:[%s1 + $0x1c0] sm:$0xf]
  %v162 = vld [vmem:[%s1 + $0x1c4] sm:$0xf]
  %v163 = vld [vmem:[%s1 + $0x1c8] sm:$0xf]
  %v164 = vld [vmem:[%s1 + $0x1cc] sm:$0xf]
  %v165 = vld [vmem:[%s1 + $0x1d0] sm:$0xf]
  %v166 = vld [vmem:[%s1 + $0x1d4] sm:$0xf]
  %v167 = vld [vmem:[%s1 + $0x1d8] sm:$0xf]
  %v168 = vld [vmem:[%s1 + $0x1dc] sm:$0xf]
  %v169 = vld [vmem:[%s1 + $0x1e0] sm:$0xf]
  %v170 = vld [vmem:[%s1 + $0x1e4] sm:$0xf]
  %v171 = vld [vmem:[%s1 + $0x1e8] sm:$0xf]
  %v172 = vld [vmem:[%s1 + $0x1ec] sm:$0xf]
  %v173 = vld [vmem:[%s1 + $0x1f0] sm:$0xf]
  %v174 = vld [vmem:[%s1 + $0x1f4] sm:$0xf]
  %v175 = vld [vmem:[%s1 + $0x1f8] sm:$0xf]
  %v176 = vld [vmem:[%s1 + $0x1fc] sm:$0xf]
  %v177 = vld [vmem:[%s1 + $0x200] sm:$0xf]
  %v178 = vld [vmem:[%s1 + $0x204] sm:$0xf]
  %v179 = vld [vmem:[%s1 + $0x208] sm:$0xf]
  %v180 = vld [vmem:[%s1 + $0x20c] sm:$0xf]
  %v181 = vld [vmem:[%s1 + $0x210] sm:$0xf]
  %v182 = vld [vmem:[%s1 + $0x214] sm:$0xf]
  %v183 = vld [vmem:[%s1 + $0x218] sm:$0xf]
  %v184 = vld [vmem:[%s1 + $0x21c] sm:$0xf]
  %v185 = vld [vmem:[%s1 + $0x220] sm:$0xf]
  %v186 = vld [vmem:[%s1 + $0x224] sm:$0xf]
  %v187 = vld [vmem:[%s1 + $0x228] sm:$0xf]
  %v188 = vld [vmem:[%s1 + $0x22c] sm:$0xf]
  %v189 = vld [vmem:[%s1 + $0x230] sm:$0xf]
  %v190 = vld [vmem:[%s1 + $0x234] sm:$0xf]
  %v191 = vld [vmem:[%s1 + $0x238] sm:$0xf]
  %v192 = vld [vmem:[%s1 + $0x23c] sm:$0xf]
  %v213 = vunpack.c.l.b16 %v29
  %v214 = vunpack.c.h.b16 %v29
  %v215 = vunpack.c.l.b16 %v30
  %v216 = vunpack.c.h.b16 %v30
  %v217 = vunpack.c.l.b16 %v31
  %v218 = vunpack.c.h.b16 %v31
  %v219 = vunpack.c.l.b16 %v32
  %v220 = vunpack.c.h.b16 %v32
  %v221 = vunpack.c.l.b16 %v33
  %v222 = vunpack.c.l.b16 %v34
  %v223 = vunpack.c.h.b16 %v34
  %v224 = vunpack.c.l.b16 %v35
  %v225 = vunpack.c.h.b16 %v35
  %v226 = vunpack.c.l.b16 %v36
  %v227 = vunpack.c.h.b16 %v36
  %v228 = vunpack.c.l.b16 %v37
  %v229 = vunpack.c.h.b16 %v37
  %v230 = vunpack.c.l.b16 %v38
  %v231 = vunpack.c.l.b16 %v39
  %v232 = vunpack.c.h.b16 %v39
  %v233 = vunpack.c.l.b16 %v40
  %v234 = vunpack.c.h.b16 %v40
  %v235 = vunpack.c.l.b16 %v41
  %v236 = vunpack.c.h.b16 %v41
  %v237 = vunpack.c.l.b16 %v42
  %v238 = vunpack.c.h.b16 %v42
  %v239 = vunpack.c.l.b16 %v43
  %v240 = vunpack.c.l.b16 %v44
  %v241 = vunpack.c.h.b16 %v44
  %v242 = vunpack.c.l.b16 %v45
  %v243 = vunpack.c.h.b16 %v45
  %v244 = vunpack.c.l.b16 %v46
  %v245 = vunpack.c.h.b16 %v46
  %v246 = vunpack.c.l.b16 %v47
  %v247 = vunpack.c.h.b16 %v47
  %v248 = vunpack.c.l.b16 %v48
  %v249 = vpack.c.b16 %v222, %v213
  %v250 = vpack.c.b16 %v223, %v214
  %v251 = vpack.c.b16 %v224, %v215
  %v252 = vpack.c.b16 %v225, %v216
  %v253 = vpack.c.b16 %v226, %v217
  %v254 = vpack.c.b16 %v227, %v218
  %v255 = vpack.c.b16 %v228, %v219
  %v256 = vpack.c.b16 %v229, %v220
  %v257 = vpack.c.b16 %v230, %v221
  %v258 = vpack.c.b16 %v240, %v231
  %v259 = vpack.c.b16 %v241, %v232
  %v260 = vpack.c.b16 %v242, %v233
  %v261 = vpack.c.b16 %v243, %v234
  %v262 = vpack.c.b16 %v244, %v235
  %v263 = vpack.c.b16 %v245, %v236
  %v264 = vpack.c.b16 %v246, %v237
  %v265 = vpack.c.b16 %v247, %v238
  %v266 = vpack.c.b16 %v248, %v239
  %v429 = vunpack.c.l.b16 %v49
  %v430 = vunpack.c.l.b16 %v50
  %v431 = vunpack.c.l.b16 %v51
  %v432 = vunpack.c.l.b16 %v52
  %v433 = vunpack.c.l.b16 %v53
  %v434 = vunpack.c.l.b16 %v54
  %v435 = vunpack.c.l.b16 %v55
  %v436 = vunpack.c.l.b16 %v56
  %v437 = vunpack.c.l.b16 %v57
  %v438 = vunpack.c.l.b16 %v58
  %v439 = vunpack.c.l.b16 %v59
  %v440 = vunpack.c.l.b16 %v60
  %v441 = vunpack.c.l.b16 %v61
  %v442 = vunpack.c.l.b16 %v62
  %v443 = vunpack.c.l.b16 %v63
  %v444 = vunpack.c.l.b16 %v64
  %v445 = vunpack.c.l.b16 %v65
  %v446 = vunpack.c.l.b16 %v66
  %v447 = vunpack.c.l.b16 %v67
  %v448 = vunpack.c.l.b16 %v68
  %v449 = vunpack.c.l.b16 %v69
  %v450 = vunpack.c.l.b16 %v70
  %v451 = vunpack.c.l.b16 %v71
  %v452 = vunpack.c.l.b16 %v72
  %v453 = vunpack.c.l.b16 %v73
  %v454 = vunpack.c.l.b16 %v74
  %v455 = vunpack.c.l.b16 %v75
  %v456 = vunpack.c.l.b16 %v76
  %v457 = vunpack.c.l.b16 %v77
  %v458 = vunpack.c.l.b16 %v78
  %v459 = vunpack.c.l.b16 %v79
  %v460 = vunpack.c.l.b16 %v80
  %v461 = vunpack.c.l.b16 %v81
  %v462 = vunpack.c.l.b16 %v82
  %v463 = vunpack.c.l.b16 %v83
  %v464 = vunpack.c.l.b16 %v84
  %v465 = vunpack.c.l.b16 %v85
  %v466 = vunpack.c.l.b16 %v86
  %v467 = vunpack.c.l.b16 %v87
  %v468 = vunpack.c.l.b16 %v88
  %v469 = vunpack.c.l.b16 %v89
  %v470 = vunpack.c.l.b16 %v90
  %v471 = vunpack.c.l.b16 %v91
  %v472 = vunpack.c.l.b16 %v92
  %v473 = vunpack.c.l.b16 %v93
  %v474 = vunpack.c.l.b16 %v94
  %v475 = vunpack.c.l.b16 %v95
  %v476 = vunpack.c.l.b16 %v96
  %v477 = vunpack.c.l.b16 %v97
  %v478 = vunpack.c.l.b16 %v98
  %v479 = vunpack.c.l.b16 %v99
  %v480 = vunpack.c.l.b16 %v100
  %v481 = vunpack.c.l.b16 %v101
  %v482 = vunpack.c.l.b16 %v102
  %v483 = vunpack.c.l.b16 %v103
  %v484 = vunpack.c.l.b16 %v104
  %v485 = vunpack.c.l.b16 %v105
  %v486 = vunpack.c.l.b16 %v106
  %v487 = vunpack.c.l.b16 %v107
  %v488 = vunpack.c.l.b16 %v108
  %v489 = vunpack.c.l.b16 %v109
  %v490 = vunpack.c.l.b16 %v110
  %v491 = vunpack.c.l.b16 %v111
  %v492 = vunpack.c.l.b16 %v112
  %v493 = vunpack.c.l.b16 %v113
  %v494 = vunpack.c.l.b16 %v114
  %v495 = vunpack.c.l.b16 %v115
  %v496 = vunpack.c.l.b16 %v116
  %v497 = vunpack.c.l.b16 %v117
  %v498 = vunpack.c.l.b16 %v118
  %v499 = vunpack.c.l.b16 %v119
  %v500 = vunpack.c.l.b16 %v120
  %v501 = vunpack.c.l.b16 %v121
  %v502 = vunpack.c.l.b16 %v122
  %v503 = vunpack.c.l.b16 %v123
  %v504 = vunpack.c.l.b16 %v124
  %v505 = vunpack.c.l.b16 %v125
  %v506 = vunpack.c.l.b16 %v126
  %v507 = vunpack.c.l.b16 %v127
  %v508 = vunpack.c.l.b16 %v128
  %v509 = vunpack.c.l.b16 %v129
  %v510 = vunpack.c.l.b16 %v130
  %v511 = vunpack.c.l.b16 %v131
  %v512 = vunpack.c.l.b16 %v132
  %v513 = vunpack.c.l.b16 %v133
  %v514 = vunpack.c.l.b16 %v134
  %v515 = vunpack.c.l.b16 %v135
  %v516 = vunpack.c.l.b16 %v136
  %v517 = vunpack.c.l.b16 %v137
  %v518 = vunpack.c.l.b16 %v138
  %v519 = vunpack.c.l.b16 %v139
  %v520 = vunpack.c.l.b16 %v140
  %v521 = vunpack.c.l.b16 %v141
  %v522 = vunpack.c.l.b16 %v142
  %v523 = vunpack.c.l.b16 %v143
  %v524 = vunpack.c.l.b16 %v144
  %v525 = vunpack.c.l.b16 %v145
  %v526 = vunpack.c.l.b16 %v146
  %v527 = vunpack.c.l.b16 %v147
  %v528 = vunpack.c.l.b16 %v148
  %v529 = vunpack.c.l.b16 %v149
  %v530 = vunpack.c.l.b16 %v150
  %v531 = vunpack.c.l.b16 %v151
  %v532 = vunpack.c.l.b16 %v152
  %v533 = vunpack.c.l.b16 %v153
  %v534 = vunpack.c.l.b16 %v154
  %v535 = vunpack.c.l.b16 %v155
  %v536 = vunpack.c.l.b16 %v156
  %v537 = vunpack.c.l.b16 %v157
  %v538 = vunpack.c.l.b16 %v158
  %v539 = vunpack.c.l.b16 %v159
  %v540 = vunpack.c.l.b16 %v160
  %v541 = vunpack.c.l.b16 %v161
  %v542 = vunpack.c.l.b16 %v162
  %v543 = vunpack.c.l.b16 %v163
  %v544 = vunpack.c.l.b16 %v164
  %v545 = vunpack.c.l.b16 %v165
  %v546 = vunpack.c.l.b16 %v166
  %v547 = vunpack.c.l.b16 %v167
  %v548 = vunpack.c.l.b16 %v168
  %v549 = vunpack.c.l.b16 %v169
  %v550 = vunpack.c.l.b16 %v170
  %v551 = vunpack.c.l.b16 %v171
  %v552 = vunpack.c.l.b16 %v172
  %v553 = vunpack.c.l.b16 %v173
  %v554 = vunpack.c.l.b16 %v174
  %v555 = vunpack.c.l.b16 %v175
  %v556 = vunpack.c.l.b16 %v176
  %v557 = vunpack.c.l.b16 %v177
  %v558 = vunpack.c.l.b16 %v178
  %v559 = vunpack.c.l.b16 %v179
  %v560 = vunpack.c.l.b16 %v180
  %v561 = vunpack.c.l.b16 %v181
  %v562 = vunpack.c.l.b16 %v182
  %v563 = vunpack.c.l.b16 %v183
  %v564 = vunpack.c.l.b16 %v184
  %v565 = vunpack.c.l.b16 %v185
  %v566 = vunpack.c.l.b16 %v186
  %v567 = vunpack.c.l.b16 %v187
  %v568 = vunpack.c.l.b16 %v188
  %v569 = vunpack.c.l.b16 %v189
  %v570 = vunpack.c.l.b16 %v190
  %v571 = vunpack.c.l.b16 %v191
  %v572 = vunpack.c.l.b16 %v192
  %v573 = vpack.c.b16 %v430, %v429
  %v574 = vpack.c.b16 %v432, %v431
  %v575 = vpack.c.b16 %v434, %v433
  %v576 = vpack.c.b16 %v436, %v435
  %v577 = vpack.c.b16 %v438, %v437
  %v578 = vpack.c.b16 %v440, %v439
  %v579 = vpack.c.b16 %v442, %v441
  %v580 = vpack.c.b16 %v444, %v443
  %v581 = vpack.c.b16 %v446, %v445
  %v582 = vpack.c.b16 %v448, %v447
  %v583 = vpack.c.b16 %v450, %v449
  %v584 = vpack.c.b16 %v452, %v451
  %v585 = vpack.c.b16 %v454, %v453
  %v586 = vpack.c.b16 %v456, %v455
  %v587 = vpack.c.b16 %v458, %v457
  %v588 = vpack.c.b16 %v460, %v459
  %v589 = vpack.c.b16 %v462, %v461
  %v590 = vpack.c.b16 %v464, %v463
  %v591 = vpack.c.b16 %v466, %v465
  %v592 = vpack.c.b16 %v468, %v467
  %v593 = vpack.c.b16 %v470, %v469
  %v594 = vpack.c.b16 %v472, %v471
  %v595 = vpack.c.b16 %v474, %v473
  %v596 = vpack.c.b16 %v476, %v475
  %v597 = vpack.c.b16 %v478, %v477
  %v598 = vpack.c.b16 %v480, %v479
  %v599 = vpack.c.b16 %v482, %v481
  %v600 = vpack.c.b16 %v484, %v483
  %v601 = vpack.c.b16 %v486, %v485
  %v602 = vpack.c.b16 %v488, %v487
  %v603 = vpack.c.b16 %v490, %v489
  %v604 = vpack.c.b16 %v492, %v491
  %v605 = vpack.c.b16 %v494, %v493
  %v606 = vpack.c.b16 %v496, %v495
  %v607 = vpack.c.b16 %v498, %v497
  %v608 = vpack.c.b16 %v500, %v499
  %v609 = vpack.c.b16 %v502, %v501
  %v610 = vpack.c.b16 %v504, %v503
  %v611 = vpack.c.b16 %v506, %v505
  %v612 = vpack.c.b16 %v508, %v507
  %v613 = vpack.c.b16 %v510, %v509
  %v614 = vpack.c.b16 %v512, %v511
  %v615 = vpack.c.b16 %v514, %v513
  %v616 = vpack.c.b16 %v516, %v515
  %v617 = vpack.c.b16 %v518, %v517
  %v618 = vpack.c.b16 %v520, %v519
  %v619 = vpack.c.b16 %v522, %v521
  %v620 = vpack.c.b16 %v524, %v523
  %v621 = vpack.c.b16 %v526, %v525
  %v622 = vpack.c.b16 %v528, %v527
  %v623 = vpack.c.b16 %v530, %v529
  %v624 = vpack.c.b16 %v532, %v531
  %v625 = vpack.c.b16 %v534, %v533
  %v626 = vpack.c.b16 %v536, %v535
  %v627 = vpack.c.b16 %v538, %v537
  %v628 = vpack.c.b16 %v540, %v539
  %v629 = vpack.c.b16 %v542, %v541
  %v630 = vpack.c.b16 %v544, %v543
  %v631 = vpack.c.b16 %v546, %v545
  %v632 = vpack.c.b16 %v548, %v547
  %v633 = vpack.c.b16 %v550, %v549
  %v634 = vpack.c.b16 %v552, %v551
  %v635 = vpack.c.b16 %v554, %v553
  %v636 = vpack.c.b16 %v556, %v555
  %v637 = vpack.c.b16 %v558, %v557
  %v638 = vpack.c.b16 %v560, %v559
  %v639 = vpack.c.b16 %v562, %v561
  %v640 = vpack.c.b16 %v564, %v563
  %v641 = vpack.c.b16 %v566, %v565
  %v642 = vpack.c.b16 %v568, %v567
  %v643 = vpack.c.b16 %v570, %v569
  %v644 = vpack.c.b16 %v572, %v571
  %717 = vmatprep.subr.bf16.mxu0 0
  %718 = vmatpush1.bf16.msra.mxu0 %v573
  %719 = vmatprep.subr.bf16.mxu0 0
  %720 = vmatpush1.bf16.msra.mxu0 %v574
  %721 = vmatprep.subr.bf16.mxu0 0
  %722 = vmatpush1.bf16.msra.mxu0 %v575
  %723 = vmatprep.subr.bf16.mxu0 0
  %724 = vmatpush1.bf16.msra.mxu0 %v576
  %725 = vmatprep.subr.bf16.mxu0 0
  %726 = vmatpush1.bf16.msra.mxu0 %v577
  %727 = vmatprep.subr.bf16.mxu0 0
  %728 = vmatpush1.bf16.msra.mxu0 %v578
  %729 = vmatprep.subr.bf16.mxu0 0
  %730 = vmatpush1.bf16.msra.mxu0 %v579
  %731 = vmatprep.subr.bf16.mxu0 0
  %732 = vmatpush1.bf16.msra.mxu0 %v580
  %733 = vmatprep.subr.bf16.mxu0 0
  %734 = vmatpush1.bf16.msra.mxu0 %v581
  %735 = vmatprep.subr.bf16.mxu0 0
  %736 = vmatpush1.bf16.msra.mxu0 %v582
  %737 = vmatprep.subr.bf16.mxu0 0
  %738 = vmatpush1.bf16.msra.mxu0 %v583
  %739 = vmatprep.subr.bf16.mxu0 0
  %740 = vmatpush1.bf16.msra.mxu0 %v584
  %741 = vmatprep.subr.bf16.mxu0 0
  %742 = vmatpush1.bf16.msra.mxu0 %v585
  %743 = vmatprep.subr.bf16.mxu0 0
  %744 = vmatpush1.bf16.msra.mxu0 %v586
  %745 = vmatprep.subr.bf16.mxu0 0
  %746 = vmatpush1.bf16.msra.mxu0 %v587
  %747 = vmatprep.subr.bf16.mxu0 0
  %748 = vmatpush1.bf16.msra.mxu0 %v588
  %749 = vmatprep.mubr.bf16.mxu0 %v250
  %750 = vmatmul.mubr.bf16.gmra.mrb[0].mxu0 %v249
  %v751 = vpop.f32.mrb[0].mxu0
  %v752 = vadd.f32 0.0, %v751
  %v753 = vpop.f32.mrb[0].mxu0
  %v754 = vpop.f32.mrb[0].mxu0
  %v755 = vadd.f32 0.0, %v754
  %v756 = vpop.f32.mrb[0].mxu0
  %757 = vmatprep.mubr.bf16.mxu0 %v259
  %758 = vmatmul.mubr.bf16.gmra.mrb[0].mxu0 %v258
  %v759 = vpop.f32.mrb[0].mxu0
  %v760 = vadd.f32 0.0, %v759
  %v761 = vpop.f32.mrb[0].mxu0
  %v762 = vpop.f32.mrb[0].mxu0
  %v763 = vadd.f32 0.0, %v762
  %v764 = vpop.f32.mrb[0].mxu0
  %765 = vdwg.mxu0
  %766 = vmatprep.subr.bf16.mxu0 0
  %767 = vmatpush1.bf16.msra.mxu0 %v589
  %768 = vmatprep.subr.bf16.mxu0 0
  %769 = vmatpush1.bf16.msra.mxu0 %v590
  %770 = vmatprep.subr.bf16.mxu0 0
  %771 = vmatpush1.bf16.msra.mxu0 %v591
  %772 = vmatprep.subr.bf16.mxu0 0
  %773 = vmatpush1.bf16.msra.mxu0 %v592
  %774 = vmatprep.subr.bf16.mxu0 0
  %775 = vmatpush1.bf16.msra.mxu0 %v593
  %776 = vmatprep.subr.bf16.mxu0 0
  %777 = vmatpush1.bf16.msra.mxu0 %v594
  %778 = vmatprep.subr.bf16.mxu0 0
  %779 = vmatpush1.bf16.msra.mxu0 %v595
  %780 = vmatprep.subr.bf16.mxu0 0
  %781 = vmatpush1.bf16.msra.mxu0 %v596
  %782 = vmatprep.subr.bf16.mxu0 0
  %783 = vmatpush1.bf16.msra.mxu0 %v597
  %784 = vmatprep.subr.bf16.mxu0 0
  %785 = vmatpush1.bf16.msra.mxu0 %v598
  %786 = vmatprep.subr.bf16.mxu0 0
  %787 = vmatpush1.bf16.msra.mxu0 %v599
  %788 = vmatprep.subr.bf16.mxu0 0
  %789 = vmatpush1.bf16.msra.mxu0 %v600
  %790 = vmatprep.subr.bf16.mxu0 0
  %791 = vmatpush1.bf16.msra.mxu0 %v601
  %792 = vmatprep.subr.bf16.mxu0 0
  %793 = vmatpush1.bf16.msra.mxu0 %v602
  %794 = vmatprep.subr.bf16.mxu0 0
  %795 = vmatpush1.bf16.msra.mxu0 %v603
  %796 = vmatprep.subr.bf16.mxu0 0
  %797 = vmatpush1.bf16.msra.mxu0 %v604
  %798 = vmatprep.mubr.bf16.mxu0 %v252
  %799 = vmatmul.mubr.bf16.gmra.mrb[0].mxu0 %v251
  %v800 = vpop.f32.mrb[0].mxu0
  %v801 = vadd.f32 %v752, %v800
  %v802 = vpop.f32.mrb[0].mxu0
  %v803 = vpop.f32.mrb[0].mxu0
  %v804 = vadd.f32 %v755, %v803
  %v805 = vpop.f32.mrb[0].mxu0
  %806 = vmatprep.mubr.bf16.mxu0 %v261
  %807 = vmatmul.mubr.bf16.gmra.mrb[0].mxu0 %v260
  %v808 = vpop.f32.mrb[0].mxu0
  %v809 = vadd.f32 %v760, %v808
  %v810 = vpop.f32.mrb[0].mxu0
  %v811 = vpop.f32.mrb[0].mxu0
  %v812 = vadd.f32 %v763, %v811
  %v813 = vpop.f32.mrb[0].mxu0
  %814 = vdwg.mxu0
  %815 = vmatprep.subr.bf16.mxu0 0
  %816 = vmatpush1.bf16.msra.mxu0 %v605
  %817 = vmatprep.subr.bf16.mxu0 0
  %818 = vmatpush1.bf16.msra.mxu0 %v606
  %819 = vmatprep.subr.bf16.mxu0 0
  %820 = vmatpush1.bf16.msra.mxu0 %v607
  %821 = vmatprep.subr.bf16.mxu0 0
  %822 = vmatpush1.bf16.msra.mxu0 %v608
  %823 = vmatprep.subr.bf16.mxu0 0
  %824 = vmatpush1.bf16.msra.mxu0 %v609
  %825 = vmatprep.subr.bf16.mxu0 0
  %826 = vmatpush1.bf16.msra.mxu0 %v610
  %827 = vmatprep.subr.bf16.mxu0 0
  %828 = vmatpush1.bf16.msra.mxu0 %v611
  %829 = vmatprep.subr.bf16.mxu0 0
  %830 = vmatpush1.bf16.msra.mxu0 %v612
  %831 = vmatprep.subr.bf16.mxu0 0
  %832 = vmatpush1.bf16.msra.mxu0 %v613
  %833 = vmatprep.subr.bf16.mxu0 0
  %834 = vmatpush1.bf16.msra.mxu0 %v614
  %835 = vmatprep.subr.bf16.mxu0 0
  %836 = vmatpush1.bf16.msra.mxu0 %v615
  %837 = vmatprep.subr.bf16.mxu0 0
  %838 = vmatpush1.bf16.msra.mxu0 %v616
  %839 = vmatprep.subr.bf16.mxu0 0
  %840 = vmatpush1.bf16.msra.mxu0 %v617
  %841 = vmatprep.subr.bf16.mxu0 0
  %842 = vmatpush1.bf16.msra.mxu0 %v618
  %843 = vmatprep.subr.bf16.mxu0 0
  %844 = vmatpush1.bf16.msra.mxu0 %v619
  %845 = vmatprep.subr.bf16.mxu0 0
  %846 = vmatpush1.bf16.msra.mxu0 %v620
  %847 = vmatprep.mubr.bf16.mxu0 %v254
  %848 = vmatmul.mubr.bf16.gmra.mrb[0].mxu0 %v253
  %v849 = vpop.f32.mrb[0].mxu0
  %v850 = vadd.f32 %v801, %v849
  %v851 = vpop.f32.mrb[0].mxu0
  %v852 = vpop.f32.mrb[0].mxu0
  %v853 = vadd.f32 %v804, %v852
  %v854 = vpop.f32.mrb[0].mxu0
  %855 = vmatprep.mubr.bf16.mxu0 %v263
  %856 = vmatmul.mubr.bf16.gmra.mrb[0].mxu0 %v262
  %v857 = vpop.f32.mrb[0].mxu0
  %v858 = vadd.f32 %v809, %v857
  %v859 = vpop.f32.mrb[0].mxu0
  %v860 = vpop.f32.mrb[0].mxu0
  %v861 = vadd.f32 %v812, %v860
  %v862 = vpop.f32.mrb[0].mxu0
  %863 = vdwg.mxu0
  %864 = vmatprep.subr.bf16.mxu0 0
  %865 = vmatpush1.bf16.msra.mxu0 %v621
  %866 = vmatprep.subr.bf16.mxu0 0
  %867 = vmatpush1.bf16.msra.mxu0 %v622
  %868 = vmatprep.subr.bf16.mxu0 0
  %869 = vmatpush1.bf16.msra.mxu0 %v623
  %870 = vmatprep.subr.bf16.mxu0 0
  %871 = vmatpush1.bf16.msra.mxu0 %v624
  %872 = vmatprep.subr.bf16.mxu0 0
  %873 = vmatpush1.bf16.msra.mxu0 %v625
  %874 = vmatprep.subr.bf16.mxu0 0
  %875 = vmatpush1.bf16.msra.mxu0 %v626
  %876 = vmatprep.subr.bf16.mxu0 0
  %877 = vmatpush1.bf16.msra.mxu0 %v627
  %878 = vmatprep.subr.bf16.mxu0 0
  %879 = vmatpush1.bf16.msra.mxu0 %v628
  %880 = vmatprep.subr.bf16.mxu0 0
  %881 = vmatpush1.bf16.msra.mxu0 %v629
  %882 = vmatprep.subr.bf16.mxu0 0
  %883 = vmatpush1.bf16.msra.mxu0 %v630
  %884 = vmatprep.subr.bf16.mxu0 0
  %885 = vmatpush1.bf16.msra.mxu0 %v631
  %886 = vmatprep.subr.bf16.mxu0 0
  %887 = vmatpush1.bf16.msra.mxu0 %v632
  %888 = vmatprep.subr.bf16.mxu0 0
  %889 = vmatpush1.bf16.msra.mxu0 %v633
  %890 = vmatprep.subr.bf16.mxu0 0
  %891 = vmatpush1.bf16.msra.mxu0 %v634
  %892 = vmatprep.subr.bf16.mxu0 0
  %893 = vmatpush1.bf16.msra.mxu0 %v635
  %894 = vmatprep.subr.bf16.mxu0 0
  %895 = vmatpush1.bf16.msra.mxu0 %v636
  %896 = vmatprep.mubr.bf16.mxu0 %v256
  %897 = vmatmul.mubr.bf16.gmra.mrb[0].mxu0 %v255
  %v898 = vpop.f32.mrb[0].mxu0
  %v899 = vadd.f32 %v850, %v898
  %v900 = vpop.f32.mrb[0].mxu0
  %v901 = vpop.f32.mrb[0].mxu0
  %v902 = vadd.f32 %v853, %v901
  %v903 = vpop.f32.mrb[0].mxu0
  %904 = vmatprep.mubr.bf16.mxu0 %v265
  %905 = vmatmul.mubr.bf16.gmra.mrb[0].mxu0 %v264
  %v906 = vpop.f32.mrb[0].mxu0
  %v907 = vadd.f32 %v858, %v906
  %v908 = vpop.f32.mrb[0].mxu0
  %v909 = vpop.f32.mrb[0].mxu0
  %v910 = vadd.f32 %v861, %v909
  %v911 = vpop.f32.mrb[0].mxu0
  %912 = vdwg.mxu0
  %913 = vmatprep.subr.bf16.mxu0 0
  %914 = vmatpush1.bf16.msra.mxu0 %v637
  %915 = vmatprep.subr.bf16.mxu0 0
  %916 = vmatpush1.bf16.msra.mxu0 %v638
  %917 = vmatprep.subr.bf16.mxu0 0
  %918 = vmatpush1.bf16.msra.mxu0 %v639
  %919 = vmatprep.subr.bf16.mxu0 0
  %920 = vmatpush1.bf16.msra.mxu0 %v640
  %921 = vmatprep.subr.bf16.mxu0 0
  %922 = vmatpush1.bf16.msra.mxu0 %v641
  %923 = vmatprep.subr.bf16.mxu0 0
  %924 = vmatpush1.bf16.msra.mxu0 %v642
  %925 = vmatprep.subr.bf16.mxu0 0
  %926 = vmatpush1.bf16.msra.mxu0 %v643
  %927 = vmatprep.subr.bf16.mxu0 0
  %928 = vmatpush1.bf16.msra.mxu0 %v644
  %929 = vmatprep.subr.bf16.mxu0 0
  %930 = vmatpush1.bf16.msra.mxu0 0
  %931 = vmatprep.subr.bf16.mxu0 0
  %932 = vmatpush1.bf16.msra.mxu0 0
  %933 = vmatprep.subr.bf16.mxu0 0
  %934 = vmatpush1.bf16.msra.mxu0 0
  %935 = vmatprep.subr.bf16.mxu0 0
  %936 = vmatpush1.bf16.msra.mxu0 0
  %937 = vmatprep.subr.bf16.mxu0 0
  %938 = vmatpush1.bf16.msra.mxu0 0
  %939 = vmatprep.subr.bf16.mxu0 0
  %940 = vmatpush1.bf16.msra.mxu0 0
  %941 = vmatprep.subr.bf16.mxu0 0
  %942 = vmatpush1.bf16.msra.mxu0 0
  %943 = vmatprep.subr.bf16.mxu0 0
  %944 = vmatpush1.bf16.msra.mxu0 0
  %945 = vmatprep.mubr.bf16.mxu0 0
  %946 = vmatmul.mubr.bf16.gmra.mrb[0].mxu0 %v257
  %v947 = vpop.f32.mrb[0].mxu0
  %v948 = vadd.f32 %v899, %v947
  %v949 = vpop.f32.mrb[0].mxu0
  %v950 = vpop.f32.mrb[0].mxu0
  %v951 = vadd.f32 %v902, %v950
  %v952 = vpop.f32.mrb[0].mxu0
  %953 = vmatprep.mubr.bf16.mxu0 0
  %954 = vmatmul.mubr.bf16.gmra.mrb[0].mxu0 %v266
  %v955 = vpop.f32.mrb[0].mxu0
  %v956 = vadd.f32 %v907, %v955
  %v957 = vpop.f32.mrb[0].mxu0
  %v958 = vpop.f32.mrb[0].mxu0
  %v959 = vadd.f32 %v910, %v958
  %v960 = vpop.f32.mrb[0].mxu0
  %961 = vdwg.mxu0
  %v962 = vld [vmem:[%s2] sm:$0x1]
  %v964 = vlaneseq
  %v965 = vshrl.u32 %v964, 7
  %v966 = vsub.s32 0, %v965
  %v967 = vrot.slane %v962, %v966
  %v969 = vmul.f32 %v948, %v967
  %v970 = vmul.f32 %v951, %v967
  %v971 = vmul.f32 %v956, %v967
  %v972 = vmul.f32 %v959, %v967
  %v973 = vld [vmem:[%s3] sm:$0x1]
  %v975 = vlaneseq
  %v976 = vshrl.u32 %v975, 7
  %v977 = vsub.s32 0, %v976
  %v978 = vrot.slane %v973, %v977
  %v980 = vadd.f32 %v969, %v978
  %v981 = vadd.f32 %v970, %v978
  %v982 = vadd.f32 %v971, %v978
  %v983 = vadd.f32 %v972, %v978
  %v984 = vmax.f32 %v980, 0.0
  %v985 = vmax.f32 %v981, 0.0
  %v986 = vmax.f32 %v982, 0.0
  %v987 = vmax.f32 %v983, 0.0
  %v988 = vpack.c.bf16 %v985, %v984
  %v989 = vpack.c.bf16 %v987, %v986
  %v992 = vunpack.c.l.b16 %v988
  %v993 = vunpack.c.h.b16 %v988
  %v994 = vunpack.c.l.b16 %v989
  %v995 = vunpack.c.h.b16 %v989
  %v996 = vpack.c.b16 %v992, %v992
  %v997 = vpack.c.b16 %v993, %v993
  %v998 = vpack.c.b16 %v994, %v994
  %v999 = vpack.c.b16 %v995, %v995
  %1004 = vst [vmem:[%s7] sm:$0xf] %v996
  %1005 = vst [vmem:[%s7 + $0x4] sm:$0xf] %v997
  %1006 = vst [vmem:[%s7 + $0x8] sm:$0xf] %v998
  %1007 = vst [vmem:[%s7 + $0xc] sm:$0xf] %v999
  %v1008 = vld [vmem:[%s4] sm:$0xf]
  %v1009 = vld [vmem:[%s4 + $0x4] sm:$0xf]
  %v1010 = vld [vmem:[%s4 + $0x8] sm:$0xf]
  %v1011 = vld [vmem:[%s4 + $0xc] sm:$0xf]
  %v1012 = vld [vmem:[%s4 + $0x10] sm:$0xf]
  %v1013 = vld [vmem:[%s4 + $0x14] sm:$0xf]
  %v1014 = vld [vmem:[%s4 + $0x18] sm:$0xf]
  %v1015 = vld [vmem:[%s4 + $0x1c] sm:$0xf]
  %v1016 = vld [vmem:[%s4 + $0x20] sm:$0xf]
  %v1017 = vld [vmem:[%s4 + $0x24] sm:$0xf]
  %v1018 = vld [vmem:[%s4 + $0x28] sm:$0xf]
  %v1019 = vld [vmem:[%s4 + $0x2c] sm:$0xf]
  %v1020 = vld [vmem:[%s4 + $0x30] sm:$0xf]
  %v1021 = vld [vmem:[%s4 + $0x34] sm:$0xf]
  %v1022 = vld [vmem:[%s4 + $0x38] sm:$0xf]
  %v1023 = vld [vmem:[%s4 + $0x3c] sm:$0xf]
  %v1040 = vunpack.c.l.b16 %v1008
  %v1041 = vunpack.c.l.b16 %v1009
  %v1042 = vunpack.c.l.b16 %v1010
  %v1043 = vunpack.c.l.b16 %v1011
  %v1044 = vunpack.c.l.b16 %v1012
  %v1045 = vunpack.c.l.b16 %v1013
  %v1046 = vunpack.c.l.b16 %v1014
  %v1047 = vunpack.c.l.b16 %v1015
  %v1048 = vunpack.c.l.b16 %v1016
  %v1049 = vunpack.c.l.b16 %v1017
  %v1050 = vunpack.c.l.b16 %v1018
  %v1051 = vunpack.c.l.b16 %v1019
  %v1052 = vunpack.c.l.b16 %v1020
  %v1053 = vunpack.c.l.b16 %v1021
  %v1054 = vunpack.c.l.b16 %v1022
  %v1055 = vunpack.c.l.b16 %v1023
  %v1056 = vpack.c.b16 %v1041, %v1040
  %v1057 = vpack.c.b16 %v1043, %v1042
  %v1058 = vpack.c.b16 %v1045, %v1044
  %v1059 = vpack.c.b16 %v1047, %v1046
  %v1060 = vpack.c.b16 %v1049, %v1048
  %v1061 = vpack.c.b16 %v1051, %v1050
  %v1062 = vpack.c.b16 %v1053, %v1052
  %v1063 = vpack.c.b16 %v1055, %v1054
  %1072 = vmatprep.subr.bf16.mxu0 0
  %1073 = vmatpush1.bf16.msra.mxu0 %v1056
  %1074 = vmatprep.subr.bf16.mxu0 0
  %1075 = vmatpush1.bf16.msra.mxu0 %v1057
  %1076 = vmatprep.subr.bf16.mxu0 0
  %1077 = vmatpush1.bf16.msra.mxu0 %v1058
  %1078 = vmatprep.subr.bf16.mxu0 0
  %1079 = vmatpush1.bf16.msra.mxu0 %v1059
  %1080 = vmatprep.subr.bf16.mxu0 0
  %1081 = vmatpush1.bf16.msra.mxu0 %v1060
  %1082 = vmatprep.subr.bf16.mxu0 0
  %1083 = vmatpush1.bf16.msra.mxu0 %v1061
  %1084 = vmatprep.subr.bf16.mxu0 0
  %1085 = vmatpush1.bf16.msra.mxu0 %v1062
  %1086 = vmatprep.subr.bf16.mxu0 0
  %1087 = vmatpush1.bf16.msra.mxu0 %v1063
  %1088 = vmatprep.subr.bf16.mxu0 0
  %1089 = vmatpush1.bf16.msra.mxu0 0
  %1090 = vmatprep.subr.bf16.mxu0 0
  %1091 = vmatpush1.bf16.msra.mxu0 0
  %1092 = vmatprep.subr.bf16.mxu0 0
  %1093 = vmatpush1.bf16.msra.mxu0 0
  %1094 = vmatprep.subr.bf16.mxu0 0
  %1095 = vmatpush1.bf16.msra.mxu0 0
  %1096 = vmatprep.subr.bf16.mxu0 0
  %1097 = vmatpush1.bf16.msra.mxu0 0
  %1098 = vmatprep.subr.bf16.mxu0 0
  %1099 = vmatpush1.bf16.msra.mxu0 0
  %1100 = vmatprep.subr.bf16.mxu0 0
  %1101 = vmatpush1.bf16.msra.mxu0 0
  %1102 = vmatprep.subr.bf16.mxu0 0
  %1103 = vmatpush1.bf16.msra.mxu0 0
  %1104 = vmatprep.mubr.bf16.mxu0 0
  %1105 = vmatmul.mubr.bf16.gmra.mrb[0].mxu0 %v253
  %v1106 = vpop.f32.mrb[0].mxu0
  %v1107 = vadd.f32 0.0, %v1106
  %v1108 = vpop.f32.mrb[0].mxu0
  %v1109 = vpop.f32.mrb[0].mxu0
  %v1110 = vadd.f32 0.0, %v1109
  %v1111 = vpop.f32.mrb[0].mxu0
  %1112 = vmatprep.mubr.bf16.mxu0 0
  %1113 = vmatmul.mubr.bf16.gmra.mrb[0].mxu0 %v262
  %v1114 = vpop.f32.mrb[0].mxu0
  %v1115 = vadd.f32 0.0, %v1114
  %v1116 = vpop.f32.mrb[0].mxu0
  %v1117 = vpop.f32.mrb[0].mxu0
  %v1118 = vadd.f32 0.0, %v1117
  %v1119 = vpop.f32.mrb[0].mxu0
  %1120 = vdwg.mxu0
  %v1121 = vld [vmem:[%s5] sm:$0x1]
  %v1123 = vlaneseq
  %v1124 = vshrl.u32 %v1123, 7
  %v1125 = vsub.s32 0, %v1124
  %v1126 = vrot.slane %v1121, %v1125
  %v1128 = vmul.f32 %v1107, %v1126
  %v1129 = vmul.f32 %v1110, %v1126
  %v1130 = vmul.f32 %v1115, %v1126
  %v1131 = vmul.f32 %v1118, %v1126
  %v1132 = vld [vmem:[%s6] sm:$0x1]
  %v1134 = vlaneseq
  %v1135 = vshrl.u32 %v1134, 7
  %v1136 = vsub.s32 0, %v1135
  %v1137 = vrot.slane %v1132, %v1136
  %v1139 = vadd.f32 %v1128, %v1137
  %v1140 = vadd.f32 %v1129, %v1137
  %v1141 = vadd.f32 %v1130, %v1137
  %v1142 = vadd.f32 %v1131, %v1137
  %v1143 = vpack.c.bf16 %v1140, %v1139
  %v1144 = vpack.c.bf16 %v1142, %v1141
  %v1147 = vunpack.c.l.b16 %v1143
  %v1148 = vunpack.c.h.b16 %v1143
  %v1149 = vunpack.c.l.b16 %v1144
  %v1150 = vunpack.c.h.b16 %v1144
  %v1151 = vpack.c.b16 %v1147, %v1147
  %v1152 = vpack.c.b16 %v1148, %v1148
  %v1153 = vpack.c.b16 %v1149, %v1149
  %v1154 = vpack.c.b16 %v1150, %v1150
  %1159 = vst [vmem:[%s8] sm:$0xf] %v1151
  %1160 = vst [vmem:[%s8 + $0x4] sm:$0xf] %v1152
  %1161 = vst [vmem:[%s8 + $0x8] sm:$0xf] %v1153
  %1162 = vst [vmem:[%s8 + $0xc] sm:$0xf] %v1154
  // Predicated region
  $region30: #{resnet_embedding_forward.14} parent=0 // pred_check
    _
  $region31: #{resnet_embedding_forward.14} parent=0 // pred_check_branch
    %1164 = sbr.rel (0) target = $region33
  $region32: #{resnet_embedding_forward.14} parent=0 // pred_region
    _
  $region33: #{resnet_embedding_forward.14} parent=0 // pred_fallthru
    _
  // Predicated region
  $region34: #{resnet_embedding_forward.14} parent=0 // pred_check
    _
  $region35: #{resnet_embedding_forward.14} parent=0 // pred_check_branch
    %1166 = sbr.rel (0) target = $region37
  $region36: #{resnet_embedding_forward.14} parent=0 // pred_region
    _
  $region37: #{resnet_embedding_forward.14} parent=0 // pred_fallthru
    _
  // Predicated region
  $region38: #{resnet_embedding_forward.14} parent=0 // pred_check
    _
  $region39: #{resnet_embedding_forward.14} parent=0 // pred_check_branch
    %1168 = sbr.rel (0) target = $region41
  $region40: #{resnet_embedding_forward.14} parent=0 // pred_region
    _
  $region41: #{resnet_embedding_forward.14} parent=0 // pred_fallthru
    _
  // Predicated region
  $region42: #{resnet_embedding_forward.14} parent=0 // pred_check
    _
  $region43: #{resnet_embedding_forward.14} parent=0 // pred_check_branch
    %1170 = sbr.rel (0) target = $region45
  $region44: #{resnet_embedding_forward.14} parent=0 // pred_region
    _
  $region45: #{resnet_embedding_forward.14} parent=0 // pred_fallthru
    _

// kernel: resnet_embedding_forward.15
$region0: #{resnet_embedding_forward.15}
  #allocation0 [shape = 'u32[]', space=smem, size = 0x4, offset = 0x4, fixed_abs, tag = 'smem constant byte address 0x4 - core index']
  #allocation1 [shape = 'u32[144,128]{1,0:T(1,128)}', space=vmem, size = 0x12000, scoped, tag = 'internal scratch']
  %s0 = inlined_call_operand.vmem [shape: bf16[120,128], index: 0, kind: input, shape index: {}]
  %s1 = inlined_call_operand.vmem [shape: bf16[1152,128], index: 1, kind: input, shape index: {}]
  %s2 = inlined_call_operand.vmem [shape: f32[1,128], index: 2, kind: input, shape index: {}]
  %s3 = inlined_call_operand.vmem [shape: f32[1,128], index: 3, kind: input, shape index: {}]
  %s4 = inlined_call_operand.vmem [shape: f32[96,1], index: 4, kind: input, shape index: {}]
  %s5 = inlined_call_operand.vmem [shape: bf16[96,128], index: 5, kind: input, shape index: {}]
  %s6 = inlined_call_operand.vmem [shape: bf16[96,128], index: 6, kind: output, shape index: {}]
  %s7 = sld [smem:[#allocation0]]
  $region34: #{resnet_embedding_forward.15} parent=0
    _
  %s9 = ssub.s32 1, %s7
  %s10 = scalar_select 0, %s9, %s7
  // Predicated region
  $region2: #{resnet_embedding_forward.15} parent=0 // pred_check
    _
  $region3: #{resnet_embedding_forward.15} parent=0 // pred_check_branch
    %12 = sbr.rel (0) target = $region5
  $region4: #{resnet_embedding_forward.15} parent=0 // pred_region
    _
  $region5: #{resnet_embedding_forward.15} parent=0 // pred_fallthru
    _
  // Predicated region
  $region6: #{resnet_embedding_forward.15} parent=0 // pred_check
    _
  $region7: #{resnet_embedding_forward.15} parent=0 // pred_check_branch
    %14 = sbr.rel (0) target = $region9
  $region8: #{resnet_embedding_forward.15} parent=0 // pred_region
    _
  $region9: #{resnet_embedding_forward.15} parent=0 // pred_fallthru
    _
  // Predicated region
  $region10: #{resnet_embedding_forward.15} parent=0 // pred_check
    _
  $region11: #{resnet_embedding_forward.15} parent=0 // pred_check_branch
    %16 = sbr.rel (0) target = $region13
  $region12: #{resnet_embedding_forward.15} parent=0 // pred_region
    _
  $region13: #{resnet_embedding_forward.15} parent=0 // pred_fallthru
    _
  // Predicated region
  $region14: #{resnet_embedding_forward.15} parent=0 // pred_check
    _
  $region15: #{resnet_embedding_forward.15} parent=0 // pred_check_branch
    %18 = sbr.rel (0) target = $region17
  $region16: #{resnet_embedding_forward.15} parent=0 // pred_region
    _
  $region17: #{resnet_embedding_forward.15} parent=0 // pred_fallthru
    _
  // Predicated region
  $region18: #{resnet_embedding_forward.15} parent=0 // pred_check
    _
  $region19: #{resnet_embedding_forward.15} parent=0 // pred_check_branch
    %20 = sbr.rel (0) target = $region21
  $region20: #{resnet_embedding_forward.15} parent=0 // pred_region
    _
  $region21: #{resnet_embedding_forward.15} parent=0 // pred_fallthru
    _
  // Predicated region
  $region22: #{resnet_embedding_forward.15} parent=0 // pred_check
    _
  $region23: #{resnet_embedding_forward.15} parent=0 // pred_check_branch
    %22 = sbr.rel (0) target = $region25
  $region24: #{resnet_embedding_forward.15} parent=0 // pred_region
    _
  $region25: #{resnet_embedding_forward.15} parent=0 // pred_fallthru
    _
  %s24 = smul.u32 0, 96
  %s25 = sshra.s32 %s24, 3
  %s26 = sand.u32 %s24, 7
  %s27 = smul.addr %s25, 4
  %s28 = scalar_lea.vmem %s0, %s27
  %v29 = vld [vmem:[%s28] sm:$0xf]
  %v30 = vld [vmem:[%s28 + $0x4] sm:$0xf]
  %v31 = vld [vmem:[%s28 + $0x8] sm:$0xf]
  %v32 = vld [vmem:[%s28 + $0xc] sm:$0xf]
  %v33 = vld [vmem:[%s28 + $0x10] sm:$0xf]
  %v34 = vld [vmem:[%s28 + $0x14] sm:$0xf]
  %v35 = vld [vmem:[%s28 + $0x18] sm:$0xf]
  %v36 = vld [vmem:[%s28 + $0x1c] sm:$0xf]
  %v37 = vld [vmem:[%s28 + $0x20] sm:$0xf]
  %v38 = vld [vmem:[%s28 + $0x24] sm:$0xf]
  %v39 = vld [vmem:[%s28 + $0x28] sm:$0xf]
  %v40 = vld [vmem:[%s28 + $0x2c] sm:$0xf]
  %v41 = vld [vmem:[%s28 + $0x30] sm:$0xf]
  %v42 = vld [vmem:[%s28 + $0x34] sm:$0xf]
  %v43 = vld [vmem:[%s28 + $0x38] sm:$0xf]
  %v56 = vunpack.c.l.b16 %v29
  %v57 = vunpack.c.l.b16 %v30
  %v58 = vunpack.c.l.b16 %v31
  %v59 = vunpack.c.l.b16 %v32
  %v60 = vunpack.c.l.b16 %v33
  %v61 = vunpack.c.l.b16 %v34
  %v62 = vunpack.c.l.b16 %v35
  %v63 = vunpack.c.l.b16 %v36
  %v64 = vunpack.c.l.b16 %v37
  %v65 = vunpack.c.l.b16 %v38
  %v66 = vunpack.c.l.b16 %v39
  %v67 = vunpack.c.l.b16 %v40
  %v68 = vpack.c.b16 %v57, %v56
  %v69 = vpack.c.b16 %v59, %v58
  %v70 = vpack.c.b16 %v61, %v60
  %v71 = vpack.c.b16 %v63, %v62
  %v72 = vpack.c.b16 %v65, %v64
  %v73 = vpack.c.b16 %v67, %v66
  %v81 = vunpack.c.l.b16 %v41
  %v82 = vpack.c.b16 %v81, %v81
  %vm83 = vsmask.f32 7424
  %v85 = vshrl.u32 %v68, 16
  %v87 = vshll.u32 %v68, 16
  %v89 = vrot.slane %v87, 1
  %v90 = vor.u32 %v85, %v89
  %v92 = vshll.u32 %v69, 16
  %v94 = vrot.slane %v92, 1
  %v95 = vsel %vm83, %v90, %v94
  %v96 = vshrl.u32 %v69, 16
  %v98 = vor.u32 %v96, %v94
  %v100 = vshll.u32 %v70, 16
  %v102 = vrot.slane %v100, 1
  %v103 = vsel %vm83, %v98, %v102
  %v104 = vshrl.u32 %v70, 16
  %v106 = vor.u32 %v104, %v102
  %v108 = vshll.u32 %v71, 16
  %v110 = vrot.slane %v108, 1
  %v111 = vsel %vm83, %v106, %v110
  %v112 = vshrl.u32 %v71, 16
  %v114 = vor.u32 %v112, %v110
  %v116 = vshll.u32 %v72, 16
  %v118 = vrot.slane %v116, 1
  %v119 = vsel %vm83, %v114, %v118
  %v120 = vshrl.u32 %v72, 16
  %v122 = vor.u32 %v120, %v118
  %v124 = vshll.u32 %v73, 16
  %v126 = vrot.slane %v124, 1
  %v127 = vsel %vm83, %v122, %v126
  %v128 = vshrl.u32 %v73, 16
  %v130 = vor.u32 %v128, %v126
  %v132 = vshll.u32 %v82, 16
  %v134 = vrot.slane %v132, 1
  %v135 = vsel %vm83, %v130, %v134
  %vm142 = vcmask 1046528
  %v143 = vrot.slane %v68, 1
  %v144 = vrot.slane %v69, 1
  %v145 = vsel %vm142, %v143, %v144
  %v146 = vrot.slane %v70, 1
  %v147 = vsel %vm142, %v144, %v146
  %v148 = vrot.slane %v71, 1
  %v149 = vsel %vm142, %v146, %v148
  %v150 = vrot.slane %v72, 1
  %v151 = vsel %vm142, %v148, %v150
  %v152 = vrot.slane %v73, 1
  %v153 = vsel %vm142, %v150, %v152
  %v154 = vrot.slane %v82, 1
  %v155 = vsel %vm142, %v152, %v154
  %v162 = vpack.c.b16 %v58, %v57
  %v163 = vpack.c.b16 %v60, %v59
  %v164 = vpack.c.b16 %v62, %v61
  %v165 = vpack.c.b16 %v64, %v63
  %v166 = vpack.c.b16 %v66, %v65
  %v167 = vpack.c.b16 %v81, %v67
  %v175 = vunpack.c.l.b16 %v42
  %v176 = vpack.c.b16 %v175, %v175
  %v178 = vshrl.u32 %v162, 16
  %v180 = vshll.u32 %v162, 16
  %v182 = vrot.slane %v180, 1
  %v183 = vor.u32 %v178, %v182
  %v185 = vshll.u32 %v163, 16
  %v187 = vrot.slane %v185, 1
  %v188 = vsel %vm83, %v183, %v187
  %v189 = vshrl.u32 %v163, 16
  %v191 = vor.u32 %v189, %v187
  %v193 = vshll.u32 %v164, 16
  %v195 = vrot.slane %v193, 1
  %v196 = vsel %vm83, %v191, %v195
  %v197 = vshrl.u32 %v164, 16
  %v199 = vor.u32 %v197, %v195
  %v201 = vshll.u32 %v165, 16
  %v203 = vrot.slane %v201, 1
  %v204 = vsel %vm83, %v199, %v203
  %v205 = vshrl.u32 %v165, 16
  %v207 = vor.u32 %v205, %v203
  %v209 = vshll.u32 %v166, 16
  %v211 = vrot.slane %v209, 1
  %v212 = vsel %vm83, %v207, %v211
  %v213 = vshrl.u32 %v166, 16
  %v215 = vor.u32 %v213, %v211
  %v217 = vshll.u32 %v167, 16
  %v219 = vrot.slane %v217, 1
  %v220 = vsel %vm83, %v215, %v219
  %v221 = vshrl.u32 %v167, 16
  %v223 = vor.u32 %v221, %v219
  %v225 = vshll.u32 %v176, 16
  %v227 = vrot.slane %v225, 1
  %v228 = vsel %vm83, %v223, %v227
  %v235 = vrot.slane %v162, 1
  %v236 = vrot.slane %v163, 1
  %v237 = vsel %vm142, %v235, %v236
  %v238 = vrot.slane %v164, 1
  %v239 = vsel %vm142, %v236, %v238
  %v240 = vrot.slane %v165, 1
  %v241 = vsel %vm142, %v238, %v240
  %v242 = vrot.slane %v166, 1
  %v243 = vsel %vm142, %v240, %v242
  %v244 = vrot.slane %v167, 1
  %v245 = vsel %vm142, %v242, %v244
  %v246 = vrot.slane %v176, 1
  %v247 = vsel %vm142, %v244, %v246
  %v254 = vpack.c.b16 %v175, %v81
  %v257 = vunpack.c.l.b16 %v43
  %v258 = vpack.c.b16 %v257, %v257
  %v260 = vshll.u32 %v254, 16
  %v262 = vrot.slane %v260, 1
  %v263 = vsel %vm83, %v130, %v262
  %v264 = vshrl.u32 %v254, 16
  %v266 = vor.u32 %v264, %v262
  %v268 = vshll.u32 %v258, 16
  %v270 = vrot.slane %v268, 1
  %v271 = vsel %vm83, %v266, %v270
  %v274 = vrot.slane %v254, 1
  %v275 = vsel %vm142, %v152, %v274
  %v276 = vrot.slane %v258, 1
  %v277 = vsel %vm142, %v274, %v276
  %v280 = vld [vmem:[%s1] sm:$0xf]
  %v281 = vld [vmem:[%s1 + $0x4] sm:$0xf]
  %v282 = vld [vmem:[%s1 + $0x8] sm:$0xf]
  %v283 = vld [vmem:[%s1 + $0xc] sm:$0xf]
  %v284 = vld [vmem:[%s1 + $0x10] sm:$0xf]
  %v285 = vld [vmem:[%s1 + $0x14] sm:$0xf]
  %v286 = vld [vmem:[%s1 + $0x18] sm:$0xf]
  %v287 = vld [vmem:[%s1 + $0x1c] sm:$0xf]
  %v288 = vld [vmem:[%s1 + $0x20] sm:$0xf]
  %v289 = vld [vmem:[%s1 + $0x24] sm:$0xf]
  %v290 = vld [vmem:[%s1 + $0x28] sm:$0xf]
  %v291 = vld [vmem:[%s1 + $0x2c] sm:$0xf]
  %v292 = vld [vmem:[%s1 + $0x30] sm:$0xf]
  %v293 = vld [vmem:[%s1 + $0x34] sm:$0xf]
  %v294 = vld [vmem:[%s1 + $0x38] sm:$0xf]
  %v295 = vld [vmem:[%s1 + $0x3c] sm:$0xf]
  %v296 = vld [vmem:[%s1 + $0x40] sm:$0xf]
  %v297 = vld [vmem:[%s1 + $0x44] sm:$0xf]
  %v298 = vld [vmem:[%s1 + $0x48] sm:$0xf]
  %v299 = vld [vmem:[%s1 + $0x4c] sm:$0xf]
  %v300 = vld [vmem:[%s1 + $0x50] sm:$0xf]
  %v301 = vld [vmem:[%s1 + $0x54] sm:$0xf]
  %v302 = vld [vmem:[%s1 + $0x58] sm:$0xf]
  %v303 = vld [vmem:[%s1 + $0x5c] sm:$0xf]
  %v304 = vld [vmem:[%s1 + $0x60] sm:$0xf]
  %v305 = vld [vmem:[%s1 + $0x64] sm:$0xf]
  %v306 = vld [vmem:[%s1 + $0x68] sm:$0xf]
  %v307 = vld [vmem:[%s1 + $0x6c] sm:$0xf]
  %v308 = vld [vmem:[%s1 + $0x70] sm:$0xf]
  %v309 = vld [vmem:[%s1 + $0x74] sm:$0xf]
  %v310 = vld [vmem:[%s1 + $0x78] sm:$0xf]
  %v311 = vld [vmem:[%s1 + $0x7c] sm:$0xf]
  %v312 = vld [vmem:[%s1 + $0x80] sm:$0xf]
  %v313 = vld [vmem:[%s1 + $0x84] sm:$0xf]
  %v314 = vld [vmem:[%s1 + $0x88] sm:$0xf]
  %v315 = vld [vmem:[%s1 + $0x8c] sm:$0xf]
  %v316 = vld [vmem:[%s1 + $0x90] sm:$0xf]
  %v317 = vld [vmem:[%s1 + $0x94] sm:$0xf]
  %v318 = vld [vmem:[%s1 + $0x98] sm:$0xf]
  %v319 = vld [vmem:[%s1 + $0x9c] sm:$0xf]
  %v320 = vld [vmem:[%s1 + $0xa0] sm:$0xf]
  %v321 = vld [vmem:[%s1 + $0xa4] sm:$0xf]
  %v322 = vld [vmem:[%s1 + $0xa8] sm:$0xf]
  %v323 = vld [vmem:[%s1 + $0xac] sm:$0xf]
  %v324 = vld [vmem:[%s1 + $0xb0] sm:$0xf]
  %v325 = vld [vmem:[%s1 + $0xb4] sm:$0xf]
  %v326 = vld [vmem:[%s1 + $0xb8] sm:$0xf]
  %v327 = vld [vmem:[%s1 + $0xbc] sm:$0xf]
  %v328 = vld [vmem:[%s1 + $0xc0] sm:$0xf]
  %v329 = vld [vmem:[%s1 + $0xc4] sm:$0xf]
  %v330 = vld [vmem:[%s1 + $0xc8] sm:$0xf]
  %v331 = vld [vmem:[%s1 + $0xcc] sm:$0xf]
  %v332 = vld [vmem:[%s1 + $0xd0] sm:$0xf]
  %v333 = vld [vmem:[%s1 + $0xd4] sm:$0xf]
  %v334 = vld [vmem:[%s1 + $0xd8] sm:$0xf]
  %v335 = vld [vmem:[%s1 + $0xdc] sm:$0xf]
  %v336 = vld [vmem:[%s1 + $0xe0] sm:$0xf]
  %v337 = vld [vmem:[%s1 + $0xe4] sm:$0xf]
  %v338 = vld [vmem:[%s1 + $0xe8] sm:$0xf]
  %v339 = vld [vmem:[%s1 + $0xec] sm:$0xf]
  %v340 = vld [vmem:[%s1 + $0xf0] sm:$0xf]
  %v341 = vld [vmem:[%s1 + $0xf4] sm:$0xf]
  %v342 = vld [vmem:[%s1 + $0xf8] sm:$0xf]
  %v343 = vld [vmem:[%s1 + $0xfc] sm:$0xf]
  %v344 = vld [vmem:[%s1 + $0x100] sm:$0xf]
  %v345 = vld [vmem:[%s1 + $0x104] sm:$0xf]
  %v346 = vld [vmem:[%s1 + $0x108] sm:$0xf]
  %v347 = vld [vmem:[%s1 + $0x10c] sm:$0xf]
  %v348 = vld [vmem:[%s1 + $0x110] sm:$0xf]
  %v349 = vld [vmem:[%s1 + $0x114] sm:$0xf]
  %v350 = vld [vmem:[%s1 + $0x118] sm:$0xf]
  %v351 = vld [vmem:[%s1 + $0x11c] sm:$0xf]
  %v352 = vld [vmem:[%s1 + $0x120] sm:$0xf]
  %v353 = vld [vmem:[%s1 + $0x124] sm:$0xf]
  %v354 = vld [vmem:[%s1 + $0x128] sm:$0xf]
  %v355 = vld [vmem:[%s1 + $0x12c] sm:$0xf]
  %v356 = vld [vmem:[%s1 + $0x130] sm:$0xf]
  %v357 = vld [vmem:[%s1 + $0x134] sm:$0xf]
  %v358 = vld [vmem:[%s1 + $0x138] sm:$0xf]
  %v359 = vld [vmem:[%s1 + $0x13c] sm:$0xf]
  %v360 = vld [vmem:[%s1 + $0x140] sm:$0xf]
  %v361 = vld [vmem:[%s1 + $0x144] sm:$0xf]
  %v362 = vld [vmem:[%s1 + $0x148] sm:$0xf]
  %v363 = vld [vmem:[%s1 + $0x14c] sm:$0xf]
  %v364 = vld [vmem:[%s1 + $0x150] sm:$0xf]
  %v365 = vld [vmem:[%s1 + $0x154] sm:$0xf]
  %v366 = vld [vmem:[%s1 + $0x158] sm:$0xf]
  %v367 = vld [vmem:[%s1 + $0x15c] sm:$0xf]
  %v368 = vld [vmem:[%s1 + $0x160] sm:$0xf]
  %v369 = vld [vmem:[%s1 + $0x164] sm:$0xf]
  %v370 = vld [vmem:[%s1 + $0x168] sm:$0xf]
  %v371 = vld [vmem:[%s1 + $0x16c] sm:$0xf]
  %v372 = vld [vmem:[%s1 + $0x170] sm:$0xf]
  %v373 = vld [vmem:[%s1 + $0x174] sm:$0xf]
  %v374 = vld [vmem:[%s1 + $0x178] sm:$0xf]
  %v375 = vld [vmem:[%s1 + $0x17c] sm:$0xf]
  %v376 = vld [vmem:[%s1 + $0x180] sm:$0xf]
  %v377 = vld [vmem:[%s1 + $0x184] sm:$0xf]
  %v378 = vld [vmem:[%s1 + $0x188] sm:$0xf]
  %v379 = vld [vmem:[%s1 + $0x18c] sm:$0xf]
  %v380 = vld [vmem:[%s1 + $0x190] sm:$0xf]
  %v381 = vld [vmem:[%s1 + $0x194] sm:$0xf]
  %v382 = vld [vmem:[%s1 + $0x198] sm:$0xf]
  %v383 = vld [vmem:[%s1 + $0x19c] sm:$0xf]
  %v384 = vld [vmem:[%s1 + $0x1a0] sm:$0xf]
  %v385 = vld [vmem:[%s1 + $0x1a4] sm:$0xf]
  %v386 = vld [vmem:[%s1 + $0x1a8] sm:$0xf]
  %v387 = vld [vmem:[%s1 + $0x1ac] sm:$0xf]
  %v388 = vld [vmem:[%s1 + $0x1b0] sm:$0xf]
  %v389 = vld [vmem:[%s1 + $0x1b4] sm:$0xf]
  %v390 = vld [vmem:[%s1 + $0x1b8] sm:$0xf]
  %v391 = vld [vmem:[%s1 + $0x1bc] sm:$0xf]
  %v392 = vld [vmem:[%s1 + $0x1c0] sm:$0xf]
  %v393 = vld [vmem:[%s1 + $0x1c4] sm:$0xf]
  %v394 = vld [vmem:[%s1 + $0x1c8] sm:$0xf]
  %v395 = vld [vmem:[%s1 + $0x1cc] sm:$0xf]
  %v396 = vld [vmem:[%s1 + $0x1d0] sm:$0xf]
  %v397 = vld [vmem:[%s1 + $0x1d4] sm:$0xf]
  %v398 = vld [vmem:[%s1 + $0x1d8] sm:$0xf]
  %v399 = vld [vmem:[%s1 + $0x1dc] sm:$0xf]
  %v400 = vld [vmem:[%s1 + $0x1e0] sm:$0xf]
  %v401 = vld [vmem:[%s1 + $0x1e4] sm:$0xf]
  %v402 = vld [vmem:[%s1 + $0x1e8] sm:$0xf]
  %v403 = vld [vmem:[%s1 + $0x1ec] sm:$0xf]
  %v404 = vld [vmem:[%s1 + $0x1f0] sm:$0xf]
  %v405 = vld [vmem:[%s1 + $0x1f4] sm:$0xf]
  %v406 = vld [vmem:[%s1 + $0x1f8] sm:$0xf]
  %v407 = vld [vmem:[%s1 + $0x1fc] sm:$0xf]
  %v408 = vld [vmem:[%s1 + $0x200] sm:$0xf]
  %v409 = vld [vmem:[%s1 + $0x204] sm:$0xf]
  %v410 = vld [vmem:[%s1 + $0x208] sm:$0xf]
  %v411 = vld [vmem:[%s1 + $0x20c] sm:$0xf]
  %v412 = vld [vmem:[%s1 + $0x210] sm:$0xf]
  %v413 = vld [vmem:[%s1 + $0x214] sm:$0xf]
  %v414 = vld [vmem:[%s1 + $0x218] sm:$0xf]
  %v415 = vld [vmem:[%s1 + $0x21c] sm:$0xf]
  %v416 = vld [vmem:[%s1 + $0x220] sm:$0xf]
  %v417 = vld [vmem:[%s1 + $0x224] sm:$0xf]
  %v418 = vld [vmem:[%s1 + $0x228] sm:$0xf]
  %v419 = vld [vmem:[%s1 + $0x22c] sm:$0xf]
  %v420 = vld [vmem:[%s1 + $0x230] sm:$0xf]
  %v421 = vld [vmem:[%s1 + $0x234] sm:$0xf]
  %v422 = vld [vmem:[%s1 + $0x238] sm:$0xf]
  %v423 = vld [vmem:[%s1 + $0x23c] sm:$0xf]
  %v568 = vunpack.c.l.b16 %v280
  %v569 = vunpack.c.l.b16 %v281
  %v570 = vunpack.c.l.b16 %v282
  %v571 = vunpack.c.l.b16 %v283
  %v572 = vunpack.c.l.b16 %v284
  %v573 = vunpack.c.l.b16 %v285
  %v574 = vunpack.c.l.b16 %v286
  %v575 = vunpack.c.l.b16 %v287
  %v576 = vunpack.c.l.b16 %v288
  %v577 = vunpack.c.l.b16 %v289
  %v578 = vunpack.c.l.b16 %v290
  %v579 = vunpack.c.l.b16 %v291
  %v580 = vunpack.c.l.b16 %v292
  %v581 = vunpack.c.l.b16 %v293
  %v582 = vunpack.c.l.b16 %v294
  %v583 = vunpack.c.l.b16 %v295
  %v584 = vunpack.c.l.b16 %v296
  %v585 = vunpack.c.l.b16 %v297
  %v586 = vunpack.c.l.b16 %v298
  %v587 = vunpack.c.l.b16 %v299
  %v588 = vunpack.c.l.b16 %v300
  %v589 = vunpack.c.l.b16 %v301
  %v590 = vunpack.c.l.b16 %v302
  %v591 = vunpack.c.l.b16 %v303
  %v592 = vunpack.c.l.b16 %v304
  %v593 = vunpack.c.l.b16 %v305
  %v594 = vunpack.c.l.b16 %v306
  %v595 = vunpack.c.l.b16 %v307
  %v596 = vunpack.c.l.b16 %v308
  %v597 = vunpack.c.l.b16 %v309
  %v598 = vunpack.c.l.b16 %v310
  %v599 = vunpack.c.l.b16 %v311
  %v600 = vunpack.c.l.b16 %v312
  %v601 = vunpack.c.l.b16 %v313
  %v602 = vunpack.c.l.b16 %v314
  %v603 = vunpack.c.l.b16 %v315
  %v604 = vunpack.c.l.b16 %v316
  %v605 = vunpack.c.l.b16 %v317
  %v606 = vunpack.c.l.b16 %v318
  %v607 = vunpack.c.l.b16 %v319
  %v608 = vunpack.c.l.b16 %v320
  %v609 = vunpack.c.l.b16 %v321
  %v610 = vunpack.c.l.b16 %v322
  %v611 = vunpack.c.l.b16 %v323
  %v612 = vunpack.c.l.b16 %v324
  %v613 = vunpack.c.l.b16 %v325
  %v614 = vunpack.c.l.b16 %v326
  %v615 = vunpack.c.l.b16 %v327
  %v616 = vunpack.c.l.b16 %v328
  %v617 = vunpack.c.l.b16 %v329
  %v618 = vunpack.c.l.b16 %v330
  %v619 = vunpack.c.l.b16 %v331
  %v620 = vunpack.c.l.b16 %v332
  %v621 = vunpack.c.l.b16 %v333
  %v622 = vunpack.c.l.b16 %v334
  %v623 = vunpack.c.l.b16 %v335
  %v624 = vunpack.c.l.b16 %v336
  %v625 = vunpack.c.l.b16 %v337
  %v626 = vunpack.c.l.b16 %v338
  %v627 = vunpack.c.l.b16 %v339
  %v628 = vunpack.c.l.b16 %v340
  %v629 = vunpack.c.l.b16 %v341
  %v630 = vunpack.c.l.b16 %v342
  %v631 = vunpack.c.l.b16 %v343
  %v632 = vunpack.c.l.b16 %v344
  %v633 = vunpack.c.l.b16 %v345
  %v634 = vunpack.c.l.b16 %v346
  %v635 = vunpack.c.l.b16 %v347
  %v636 = vunpack.c.l.b16 %v348
  %v637 = vunpack.c.l.b16 %v349
  %v638 = vunpack.c.l.b16 %v350
  %v639 = vunpack.c.l.b16 %v351
  %v640 = vunpack.c.l.b16 %v352
  %v641 = vunpack.c.l.b16 %v353
  %v642 = vunpack.c.l.b16 %v354
  %v643 = vunpack.c.l.b16 %v355
  %v644 = vunpack.c.l.b16 %v356
  %v645 = vunpack.c.l.b16 %v357
  %v646 = vunpack.c.l.b16 %v358
  %v647 = vunpack.c.l.b16 %v359
  %v648 = vunpack.c.l.b16 %v360
  %v649 = vunpack.c.l.b16 %v361
  %v650 = vunpack.c.l.b16 %v362
  %v651 = vunpack.c.l.b16 %v363
  %v652 = vunpack.c.l.b16 %v364
  %v653 = vunpack.c.l.b16 %v365
  %v654 = vunpack.c.l.b16 %v366
  %v655 = vunpack.c.l.b16 %v367
  %v656 = vunpack.c.l.b16 %v368
  %v657 = vunpack.c.l.b16 %v369
  %v658 = vunpack.c.l.b16 %v370
  %v659 = vunpack.c.l.b16 %v371
  %v660 = vunpack.c.l.b16 %v372
  %v661 = vunpack.c.l.b16 %v373
  %v662 = vunpack.c.l.b16 %v374
  %v663 = vunpack.c.l.b16 %v375
  %v664 = vunpack.c.l.b16 %v376
  %v665 = vunpack.c.l.b16 %v377
  %v666 = vunpack.c.l.b16 %v378
  %v667 = vunpack.c.l.b16 %v379
  %v668 = vunpack.c.l.b16 %v380
  %v669 = vunpack.c.l.b16 %v381
  %v670 = vunpack.c.l.b16 %v382
  %v671 = vunpack.c.l.b16 %v383
  %v672 = vunpack.c.l.b16 %v384
  %v673 = vunpack.c.l.b16 %v385
  %v674 = vunpack.c.l.b16 %v386
  %v675 = vunpack.c.l.b16 %v387
  %v676 = vunpack.c.l.b16 %v388
  %v677 = vunpack.c.l.b16 %v389
  %v678 = vunpack.c.l.b16 %v390
  %v679 = vunpack.c.l.b16 %v391
  %v680 = vunpack.c.l.b16 %v392
  %v681 = vunpack.c.l.b16 %v393
  %v682 = vunpack.c.l.b16 %v394
  %v683 = vunpack.c.l.b16 %v395
  %v684 = vunpack.c.l.b16 %v396
  %v685 = vunpack.c.l.b16 %v397
  %v686 = vunpack.c.l.b16 %v398
  %v687 = vunpack.c.l.b16 %v399
  %v688 = vunpack.c.l.b16 %v400
  %v689 = vunpack.c.l.b16 %v401
  %v690 = vunpack.c.l.b16 %v402
  %v691 = vunpack.c.l.b16 %v403
  %v692 = vunpack.c.l.b16 %v404
  %v693 = vunpack.c.l.b16 %v405
  %v694 = vunpack.c.l.b16 %v406
  %v695 = vunpack.c.l.b16 %v407
  %v696 = vunpack.c.l.b16 %v408
  %v697 = vunpack.c.l.b16 %v409
  %v698 = vunpack.c.l.b16 %v410
  %v699 = vunpack.c.l.b16 %v411
  %v700 = vunpack.c.l.b16 %v412
  %v701 = vunpack.c.l.b16 %v413
  %v702 = vunpack.c.l.b16 %v414
  %v703 = vunpack.c.l.b16 %v415
  %v704 = vunpack.c.l.b16 %v416
  %v705 = vunpack.c.l.b16 %v417
  %v706 = vunpack.c.l.b16 %v418
  %v707 = vunpack.c.l.b16 %v419
  %v708 = vunpack.c.l.b16 %v420
  %v709 = vunpack.c.l.b16 %v421
  %v710 = vunpack.c.l.b16 %v422
  %v711 = vunpack.c.l.b16 %v423
  %v712 = vpack.c.b16 %v569, %v568
  %v713 = vpack.c.b16 %v571, %v570
  %v714 = vpack.c.b16 %v573, %v572
  %v715 = vpack.c.b16 %v575, %v574
  %v716 = vpack.c.b16 %v577, %v576
  %v717 = vpack.c.b16 %v579, %v578
  %v718 = vpack.c.b16 %v581, %v580
  %v719 = vpack.c.b16 %v583, %v582
  %v720 = vpack.c.b16 %v585, %v584
  %v721 = vpack.c.b16 %v587, %v586
  %v722 = vpack.c.b16 %v589, %v588
  %v723 = vpack.c.b16 %v591, %v590
  %v724 = vpack.c.b16 %v593, %v592
  %v725 = vpack.c.b16 %v595, %v594
  %v726 = vpack.c.b16 %v597, %v596
  %v727 = vpack.c.b16 %v599, %v598
  %v728 = vpack.c.b16 %v601, %v600
  %v729 = vpack.c.b16 %v603, %v602
  %v730 = vpack.c.b16 %v605, %v604
  %v731 = vpack.c.b16 %v607, %v606
  %v732 = vpack.c.b16 %v609, %v608
  %v733 = vpack.c.b16 %v611, %v610
  %v734 = vpack.c.b16 %v613, %v612
  %v735 = vpack.c.b16 %v615, %v614
  %v736 = vpack.c.b16 %v617, %v616
  %v737 = vpack.c.b16 %v619, %v618
  %v738 = vpack.c.b16 %v621, %v620
  %v739 = vpack.c.b16 %v623, %v622
  %v740 = vpack.c.b16 %v625, %v624
  %v741 = vpack.c.b16 %v627, %v626
  %v742 = vpack.c.b16 %v629, %v628
  %v743 = vpack.c.b16 %v631, %v630
  %v744 = vpack.c.b16 %v633, %v632
  %v745 = vpack.c.b16 %v635, %v634
  %v746 = vpack.c.b16 %v637, %v636
  %v747 = vpack.c.b16 %v639, %v638
  %v748 = vpack.c.b16 %v641, %v640
  %v749 = vpack.c.b16 %v643, %v642
  %v750 = vpack.c.b16 %v645, %v644
  %v751 = vpack.c.b16 %v647, %v646
  %v752 = vpack.c.b16 %v649, %v648
  %v753 = vpack.c.b16 %v651, %v650
  %v754 = vpack.c.b16 %v653, %v652
  %v755 = vpack.c.b16 %v655, %v654
  %v756 = vpack.c.b16 %v657, %v656
  %v757 = vpack.c.b16 %v659, %v658
  %v758 = vpack.c.b16 %v661, %v660
  %v759 = vpack.c.b16 %v663, %v662
  %v760 = vpack.c.b16 %v665, %v664
  %v761 = vpack.c.b16 %v667, %v666
  %v762 = vpack.c.b16 %v669, %v668
  %v763 = vpack.c.b16 %v671, %v670
  %v764 = vpack.c.b16 %v673, %v672
  %v765 = vpack.c.b16 %v675, %v674
  %v766 = vpack.c.b16 %v677, %v676
  %v767 = vpack.c.b16 %v679, %v678
  %v768 = vpack.c.b16 %v681, %v680
  %v769 = vpack.c.b16 %v683, %v682
  %v770 = vpack.c.b16 %v685, %v684
  %v771 = vpack.c.b16 %v687, %v686
  %v772 = vpack.c.b16 %v689, %v688
  %v773 = vpack.c.b16 %v691, %v690
  %v774 = vpack.c.b16 %v693, %v692
  %v775 = vpack.c.b16 %v695, %v694
  %v776 = vpack.c.b16 %v697, %v696
  %v777 = vpack.c.b16 %v699, %v698
  %v778 = vpack.c.b16 %v701, %v700
  %v779 = vpack.c.b16 %v703, %v702
  %v780 = vpack.c.b16 %v705, %v704
  %v781 = vpack.c.b16 %v707, %v706
  %v782 = vpack.c.b16 %v709, %v708
  %v783 = vpack.c.b16 %v711, %v710
  %856 = vmatprep.subr.bf16.mxu0 0
  %857 = vmatpush1.bf16.msra.mxu0 %v712
  %858 = vmatprep.subr.bf16.mxu0 0
  %859 = vmatpush1.bf16.msra.mxu0 %v713
  %860 = vmatprep.subr.bf16.mxu0 0
  %861 = vmatpush1.bf16.msra.mxu0 %v714
  %862 = vmatprep.subr.bf16.mxu0 0
  %863 = vmatpush1.bf16.msra.mxu0 %v715
  %864 = vmatprep.subr.bf16.mxu0 0
  %865 = vmatpush1.bf16.msra.mxu0 %v716
  %866 = vmatprep.subr.bf16.mxu0 0
  %867 = vmatpush1.bf16.msra.mxu0 %v717
  %868 = vmatprep.subr.bf16.mxu0 0
  %869 = vmatpush1.bf16.msra.mxu0 %v718
  %870 = vmatprep.subr.bf16.mxu0 0
  %871 = vmatpush1.bf16.msra.mxu0 %v719
  %872 = vmatprep.subr.bf16.mxu0 0
  %873 = vmatpush1.bf16.msra.mxu0 %v720
  %874 = vmatprep.subr.bf16.mxu0 0
  %875 = vmatpush1.bf16.msra.mxu0 %v721
  %876 = vmatprep.subr.bf16.mxu0 0
  %877 = vmatpush1.bf16.msra.mxu0 %v722
  %878 = vmatprep.subr.bf16.mxu0 0
  %879 = vmatpush1.bf16.msra.mxu0 %v723
  %880 = vmatprep.subr.bf16.mxu0 0
  %881 = vmatpush1.bf16.msra.mxu0 %v724
  %882 = vmatprep.subr.bf16.mxu0 0
  %883 = vmatpush1.bf16.msra.mxu0 %v725
  %884 = vmatprep.subr.bf16.mxu0 0
  %885 = vmatpush1.bf16.msra.mxu0 %v726
  %886 = vmatprep.subr.bf16.mxu0 0
  %887 = vmatpush1.bf16.msra.mxu0 %v727
  %888 = vmatprep.mubr.bf16.mxu0 %v95
  %889 = vmatmul.mubr.bf16.gmra.mrb[0].mxu0 %v68
  %v890 = vpop.f32.mrb[0].mxu0
  %v891 = vadd.f32 0.0, %v890
  %v892 = vpop.f32.mrb[0].mxu0
  %v893 = vpop.f32.mrb[0].mxu0
  %v894 = vadd.f32 0.0, %v893
  %v895 = vpop.f32.mrb[0].mxu0
  %896 = vmatprep.mubr.bf16.mxu0 %v103
  %897 = vmatmul.mubr.bf16.gmra.mrb[0].mxu0 %v69
  %v898 = vpop.f32.mrb[0].mxu0
  %v899 = vadd.f32 0.0, %v898
  %v900 = vpop.f32.mrb[0].mxu0
  %v901 = vpop.f32.mrb[0].mxu0
  %v902 = vadd.f32 0.0, %v901
  %v903 = vpop.f32.mrb[0].mxu0
  %904 = vmatprep.mubr.bf16.mxu0 %v111
  %905 = vmatmul.mubr.bf16.gmra.mrb[0].mxu0 %v70
  %v906 = vpop.f32.mrb[0].mxu0
  %v907 = vadd.f32 0.0, %v906
  %v908 = vpop.f32.mrb[0].mxu0
  %v909 = vpop.f32.mrb[0].mxu0
  %v910 = vadd.f32 0.0, %v909
  %v911 = vpop.f32.mrb[0].mxu0
  %912 = vmatprep.mubr.bf16.mxu0 %v119
  %913 = vmatmul.mubr.bf16.gmra.mrb[0].mxu0 %v71
  %v914 = vpop.f32.mrb[0].mxu0
  %v915 = vadd.f32 0.0, %v914
  %v916 = vpop.f32.mrb[0].mxu0
  %v917 = vpop.f32.mrb[0].mxu0
  %v918 = vadd.f32 0.0, %v917
  %v919 = vpop.f32.mrb[0].mxu0
  %920 = vmatprep.mubr.bf16.mxu0 %v127
  %921 = vmatmul.mubr.bf16.gmra.mrb[0].mxu0 %v72
  %v922 = vpop.f32.mrb[0].mxu0
  %v923 = vadd.f32 0.0, %v922
  %v924 = vpop.f32.mrb[0].mxu0
  %v925 = vpop.f32.mrb[0].mxu0
  %v926 = vadd.f32 0.0, %v925
  %v927 = vpop.f32.mrb[0].mxu0
  %928 = vmatprep.mubr.bf16.mxu0 %v135
  %929 = vmatmul.mubr.bf16.gmra.mrb[0].mxu0 %v73
  %v930 = vpop.f32.mrb[0].mxu0
  %v931 = vadd.f32 0.0, %v930
  %v932 = vpop.f32.mrb[0].mxu0
  %v933 = vpop.f32.mrb[0].mxu0
  %v934 = vadd.f32 0.0, %v933
  %v935 = vpop.f32.mrb[0].mxu0
  %936 = vdwg.mxu0
  %937 = vmatprep.subr.bf16.mxu0 0
  %938 = vmatpush1.bf16.msra.mxu0 %v728
  %939 = vmatprep.subr.bf16.mxu0 0
  %940 = vmatpush1.bf16.msra.mxu0 %v729
  %941 = vmatprep.subr.bf16.mxu0 0
  %942 = vmatpush1.bf16.msra.mxu0 %v730
  %943 = vmatprep.subr.bf16.mxu0 0
  %944 = vmatpush1.bf16.msra.mxu0 %v731
  %945 = vmatprep.subr.bf16.mxu0 0
  %946 = vmatpush1.bf16.msra.mxu0 %v732
  %947 = vmatprep.subr.bf16.mxu0 0
  %948 = vmatpush1.bf16.msra.mxu0 %v733
  %949 = vmatprep.subr.bf16.mxu0 0
  %950 = vmatpush1.bf16.msra.mxu0 %v734
  %951 = vmatprep.subr.bf16.mxu0 0
  %952 = vmatpush1.bf16.msra.mxu0 %v735
  %953 = vmatprep.subr.bf16.mxu0 0
  %954 = vmatpush1.bf16.msra.mxu0 %v736
  %955 = vmatprep.subr.bf16.mxu0 0
  %956 = vmatpush1.bf16.msra.mxu0 %v737
  %957 = vmatprep.subr.bf16.mxu0 0
  %958 = vmatpush1.bf16.msra.mxu0 %v738
  %959 = vmatprep.subr.bf16.mxu0 0
  %960 = vmatpush1.bf16.msra.mxu0 %v739
  %961 = vmatprep.subr.bf16.mxu0 0
  %962 = vmatpush1.bf16.msra.mxu0 %v740
  %963 = vmatprep.subr.bf16.mxu0 0
  %964 = vmatpush1.bf16.msra.mxu0 %v741
  %965 = vmatprep.subr.bf16.mxu0 0
  %966 = vmatpush1.bf16.msra.mxu0 %v742
  %967 = vmatprep.subr.bf16.mxu0 0
  %968 = vmatpush1.bf16.msra.mxu0 %v743
  %969 = vmatprep.mubr.bf16.mxu0 %v162
  %970 = vmatmul.mubr.bf16.gmra.mrb[0].mxu0 %v145
  %v971 = vpop.f32.mrb[0].mxu0
  %v972 = vadd.f32 %v891, %v971
  %v973 = vpop.f32.mrb[0].mxu0
  %v974 = vpop.f32.mrb[0].mxu0
  %v975 = vadd.f32 %v894, %v974
  %v976 = vpop.f32.mrb[0].mxu0
  %977 = vmatprep.mubr.bf16.mxu0 %v163
  %978 = vmatmul.mubr.bf16.gmra.mrb[0].mxu0 %v147
  %v979 = vpop.f32.mrb[0].mxu0
  %v980 = vadd.f32 %v899, %v979
  %v981 = vpop.f32.mrb[0].mxu0
  %v982 = vpop.f32.mrb[0].mxu0
  %v983 = vadd.f32 %v902, %v982
  %v984 = vpop.f32.mrb[0].mxu0
  %985 = vmatprep.mubr.bf16.mxu0 %v164
  %986 = vmatmul.mubr.bf16.gmra.mrb[0].mxu0 %v149
  %v987 = vpop.f32.mrb[0].mxu0
  %v988 = vadd.f32 %v907, %v987
  %v989 = vpop.f32.mrb[0].mxu0
  %v990 = vpop.f32.mrb[0].mxu0
  %v991 = vadd.f32 %v910, %v990
  %v992 = vpop.f32.mrb[0].mxu0
  %993 = vmatprep.mubr.bf16.mxu0 %v165
  %994 = vmatmul.mubr.bf16.gmra.mrb[0].mxu0 %v151
  %v995 = vpop.f32.mrb[0].mxu0
  %v996 = vadd.f32 %v915, %v995
  %v997 = vpop.f32.mrb[0].mxu0
  %v998 = vpop.f32.mrb[0].mxu0
  %v999 = vadd.f32 %v918, %v998
  %v1000 = vpop.f32.mrb[0].mxu0
  %1001 = vmatprep.mubr.bf16.mxu0 %v166
  %1002 = vmatmul.mubr.bf16.gmra.mrb[0].mxu0 %v153
  %v1003 = vpop.f32.mrb[0].mxu0
  %v1004 = vadd.f32 %v923, %v1003
  %v1005 = vpop.f32.mrb[0].mxu0
  %v1006 = vpop.f32.mrb[0].mxu0
  %v1007 = vadd.f32 %v926, %v1006
  %v1008 = vpop.f32.mrb[0].mxu0
  %1009 = vmatprep.mubr.bf16.mxu0 %v167
  %1010 = vmatmul.mubr.bf16.gmra.mrb[0].mxu0 %v155
  %v1011 = vpop.f32.mrb[0].mxu0
  %v1012 = vadd.f32 %v931, %v1011
  %v1013 = vpop.f32.mrb[0].mxu0
  %v1014 = vpop.f32.mrb[0].mxu0
  %v1015 = vadd.f32 %v934, %v1014
  %v1016 = vpop.f32.mrb[0].mxu0
  %1017 = vdwg.mxu0
  %1018 = vmatprep.subr.bf16.mxu0 0
  %1019 = vmatpush1.bf16.msra.mxu0 %v744
  %1020 = vmatprep.subr.bf16.mxu0 0
  %1021 = vmatpush1.bf16.msra.mxu0 %v745
  %1022 = vmatprep.subr.bf16.mxu0 0
  %1023 = vmatpush1.bf16.msra.mxu0 %v746
  %1024 = vmatprep.subr.bf16.mxu0 0
  %1025 = vmatpush1.bf16.msra.mxu0 %v747
  %1026 = vmatprep.subr.bf16.mxu0 0
  %1027 = vmatpush1.bf16.msra.mxu0 %v748
  %1028 = vmatprep.subr.bf16.mxu0 0
  %1029 = vmatpush1.bf16.msra.mxu0 %v749
  %1030 = vmatprep.subr.bf16.mxu0 0
  %1031 = vmatpush1.bf16.msra.mxu0 %v750
  %1032 = vmatprep.subr.bf16.mxu0 0
  %1033 = vmatpush1.bf16.msra.mxu0 %v751
  %1034 = vmatprep.subr.bf16.mxu0 0
  %1035 = vmatpush1.bf16.msra.mxu0 %v752
  %1036 = vmatprep.subr.bf16.mxu0 0
  %1037 = vmatpush1.bf16.msra.mxu0 %v753
  %1038 = vmatprep.subr.bf16.mxu0 0
  %1039 = vmatpush1.bf16.msra.mxu0 %v754
  %1040 = vmatprep.subr.bf16.mxu0 0
  %1041 = vmatpush1.bf16.msra.mxu0 %v755
  %1042 = vmatprep.subr.bf16.mxu0 0
  %1043 = vmatpush1.bf16.msra.mxu0 %v756
  %1044 = vmatprep.subr.bf16.mxu0 0
  %1045 = vmatpush1.bf16.msra.mxu0 %v757
  %1046 = vmatprep.subr.bf16.mxu0 0
  %1047 = vmatpush1.bf16.msra.mxu0 %v758
  %1048 = vmatprep.subr.bf16.mxu0 0
  %1049 = vmatpush1.bf16.msra.mxu0 %v759
  %1050 = vmatprep.mubr.bf16.mxu0 %v237
  %1051 = vmatmul.mubr.bf16.gmra.mrb[0].mxu0 %v188
  %v1052 = vpop.f32.mrb[0].mxu0
  %v1053 = vadd.f32 %v972, %v1052
  %v1054 = vpop.f32.mrb[0].mxu0
  %v1055 = vpop.f32.mrb[0].mxu0
  %v1056 = vadd.f32 %v975, %v1055
  %v1057 = vpop.f32.mrb[0].mxu0
  %1058 = vmatprep.mubr.bf16.mxu0 %v239
  %1059 = vmatmul.mubr.bf16.gmra.mrb[0].mxu0 %v196
  %v1060 = vpop.f32.mrb[0].mxu0
  %v1061 = vadd.f32 %v980, %v1060
  %v1062 = vpop.f32.mrb[0].mxu0
  %v1063 = vpop.f32.mrb[0].mxu0
  %v1064 = vadd.f32 %v983, %v1063
  %v1065 = vpop.f32.mrb[0].mxu0
  %1066 = vmatprep.mubr.bf16.mxu0 %v241
  %1067 = vmatmul.mubr.bf16.gmra.mrb[0].mxu0 %v204
  %v1068 = vpop.f32.mrb[0].mxu0
  %v1069 = vadd.f32 %v988, %v1068
  %v1070 = vpop.f32.mrb[0].mxu0
  %v1071 = vpop.f32.mrb[0].mxu0
  %v1072 = vadd.f32 %v991, %v1071
  %v1073 = vpop.f32.mrb[0].mxu0
  %1074 = vmatprep.mubr.bf16.mxu0 %v243
  %1075 = vmatmul.mubr.bf16.gmra.mrb[0].mxu0 %v212
  %v1076 = vpop.f32.mrb[0].mxu0
  %v1077 = vadd.f32 %v996, %v1076
  %v1078 = vpop.f32.mrb[0].mxu0
  %v1079 = vpop.f32.mrb[0].mxu0
  %v1080 = vadd.f32 %v999, %v1079
  %v1081 = vpop.f32.mrb[0].mxu0
  %1082 = vmatprep.mubr.bf16.mxu0 %v245
  %1083 = vmatmul.mubr.bf16.gmra.mrb[0].mxu0 %v220
  %v1084 = vpop.f32.mrb[0].mxu0
  %v1085 = vadd.f32 %v1004, %v1084
  %v1086 = vpop.f32.mrb[0].mxu0
  %v1087 = vpop.f32.mrb[0].mxu0
  %v1088 = vadd.f32 %v1007, %v1087
  %v1089 = vpop.f32.mrb[0].mxu0
  %1090 = vmatprep.mubr.bf16.mxu0 %v247
  %1091 = vmatmul.mubr.bf16.gmra.mrb[0].mxu0 %v228
  %v1092 = vpop.f32.mrb[0].mxu0
  %v1093 = vadd.f32 %v1012, %v1092
  %v1094 = vpop.f32.mrb[0].mxu0
  %v1095 = vpop.f32.mrb[0].mxu0
  %v1096 = vadd.f32 %v1015, %v1095
  %v1097 = vpop.f32.mrb[0].mxu0
  %1098 = vdwg.mxu0
  %1099 = vmatprep.subr.bf16.mxu0 0
  %1100 = vmatpush1.bf16.msra.mxu0 %v760
  %1101 = vmatprep.subr.bf16.mxu0 0
  %1102 = vmatpush1.bf16.msra.mxu0 %v761
  %1103 = vmatprep.subr.bf16.mxu0 0
  %1104 = vmatpush1.bf16.msra.mxu0 %v762
  %1105 = vmatprep.subr.bf16.mxu0 0
  %1106 = vmatpush1.bf16.msra.mxu0 %v763
  %1107 = vmatprep.subr.bf16.mxu0 0
  %1108 = vmatpush1.bf16.msra.mxu0 %v764
  %1109 = vmatprep.subr.bf16.mxu0 0
  %1110 = vmatpush1.bf16.msra.mxu0 %v765
  %1111 = vmatprep.subr.bf16.mxu0 0
  %1112 = vmatpush1.bf16.msra.mxu0 %v766
  %1113 = vmatprep.subr.bf16.mxu0 0
  %1114 = vmatpush1.bf16.msra.mxu0 %v767
  %1115 = vmatprep.subr.bf16.mxu0 0
  %1116 = vmatpush1.bf16.msra.mxu0 %v768
  %1117 = vmatprep.subr.bf16.mxu0 0
  %1118 = vmatpush1.bf16.msra.mxu0 %v769
  %1119 = vmatprep.subr.bf16.mxu0 0
  %1120 = vmatpush1.bf16.msra.mxu0 %v770
  %1121 = vmatprep.subr.bf16.mxu0 0
  %1122 = vmatpush1.bf16.msra.mxu0 %v771
  %1123 = vmatprep.subr.bf16.mxu0 0
  %1124 = vmatpush1.bf16.msra.mxu0 %v772
  %1125 = vmatprep.subr.bf16.mxu0 0
  %1126 = vmatpush1.bf16.msra.mxu0 %v773
  %1127 = vmatprep.subr.bf16.mxu0 0
  %1128 = vmatpush1.bf16.msra.mxu0 %v774
  %1129 = vmatprep.subr.bf16.mxu0 0
  %1130 = vmatpush1.bf16.msra.mxu0 %v775
  %1131 = vmatprep.mubr.bf16.mxu0 %v103
  %1132 = vmatmul.mubr.bf16.gmra.mrb[0].mxu0 %v69
  %v1133 = vpop.f32.mrb[0].mxu0
  %v1134 = vadd.f32 %v1053, %v1133
  %v1135 = vpop.f32.mrb[0].mxu0
  %v1136 = vpop.f32.mrb[0].mxu0
  %v1137 = vadd.f32 %v1056, %v1136
  %v1138 = vpop.f32.mrb[0].mxu0
  %1139 = vmatprep.mubr.bf16.mxu0 %v111
  %1140 = vmatmul.mubr.bf16.gmra.mrb[0].mxu0 %v70
  %v1141 = vpop.f32.mrb[0].mxu0
  %v1142 = vadd.f32 %v1061, %v1141
  %v1143 = vpop.f32.mrb[0].mxu0
  %v1144 = vpop.f32.mrb[0].mxu0
  %v1145 = vadd.f32 %v1064, %v1144
  %v1146 = vpop.f32.mrb[0].mxu0
  %1147 = vmatprep.mubr.bf16.mxu0 %v119
  %1148 = vmatmul.mubr.bf16.gmra.mrb[0].mxu0 %v71
  %v1149 = vpop.f32.mrb[0].mxu0
  %v1150 = vadd.f32 %v1069, %v1149
  %v1151 = vpop.f32.mrb[0].mxu0
  %v1152 = vpop.f32.mrb[0].mxu0
  %v1153 = vadd.f32 %v1072, %v1152
  %v1154 = vpop.f32.mrb[0].mxu0
  %1155 = vmatprep.mubr.bf16.mxu0 %v127
  %1156 = vmatmul.mubr.bf16.gmra.mrb[0].mxu0 %v72
  %v1157 = vpop.f32.mrb[0].mxu0
  %v1158 = vadd.f32 %v1077, %v1157
  %v1159 = vpop.f32.mrb[0].mxu0
  %v1160 = vpop.f32.mrb[0].mxu0
  %v1161 = vadd.f32 %v1080, %v1160
  %v1162 = vpop.f32.mrb[0].mxu0
  %1163 = vmatprep.mubr.bf16.mxu0 %v263
  %1164 = vmatmul.mubr.bf16.gmra.mrb[0].mxu0 %v73
  %v1165 = vpop.f32.mrb[0].mxu0
  %v1166 = vadd.f32 %v1085, %v1165
  %v1167 = vpop.f32.mrb[0].mxu0
  %v1168 = vpop.f32.mrb[0].mxu0
  %v1169 = vadd.f32 %v1088, %v1168
  %v1170 = vpop.f32.mrb[0].mxu0
  %1171 = vmatprep.mubr.bf16.mxu0 %v271
  %1172 = vmatmul.mubr.bf16.gmra.mrb[0].mxu0 %v254
  %v1173 = vpop.f32.mrb[0].mxu0
  %v1174 = vadd.f32 %v1093, %v1173
  %v1175 = vpop.f32.mrb[0].mxu0
  %v1176 = vpop.f32.mrb[0].mxu0
  %v1177 = vadd.f32 %v1096, %v1176
  %v1178 = vpop.f32.mrb[0].mxu0
  %1179 = vdwg.mxu0
  %1180 = vmatprep.subr.bf16.mxu0 0
  %1181 = vmatpush1.bf16.msra.mxu0 %v776
  %1182 = vmatprep.subr.bf16.mxu0 0
  %1183 = vmatpush1.bf16.msra.mxu0 %v777
  %1184 = vmatprep.subr.bf16.mxu0 0
  %1185 = vmatpush1.bf16.msra.mxu0 %v778
  %1186 = vmatprep.subr.bf16.mxu0 0
  %1187 = vmatpush1.bf16.msra.mxu0 %v779
  %1188 = vmatprep.subr.bf16.mxu0 0
  %1189 = vmatpush1.bf16.msra.mxu0 %v780
  %1190 = vmatprep.subr.bf16.mxu0 0
  %1191 = vmatpush1.bf16.msra.mxu0 %v781
  %1192 = vmatprep.subr.bf16.mxu0 0
  %1193 = vmatpush1.bf16.msra.mxu0 %v782
  %1194 = vmatprep.subr.bf16.mxu0 0
  %1195 = vmatpush1.bf16.msra.mxu0 %v783
  %1196 = vmatprep.subr.bf16.mxu0 0
  %1197 = vmatpush1.bf16.msra.mxu0 0
  %1198 = vmatprep.subr.bf16.mxu0 0
  %1199 = vmatpush1.bf16.msra.mxu0 0
  %1200 = vmatprep.subr.bf16.mxu0 0
  %1201 = vmatpush1.bf16.msra.mxu0 0
  %1202 = vmatprep.subr.bf16.mxu0 0
  %1203 = vmatpush1.bf16.msra.mxu0 0
  %1204 = vmatprep.subr.bf16.mxu0 0
  %1205 = vmatpush1.bf16.msra.mxu0 0
  %1206 = vmatprep.subr.bf16.mxu0 0
  %1207 = vmatpush1.bf16.msra.mxu0 0
  %1208 = vmatprep.subr.bf16.mxu0 0
  %1209 = vmatpush1.bf16.msra.mxu0 0
  %1210 = vmatprep.subr.bf16.mxu0 0
  %1211 = vmatpush1.bf16.msra.mxu0 0
  %1212 = vmatprep.mubr.bf16.mxu0 0
  %1213 = vmatmul.mubr.bf16.gmra.mrb[0].mxu0 %v147
  %v1214 = vpop.f32.mrb[0].mxu0
  %v1215 = vadd.f32 %v1134, %v1214
  %v1216 = vpop.f32.mrb[0].mxu0
  %v1217 = vpop.f32.mrb[0].mxu0
  %v1218 = vadd.f32 %v1137, %v1217
  %v1219 = vpop.f32.mrb[0].mxu0
  %1220 = vmatprep.mubr.bf16.mxu0 0
  %1221 = vmatmul.mubr.bf16.gmra.mrb[0].mxu0 %v149
  %v1222 = vpop.f32.mrb[0].mxu0
  %v1223 = vadd.f32 %v1142, %v1222
  %v1224 = vpop.f32.mrb[0].mxu0
  %v1225 = vpop.f32.mrb[0].mxu0
  %v1226 = vadd.f32 %v1145, %v1225
  %v1227 = vpop.f32.mrb[0].mxu0
  %1228 = vmatprep.mubr.bf16.mxu0 0
  %1229 = vmatmul.mubr.bf16.gmra.mrb[0].mxu0 %v151
  %v1230 = vpop.f32.mrb[0].mxu0
  %v1231 = vadd.f32 %v1150, %v1230
  %v1232 = vpop.f32.mrb[0].mxu0
  %v1233 = vpop.f32.mrb[0].mxu0
  %v1234 = vadd.f32 %v1153, %v1233
  %v1235 = vpop.f32.mrb[0].mxu0
  %1236 = vmatprep.mubr.bf16.mxu0 0
  %1237 = vmatmul.mubr.bf16.gmra.mrb[0].mxu0 %v153
  %v1238 = vpop.f32.mrb[0].mxu0
  %v1239 = vadd.f32 %v1158, %v1238
  %v1240 = vpop.f32.mrb[0].mxu0
  %v1241 = vpop.f32.mrb[0].mxu0
  %v1242 = vadd.f32 %v1161, %v1241
  %v1243 = vpop.f32.mrb[0].mxu0
  %1244 = vmatprep.mubr.bf16.mxu0 0
  %1245 = vmatmul.mubr.bf16.gmra.mrb[0].mxu0 %v275
  %v1246 = vpop.f32.mrb[0].mxu0
  %v1247 = vadd.f32 %v1166, %v1246
  %v1248 = vpop.f32.mrb[0].mxu0
  %v1249 = vpop.f32.mrb[0].mxu0
  %v1250 = vadd.f32 %v1169, %v1249
  %v1251 = vpop.f32.mrb[0].mxu0
  %1252 = vmatprep.mubr.bf16.mxu0 0
  %1253 = vmatmul.mubr.bf16.gmra.mrb[0].mxu0 %v277
  %v1254 = vpop.f32.mrb[0].mxu0
  %v1255 = vadd.f32 %v1174, %v1254
  %v1256 = vpop.f32.mrb[0].mxu0
  %v1257 = vpop.f32.mrb[0].mxu0
  %v1258 = vadd.f32 %v1177, %v1257
  %v1259 = vpop.f32.mrb[0].mxu0
  %1260 = vdwg.mxu0
  %v1261 = vld [vmem:[%s2] sm:$0x1]
  %v1263 = vlaneseq
  %v1264 = vshrl.u32 %v1263, 7
  %v1265 = vsub.s32 0, %v1264
  %v1266 = vrot.slane %v1261, %v1265
  %v1268 = vmul.f32 %v1215, %v1266
  %v1269 = vmul.f32 %v1218, %v1266
  %v1270 = vmul.f32 %v1223, %v1266
  %v1271 = vmul.f32 %v1226, %v1266
  %v1272 = vmul.f32 %v1231, %v1266
  %v1273 = vmul.f32 %v1234, %v1266
  %v1274 = vmul.f32 %v1239, %v1266
  %v1275 = vmul.f32 %v1242, %v1266
  %v1276 = vmul.f32 %v1247, %v1266
  %v1277 = vmul.f32 %v1250, %v1266
  %v1278 = vmul.f32 %v1255, %v1266
  %v1279 = vmul.f32 %v1258, %v1266
  %v1280 = vld [vmem:[%s3] sm:$0x1]
  %v1282 = vlaneseq
  %v1283 = vshrl.u32 %v1282, 7
  %v1284 = vsub.s32 0, %v1283
  %v1285 = vrot.slane %v1280, %v1284
  %v1287 = vadd.f32 %v1268, %v1285
  %v1288 = vadd.f32 %v1269, %v1285
  %v1289 = vadd.f32 %v1270, %v1285
  %v1290 = vadd.f32 %v1271, %v1285
  %v1291 = vadd.f32 %v1272, %v1285
  %v1292 = vadd.f32 %v1273, %v1285
  %v1293 = vadd.f32 %v1274, %v1285
  %v1294 = vadd.f32 %v1275, %v1285
  %v1295 = vadd.f32 %v1276, %v1285
  %v1296 = vadd.f32 %v1277, %v1285
  %v1297 = vadd.f32 %v1278, %v1285
  %v1298 = vadd.f32 %v1279, %v1285
  %v1299 = vld [vmem:[%s5] sm:$0xf]
  %v1300 = vld [vmem:[%s5 + $0x4] sm:$0xf]
  %v1301 = vld [vmem:[%s5 + $0x8] sm:$0xf]
  %v1302 = vld [vmem:[%s5 + $0xc] sm:$0xf]
  %v1303 = vld [vmem:[%s5 + $0x10] sm:$0xf]
  %v1304 = vld [vmem:[%s5 + $0x14] sm:$0xf]
  %v1305 = vld [vmem:[%s5 + $0x18] sm:$0xf]
  %v1306 = vld [vmem:[%s5 + $0x1c] sm:$0xf]
  %v1307 = vld [vmem:[%s5 + $0x20] sm:$0xf]
  %v1308 = vld [vmem:[%s5 + $0x24] sm:$0xf]
  %v1309 = vld [vmem:[%s5 + $0x28] sm:$0xf]
  %v1310 = vld [vmem:[%s5 + $0x2c] sm:$0xf]
  %v1311 = vunpack.c.l.bf16 %v1299
  %v1312 = vunpack.c.l.bf16 %v1300
  %v1313 = vunpack.c.l.bf16 %v1301
  %v1314 = vunpack.c.l.bf16 %v1302
  %v1315 = vunpack.c.l.bf16 %v1303
  %v1316 = vunpack.c.l.bf16 %v1304
  %v1317 = vunpack.c.l.bf16 %v1305
  %v1318 = vunpack.c.l.bf16 %v1306
  %v1319 = vunpack.c.l.bf16 %v1307
  %v1320 = vunpack.c.l.bf16 %v1308
  %v1321 = vunpack.c.l.bf16 %v1309
  %v1322 = vunpack.c.l.bf16 %v1310
  %v1323 = vadd.f32 %v1287, %v1311
  %v1324 = vadd.f32 %v1288, %v1312
  %v1325 = vadd.f32 %v1289, %v1313
  %v1326 = vadd.f32 %v1290, %v1314
  %v1327 = vadd.f32 %v1291, %v1315
  %v1328 = vadd.f32 %v1292, %v1316
  %v1329 = vadd.f32 %v1293, %v1317
  %v1330 = vadd.f32 %v1294, %v1318
  %v1331 = vadd.f32 %v1295, %v1319
  %v1332 = vadd.f32 %v1296, %v1320
  %v1333 = vadd.f32 %v1297, %v1321
  %v1334 = vadd.f32 %v1298, %v1322
  %v1335 = vmax.f32 %v1323, 0.0
  %v1336 = vmax.f32 %v1324, 0.0
  %v1337 = vmax.f32 %v1325, 0.0
  %v1338 = vmax.f32 %v1326, 0.0
  %v1339 = vmax.f32 %v1327, 0.0
  %v1340 = vmax.f32 %v1328, 0.0
  %v1341 = vmax.f32 %v1329, 0.0
  %v1342 = vmax.f32 %v1330, 0.0
  %v1343 = vmax.f32 %v1331, 0.0
  %v1344 = vmax.f32 %v1332, 0.0
  %v1345 = vmax.f32 %v1333, 0.0
  %v1346 = vmax.f32 %v1334, 0.0
  %v1347 = vld [vmem:[%s4] sm:$0xff]
  %v1348 = vld [vmem:[%s4 + $0x8] sm:$0xff]
  %v1349 = vld [vmem:[%s4 + $0x10] sm:$0xff]
  %v1350 = vld [vmem:[%s4 + $0x18] sm:$0xff]
  %v1351 = vld [vmem:[%s4 + $0x20] sm:$0xff]
  %v1352 = vld [vmem:[%s4 + $0x28] sm:$0xff]
  %v1353 = vld [vmem:[%s4 + $0x30] sm:$0xff]
  %v1354 = vld [vmem:[%s4 + $0x38] sm:$0xff]
  %v1355 = vld [vmem:[%s4 + $0x40] sm:$0xff]
  %v1356 = vld [vmem:[%s4 + $0x48] sm:$0xff]
  %v1357 = vld [vmem:[%s4 + $0x50] sm:$0xff]
  %v1358 = vld [vmem:[%s4 + $0x58] sm:$0xff]
  %1360 = vset.pattern.permute.xlu0 0
  %1361 = vperm.xlu0 %1360, %v1347
  %v1362 = vpop.permute.xlu0 %1361
  %1365 = vset.pattern.permute.xlu0 0
  %1366 = vperm.xlu0 %1365, %v1348
  %v1367 = vpop.permute.xlu0 %1366
  %1370 = vset.pattern.permute.xlu0 0
  %1371 = vperm.xlu0 %1370, %v1349
  %v1372 = vpop.permute.xlu0 %1371
  %1375 = vset.pattern.permute.xlu0 0
  %1376 = vperm.xlu0 %1375, %v1350
  %v1377 = vpop.permute.xlu0 %1376
  %1380 = vset.pattern.permute.xlu0 0
  %1381 = vperm.xlu0 %1380, %v1351
  %v1382 = vpop.permute.xlu0 %1381
  %1385 = vset.pattern.permute.xlu0 0
  %1386 = vperm.xlu0 %1385, %v1352
  %v1387 = vpop.permute.xlu0 %1386
  %1390 = vset.pattern.permute.xlu0 0
  %1391 = vperm.xlu0 %1390, %v1353
  %v1392 = vpop.permute.xlu0 %1391
  %1395 = vset.pattern.permute.xlu0 0
  %1396 = vperm.xlu0 %1395, %v1354
  %v1397 = vpop.permute.xlu0 %1396
  %1400 = vset.pattern.permute.xlu0 0
  %1401 = vperm.xlu0 %1400, %v1355
  %v1402 = vpop.permute.xlu0 %1401
  %1405 = vset.pattern.permute.xlu0 0
  %1406 = vperm.xlu0 %1405, %v1356
  %v1407 = vpop.permute.xlu0 %1406
  %1410 = vset.pattern.permute.xlu0 0
  %1411 = vperm.xlu0 %1410, %v1357
  %v1412 = vpop.permute.xlu0 %1411
  %1415 = vset.pattern.permute.xlu0 0
  %1416 = vperm.xlu0 %1415, %v1358
  %v1417 = vpop.permute.xlu0 %1416
  %v1419 = vmul.f32 %v1335, %v1362
  %v1420 = vmul.f32 %v1336, %v1367
  %v1421 = vmul.f32 %v1337, %v1372
  %v1422 = vmul.f32 %v1338, %v1377
  %v1423 = vmul.f32 %v1339, %v1382
  %v1424 = vmul.f32 %v1340, %v1387
  %v1425 = vmul.f32 %v1341, %v1392
  %v1426 = vmul.f32 %v1342, %v1397
  %v1427 = vmul.f32 %v1343, %v1402
  %v1428 = vmul.f32 %v1344, %v1407
  %v1429 = vmul.f32 %v1345, %v1412
  %v1430 = vmul.f32 %v1346, %v1417
  %v1431 = vpack.c.bf16 %v1420, %v1419
  %v1432 = vpack.c.bf16 %v1422, %v1421
  %v1433 = vpack.c.bf16 %v1424, %v1423
  %v1434 = vpack.c.bf16 %v1426, %v1425
  %v1435 = vpack.c.bf16 %v1428, %v1427
  %v1436 = vpack.c.bf16 %v1430, %v1429
  %v1443 = vunpack.c.l.b16 %v1431
  %v1444 = vunpack.c.h.b16 %v1431
  %v1445 = vunpack.c.l.b16 %v1432
  %v1446 = vunpack.c.h.b16 %v1432
  %v1447 = vunpack.c.l.b16 %v1433
  %v1448 = vunpack.c.h.b16 %v1433
  %v1449 = vunpack.c.l.b16 %v1434
  %v1450 = vunpack.c.h.b16 %v1434
  %v1451 = vunpack.c.l.b16 %v1435
  %v1452 = vunpack.c.h.b16 %v1435
  %v1453 = vunpack.c.l.b16 %v1436
  %v1454 = vunpack.c.h.b16 %v1436
  %v1455 = vpack.c.b16 %v1443, %v1443
  %v1456 = vpack.c.b16 %v1444, %v1444
  %v1457 = vpack.c.b16 %v1445, %v1445
  %v1458 = vpack.c.b16 %v1446, %v1446
  %v1459 = vpack.c.b16 %v1447, %v1447
  %v1460 = vpack.c.b16 %v1448, %v1448
  %v1461 = vpack.c.b16 %v1449, %v1449
  %v1462 = vpack.c.b16 %v1450, %v1450
  %v1463 = vpack.c.b16 %v1451, %v1451
  %v1464 = vpack.c.b16 %v1452, %v1452
  %v1465 = vpack.c.b16 %v1453, %v1453
  %v1466 = vpack.c.b16 %v1454, %v1454
  %1479 = vst [vmem:[%s6] sm:$0xf] %v1455
  %1480 = vst [vmem:[%s6 + $0x4] sm:$0xf] %v1456
  %1481 = vst [vmem:[%s6 + $0x8] sm:$0xf] %v1457
  %1482 = vst [vmem:[%s6 + $0xc] sm:$0xf] %v1458
  %1483 = vst [vmem:[%s6 + $0x10] sm:$0xf] %v1459
  %1484 = vst [vmem:[%s6 + $0x14] sm:$0xf] %v1460
  %1485 = vst [vmem:[%s6 + $0x18] sm:$0xf] %v1461
  %1486 = vst [vmem:[%s6 + $0x1c] sm:$0xf] %v1462
  %1487 = vst [vmem:[%s6 + $0x20] sm:$0xf] %v1463
  %1488 = vst [vmem:[%s6 + $0x24] sm:$0xf] %v1464
  %1489 = vst [vmem:[%s6 + $0x28] sm:$0xf] %v1465
  %1490 = vst [vmem:[%s6 + $0x2c] sm:$0xf] %v1466
  // Predicated region
  $region26: #{resnet_embedding_forward.15} parent=0 // pred_check
    _
  $region27: #{resnet_embedding_forward.15} parent=0 // pred_check_branch
    %1492 = sbr.rel (0) target = $region29
  $region28: #{resnet_embedding_forward.15} parent=0 // pred_region
    _
  $region29: #{resnet_embedding_forward.15} parent=0 // pred_fallthru
    _
  // Predicated region
  $region30: #{resnet_embedding_forward.15} parent=0 // pred_check
    _
  $region31: #{resnet_embedding_forward.15} parent=0 // pred_check_branch
    %1494 = sbr.rel (0) target = $region33
  $region32: #{resnet_embedding_forward.15} parent=0 // pred_region
    _
  $region33: #{resnet_embedding_forward.15} parent=0 // pred_fallthru
    _

// kernel: resnet_embedding_forward.16
$region0: #{resnet_embedding_forward.16}
  #allocation0 [shape = 'u32[]', space=smem, size = 0x4, offset = 0x4, fixed_abs, tag = 'smem constant byte address 0x4 - core index']
  #allocation1 [shape = 'u32[144,128]{1,0:T(1,128)}', space=vmem, size = 0x12000, scoped, tag = 'internal scratch']
  %s0 = inlined_call_operand.vmem [shape: bf16[8,1152], index: 0, kind: input, shape index: {}]
  %s1 = inlined_call_operand.vmem [shape: bf16[1152,128], index: 1, kind: input, shape index: {}]
  %s2 = inlined_call_operand.vmem [shape: f32[1,128], index: 2, kind: input, shape index: {}]
  %s3 = inlined_call_operand.vmem [shape: f32[1,128], index: 3, kind: input, shape index: {}]
  %s4 = inlined_call_operand.vmem [shape: bf16[128,128], index: 4, kind: input, shape index: {}]
  %s5 = inlined_call_operand.vmem [shape: f32[1,128], index: 5, kind: input, shape index: {}]
  %s6 = inlined_call_operand.vmem [shape: f32[1,128], index: 6, kind: input, shape index: {}]
  %s7 = inlined_call_operand.vmem [shape: bf16[8,128], index: 7, kind: output, shape index: {0}]
  %s8 = inlined_call_operand.vmem [shape: bf16[8,128], index: 8, kind: output, shape index: {1}]
  %9 = xla_tuple %s7, %s8
  %s10 = sld [smem:[#allocation0]]
  $region46: #{resnet_embedding_forward.16} parent=0
    _
  %s12 = ssub.s32 1, %s10
  %s13 = scalar_select 0, %s12, %s10
  // Predicated region
  $region2: #{resnet_embedding_forward.16} parent=0 // pred_check
    _
  $region3: #{resnet_embedding_forward.16} parent=0 // pred_check_branch
    %15 = sbr.rel (0) target = $region5
  $region4: #{resnet_embedding_forward.16} parent=0 // pred_region
    _
  $region5: #{resnet_embedding_forward.16} parent=0 // pred_fallthru
    _
  // Predicated region
  $region6: #{resnet_embedding_forward.16} parent=0 // pred_check
    _
  $region7: #{resnet_embedding_forward.16} parent=0 // pred_check_branch
    %17 = sbr.rel (0) target = $region9
  $region8: #{resnet_embedding_forward.16} parent=0 // pred_region
    _
  $region9: #{resnet_embedding_forward.16} parent=0 // pred_fallthru
    _
  // Predicated region
  $region10: #{resnet_embedding_forward.16} parent=0 // pred_check
    _
  $region11: #{resnet_embedding_forward.16} parent=0 // pred_check_branch
    %19 = sbr.rel (0) target = $region13
  $region12: #{resnet_embedding_forward.16} parent=0 // pred_region
    _
  $region13: #{resnet_embedding_forward.16} parent=0 // pred_fallthru
    _
  // Predicated region
  $region14: #{resnet_embedding_forward.16} parent=0 // pred_check
    _
  $region15: #{resnet_embedding_forward.16} parent=0 // pred_check_branch
    %21 = sbr.rel (0) target = $region17
  $region16: #{resnet_embedding_forward.16} parent=0 // pred_region
    _
  $region17: #{resnet_embedding_forward.16} parent=0 // pred_fallthru
    _
  // Predicated region
  $region18: #{resnet_embedding_forward.16} parent=0 // pred_check
    _
  $region19: #{resnet_embedding_forward.16} parent=0 // pred_check_branch
    %23 = sbr.rel (0) target = $region21
  $region20: #{resnet_embedding_forward.16} parent=0 // pred_region
    _
  $region21: #{resnet_embedding_forward.16} parent=0 // pred_fallthru
    _
  // Predicated region
  $region22: #{resnet_embedding_forward.16} parent=0 // pred_check
    _
  $region23: #{resnet_embedding_forward.16} parent=0 // pred_check_branch
    %25 = sbr.rel (0) target = $region25
  $region24: #{resnet_embedding_forward.16} parent=0 // pred_region
    _
  $region25: #{resnet_embedding_forward.16} parent=0 // pred_fallthru
    _
  // Predicated region
  $region26: #{resnet_embedding_forward.16} parent=0 // pred_check
    _
  $region27: #{resnet_embedding_forward.16} parent=0 // pred_check_branch
    %27 = sbr.rel (0) target = $region29
  $region28: #{resnet_embedding_forward.16} parent=0 // pred_region
    _
  $region29: #{resnet_embedding_forward.16} parent=0 // pred_fallthru
    _
  %v29 = vld [vmem:[%s0] sm:$0xff]
  %v30 = vld [vmem:[%s0 + $0x8] sm:$0xff]
  %v31 = vld [vmem:[%s0 + $0x10] sm:$0xff]
  %v32 = vld [vmem:[%s0 + $0x18] sm:$0xff]
  %v33 = vld [vmem:[%s0 + $0x20] sm:$0xf]
  %v34 = vld [vmem:[%s1] sm:$0xf]
  %v35 = vld [vmem:[%s1 + $0x4] sm:$0xf]
  %v36 = vld [vmem:[%s1 + $0x8] sm:$0xf]
  %v37 = vld [vmem:[%s1 + $0xc] sm:$0xf]
  %v38 = vld [vmem:[%s1 + $0x10] sm:$0xf]
  %v39 = vld [vmem:[%s1 + $0x14] sm:$0xf]
  %v40 = vld [vmem:[%s1 + $0x18] sm:$0xf]
  %v41 = vld [vmem:[%s1 + $0x1c] sm:$0xf]
  %v42 = vld [vmem:[%s1 + $0x20] sm:$0xf]
  %v43 = vld [vmem:[%s1 + $0x24] sm:$0xf]
  %v44 = vld [vmem:[%s1 + $0x28] sm:$0xf]
  %v45 = vld [vmem:[%s1 + $0x2c] sm:$0xf]
  %v46 = vld [vmem:[%s1 + $0x30] sm:$0xf]
  %v47 = vld [vmem:[%s1 + $0x34] sm:$0xf]
  %v48 = vld [vmem:[%s1 + $0x38] sm:$0xf]
  %v49 = vld [vmem:[%s1 + $0x3c] sm:$0xf]
  %v50 = vld [vmem:[%s1 + $0x40] sm:$0xf]
  %v51 = vld [vmem:[%s1 + $0x44] sm:$0xf]
  %v52 = vld [vmem:[%s1 + $0x48] sm:$0xf]
  %v53 = vld [vmem:[%s1 + $0x4c] sm:$0xf]
  %v54 = vld [vmem:[%s1 + $0x50] sm:$0xf]
  %v55 = vld [vmem:[%s1 + $0x54] sm:$0xf]
  %v56 = vld [vmem:[%s1 + $0x58] sm:$0xf]
  %v57 = vld [vmem:[%s1 + $0x5c] sm:$0xf]
  %v58 = vld [vmem:[%s1 + $0x60] sm:$0xf]
  %v59 = vld [vmem:[%s1 + $0x64] sm:$0xf]
  %v60 = vld [vmem:[%s1 + $0x68] sm:$0xf]
  %v61 = vld [vmem:[%s1 + $0x6c] sm:$0xf]
  %v62 = vld [vmem:[%s1 + $0x70] sm:$0xf]
  %v63 = vld [vmem:[%s1 + $0x74] sm:$0xf]
  %v64 = vld [vmem:[%s1 + $0x78] sm:$0xf]
  %v65 = vld [vmem:[%s1 + $0x7c] sm:$0xf]
  %v66 = vld [vmem:[%s1 + $0x80] sm:$0xf]
  %v67 = vld [vmem:[%s1 + $0x84] sm:$0xf]
  %v68 = vld [vmem:[%s1 + $0x88] sm:$0xf]
  %v69 = vld [vmem:[%s1 + $0x8c] sm:$0xf]
  %v70 = vld [vmem:[%s1 + $0x90] sm:$0xf]
  %v71 = vld [vmem:[%s1 + $0x94] sm:$0xf]
  %v72 = vld [vmem:[%s1 + $0x98] sm:$0xf]
  %v73 = vld [vmem:[%s1 + $0x9c] sm:$0xf]
  %v74 = vld [vmem:[%s1 + $0xa0] sm:$0xf]
  %v75 = vld [vmem:[%s1 + $0xa4] sm:$0xf]
  %v76 = vld [vmem:[%s1 + $0xa8] sm:$0xf]
  %v77 = vld [vmem:[%s1 + $0xac] sm:$0xf]
  %v78 = vld [vmem:[%s1 + $0xb0] sm:$0xf]
  %v79 = vld [vmem:[%s1 + $0xb4] sm:$0xf]
  %v80 = vld [vmem:[%s1 + $0xb8] sm:$0xf]
  %v81 = vld [vmem:[%s1 + $0xbc] sm:$0xf]
  %v82 = vld [vmem:[%s1 + $0xc0] sm:$0xf]
  %v83 = vld [vmem:[%s1 + $0xc4] sm:$0xf]
  %v84 = vld [vmem:[%s1 + $0xc8] sm:$0xf]
  %v85 = vld [vmem:[%s1 + $0xcc] sm:$0xf]
  %v86 = vld [vmem:[%s1 + $0xd0] sm:$0xf]
  %v87 = vld [vmem:[%s1 + $0xd4] sm:$0xf]
  %v88 = vld [vmem:[%s1 + $0xd8] sm:$0xf]
  %v89 = vld [vmem:[%s1 + $0xdc] sm:$0xf]
  %v90 = vld [vmem:[%s1 + $0xe0] sm:$0xf]
  %v91 = vld [vmem:[%s1 + $0xe4] sm:$0xf]
  %v92 = vld [vmem:[%s1 + $0xe8] sm:$0xf]
  %v93 = vld [vmem:[%s1 + $0xec] sm:$0xf]
  %v94 = vld [vmem:[%s1 + $0xf0] sm:$0xf]
  %v95 = vld [vmem:[%s1 + $0xf4] sm:$0xf]
  %v96 = vld [vmem:[%s1 + $0xf8] sm:$0xf]
  %v97 = vld [vmem:[%s1 + $0xfc] sm:$0xf]
  %v98 = vld [vmem:[%s1 + $0x100] sm:$0xf]
  %v99 = vld [vmem:[%s1 + $0x104] sm:$0xf]
  %v100 = vld [vmem:[%s1 + $0x108] sm:$0xf]
  %v101 = vld [vmem:[%s1 + $0x10c] sm:$0xf]
  %v102 = vld [vmem:[%s1 + $0x110] sm:$0xf]
  %v103 = vld [vmem:[%s1 + $0x114] sm:$0xf]
  %v104 = vld [vmem:[%s1 + $0x118] sm:$0xf]
  %v105 = vld [vmem:[%s1 + $0x11c] sm:$0xf]
  %v106 = vld [vmem:[%s1 + $0x120] sm:$0xf]
  %v107 = vld [vmem:[%s1 + $0x124] sm:$0xf]
  %v108 = vld [vmem:[%s1 + $0x128] sm:$0xf]
  %v109 = vld [vmem:[%s1 + $0x12c] sm:$0xf]
  %v110 = vld [vmem:[%s1 + $0x130] sm:$0xf]
  %v111 = vld [vmem:[%s1 + $0x134] sm:$0xf]
  %v112 = vld [vmem:[%s1 + $0x138] sm:$0xf]
  %v113 = vld [vmem:[%s1 + $0x13c] sm:$0xf]
  %v114 = vld [vmem:[%s1 + $0x140] sm:$0xf]
  %v115 = vld [vmem:[%s1 + $0x144] sm:$0xf]
  %v116 = vld [vmem:[%s1 + $0x148] sm:$0xf]
  %v117 = vld [vmem:[%s1 + $0x14c] sm:$0xf]
  %v118 = vld [vmem:[%s1 + $0x150] sm:$0xf]
  %v119 = vld [vmem:[%s1 + $0x154] sm:$0xf]
  %v120 = vld [vmem:[%s1 + $0x158] sm:$0xf]
  %v121 = vld [vmem:[%s1 + $0x15c] sm:$0xf]
  %v122 = vld [vmem:[%s1 + $0x160] sm:$0xf]
  %v123 = vld [vmem:[%s1 + $0x164] sm:$0xf]
  %v124 = vld [vmem:[%s1 + $0x168] sm:$0xf]
  %v125 = vld [vmem:[%s1 + $0x16c] sm:$0xf]
  %v126 = vld [vmem:[%s1 + $0x170] sm:$0xf]
  %v127 = vld [vmem:[%s1 + $0x174] sm:$0xf]
  %v128 = vld [vmem:[%s1 + $0x178] sm:$0xf]
  %v129 = vld [vmem:[%s1 + $0x17c] sm:$0xf]
  %v130 = vld [vmem:[%s1 + $0x180] sm:$0xf]
  %v131 = vld [vmem:[%s1 + $0x184] sm:$0xf]
  %v132 = vld [vmem:[%s1 + $0x188] sm:$0xf]
  %v133 = vld [vmem:[%s1 + $0x18c] sm:$0xf]
  %v134 = vld [vmem:[%s1 + $0x190] sm:$0xf]
  %v135 = vld [vmem:[%s1 + $0x194] sm:$0xf]
  %v136 = vld [vmem:[%s1 + $0x198] sm:$0xf]
  %v137 = vld [vmem:[%s1 + $0x19c] sm:$0xf]
  %v138 = vld [vmem:[%s1 + $0x1a0] sm:$0xf]
  %v139 = vld [vmem:[%s1 + $0x1a4] sm:$0xf]
  %v140 = vld [vmem:[%s1 + $0x1a8] sm:$0xf]
  %v141 = vld [vmem:[%s1 + $0x1ac] sm:$0xf]
  %v142 = vld [vmem:[%s1 + $0x1b0] sm:$0xf]
  %v143 = vld [vmem:[%s1 + $0x1b4] sm:$0xf]
  %v144 = vld [vmem:[%s1 + $0x1b8] sm:$0xf]
  %v145 = vld [vmem:[%s1 + $0x1bc] sm:$0xf]
  %v146 = vld [vmem:[%s1 + $0x1c0] sm:$0xf]
  %v147 = vld [vmem:[%s1 + $0x1c4] sm:$0xf]
  %v148 = vld [vmem:[%s1 + $0x1c8] sm:$0xf]
  %v149 = vld [vmem:[%s1 + $0x1cc] sm:$0xf]
  %v150 = vld [vmem:[%s1 + $0x1d0] sm:$0xf]
  %v151 = vld [vmem:[%s1 + $0x1d4] sm:$0xf]
  %v152 = vld [vmem:[%s1 + $0x1d8] sm:$0xf]
  %v153 = vld [vmem:[%s1 + $0x1dc] sm:$0xf]
  %v154 = vld [vmem:[%s1 + $0x1e0] sm:$0xf]
  %v155 = vld [vmem:[%s1 + $0x1e4] sm:$0xf]
  %v156 = vld [vmem:[%s1 + $0x1e8] sm:$0xf]
  %v157 = vld [vmem:[%s1 + $0x1ec] sm:$0xf]
  %v158 = vld [vmem:[%s1 + $0x1f0] sm:$0xf]
  %v159 = vld [vmem:[%s1 + $0x1f4] sm:$0xf]
  %v160 = vld [vmem:[%s1 + $0x1f8] sm:$0xf]
  %v161 = vld [vmem:[%s1 + $0x1fc] sm:$0xf]
  %v162 = vld [vmem:[%s1 + $0x200] sm:$0xf]
  %v163 = vld [vmem:[%s1 + $0x204] sm:$0xf]
  %v164 = vld [vmem:[%s1 + $0x208] sm:$0xf]
  %v165 = vld [vmem:[%s1 + $0x20c] sm:$0xf]
  %v166 = vld [vmem:[%s1 + $0x210] sm:$0xf]
  %v167 = vld [vmem:[%s1 + $0x214] sm:$0xf]
  %v168 = vld [vmem:[%s1 + $0x218] sm:$0xf]
  %v169 = vld [vmem:[%s1 + $0x21c] sm:$0xf]
  %v170 = vld [vmem:[%s1 + $0x220] sm:$0xf]
  %v171 = vld [vmem:[%s1 + $0x224] sm:$0xf]
  %v172 = vld [vmem:[%s1 + $0x228] sm:$0xf]
  %v173 = vld [vmem:[%s1 + $0x22c] sm:$0xf]
  %v174 = vld [vmem:[%s1 + $0x230] sm:$0xf]
  %v175 = vld [vmem:[%s1 + $0x234] sm:$0xf]
  %v176 = vld [vmem:[%s1 + $0x238] sm:$0xf]
  %v177 = vld [vmem:[%s1 + $0x23c] sm:$0xf]
  %v183 = vunpack.c.l.b16 %v29
  %v184 = vunpack.c.h.b16 %v29
  %v185 = vunpack.c.l.b16 %v30
  %v186 = vunpack.c.h.b16 %v30
  %v187 = vunpack.c.l.b16 %v31
  %v188 = vunpack.c.h.b16 %v31
  %v189 = vunpack.c.l.b16 %v32
  %v190 = vunpack.c.h.b16 %v32
  %v191 = vunpack.c.l.b16 %v33
  %v192 = vpack.c.b16 %v183, %v183
  %v193 = vpack.c.b16 %v184, %v184
  %v194 = vpack.c.b16 %v185, %v185
  %v195 = vpack.c.b16 %v186, %v186
  %v196 = vpack.c.b16 %v187, %v187
  %v197 = vpack.c.b16 %v188, %v188
  %v198 = vpack.c.b16 %v189, %v189
  %v199 = vpack.c.b16 %v190, %v190
  %v200 = vpack.c.b16 %v191, %v191
  %v354 = vunpack.c.l.b16 %v34
  %v355 = vunpack.c.l.b16 %v35
  %v356 = vunpack.c.l.b16 %v36
  %v357 = vunpack.c.l.b16 %v37
  %v358 = vunpack.c.l.b16 %v38
  %v359 = vunpack.c.l.b16 %v39
  %v360 = vunpack.c.l.b16 %v40
  %v361 = vunpack.c.l.b16 %v41
  %v362 = vunpack.c.l.b16 %v42
  %v363 = vunpack.c.l.b16 %v43
  %v364 = vunpack.c.l.b16 %v44
  %v365 = vunpack.c.l.b16 %v45
  %v366 = vunpack.c.l.b16 %v46
  %v367 = vunpack.c.l.b16 %v47
  %v368 = vunpack.c.l.b16 %v48
  %v369 = vunpack.c.l.b16 %v49
  %v370 = vunpack.c.l.b16 %v50
  %v371 = vunpack.c.l.b16 %v51
  %v372 = vunpack.c.l.b16 %v52
  %v373 = vunpack.c.l.b16 %v53
  %v374 = vunpack.c.l.b16 %v54
  %v375 = vunpack.c.l.b16 %v55
  %v376 = vunpack.c.l.b16 %v56
  %v377 = vunpack.c.l.b16 %v57
  %v378 = vunpack.c.l.b16 %v58
  %v379 = vunpack.c.l.b16 %v59
  %v380 = vunpack.c.l.b16 %v60
  %v381 = vunpack.c.l.b16 %v61
  %v382 = vunpack.c.l.b16 %v62
  %v383 = vunpack.c.l.b16 %v63
  %v384 = vunpack.c.l.b16 %v64
  %v385 = vunpack.c.l.b16 %v65
  %v386 = vunpack.c.l.b16 %v66
  %v387 = vunpack.c.l.b16 %v67
  %v388 = vunpack.c.l.b16 %v68
  %v389 = vunpack.c.l.b16 %v69
  %v390 = vunpack.c.l.b16 %v70
  %v391 = vunpack.c.l.b16 %v71
  %v392 = vunpack.c.l.b16 %v72
  %v393 = vunpack.c.l.b16 %v73
  %v394 = vunpack.c.l.b16 %v74
  %v395 = vunpack.c.l.b16 %v75
  %v396 = vunpack.c.l.b16 %v76
  %v397 = vunpack.c.l.b16 %v77
  %v398 = vunpack.c.l.b16 %v78
  %v399 = vunpack.c.l.b16 %v79
  %v400 = vunpack.c.l.b16 %v80
  %v401 = vunpack.c.l.b16 %v81
  %v402 = vunpack.c.l.b16 %v82
  %v403 = vunpack.c.l.b16 %v83
  %v404 = vunpack.c.l.b16 %v84
  %v405 = vunpack.c.l.b16 %v85
  %v406 = vunpack.c.l.b16 %v86
  %v407 = vunpack.c.l.b16 %v87
  %v408 = vunpack.c.l.b16 %v88
  %v409 = vunpack.c.l.b16 %v89
  %v410 = vunpack.c.l.b16 %v90
  %v411 = vunpack.c.l.b16 %v91
  %v412 = vunpack.c.l.b16 %v92
  %v413 = vunpack.c.l.b16 %v93
  %v414 = vunpack.c.l.b16 %v94
  %v415 = vunpack.c.l.b16 %v95
  %v416 = vunpack.c.l.b16 %v96
  %v417 = vunpack.c.l.b16 %v97
  %v418 = vunpack.c.l.b16 %v98
  %v419 = vunpack.c.l.b16 %v99
  %v420 = vunpack.c.l.b16 %v100
  %v421 = vunpack.c.l.b16 %v101
  %v422 = vunpack.c.l.b16 %v102
  %v423 = vunpack.c.l.b16 %v103
  %v424 = vunpack.c.l.b16 %v104
  %v425 = vunpack.c.l.b16 %v105
  %v426 = vunpack.c.l.b16 %v106
  %v427 = vunpack.c.l.b16 %v107
  %v428 = vunpack.c.l.b16 %v108
  %v429 = vunpack.c.l.b16 %v109
  %v430 = vunpack.c.l.b16 %v110
  %v431 = vunpack.c.l.b16 %v111
  %v432 = vunpack.c.l.b16 %v112
  %v433 = vunpack.c.l.b16 %v113
  %v434 = vunpack.c.l.b16 %v114
  %v435 = vunpack.c.l.b16 %v115
  %v436 = vunpack.c.l.b16 %v116
  %v437 = vunpack.c.l.b16 %v117
  %v438 = vunpack.c.l.b16 %v118
  %v439 = vunpack.c.l.b16 %v119
  %v440 = vunpack.c.l.b16 %v120
  %v441 = vunpack.c.l.b16 %v121
  %v442 = vunpack.c.l.b16 %v122
  %v443 = vunpack.c.l.b16 %v123
  %v444 = vunpack.c.l.b16 %v124
  %v445 = vunpack.c.l.b16 %v125
  %v446 = vunpack.c.l.b16 %v126
  %v447 = vunpack.c.l.b16 %v127
  %v448 = vunpack.c.l.b16 %v128
  %v449 = vunpack.c.l.b16 %v129
  %v450 = vunpack.c.l.b16 %v130
  %v451 = vunpack.c.l.b16 %v131
  %v452 = vunpack.c.l.b16 %v132
  %v453 = vunpack.c.l.b16 %v133
  %v454 = vunpack.c.l.b16 %v134
  %v455 = vunpack.c.l.b16 %v135
  %v456 = vunpack.c.l.b16 %v136
  %v457 = vunpack.c.l.b16 %v137
  %v458 = vunpack.c.l.b16 %v138
  %v459 = vunpack.c.l.b16 %v139
  %v460 = vunpack.c.l.b16 %v140
  %v461 = vunpack.c.l.b16 %v141
  %v462 = vunpack.c.l.b16 %v142
  %v463 = vunpack.c.l.b16 %v143
  %v464 = vunpack.c.l.b16 %v144
  %v465 = vunpack.c.l.b16 %v145
  %v466 = vunpack.c.l.b16 %v146
  %v467 = vunpack.c.l.b16 %v147
  %v468 = vunpack.c.l.b16 %v148
  %v469 = vunpack.c.l.b16 %v149
  %v470 = vunpack.c.l.b16 %v150
  %v471 = vunpack.c.l.b16 %v151
  %v472 = vunpack.c.l.b16 %v152
  %v473 = vunpack.c.l.b16 %v153
  %v474 = vunpack.c.l.b16 %v154
  %v475 = vunpack.c.l.b16 %v155
  %v476 = vunpack.c.l.b16 %v156
  %v477 = vunpack.c.l.b16 %v157
  %v478 = vunpack.c.l.b16 %v158
  %v479 = vunpack.c.l.b16 %v159
  %v480 = vunpack.c.l.b16 %v160
  %v481 = vunpack.c.l.b16 %v161
  %v482 = vunpack.c.l.b16 %v162
  %v483 = vunpack.c.l.b16 %v163
  %v484 = vunpack.c.l.b16 %v164
  %v485 = vunpack.c.l.b16 %v165
  %v486 = vunpack.c.l.b16 %v166
  %v487 = vunpack.c.l.b16 %v167
  %v488 = vunpack.c.l.b16 %v168
  %v489 = vunpack.c.l.b16 %v169
  %v490 = vunpack.c.l.b16 %v170
  %v491 = vunpack.c.l.b16 %v171
  %v492 = vunpack.c.l.b16 %v172
  %v493 = vunpack.c.l.b16 %v173
  %v494 = vunpack.c.l.b16 %v174
  %v495 = vunpack.c.l.b16 %v175
  %v496 = vunpack.c.l.b16 %v176
  %v497 = vunpack.c.l.b16 %v177
  %v498 = vpack.c.b16 %v355, %v354
  %v499 = vpack.c.b16 %v357, %v356
  %v500 = vpack.c.b16 %v359, %v358
  %v501 = vpack.c.b16 %v361, %v360
  %v502 = vpack.c.b16 %v363, %v362
  %v503 = vpack.c.b16 %v365, %v364
  %v504 = vpack.c.b16 %v367, %v366
  %v505 = vpack.c.b16 %v369, %v368
  %v506 = vpack.c.b16 %v371, %v370
  %v507 = vpack.c.b16 %v373, %v372
  %v508 = vpack.c.b16 %v375, %v374
  %v509 = vpack.c.b16 %v377, %v376
  %v510 = vpack.c.b16 %v379, %v378
  %v511 = vpack.c.b16 %v381, %v380
  %v512 = vpack.c.b16 %v383, %v382
  %v513 = vpack.c.b16 %v385, %v384
  %v514 = vpack.c.b16 %v387, %v386
  %v515 = vpack.c.b16 %v389, %v388
  %v516 = vpack.c.b16 %v391, %v390
  %v517 = vpack.c.b16 %v393, %v392
  %v518 = vpack.c.b16 %v395, %v394
  %v519 = vpack.c.b16 %v397, %v396
  %v520 = vpack.c.b16 %v399, %v398
  %v521 = vpack.c.b16 %v401, %v400
  %v522 = vpack.c.b16 %v403, %v402
  %v523 = vpack.c.b16 %v405, %v404
  %v524 = vpack.c.b16 %v407, %v406
  %v525 = vpack.c.b16 %v409, %v408
  %v526 = vpack.c.b16 %v411, %v410
  %v527 = vpack.c.b16 %v413, %v412
  %v528 = vpack.c.b16 %v415, %v414
  %v529 = vpack.c.b16 %v417, %v416
  %v530 = vpack.c.b16 %v419, %v418
  %v531 = vpack.c.b16 %v421, %v420
  %v532 = vpack.c.b16 %v423, %v422
  %v533 = vpack.c.b16 %v425, %v424
  %v534 = vpack.c.b16 %v427, %v426
  %v535 = vpack.c.b16 %v429, %v428
  %v536 = vpack.c.b16 %v431, %v430
  %v537 = vpack.c.b16 %v433, %v432
  %v538 = vpack.c.b16 %v435, %v434
  %v539 = vpack.c.b16 %v437, %v436
  %v540 = vpack.c.b16 %v439, %v438
  %v541 = vpack.c.b16 %v441, %v440
  %v542 = vpack.c.b16 %v443, %v442
  %v543 = vpack.c.b16 %v445, %v444
  %v544 = vpack.c.b16 %v447, %v446
  %v545 = vpack.c.b16 %v449, %v448
  %v546 = vpack.c.b16 %v451, %v450
  %v547 = vpack.c.b16 %v453, %v452
  %v548 = vpack.c.b16 %v455, %v454
  %v549 = vpack.c.b16 %v457, %v456
  %v550 = vpack.c.b16 %v459, %v458
  %v551 = vpack.c.b16 %v461, %v460
  %v552 = vpack.c.b16 %v463, %v462
  %v553 = vpack.c.b16 %v465, %v464
  %v554 = vpack.c.b16 %v467, %v466
  %v555 = vpack.c.b16 %v469, %v468
  %v556 = vpack.c.b16 %v471, %v470
  %v557 = vpack.c.b16 %v473, %v472
  %v558 = vpack.c.b16 %v475, %v474
  %v559 = vpack.c.b16 %v477, %v476
  %v560 = vpack.c.b16 %v479, %v478
  %v561 = vpack.c.b16 %v481, %v480
  %v562 = vpack.c.b16 %v483, %v482
  %v563 = vpack.c.b16 %v485, %v484
  %v564 = vpack.c.b16 %v487, %v486
  %v565 = vpack.c.b16 %v489, %v488
  %v566 = vpack.c.b16 %v491, %v490
  %v567 = vpack.c.b16 %v493, %v492
  %v568 = vpack.c.b16 %v495, %v494
  %v569 = vpack.c.b16 %v497, %v496
  %642 = vmatprep.subr.bf16.mxu0 0
  %643 = vmatpush1.bf16.msra.mxu0 %v498
  %644 = vmatprep.subr.bf16.mxu0 0
  %645 = vmatpush1.bf16.msra.mxu0 %v499
  %646 = vmatprep.subr.bf16.mxu0 0
  %647 = vmatpush1.bf16.msra.mxu0 %v500
  %648 = vmatprep.subr.bf16.mxu0 0
  %649 = vmatpush1.bf16.msra.mxu0 %v501
  %650 = vmatprep.subr.bf16.mxu0 0
  %651 = vmatpush1.bf16.msra.mxu0 %v502
  %652 = vmatprep.subr.bf16.mxu0 0
  %653 = vmatpush1.bf16.msra.mxu0 %v503
  %654 = vmatprep.subr.bf16.mxu0 0
  %655 = vmatpush1.bf16.msra.mxu0 %v504
  %656 = vmatprep.subr.bf16.mxu0 0
  %657 = vmatpush1.bf16.msra.mxu0 %v505
  %658 = vmatprep.subr.bf16.mxu0 0
  %659 = vmatpush1.bf16.msra.mxu0 %v506
  %660 = vmatprep.subr.bf16.mxu0 0
  %661 = vmatpush1.bf16.msra.mxu0 %v507
  %662 = vmatprep.subr.bf16.mxu0 0
  %663 = vmatpush1.bf16.msra.mxu0 %v508
  %664 = vmatprep.subr.bf16.mxu0 0
  %665 = vmatpush1.bf16.msra.mxu0 %v509
  %666 = vmatprep.subr.bf16.mxu0 0
  %667 = vmatpush1.bf16.msra.mxu0 %v510
  %668 = vmatprep.subr.bf16.mxu0 0
  %669 = vmatpush1.bf16.msra.mxu0 %v511
  %670 = vmatprep.subr.bf16.mxu0 0
  %671 = vmatpush1.bf16.msra.mxu0 %v512
  %672 = vmatprep.subr.bf16.mxu0 0
  %673 = vmatpush1.bf16.msra.mxu0 %v513
  %674 = vmatprep.mubr.bf16.mxu0 %v193
  %675 = vmatmul.mubr.bf16.gmra.mrb[0].mxu0 %v192
  %v676 = vpop.f32.mrb[0].mxu0
  %v677 = vadd.f32 0.0, %v676
  %v678 = vpop.f32.mrb[0].mxu0
  %v679 = vpop.f32.mrb[0].mxu0
  %v680 = vpop.f32.mrb[0].mxu0
  %681 = vdwg.mxu0
  %682 = vmatprep.subr.bf16.mxu0 0
  %683 = vmatpush1.bf16.msra.mxu0 %v514
  %684 = vmatprep.subr.bf16.mxu0 0
  %685 = vmatpush1.bf16.msra.mxu0 %v515
  %686 = vmatprep.subr.bf16.mxu0 0
  %687 = vmatpush1.bf16.msra.mxu0 %v516
  %688 = vmatprep.subr.bf16.mxu0 0
  %689 = vmatpush1.bf16.msra.mxu0 %v517
  %690 = vmatprep.subr.bf16.mxu0 0
  %691 = vmatpush1.bf16.msra.mxu0 %v518
  %692 = vmatprep.subr.bf16.mxu0 0
  %693 = vmatpush1.bf16.msra.mxu0 %v519
  %694 = vmatprep.subr.bf16.mxu0 0
  %695 = vmatpush1.bf16.msra.mxu0 %v520
  %696 = vmatprep.subr.bf16.mxu0 0
  %697 = vmatpush1.bf16.msra.mxu0 %v521
  %698 = vmatprep.subr.bf16.mxu0 0
  %699 = vmatpush1.bf16.msra.mxu0 %v522
  %700 = vmatprep.subr.bf16.mxu0 0
  %701 = vmatpush1.bf16.msra.mxu0 %v523
  %702 = vmatprep.subr.bf16.mxu0 0
  %703 = vmatpush1.bf16.msra.mxu0 %v524
  %704 = vmatprep.subr.bf16.mxu0 0
  %705 = vmatpush1.bf16.msra.mxu0 %v525
  %706 = vmatprep.subr.bf16.mxu0 0
  %707 = vmatpush1.bf16.msra.mxu0 %v526
  %708 = vmatprep.subr.bf16.mxu0 0
  %709 = vmatpush1.bf16.msra.mxu0 %v527
  %710 = vmatprep.subr.bf16.mxu0 0
  %711 = vmatpush1.bf16.msra.mxu0 %v528
  %712 = vmatprep.subr.bf16.mxu0 0
  %713 = vmatpush1.bf16.msra.mxu0 %v529
  %714 = vmatprep.mubr.bf16.mxu0 %v195
  %715 = vmatmul.mubr.bf16.gmra.mrb[0].mxu0 %v194
  %v716 = vpop.f32.mrb[0].mxu0
  %v717 = vadd.f32 %v677, %v716
  %v718 = vpop.f32.mrb[0].mxu0
  %v719 = vpop.f32.mrb[0].mxu0
  %v720 = vpop.f32.mrb[0].mxu0
  %721 = vdwg.mxu0
  %722 = vmatprep.subr.bf16.mxu0 0
  %723 = vmatpush1.bf16.msra.mxu0 %v530
  %724 = vmatprep.subr.bf16.mxu0 0
  %725 = vmatpush1.bf16.msra.mxu0 %v531
  %726 = vmatprep.subr.bf16.mxu0 0
  %727 = vmatpush1.bf16.msra.mxu0 %v532
  %728 = vmatprep.subr.bf16.mxu0 0
  %729 = vmatpush1.bf16.msra.mxu0 %v533
  %730 = vmatprep.subr.bf16.mxu0 0
  %731 = vmatpush1.bf16.msra.mxu0 %v534
  %732 = vmatprep.subr.bf16.mxu0 0
  %733 = vmatpush1.bf16.msra.mxu0 %v535
  %734 = vmatprep.subr.bf16.mxu0 0
  %735 = vmatpush1.bf16.msra.mxu0 %v536
  %736 = vmatprep.subr.bf16.mxu0 0
  %737 = vmatpush1.bf16.msra.mxu0 %v537
  %738 = vmatprep.subr.bf16.mxu0 0
  %739 = vmatpush1.bf16.msra.mxu0 %v538
  %740 = vmatprep.subr.bf16.mxu0 0
  %741 = vmatpush1.bf16.msra.mxu0 %v539
  %742 = vmatprep.subr.bf16.mxu0 0
  %743 = vmatpush1.bf16.msra.mxu0 %v540
  %744 = vmatprep.subr.bf16.mxu0 0
  %745 = vmatpush1.bf16.msra.mxu0 %v541
  %746 = vmatprep.subr.bf16.mxu0 0
  %747 = vmatpush1.bf16.msra.mxu0 %v542
  %748 = vmatprep.subr.bf16.mxu0 0
  %749 = vmatpush1.bf16.msra.mxu0 %v543
  %750 = vmatprep.subr.bf16.mxu0 0
  %751 = vmatpush1.bf16.msra.mxu0 %v544
  %752 = vmatprep.subr.bf16.mxu0 0
  %753 = vmatpush1.bf16.msra.mxu0 %v545
  %754 = vmatprep.mubr.bf16.mxu0 %v197
  %755 = vmatmul.mubr.bf16.gmra.mrb[0].mxu0 %v196
  %v756 = vpop.f32.mrb[0].mxu0
  %v757 = vadd.f32 %v717, %v756
  %v758 = vpop.f32.mrb[0].mxu0
  %v759 = vpop.f32.mrb[0].mxu0
  %v760 = vpop.f32.mrb[0].mxu0
  %761 = vdwg.mxu0
  %762 = vmatprep.subr.bf16.mxu0 0
  %763 = vmatpush1.bf16.msra.mxu0 %v546
  %764 = vmatprep.subr.bf16.mxu0 0
  %765 = vmatpush1.bf16.msra.mxu0 %v547
  %766 = vmatprep.subr.bf16.mxu0 0
  %767 = vmatpush1.bf16.msra.mxu0 %v548
  %768 = vmatprep.subr.bf16.mxu0 0
  %769 = vmatpush1.bf16.msra.mxu0 %v549
  %770 = vmatprep.subr.bf16.mxu0 0
  %771 = vmatpush1.bf16.msra.mxu0 %v550
  %772 = vmatprep.subr.bf16.mxu0 0
  %773 = vmatpush1.bf16.msra.mxu0 %v551
  %774 = vmatprep.subr.bf16.mxu0 0
  %775 = vmatpush1.bf16.msra.mxu0 %v552
  %776 = vmatprep.subr.bf16.mxu0 0
  %777 = vmatpush1.bf16.msra.mxu0 %v553
  %778 = vmatprep.subr.bf16.mxu0 0
  %779 = vmatpush1.bf16.msra.mxu0 %v554
  %780 = vmatprep.subr.bf16.mxu0 0
  %781 = vmatpush1.bf16.msra.mxu0 %v555
  %782 = vmatprep.subr.bf16.mxu0 0
  %783 = vmatpush1.bf16.msra.mxu0 %v556
  %784 = vmatprep.subr.bf16.mxu0 0
  %785 = vmatpush1.bf16.msra.mxu0 %v557
  %786 = vmatprep.subr.bf16.mxu0 0
  %787 = vmatpush1.bf16.msra.mxu0 %v558
  %788 = vmatprep.subr.bf16.mxu0 0
  %789 = vmatpush1.bf16.msra.mxu0 %v559
  %790 = vmatprep.subr.bf16.mxu0 0
  %791 = vmatpush1.bf16.msra.mxu0 %v560
  %792 = vmatprep.subr.bf16.mxu0 0
  %793 = vmatpush1.bf16.msra.mxu0 %v561
  %794 = vmatprep.mubr.bf16.mxu0 %v199
  %795 = vmatmul.mubr.bf16.gmra.mrb[0].mxu0 %v198
  %v796 = vpop.f32.mrb[0].mxu0
  %v797 = vadd.f32 %v757, %v796
  %v798 = vpop.f32.mrb[0].mxu0
  %v799 = vpop.f32.mrb[0].mxu0
  %v800 = vpop.f32.mrb[0].mxu0
  %801 = vdwg.mxu0
  %802 = vmatprep.subr.bf16.mxu0 0
  %803 = vmatpush1.bf16.msra.mxu0 %v562
  %804 = vmatprep.subr.bf16.mxu0 0
  %805 = vmatpush1.bf16.msra.mxu0 %v563
  %806 = vmatprep.subr.bf16.mxu0 0
  %807 = vmatpush1.bf16.msra.mxu0 %v564
  %808 = vmatprep.subr.bf16.mxu0 0
  %809 = vmatpush1.bf16.msra.mxu0 %v565
  %810 = vmatprep.subr.bf16.mxu0 0
  %811 = vmatpush1.bf16.msra.mxu0 %v566
  %812 = vmatprep.subr.bf16.mxu0 0
  %813 = vmatpush1.bf16.msra.mxu0 %v567
  %814 = vmatprep.subr.bf16.mxu0 0
  %815 = vmatpush1.bf16.msra.mxu0 %v568
  %816 = vmatprep.subr.bf16.mxu0 0
  %817 = vmatpush1.bf16.msra.mxu0 %v569
  %818 = vmatprep.subr.bf16.mxu0 0
  %819 = vmatpush1.bf16.msra.mxu0 0
  %820 = vmatprep.subr.bf16.mxu0 0
  %821 = vmatpush1.bf16.msra.mxu0 0
  %822 = vmatprep.subr.bf16.mxu0 0
  %823 = vmatpush1.bf16.msra.mxu0 0
  %824 = vmatprep.subr.bf16.mxu0 0
  %825 = vmatpush1.bf16.msra.mxu0 0
  %826 = vmatprep.subr.bf16.mxu0 0
  %827 = vmatpush1.bf16.msra.mxu0 0
  %828 = vmatprep.subr.bf16.mxu0 0
  %829 = vmatpush1.bf16.msra.mxu0 0
  %830 = vmatprep.subr.bf16.mxu0 0
  %831 = vmatpush1.bf16.msra.mxu0 0
  %832 = vmatprep.subr.bf16.mxu0 0
  %833 = vmatpush1.bf16.msra.mxu0 0
  %834 = vmatprep.mubr.bf16.mxu0 0
  %835 = vmatmul.mubr.bf16.gmra.mrb[0].mxu0 %v200
  %v836 = vpop.f32.mrb[0].mxu0
  %v837 = vadd.f32 %v797, %v836
  %v838 = vpop.f32.mrb[0].mxu0
  %v839 = vpop.f32.mrb[0].mxu0
  %v840 = vpop.f32.mrb[0].mxu0
  %841 = vdwg.mxu0
  %v842 = vld [vmem:[%s2] sm:$0x1]
  %v844 = vlaneseq
  %v845 = vshrl.u32 %v844, 7
  %v846 = vsub.s32 0, %v845
  %v847 = vrot.slane %v842, %v846
  %v849 = vmul.f32 %v837, %v847
  %v850 = vld [vmem:[%s3] sm:$0x1]
  %v852 = vlaneseq
  %v853 = vshrl.u32 %v852, 7
  %v854 = vsub.s32 0, %v853
  %v855 = vrot.slane %v850, %v854
  %v857 = vadd.f32 %v849, %v855
  %v858 = vmax.f32 %v857, 0.0
  %v859 = vpack.c.bf16 %v858, %v858
  %860 = vst [vmem:[%s7] sm:$0xf] %v859
  %v861 = vld [vmem:[%s4] sm:$0xf]
  %v862 = vld [vmem:[%s4 + $0x4] sm:$0xf]
  %v863 = vld [vmem:[%s4 + $0x8] sm:$0xf]
  %v864 = vld [vmem:[%s4 + $0xc] sm:$0xf]
  %v865 = vld [vmem:[%s4 + $0x10] sm:$0xf]
  %v866 = vld [vmem:[%s4 + $0x14] sm:$0xf]
  %v867 = vld [vmem:[%s4 + $0x18] sm:$0xf]
  %v868 = vld [vmem:[%s4 + $0x1c] sm:$0xf]
  %v869 = vld [vmem:[%s4 + $0x20] sm:$0xf]
  %v870 = vld [vmem:[%s4 + $0x24] sm:$0xf]
  %v871 = vld [vmem:[%s4 + $0x28] sm:$0xf]
  %v872 = vld [vmem:[%s4 + $0x2c] sm:$0xf]
  %v873 = vld [vmem:[%s4 + $0x30] sm:$0xf]
  %v874 = vld [vmem:[%s4 + $0x34] sm:$0xf]
  %v875 = vld [vmem:[%s4 + $0x38] sm:$0xf]
  %v876 = vld [vmem:[%s4 + $0x3c] sm:$0xf]
  %v893 = vunpack.c.l.b16 %v861
  %v894 = vunpack.c.l.b16 %v862
  %v895 = vunpack.c.l.b16 %v863
  %v896 = vunpack.c.l.b16 %v864
  %v897 = vunpack.c.l.b16 %v865
  %v898 = vunpack.c.l.b16 %v866
  %v899 = vunpack.c.l.b16 %v867
  %v900 = vunpack.c.l.b16 %v868
  %v901 = vunpack.c.l.b16 %v869
  %v902 = vunpack.c.l.b16 %v870
  %v903 = vunpack.c.l.b16 %v871
  %v904 = vunpack.c.l.b16 %v872
  %v905 = vunpack.c.l.b16 %v873
  %v906 = vunpack.c.l.b16 %v874
  %v907 = vunpack.c.l.b16 %v875
  %v908 = vunpack.c.l.b16 %v876
  %v909 = vpack.c.b16 %v894, %v893
  %v910 = vpack.c.b16 %v896, %v895
  %v911 = vpack.c.b16 %v898, %v897
  %v912 = vpack.c.b16 %v900, %v899
  %v913 = vpack.c.b16 %v902, %v901
  %v914 = vpack.c.b16 %v904, %v903
  %v915 = vpack.c.b16 %v906, %v905
  %v916 = vpack.c.b16 %v908, %v907
  %925 = vmatprep.subr.bf16.mxu0 0
  %926 = vmatpush1.bf16.msra.mxu0 %v909
  %927 = vmatprep.subr.bf16.mxu0 0
  %928 = vmatpush1.bf16.msra.mxu0 %v910
  %929 = vmatprep.subr.bf16.mxu0 0
  %930 = vmatpush1.bf16.msra.mxu0 %v911
  %931 = vmatprep.subr.bf16.mxu0 0
  %932 = vmatpush1.bf16.msra.mxu0 %v912
  %933 = vmatprep.subr.bf16.mxu0 0
  %934 = vmatpush1.bf16.msra.mxu0 %v913
  %935 = vmatprep.subr.bf16.mxu0 0
  %936 = vmatpush1.bf16.msra.mxu0 %v914
  %937 = vmatprep.subr.bf16.mxu0 0
  %938 = vmatpush1.bf16.msra.mxu0 %v915
  %939 = vmatprep.subr.bf16.mxu0 0
  %940 = vmatpush1.bf16.msra.mxu0 %v916
  %941 = vmatprep.subr.bf16.mxu0 0
  %942 = vmatpush1.bf16.msra.mxu0 0
  %943 = vmatprep.subr.bf16.mxu0 0
  %944 = vmatpush1.bf16.msra.mxu0 0
  %945 = vmatprep.subr.bf16.mxu0 0
  %946 = vmatpush1.bf16.msra.mxu0 0
  %947 = vmatprep.subr.bf16.mxu0 0
  %948 = vmatpush1.bf16.msra.mxu0 0
  %949 = vmatprep.subr.bf16.mxu0 0
  %950 = vmatpush1.bf16.msra.mxu0 0
  %951 = vmatprep.subr.bf16.mxu0 0
  %952 = vmatpush1.bf16.msra.mxu0 0
  %953 = vmatprep.subr.bf16.mxu0 0
  %954 = vmatpush1.bf16.msra.mxu0 0
  %955 = vmatprep.subr.bf16.mxu0 0
  %956 = vmatpush1.bf16.msra.mxu0 0
  %957 = vmatprep.mubr.bf16.mxu0 0
  %958 = vmatmul.mubr.bf16.gmra.mrb[0].mxu0 %v31
  %v959 = vpop.f32.mrb[0].mxu0
  %v960 = vadd.f32 0.0, %v959
  %v961 = vpop.f32.mrb[0].mxu0
  %v962 = vpop.f32.mrb[0].mxu0
  %v963 = vpop.f32.mrb[0].mxu0
  %964 = vdwg.mxu0
  %v965 = vld [vmem:[%s5] sm:$0x1]
  %v967 = vlaneseq
  %v968 = vshrl.u32 %v967, 7
  %v969 = vsub.s32 0, %v968
  %v970 = vrot.slane %v965, %v969
  %v972 = vmul.f32 %v960, %v970
  %v973 = vld [vmem:[%s6] sm:$0x1]
  %v975 = vlaneseq
  %v976 = vshrl.u32 %v975, 7
  %v977 = vsub.s32 0, %v976
  %v978 = vrot.slane %v973, %v977
  %v980 = vadd.f32 %v972, %v978
  %v981 = vpack.c.bf16 %v980, %v980
  %982 = vst [vmem:[%s8] sm:$0xf] %v981
  // Predicated region
  $region30: #{resnet_embedding_forward.16} parent=0 // pred_check
    _
  $region31: #{resnet_embedding_forward.16} parent=0 // pred_check_branch
    %984 = sbr.rel (0) target = $region33
  $region32: #{resnet_embedding_forward.16} parent=0 // pred_region
    _
  $region33: #{resnet_embedding_forward.16} parent=0 // pred_fallthru
    _
  // Predicated region
  $region34: #{resnet_embedding_forward.16} parent=0 // pred_check
    _
  $region35: #{resnet_embedding_forward.16} parent=0 // pred_check_branch
    %986 = sbr.rel (0) target = $region37
  $region36: #{resnet_embedding_forward.16} parent=0 // pred_region
    _
  $region37: #{resnet_embedding_forward.16} parent=0 // pred_fallthru
    _
  // Predicated region
  $region38: #{resnet_embedding_forward.16} parent=0 // pred_check
    _
  $region39: #{resnet_embedding_forward.16} parent=0 // pred_check_branch
    %988 = sbr.rel (0) target = $region41
  $region40: #{resnet_embedding_forward.16} parent=0 // pred_region
    _
  $region41: #{resnet_embedding_forward.16} parent=0 // pred_fallthru
    _
  // Predicated region
  $region42: #{resnet_embedding_forward.16} parent=0 // pred_check
    _
  $region43: #{resnet_embedding_forward.16} parent=0 // pred_check_branch
    %990 = sbr.rel (0) target = $region45
  $region44: #{resnet_embedding_forward.16} parent=0 // pred_region
    _
  $region45: #{resnet_embedding_forward.16} parent=0 // pred_fallthru
    _

// kernel: resnet_embedding_forward.17
$region0: #{resnet_embedding_forward.17}
  #allocation0 [shape = 'u32[]', space=smem, size = 0x4, offset = 0x4, fixed_abs, tag = 'smem constant byte address 0x4 - core index']
  #allocation1 [shape = 'u32[144,128]{1,0:T(1,128)}', space=vmem, size = 0x12000, scoped, tag = 'internal scratch']
  %s0 = inlined_call_operand.vmem [shape: bf16[88,128], index: 0, kind: input, shape index: {}]
  %s1 = inlined_call_operand.vmem [shape: bf16[1152,128], index: 1, kind: input, shape index: {}]
  %s2 = inlined_call_operand.vmem [shape: f32[1,128], index: 2, kind: input, shape index: {}]
  %s3 = inlined_call_operand.vmem [shape: f32[1,128], index: 3, kind: input, shape index: {}]
  %s4 = inlined_call_operand.vmem [shape: f32[64,1], index: 4, kind: input, shape index: {}]
  %s5 = inlined_call_operand.vmem [shape: bf16[64,128], index: 5, kind: input, shape index: {}]
  %s6 = inlined_call_operand.vmem [shape: bf16[64,128], index: 6, kind: output, shape index: {}]
  %s7 = sld [smem:[#allocation0]]
  $region34: #{resnet_embedding_forward.17} parent=0
    _
  %s9 = ssub.s32 1, %s7
  %s10 = scalar_select 0, %s9, %s7
  // Predicated region
  $region2: #{resnet_embedding_forward.17} parent=0 // pred_check
    _
  $region3: #{resnet_embedding_forward.17} parent=0 // pred_check_branch
    %12 = sbr.rel (0) target = $region5
  $region4: #{resnet_embedding_forward.17} parent=0 // pred_region
    _
  $region5: #{resnet_embedding_forward.17} parent=0 // pred_fallthru
    _
  // Predicated region
  $region6: #{resnet_embedding_forward.17} parent=0 // pred_check
    _
  $region7: #{resnet_embedding_forward.17} parent=0 // pred_check_branch
    %14 = sbr.rel (0) target = $region9
  $region8: #{resnet_embedding_forward.17} parent=0 // pred_region
    _
  $region9: #{resnet_embedding_forward.17} parent=0 // pred_fallthru
    _
  // Predicated region
  $region10: #{resnet_embedding_forward.17} parent=0 // pred_check
    _
  $region11: #{resnet_embedding_forward.17} parent=0 // pred_check_branch
    %16 = sbr.rel (0) target = $region13
  $region12: #{resnet_embedding_forward.17} parent=0 // pred_region
    _
  $region13: #{resnet_embedding_forward.17} parent=0 // pred_fallthru
    _
  // Predicated region
  $region14: #{resnet_embedding_forward.17} parent=0 // pred_check
    _
  $region15: #{resnet_embedding_forward.17} parent=0 // pred_check_branch
    %18 = sbr.rel (0) target = $region17
  $region16: #{resnet_embedding_forward.17} parent=0 // pred_region
    _
  $region17: #{resnet_embedding_forward.17} parent=0 // pred_fallthru
    _
  // Predicated region
  $region18: #{resnet_embedding_forward.17} parent=0 // pred_check
    _
  $region19: #{resnet_embedding_forward.17} parent=0 // pred_check_branch
    %20 = sbr.rel (0) target = $region21
  $region20: #{resnet_embedding_forward.17} parent=0 // pred_region
    _
  $region21: #{resnet_embedding_forward.17} parent=0 // pred_fallthru
    _
  // Predicated region
  $region22: #{resnet_embedding_forward.17} parent=0 // pred_check
    _
  $region23: #{resnet_embedding_forward.17} parent=0 // pred_check_branch
    %22 = sbr.rel (0) target = $region25
  $region24: #{resnet_embedding_forward.17} parent=0 // pred_region
    _
  $region25: #{resnet_embedding_forward.17} parent=0 // pred_fallthru
    _
  %s24 = smul.u32 0, 64
  %s25 = sshra.s32 %s24, 3
  %s26 = sand.u32 %s24, 7
  %s27 = smul.addr %s25, 4
  %s28 = scalar_lea.vmem %s0, %s27
  %v29 = vld [vmem:[%s28] sm:$0xf]
  %v30 = vld [vmem:[%s28 + $0x4] sm:$0xf]
  %v31 = vld [vmem:[%s28 + $0x8] sm:$0xf]
  %v32 = vld [vmem:[%s28 + $0xc] sm:$0xf]
  %v33 = vld [vmem:[%s28 + $0x10] sm:$0xf]
  %v34 = vld [vmem:[%s28 + $0x14] sm:$0xf]
  %v35 = vld [vmem:[%s28 + $0x18] sm:$0xf]
  %v36 = vld [vmem:[%s28 + $0x1c] sm:$0xf]
  %v37 = vld [vmem:[%s28 + $0x20] sm:$0xf]
  %v38 = vld [vmem:[%s28 + $0x24] sm:$0xf]
  %v39 = vld [vmem:[%s28 + $0x28] sm:$0xf]
  %v48 = vunpack.c.l.b16 %v29
  %v49 = vunpack.c.l.b16 %v30
  %v50 = vunpack.c.l.b16 %v31
  %v51 = vunpack.c.l.b16 %v32
  %v52 = vunpack.c.l.b16 %v33
  %v53 = vunpack.c.l.b16 %v34
  %v54 = vunpack.c.l.b16 %v35
  %v55 = vunpack.c.l.b16 %v36
  %v56 = vpack.c.b16 %v49, %v48
  %v57 = vpack.c.b16 %v51, %v50
  %v58 = vpack.c.b16 %v53, %v52
  %v59 = vpack.c.b16 %v55, %v54
  %v65 = vunpack.c.l.b16 %v37
  %v66 = vpack.c.b16 %v65, %v65
  %vm67 = vsmask.f32 7424
  %v69 = vshrl.u32 %v56, 16
  %v71 = vshll.u32 %v56, 16
  %v73 = vrot.slane %v71, 1
  %v74 = vor.u32 %v69, %v73
  %v76 = vshll.u32 %v57, 16
  %v78 = vrot.slane %v76, 1
  %v79 = vsel %vm67, %v74, %v78
  %v80 = vshrl.u32 %v57, 16
  %v82 = vor.u32 %v80, %v78
  %v84 = vshll.u32 %v58, 16
  %v86 = vrot.slane %v84, 1
  %v87 = vsel %vm67, %v82, %v86
  %v88 = vshrl.u32 %v58, 16
  %v90 = vor.u32 %v88, %v86
  %v92 = vshll.u32 %v59, 16
  %v94 = vrot.slane %v92, 1
  %v95 = vsel %vm67, %v90, %v94
  %v96 = vshrl.u32 %v59, 16
  %v98 = vor.u32 %v96, %v94
  %v100 = vshll.u32 %v66, 16
  %v102 = vrot.slane %v100, 1
  %v103 = vsel %vm67, %v98, %v102
  %vm108 = vcmask 1046528
  %v109 = vrot.slane %v56, 1
  %v110 = vrot.slane %v57, 1
  %v111 = vsel %vm108, %v109, %v110
  %v112 = vrot.slane %v58, 1
  %v113 = vsel %vm108, %v110, %v112
  %v114 = vrot.slane %v59, 1
  %v115 = vsel %vm108, %v112, %v114
  %v116 = vrot.slane %v66, 1
  %v117 = vsel %vm108, %v114, %v116
  %v122 = vpack.c.b16 %v50, %v49
  %v123 = vpack.c.b16 %v52, %v51
  %v124 = vpack.c.b16 %v54, %v53
  %v125 = vpack.c.b16 %v65, %v55
  %v131 = vunpack.c.l.b16 %v38
  %v132 = vpack.c.b16 %v131, %v131
  %v134 = vshrl.u32 %v122, 16
  %v136 = vshll.u32 %v122, 16
  %v138 = vrot.slane %v136, 1
  %v139 = vor.u32 %v134, %v138
  %v141 = vshll.u32 %v123, 16
  %v143 = vrot.slane %v141, 1
  %v144 = vsel %vm67, %v139, %v143
  %v145 = vshrl.u32 %v123, 16
  %v147 = vor.u32 %v145, %v143
  %v149 = vshll.u32 %v124, 16
  %v151 = vrot.slane %v149, 1
  %v152 = vsel %vm67, %v147, %v151
  %v153 = vshrl.u32 %v124, 16
  %v155 = vor.u32 %v153, %v151
  %v157 = vshll.u32 %v125, 16
  %v159 = vrot.slane %v157, 1
  %v160 = vsel %vm67, %v155, %v159
  %v161 = vshrl.u32 %v125, 16
  %v163 = vor.u32 %v161, %v159
  %v165 = vshll.u32 %v132, 16
  %v167 = vrot.slane %v165, 1
  %v168 = vsel %vm67, %v163, %v167
  %v173 = vrot.slane %v122, 1
  %v174 = vrot.slane %v123, 1
  %v175 = vsel %vm108, %v173, %v174
  %v176 = vrot.slane %v124, 1
  %v177 = vsel %vm108, %v174, %v176
  %v178 = vrot.slane %v125, 1
  %v179 = vsel %vm108, %v176, %v178
  %v180 = vrot.slane %v132, 1
  %v181 = vsel %vm108, %v178, %v180
  %v186 = vpack.c.b16 %v131, %v65
  %v189 = vunpack.c.l.b16 %v39
  %v190 = vpack.c.b16 %v189, %v189
  %v192 = vshll.u32 %v186, 16
  %v194 = vrot.slane %v192, 1
  %v195 = vsel %vm67, %v98, %v194
  %v196 = vshrl.u32 %v186, 16
  %v198 = vor.u32 %v196, %v194
  %v200 = vshll.u32 %v190, 16
  %v202 = vrot.slane %v200, 1
  %v203 = vsel %vm67, %v198, %v202
  %v206 = vrot.slane %v186, 1
  %v207 = vsel %vm108, %v114, %v206
  %v208 = vrot.slane %v190, 1
  %v209 = vsel %vm108, %v206, %v208
  %v212 = vld [vmem:[%s1] sm:$0xf]
  %v213 = vld [vmem:[%s1 + $0x4] sm:$0xf]
  %v214 = vld [vmem:[%s1 + $0x8] sm:$0xf]
  %v215 = vld [vmem:[%s1 + $0xc] sm:$0xf]
  %v216 = vld [vmem:[%s1 + $0x10] sm:$0xf]
  %v217 = vld [vmem:[%s1 + $0x14] sm:$0xf]
  %v218 = vld [vmem:[%s1 + $0x18] sm:$0xf]
  %v219 = vld [vmem:[%s1 + $0x1c] sm:$0xf]
  %v220 = vld [vmem:[%s1 + $0x20] sm:$0xf]
  %v221 = vld [vmem:[%s1 + $0x24] sm:$0xf]
  %v222 = vld [vmem:[%s1 + $0x28] sm:$0xf]
  %v223 = vld [vmem:[%s1 + $0x2c] sm:$0xf]
  %v224 = vld [vmem:[%s1 + $0x30] sm:$0xf]
  %v225 = vld [vmem:[%s1 + $0x34] sm:$0xf]
  %v226 = vld [vmem:[%s1 + $0x38] sm:$0xf]
  %v227 = vld [vmem:[%s1 + $0x3c] sm:$0xf]
  %v228 = vld [vmem:[%s1 + $0x40] sm:$0xf]
  %v229 = vld [vmem:[%s1 + $0x44] sm:$0xf]
  %v230 = vld [vmem:[%s1 + $0x48] sm:$0xf]
  %v231 = vld [vmem:[%s1 + $0x4c] sm:$0xf]
  %v232 = vld [vmem:[%s1 + $0x50] sm:$0xf]
  %v233 = vld [vmem:[%s1 + $0x54] sm:$0xf]
  %v234 = vld [vmem:[%s1 + $0x58] sm:$0xf]
  %v235 = vld [vmem:[%s1 + $0x5c] sm:$0xf]
  %v236 = vld [vmem:[%s1 + $0x60] sm:$0xf]
  %v237 = vld [vmem:[%s1 + $0x64] sm:$0xf]
  %v238 = vld [vmem:[%s1 + $0x68] sm:$0xf]
  %v239 = vld [vmem:[%s1 + $0x6c] sm:$0xf]
  %v240 = vld [vmem:[%s1 + $0x70] sm:$0xf]
  %v241 = vld [vmem:[%s1 + $0x74] sm:$0xf]
  %v242 = vld [vmem:[%s1 + $0x78] sm:$0xf]
  %v243 = vld [vmem:[%s1 + $0x7c] sm:$0xf]
  %v244 = vld [vmem:[%s1 + $0x80] sm:$0xf]
  %v245 = vld [vmem:[%s1 + $0x84] sm:$0xf]
  %v246 = vld [vmem:[%s1 + $0x88] sm:$0xf]
  %v247 = vld [vmem:[%s1 + $0x8c] sm:$0xf]
  %v248 = vld [vmem:[%s1 + $0x90] sm:$0xf]
  %v249 = vld [vmem:[%s1 + $0x94] sm:$0xf]
  %v250 = vld [vmem:[%s1 + $0x98] sm:$0xf]
  %v251 = vld [vmem:[%s1 + $0x9c] sm:$0xf]
  %v252 = vld [vmem:[%s1 + $0xa0] sm:$0xf]
  %v253 = vld [vmem:[%s1 + $0xa4] sm:$0xf]
  %v254 = vld [vmem:[%s1 + $0xa8] sm:$0xf]
  %v255 = vld [vmem:[%s1 + $0xac] sm:$0xf]
  %v256 = vld [vmem:[%s1 + $0xb0] sm:$0xf]
  %v257 = vld [vmem:[%s1 + $0xb4] sm:$0xf]
  %v258 = vld [vmem:[%s1 + $0xb8] sm:$0xf]
  %v259 = vld [vmem:[%s1 + $0xbc] sm:$0xf]
  %v260 = vld [vmem:[%s1 + $0xc0] sm:$0xf]
  %v261 = vld [vmem:[%s1 + $0xc4] sm:$0xf]
  %v262 = vld [vmem:[%s1 + $0xc8] sm:$0xf]
  %v263 = vld [vmem:[%s1 + $0xcc] sm:$0xf]
  %v264 = vld [vmem:[%s1 + $0xd0] sm:$0xf]
  %v265 = vld [vmem:[%s1 + $0xd4] sm:$0xf]
  %v266 = vld [vmem:[%s1 + $0xd8] sm:$0xf]
  %v267 = vld [vmem:[%s1 + $0xdc] sm:$0xf]
  %v268 = vld [vmem:[%s1 + $0xe0] sm:$0xf]
  %v269 = vld [vmem:[%s1 + $0xe4] sm:$0xf]
  %v270 = vld [vmem:[%s1 + $0xe8] sm:$0xf]
  %v271 = vld [vmem:[%s1 + $0xec] sm:$0xf]
  %v272 = vld [vmem:[%s1 + $0xf0] sm:$0xf]
  %v273 = vld [vmem:[%s1 + $0xf4] sm:$0xf]
  %v274 = vld [vmem:[%s1 + $0xf8] sm:$0xf]
  %v275 = vld [vmem:[%s1 + $0xfc] sm:$0xf]
  %v276 = vld [vmem:[%s1 + $0x100] sm:$0xf]
  %v277 = vld [vmem:[%s1 + $0x104] sm:$0xf]
  %v278 = vld [vmem:[%s1 + $0x108] sm:$0xf]
  %v279 = vld [vmem:[%s1 + $0x10c] sm:$0xf]
  %v280 = vld [vmem:[%s1 + $0x110] sm:$0xf]
  %v281 = vld [vmem:[%s1 + $0x114] sm:$0xf]
  %v282 = vld [vmem:[%s1 + $0x118] sm:$0xf]
  %v283 = vld [vmem:[%s1 + $0x11c] sm:$0xf]
  %v284 = vld [vmem:[%s1 + $0x120] sm:$0xf]
  %v285 = vld [vmem:[%s1 + $0x124] sm:$0xf]
  %v286 = vld [vmem:[%s1 + $0x128] sm:$0xf]
  %v287 = vld [vmem:[%s1 + $0x12c] sm:$0xf]
  %v288 = vld [vmem:[%s1 + $0x130] sm:$0xf]
  %v289 = vld [vmem:[%s1 + $0x134] sm:$0xf]
  %v290 = vld [vmem:[%s1 + $0x138] sm:$0xf]
  %v291 = vld [vmem:[%s1 + $0x13c] sm:$0xf]
  %v292 = vld [vmem:[%s1 + $0x140] sm:$0xf]
  %v293 = vld [vmem:[%s1 + $0x144] sm:$0xf]
  %v294 = vld [vmem:[%s1 + $0x148] sm:$0xf]
  %v295 = vld [vmem:[%s1 + $0x14c] sm:$0xf]
  %v296 = vld [vmem:[%s1 + $0x150] sm:$0xf]
  %v297 = vld [vmem:[%s1 + $0x154] sm:$0xf]
  %v298 = vld [vmem:[%s1 + $0x158] sm:$0xf]
  %v299 = vld [vmem:[%s1 + $0x15c] sm:$0xf]
  %v300 = vld [vmem:[%s1 + $0x160] sm:$0xf]
  %v301 = vld [vmem:[%s1 + $0x164] sm:$0xf]
  %v302 = vld [vmem:[%s1 + $0x168] sm:$0xf]
  %v303 = vld [vmem:[%s1 + $0x16c] sm:$0xf]
  %v304 = vld [vmem:[%s1 + $0x170] sm:$0xf]
  %v305 = vld [vmem:[%s1 + $0x174] sm:$0xf]
  %v306 = vld [vmem:[%s1 + $0x178] sm:$0xf]
  %v307 = vld [vmem:[%s1 + $0x17c] sm:$0xf]
  %v308 = vld [vmem:[%s1 + $0x180] sm:$0xf]
  %v309 = vld [vmem:[%s1 + $0x184] sm:$0xf]
  %v310 = vld [vmem:[%s1 + $0x188] sm:$0xf]
  %v311 = vld [vmem:[%s1 + $0x18c] sm:$0xf]
  %v312 = vld [vmem:[%s1 + $0x190] sm:$0xf]
  %v313 = vld [vmem:[%s1 + $0x194] sm:$0xf]
  %v314 = vld [vmem:[%s1 + $0x198] sm:$0xf]
  %v315 = vld [vmem:[%s1 + $0x19c] sm:$0xf]
  %v316 = vld [vmem:[%s1 + $0x1a0] sm:$0xf]
  %v317 = vld [vmem:[%s1 + $0x1a4] sm:$0xf]
  %v318 = vld [vmem:[%s1 + $0x1a8] sm:$0xf]
  %v319 = vld [vmem:[%s1 + $0x1ac] sm:$0xf]
  %v320 = vld [vmem:[%s1 + $0x1b0] sm:$0xf]
  %v321 = vld [vmem:[%s1 + $0x1b4] sm:$0xf]
  %v322 = vld [vmem:[%s1 + $0x1b8] sm:$0xf]
  %v323 = vld [vmem:[%s1 + $0x1bc] sm:$0xf]
  %v324 = vld [vmem:[%s1 + $0x1c0] sm:$0xf]
  %v325 = vld [vmem:[%s1 + $0x1c4] sm:$0xf]
  %v326 = vld [vmem:[%s1 + $0x1c8] sm:$0xf]
  %v327 = vld [vmem:[%s1 + $0x1cc] sm:$0xf]
  %v328 = vld [vmem:[%s1 + $0x1d0] sm:$0xf]
  %v329 = vld [vmem:[%s1 + $0x1d4] sm:$0xf]
  %v330 = vld [vmem:[%s1 + $0x1d8] sm:$0xf]
  %v331 = vld [vmem:[%s1 + $0x1dc] sm:$0xf]
  %v332 = vld [vmem:[%s1 + $0x1e0] sm:$0xf]
  %v333 = vld [vmem:[%s1 + $0x1e4] sm:$0xf]
  %v334 = vld [vmem:[%s1 + $0x1e8] sm:$0xf]
  %v335 = vld [vmem:[%s1 + $0x1ec] sm:$0xf]
  %v336 = vld [vmem:[%s1 + $0x1f0] sm:$0xf]
  %v337 = vld [vmem:[%s1 + $0x1f4] sm:$0xf]
  %v338 = vld [vmem:[%s1 + $0x1f8] sm:$0xf]
  %v339 = vld [vmem:[%s1 + $0x1fc] sm:$0xf]
  %v340 = vld [vmem:[%s1 + $0x200] sm:$0xf]
  %v341 = vld [vmem:[%s1 + $0x204] sm:$0xf]
  %v342 = vld [vmem:[%s1 + $0x208] sm:$0xf]
  %v343 = vld [vmem:[%s1 + $0x20c] sm:$0xf]
  %v344 = vld [vmem:[%s1 + $0x210] sm:$0xf]
  %v345 = vld [vmem:[%s1 + $0x214] sm:$0xf]
  %v346 = vld [vmem:[%s1 + $0x218] sm:$0xf]
  %v347 = vld [vmem:[%s1 + $0x21c] sm:$0xf]
  %v348 = vld [vmem:[%s1 + $0x220] sm:$0xf]
  %v349 = vld [vmem:[%s1 + $0x224] sm:$0xf]
  %v350 = vld [vmem:[%s1 + $0x228] sm:$0xf]
  %v351 = vld [vmem:[%s1 + $0x22c] sm:$0xf]
  %v352 = vld [vmem:[%s1 + $0x230] sm:$0xf]
  %v353 = vld [vmem:[%s1 + $0x234] sm:$0xf]
  %v354 = vld [vmem:[%s1 + $0x238] sm:$0xf]
  %v355 = vld [vmem:[%s1 + $0x23c] sm:$0xf]
  %v500 = vunpack.c.l.b16 %v212
  %v501 = vunpack.c.l.b16 %v213
  %v502 = vunpack.c.l.b16 %v214
  %v503 = vunpack.c.l.b16 %v215
  %v504 = vunpack.c.l.b16 %v216
  %v505 = vunpack.c.l.b16 %v217
  %v506 = vunpack.c.l.b16 %v218
  %v507 = vunpack.c.l.b16 %v219
  %v508 = vunpack.c.l.b16 %v220
  %v509 = vunpack.c.l.b16 %v221
  %v510 = vunpack.c.l.b16 %v222
  %v511 = vunpack.c.l.b16 %v223
  %v512 = vunpack.c.l.b16 %v224
  %v513 = vunpack.c.l.b16 %v225
  %v514 = vunpack.c.l.b16 %v226
  %v515 = vunpack.c.l.b16 %v227
  %v516 = vunpack.c.l.b16 %v228
  %v517 = vunpack.c.l.b16 %v229
  %v518 = vunpack.c.l.b16 %v230
  %v519 = vunpack.c.l.b16 %v231
  %v520 = vunpack.c.l.b16 %v232
  %v521 = vunpack.c.l.b16 %v233
  %v522 = vunpack.c.l.b16 %v234
  %v523 = vunpack.c.l.b16 %v235
  %v524 = vunpack.c.l.b16 %v236
  %v525 = vunpack.c.l.b16 %v237
  %v526 = vunpack.c.l.b16 %v238
  %v527 = vunpack.c.l.b16 %v239
  %v528 = vunpack.c.l.b16 %v240
  %v529 = vunpack.c.l.b16 %v241
  %v530 = vunpack.c.l.b16 %v242
  %v531 = vunpack.c.l.b16 %v243
  %v532 = vunpack.c.l.b16 %v244
  %v533 = vunpack.c.l.b16 %v245
  %v534 = vunpack.c.l.b16 %v246
  %v535 = vunpack.c.l.b16 %v247
  %v536 = vunpack.c.l.b16 %v248
  %v537 = vunpack.c.l.b16 %v249
  %v538 = vunpack.c.l.b16 %v250
  %v539 = vunpack.c.l.b16 %v251
  %v540 = vunpack.c.l.b16 %v252
  %v541 = vunpack.c.l.b16 %v253
  %v542 = vunpack.c.l.b16 %v254
  %v543 = vunpack.c.l.b16 %v255
  %v544 = vunpack.c.l.b16 %v256
  %v545 = vunpack.c.l.b16 %v257
  %v546 = vunpack.c.l.b16 %v258
  %v547 = vunpack.c.l.b16 %v259
  %v548 = vunpack.c.l.b16 %v260
  %v549 = vunpack.c.l.b16 %v261
  %v550 = vunpack.c.l.b16 %v262
  %v551 = vunpack.c.l.b16 %v263
  %v552 = vunpack.c.l.b16 %v264
  %v553 = vunpack.c.l.b16 %v265
  %v554 = vunpack.c.l.b16 %v266
  %v555 = vunpack.c.l.b16 %v267
  %v556 = vunpack.c.l.b16 %v268
  %v557 = vunpack.c.l.b16 %v269
  %v558 = vunpack.c.l.b16 %v270
  %v559 = vunpack.c.l.b16 %v271
  %v560 = vunpack.c.l.b16 %v272
  %v561 = vunpack.c.l.b16 %v273
  %v562 = vunpack.c.l.b16 %v274
  %v563 = vunpack.c.l.b16 %v275
  %v564 = vunpack.c.l.b16 %v276
  %v565 = vunpack.c.l.b16 %v277
  %v566 = vunpack.c.l.b16 %v278
  %v567 = vunpack.c.l.b16 %v279
  %v568 = vunpack.c.l.b16 %v280
  %v569 = vunpack.c.l.b16 %v281
  %v570 = vunpack.c.l.b16 %v282
  %v571 = vunpack.c.l.b16 %v283
  %v572 = vunpack.c.l.b16 %v284
  %v573 = vunpack.c.l.b16 %v285
  %v574 = vunpack.c.l.b16 %v286
  %v575 = vunpack.c.l.b16 %v287
  %v576 = vunpack.c.l.b16 %v288
  %v577 = vunpack.c.l.b16 %v289
  %v578 = vunpack.c.l.b16 %v290
  %v579 = vunpack.c.l.b16 %v291
  %v580 = vunpack.c.l.b16 %v292
  %v581 = vunpack.c.l.b16 %v293
  %v582 = vunpack.c.l.b16 %v294
  %v583 = vunpack.c.l.b16 %v295
  %v584 = vunpack.c.l.b16 %v296
  %v585 = vunpack.c.l.b16 %v297
  %v586 = vunpack.c.l.b16 %v298
  %v587 = vunpack.c.l.b16 %v299
  %v588 = vunpack.c.l.b16 %v300
  %v589 = vunpack.c.l.b16 %v301
  %v590 = vunpack.c.l.b16 %v302
  %v591 = vunpack.c.l.b16 %v303
  %v592 = vunpack.c.l.b16 %v304
  %v593 = vunpack.c.l.b16 %v305
  %v594 = vunpack.c.l.b16 %v306
  %v595 = vunpack.c.l.b16 %v307
  %v596 = vunpack.c.l.b16 %v308
  %v597 = vunpack.c.l.b16 %v309
  %v598 = vunpack.c.l.b16 %v310
  %v599 = vunpack.c.l.b16 %v311
  %v600 = vunpack.c.l.b16 %v312
  %v601 = vunpack.c.l.b16 %v313
  %v602 = vunpack.c.l.b16 %v314
  %v603 = vunpack.c.l.b16 %v315
  %v604 = vunpack.c.l.b16 %v316
  %v605 = vunpack.c.l.b16 %v317
  %v606 = vunpack.c.l.b16 %v318
  %v607 = vunpack.c.l.b16 %v319
  %v608 = vunpack.c.l.b16 %v320
  %v609 = vunpack.c.l.b16 %v321
  %v610 = vunpack.c.l.b16 %v322
  %v611 = vunpack.c.l.b16 %v323
  %v612 = vunpack.c.l.b16 %v324
  %v613 = vunpack.c.l.b16 %v325
  %v614 = vunpack.c.l.b16 %v326
  %v615 = vunpack.c.l.b16 %v327
  %v616 = vunpack.c.l.b16 %v328
  %v617 = vunpack.c.l.b16 %v329
  %v618 = vunpack.c.l.b16 %v330
  %v619 = vunpack.c.l.b16 %v331
  %v620 = vunpack.c.l.b16 %v332
  %v621 = vunpack.c.l.b16 %v333
  %v622 = vunpack.c.l.b16 %v334
  %v623 = vunpack.c.l.b16 %v335
  %v624 = vunpack.c.l.b16 %v336
  %v625 = vunpack.c.l.b16 %v337
  %v626 = vunpack.c.l.b16 %v338
  %v627 = vunpack.c.l.b16 %v339
  %v628 = vunpack.c.l.b16 %v340
  %v629 = vunpack.c.l.b16 %v341
  %v630 = vunpack.c.l.b16 %v342
  %v631 = vunpack.c.l.b16 %v343
  %v632 = vunpack.c.l.b16 %v344
  %v633 = vunpack.c.l.b16 %v345
  %v634 = vunpack.c.l.b16 %v346
  %v635 = vunpack.c.l.b16 %v347
  %v636 = vunpack.c.l.b16 %v348
  %v637 = vunpack.c.l.b16 %v349
  %v638 = vunpack.c.l.b16 %v350
  %v639 = vunpack.c.l.b16 %v351
  %v640 = vunpack.c.l.b16 %v352
  %v641 = vunpack.c.l.b16 %v353
  %v642 = vunpack.c.l.b16 %v354
  %v643 = vunpack.c.l.b16 %v355
  %v644 = vpack.c.b16 %v501, %v500
  %v645 = vpack.c.b16 %v503, %v502
  %v646 = vpack.c.b16 %v505, %v504
  %v647 = vpack.c.b16 %v507, %v506
  %v648 = vpack.c.b16 %v509, %v508
  %v649 = vpack.c.b16 %v511, %v510
  %v650 = vpack.c.b16 %v513, %v512
  %v651 = vpack.c.b16 %v515, %v514
  %v652 = vpack.c.b16 %v517, %v516
  %v653 = vpack.c.b16 %v519, %v518
  %v654 = vpack.c.b16 %v521, %v520
  %v655 = vpack.c.b16 %v523, %v522
  %v656 = vpack.c.b16 %v525, %v524
  %v657 = vpack.c.b16 %v527, %v526
  %v658 = vpack.c.b16 %v529, %v528
  %v659 = vpack.c.b16 %v531, %v530
  %v660 = vpack.c.b16 %v533, %v532
  %v661 = vpack.c.b16 %v535, %v534
  %v662 = vpack.c.b16 %v537, %v536
  %v663 = vpack.c.b16 %v539, %v538
  %v664 = vpack.c.b16 %v541, %v540
  %v665 = vpack.c.b16 %v543, %v542
  %v666 = vpack.c.b16 %v545, %v544
  %v667 = vpack.c.b16 %v547, %v546
  %v668 = vpack.c.b16 %v549, %v548
  %v669 = vpack.c.b16 %v551, %v550
  %v670 = vpack.c.b16 %v553, %v552
  %v671 = vpack.c.b16 %v555, %v554
  %v672 = vpack.c.b16 %v557, %v556
  %v673 = vpack.c.b16 %v559, %v558
  %v674 = vpack.c.b16 %v561, %v560
  %v675 = vpack.c.b16 %v563, %v562
  %v676 = vpack.c.b16 %v565, %v564
  %v677 = vpack.c.b16 %v567, %v566
  %v678 = vpack.c.b16 %v569, %v568
  %v679 = vpack.c.b16 %v571, %v570
  %v680 = vpack.c.b16 %v573, %v572
  %v681 = vpack.c.b16 %v575, %v574
  %v682 = vpack.c.b16 %v577, %v576
  %v683 = vpack.c.b16 %v579, %v578
  %v684 = vpack.c.b16 %v581, %v580
  %v685 = vpack.c.b16 %v583, %v582
  %v686 = vpack.c.b16 %v585, %v584
  %v687 = vpack.c.b16 %v587, %v586
  %v688 = vpack.c.b16 %v589, %v588
  %v689 = vpack.c.b16 %v591, %v590
  %v690 = vpack.c.b16 %v593, %v592
  %v691 = vpack.c.b16 %v595, %v594
  %v692 = vpack.c.b16 %v597, %v596
  %v693 = vpack.c.b16 %v599, %v598
  %v694 = vpack.c.b16 %v601, %v600
  %v695 = vpack.c.b16 %v603, %v602
  %v696 = vpack.c.b16 %v605, %v604
  %v697 = vpack.c.b16 %v607, %v606
  %v698 = vpack.c.b16 %v609, %v608
  %v699 = vpack.c.b16 %v611, %v610
  %v700 = vpack.c.b16 %v613, %v612
  %v701 = vpack.c.b16 %v615, %v614
  %v702 = vpack.c.b16 %v617, %v616
  %v703 = vpack.c.b16 %v619, %v618
  %v704 = vpack.c.b16 %v621, %v620
  %v705 = vpack.c.b16 %v623, %v622
  %v706 = vpack.c.b16 %v625, %v624
  %v707 = vpack.c.b16 %v627, %v626
  %v708 = vpack.c.b16 %v629, %v628
  %v709 = vpack.c.b16 %v631, %v630
  %v710 = vpack.c.b16 %v633, %v632
  %v711 = vpack.c.b16 %v635, %v634
  %v712 = vpack.c.b16 %v637, %v636
  %v713 = vpack.c.b16 %v639, %v638
  %v714 = vpack.c.b16 %v641, %v640
  %v715 = vpack.c.b16 %v643, %v642
  %788 = vmatprep.subr.bf16.mxu0 0
  %789 = vmatpush1.bf16.msra.mxu0 %v644
  %790 = vmatprep.subr.bf16.mxu0 0
  %791 = vmatpush1.bf16.msra.mxu0 %v645
  %792 = vmatprep.subr.bf16.mxu0 0
  %793 = vmatpush1.bf16.msra.mxu0 %v646
  %794 = vmatprep.subr.bf16.mxu0 0
  %795 = vmatpush1.bf16.msra.mxu0 %v647
  %796 = vmatprep.subr.bf16.mxu0 0
  %797 = vmatpush1.bf16.msra.mxu0 %v648
  %798 = vmatprep.subr.bf16.mxu0 0
  %799 = vmatpush1.bf16.msra.mxu0 %v649
  %800 = vmatprep.subr.bf16.mxu0 0
  %801 = vmatpush1.bf16.msra.mxu0 %v650
  %802 = vmatprep.subr.bf16.mxu0 0
  %803 = vmatpush1.bf16.msra.mxu0 %v651
  %804 = vmatprep.subr.bf16.mxu0 0
  %805 = vmatpush1.bf16.msra.mxu0 %v652
  %806 = vmatprep.subr.bf16.mxu0 0
  %807 = vmatpush1.bf16.msra.mxu0 %v653
  %808 = vmatprep.subr.bf16.mxu0 0
  %809 = vmatpush1.bf16.msra.mxu0 %v654
  %810 = vmatprep.subr.bf16.mxu0 0
  %811 = vmatpush1.bf16.msra.mxu0 %v655
  %812 = vmatprep.subr.bf16.mxu0 0
  %813 = vmatpush1.bf16.msra.mxu0 %v656
  %814 = vmatprep.subr.bf16.mxu0 0
  %815 = vmatpush1.bf16.msra.mxu0 %v657
  %816 = vmatprep.subr.bf16.mxu0 0
  %817 = vmatpush1.bf16.msra.mxu0 %v658
  %818 = vmatprep.subr.bf16.mxu0 0
  %819 = vmatpush1.bf16.msra.mxu0 %v659
  %820 = vmatprep.mubr.bf16.mxu0 %v79
  %821 = vmatmul.mubr.bf16.gmra.mrb[0].mxu0 %v56
  %v822 = vpop.f32.mrb[0].mxu0
  %v823 = vadd.f32 0.0, %v822
  %v824 = vpop.f32.mrb[0].mxu0
  %v825 = vpop.f32.mrb[0].mxu0
  %v826 = vadd.f32 0.0, %v825
  %v827 = vpop.f32.mrb[0].mxu0
  %828 = vmatprep.mubr.bf16.mxu0 %v87
  %829 = vmatmul.mubr.bf16.gmra.mrb[0].mxu0 %v57
  %v830 = vpop.f32.mrb[0].mxu0
  %v831 = vadd.f32 0.0, %v830
  %v832 = vpop.f32.mrb[0].mxu0
  %v833 = vpop.f32.mrb[0].mxu0
  %v834 = vadd.f32 0.0, %v833
  %v835 = vpop.f32.mrb[0].mxu0
  %836 = vmatprep.mubr.bf16.mxu0 %v95
  %837 = vmatmul.mubr.bf16.gmra.mrb[0].mxu0 %v58
  %v838 = vpop.f32.mrb[0].mxu0
  %v839 = vadd.f32 0.0, %v838
  %v840 = vpop.f32.mrb[0].mxu0
  %v841 = vpop.f32.mrb[0].mxu0
  %v842 = vadd.f32 0.0, %v841
  %v843 = vpop.f32.mrb[0].mxu0
  %844 = vmatprep.mubr.bf16.mxu0 %v103
  %845 = vmatmul.mubr.bf16.gmra.mrb[0].mxu0 %v59
  %v846 = vpop.f32.mrb[0].mxu0
  %v847 = vadd.f32 0.0, %v846
  %v848 = vpop.f32.mrb[0].mxu0
  %v849 = vpop.f32.mrb[0].mxu0
  %v850 = vadd.f32 0.0, %v849
  %v851 = vpop.f32.mrb[0].mxu0
  %852 = vdwg.mxu0
  %853 = vmatprep.subr.bf16.mxu0 0
  %854 = vmatpush1.bf16.msra.mxu0 %v660
  %855 = vmatprep.subr.bf16.mxu0 0
  %856 = vmatpush1.bf16.msra.mxu0 %v661
  %857 = vmatprep.subr.bf16.mxu0 0
  %858 = vmatpush1.bf16.msra.mxu0 %v662
  %859 = vmatprep.subr.bf16.mxu0 0
  %860 = vmatpush1.bf16.msra.mxu0 %v663
  %861 = vmatprep.subr.bf16.mxu0 0
  %862 = vmatpush1.bf16.msra.mxu0 %v664
  %863 = vmatprep.subr.bf16.mxu0 0
  %864 = vmatpush1.bf16.msra.mxu0 %v665
  %865 = vmatprep.subr.bf16.mxu0 0
  %866 = vmatpush1.bf16.msra.mxu0 %v666
  %867 = vmatprep.subr.bf16.mxu0 0
  %868 = vmatpush1.bf16.msra.mxu0 %v667
  %869 = vmatprep.subr.bf16.mxu0 0
  %870 = vmatpush1.bf16.msra.mxu0 %v668
  %871 = vmatprep.subr.bf16.mxu0 0
  %872 = vmatpush1.bf16.msra.mxu0 %v669
  %873 = vmatprep.subr.bf16.mxu0 0
  %874 = vmatpush1.bf16.msra.mxu0 %v670
  %875 = vmatprep.subr.bf16.mxu0 0
  %876 = vmatpush1.bf16.msra.mxu0 %v671
  %877 = vmatprep.subr.bf16.mxu0 0
  %878 = vmatpush1.bf16.msra.mxu0 %v672
  %879 = vmatprep.subr.bf16.mxu0 0
  %880 = vmatpush1.bf16.msra.mxu0 %v673
  %881 = vmatprep.subr.bf16.mxu0 0
  %882 = vmatpush1.bf16.msra.mxu0 %v674
  %883 = vmatprep.subr.bf16.mxu0 0
  %884 = vmatpush1.bf16.msra.mxu0 %v675
  %885 = vmatprep.mubr.bf16.mxu0 %v122
  %886 = vmatmul.mubr.bf16.gmra.mrb[0].mxu0 %v111
  %v887 = vpop.f32.mrb[0].mxu0
  %v888 = vadd.f32 %v823, %v887
  %v889 = vpop.f32.mrb[0].mxu0
  %v890 = vpop.f32.mrb[0].mxu0
  %v891 = vadd.f32 %v826, %v890
  %v892 = vpop.f32.mrb[0].mxu0
  %893 = vmatprep.mubr.bf16.mxu0 %v123
  %894 = vmatmul.mubr.bf16.gmra.mrb[0].mxu0 %v113
  %v895 = vpop.f32.mrb[0].mxu0
  %v896 = vadd.f32 %v831, %v895
  %v897 = vpop.f32.mrb[0].mxu0
  %v898 = vpop.f32.mrb[0].mxu0
  %v899 = vadd.f32 %v834, %v898
  %v900 = vpop.f32.mrb[0].mxu0
  %901 = vmatprep.mubr.bf16.mxu0 %v124
  %902 = vmatmul.mubr.bf16.gmra.mrb[0].mxu0 %v115
  %v903 = vpop.f32.mrb[0].mxu0
  %v904 = vadd.f32 %v839, %v903
  %v905 = vpop.f32.mrb[0].mxu0
  %v906 = vpop.f32.mrb[0].mxu0
  %v907 = vadd.f32 %v842, %v906
  %v908 = vpop.f32.mrb[0].mxu0
  %909 = vmatprep.mubr.bf16.mxu0 %v125
  %910 = vmatmul.mubr.bf16.gmra.mrb[0].mxu0 %v117
  %v911 = vpop.f32.mrb[0].mxu0
  %v912 = vadd.f32 %v847, %v911
  %v913 = vpop.f32.mrb[0].mxu0
  %v914 = vpop.f32.mrb[0].mxu0
  %v915 = vadd.f32 %v850, %v914
  %v916 = vpop.f32.mrb[0].mxu0
  %917 = vdwg.mxu0
  %918 = vmatprep.subr.bf16.mxu0 0
  %919 = vmatpush1.bf16.msra.mxu0 %v676
  %920 = vmatprep.subr.bf16.mxu0 0
  %921 = vmatpush1.bf16.msra.mxu0 %v677
  %922 = vmatprep.subr.bf16.mxu0 0
  %923 = vmatpush1.bf16.msra.mxu0 %v678
  %924 = vmatprep.subr.bf16.mxu0 0
  %925 = vmatpush1.bf16.msra.mxu0 %v679
  %926 = vmatprep.subr.bf16.mxu0 0
  %927 = vmatpush1.bf16.msra.mxu0 %v680
  %928 = vmatprep.subr.bf16.mxu0 0
  %929 = vmatpush1.bf16.msra.mxu0 %v681
  %930 = vmatprep.subr.bf16.mxu0 0
  %931 = vmatpush1.bf16.msra.mxu0 %v682
  %932 = vmatprep.subr.bf16.mxu0 0
  %933 = vmatpush1.bf16.msra.mxu0 %v683
  %934 = vmatprep.subr.bf16.mxu0 0
  %935 = vmatpush1.bf16.msra.mxu0 %v684
  %936 = vmatprep.subr.bf16.mxu0 0
  %937 = vmatpush1.bf16.msra.mxu0 %v685
  %938 = vmatprep.subr.bf16.mxu0 0
  %939 = vmatpush1.bf16.msra.mxu0 %v686
  %940 = vmatprep.subr.bf16.mxu0 0
  %941 = vmatpush1.bf16.msra.mxu0 %v687
  %942 = vmatprep.subr.bf16.mxu0 0
  %943 = vmatpush1.bf16.msra.mxu0 %v688
  %944 = vmatprep.subr.bf16.mxu0 0
  %945 = vmatpush1.bf16.msra.mxu0 %v689
  %946 = vmatprep.subr.bf16.mxu0 0
  %947 = vmatpush1.bf16.msra.mxu0 %v690
  %948 = vmatprep.subr.bf16.mxu0 0
  %949 = vmatpush1.bf16.msra.mxu0 %v691
  %950 = vmatprep.mubr.bf16.mxu0 %v175
  %951 = vmatmul.mubr.bf16.gmra.mrb[0].mxu0 %v144
  %v952 = vpop.f32.mrb[0].mxu0
  %v953 = vadd.f32 %v888, %v952
  %v954 = vpop.f32.mrb[0].mxu0
  %v955 = vpop.f32.mrb[0].mxu0
  %v956 = vadd.f32 %v891, %v955
  %v957 = vpop.f32.mrb[0].mxu0
  %958 = vmatprep.mubr.bf16.mxu0 %v177
  %959 = vmatmul.mubr.bf16.gmra.mrb[0].mxu0 %v152
  %v960 = vpop.f32.mrb[0].mxu0
  %v961 = vadd.f32 %v896, %v960
  %v962 = vpop.f32.mrb[0].mxu0
  %v963 = vpop.f32.mrb[0].mxu0
  %v964 = vadd.f32 %v899, %v963
  %v965 = vpop.f32.mrb[0].mxu0
  %966 = vmatprep.mubr.bf16.mxu0 %v179
  %967 = vmatmul.mubr.bf16.gmra.mrb[0].mxu0 %v160
  %v968 = vpop.f32.mrb[0].mxu0
  %v969 = vadd.f32 %v904, %v968
  %v970 = vpop.f32.mrb[0].mxu0
  %v971 = vpop.f32.mrb[0].mxu0
  %v972 = vadd.f32 %v907, %v971
  %v973 = vpop.f32.mrb[0].mxu0
  %974 = vmatprep.mubr.bf16.mxu0 %v181
  %975 = vmatmul.mubr.bf16.gmra.mrb[0].mxu0 %v168
  %v976 = vpop.f32.mrb[0].mxu0
  %v977 = vadd.f32 %v912, %v976
  %v978 = vpop.f32.mrb[0].mxu0
  %v979 = vpop.f32.mrb[0].mxu0
  %v980 = vadd.f32 %v915, %v979
  %v981 = vpop.f32.mrb[0].mxu0
  %982 = vdwg.mxu0
  %983 = vmatprep.subr.bf16.mxu0 0
  %984 = vmatpush1.bf16.msra.mxu0 %v692
  %985 = vmatprep.subr.bf16.mxu0 0
  %986 = vmatpush1.bf16.msra.mxu0 %v693
  %987 = vmatprep.subr.bf16.mxu0 0
  %988 = vmatpush1.bf16.msra.mxu0 %v694
  %989 = vmatprep.subr.bf16.mxu0 0
  %990 = vmatpush1.bf16.msra.mxu0 %v695
  %991 = vmatprep.subr.bf16.mxu0 0
  %992 = vmatpush1.bf16.msra.mxu0 %v696
  %993 = vmatprep.subr.bf16.mxu0 0
  %994 = vmatpush1.bf16.msra.mxu0 %v697
  %995 = vmatprep.subr.bf16.mxu0 0
  %996 = vmatpush1.bf16.msra.mxu0 %v698
  %997 = vmatprep.subr.bf16.mxu0 0
  %998 = vmatpush1.bf16.msra.mxu0 %v699
  %999 = vmatprep.subr.bf16.mxu0 0
  %1000 = vmatpush1.bf16.msra.mxu0 %v700
  %1001 = vmatprep.subr.bf16.mxu0 0
  %1002 = vmatpush1.bf16.msra.mxu0 %v701
  %1003 = vmatprep.subr.bf16.mxu0 0
  %1004 = vmatpush1.bf16.msra.mxu0 %v702
  %1005 = vmatprep.subr.bf16.mxu0 0
  %1006 = vmatpush1.bf16.msra.mxu0 %v703
  %1007 = vmatprep.subr.bf16.mxu0 0
  %1008 = vmatpush1.bf16.msra.mxu0 %v704
  %1009 = vmatprep.subr.bf16.mxu0 0
  %1010 = vmatpush1.bf16.msra.mxu0 %v705
  %1011 = vmatprep.subr.bf16.mxu0 0
  %1012 = vmatpush1.bf16.msra.mxu0 %v706
  %1013 = vmatprep.subr.bf16.mxu0 0
  %1014 = vmatpush1.bf16.msra.mxu0 %v707
  %1015 = vmatprep.mubr.bf16.mxu0 %v87
  %1016 = vmatmul.mubr.bf16.gmra.mrb[0].mxu0 %v57
  %v1017 = vpop.f32.mrb[0].mxu0
  %v1018 = vadd.f32 %v953, %v1017
  %v1019 = vpop.f32.mrb[0].mxu0
  %v1020 = vpop.f32.mrb[0].mxu0
  %v1021 = vadd.f32 %v956, %v1020
  %v1022 = vpop.f32.mrb[0].mxu0
  %1023 = vmatprep.mubr.bf16.mxu0 %v95
  %1024 = vmatmul.mubr.bf16.gmra.mrb[0].mxu0 %v58
  %v1025 = vpop.f32.mrb[0].mxu0
  %v1026 = vadd.f32 %v961, %v1025
  %v1027 = vpop.f32.mrb[0].mxu0
  %v1028 = vpop.f32.mrb[0].mxu0
  %v1029 = vadd.f32 %v964, %v1028
  %v1030 = vpop.f32.mrb[0].mxu0
  %1031 = vmatprep.mubr.bf16.mxu0 %v195
  %1032 = vmatmul.mubr.bf16.gmra.mrb[0].mxu0 %v59
  %v1033 = vpop.f32.mrb[0].mxu0
  %v1034 = vadd.f32 %v969, %v1033
  %v1035 = vpop.f32.mrb[0].mxu0
  %v1036 = vpop.f32.mrb[0].mxu0
  %v1037 = vadd.f32 %v972, %v1036
  %v1038 = vpop.f32.mrb[0].mxu0
  %1039 = vmatprep.mubr.bf16.mxu0 %v203
  %1040 = vmatmul.mubr.bf16.gmra.mrb[0].mxu0 %v186
  %v1041 = vpop.f32.mrb[0].mxu0
  %v1042 = vadd.f32 %v977, %v1041
  %v1043 = vpop.f32.mrb[0].mxu0
  %v1044 = vpop.f32.mrb[0].mxu0
  %v1045 = vadd.f32 %v980, %v1044
  %v1046 = vpop.f32.mrb[0].mxu0
  %1047 = vdwg.mxu0
  %1048 = vmatprep.subr.bf16.mxu0 0
  %1049 = vmatpush1.bf16.msra.mxu0 %v708
  %1050 = vmatprep.subr.bf16.mxu0 0
  %1051 = vmatpush1.bf16.msra.mxu0 %v709
  %1052 = vmatprep.subr.bf16.mxu0 0
  %1053 = vmatpush1.bf16.msra.mxu0 %v710
  %1054 = vmatprep.subr.bf16.mxu0 0
  %1055 = vmatpush1.bf16.msra.mxu0 %v711
  %1056 = vmatprep.subr.bf16.mxu0 0
  %1057 = vmatpush1.bf16.msra.mxu0 %v712
  %1058 = vmatprep.subr.bf16.mxu0 0
  %1059 = vmatpush1.bf16.msra.mxu0 %v713
  %1060 = vmatprep.subr.bf16.mxu0 0
  %1061 = vmatpush1.bf16.msra.mxu0 %v714
  %1062 = vmatprep.subr.bf16.mxu0 0
  %1063 = vmatpush1.bf16.msra.mxu0 %v715
  %1064 = vmatprep.subr.bf16.mxu0 0
  %1065 = vmatpush1.bf16.msra.mxu0 0
  %1066 = vmatprep.subr.bf16.mxu0 0
  %1067 = vmatpush1.bf16.msra.mxu0 0
  %1068 = vmatprep.subr.bf16.mxu0 0
  %1069 = vmatpush1.bf16.msra.mxu0 0
  %1070 = vmatprep.subr.bf16.mxu0 0
  %1071 = vmatpush1.bf16.msra.mxu0 0
  %1072 = vmatprep.subr.bf16.mxu0 0
  %1073 = vmatpush1.bf16.msra.mxu0 0
  %1074 = vmatprep.subr.bf16.mxu0 0
  %1075 = vmatpush1.bf16.msra.mxu0 0
  %1076 = vmatprep.subr.bf16.mxu0 0
  %1077 = vmatpush1.bf16.msra.mxu0 0
  %1078 = vmatprep.subr.bf16.mxu0 0
  %1079 = vmatpush1.bf16.msra.mxu0 0
  %1080 = vmatprep.mubr.bf16.mxu0 0
  %1081 = vmatmul.mubr.bf16.gmra.mrb[0].mxu0 %v113
  %v1082 = vpop.f32.mrb[0].mxu0
  %v1083 = vadd.f32 %v1018, %v1082
  %v1084 = vpop.f32.mrb[0].mxu0
  %v1085 = vpop.f32.mrb[0].mxu0
  %v1086 = vadd.f32 %v1021, %v1085
  %v1087 = vpop.f32.mrb[0].mxu0
  %1088 = vmatprep.mubr.bf16.mxu0 0
  %1089 = vmatmul.mubr.bf16.gmra.mrb[0].mxu0 %v115
  %v1090 = vpop.f32.mrb[0].mxu0
  %v1091 = vadd.f32 %v1026, %v1090
  %v1092 = vpop.f32.mrb[0].mxu0
  %v1093 = vpop.f32.mrb[0].mxu0
  %v1094 = vadd.f32 %v1029, %v1093
  %v1095 = vpop.f32.mrb[0].mxu0
  %1096 = vmatprep.mubr.bf16.mxu0 0
  %1097 = vmatmul.mubr.bf16.gmra.mrb[0].mxu0 %v207
  %v1098 = vpop.f32.mrb[0].mxu0
  %v1099 = vadd.f32 %v1034, %v1098
  %v1100 = vpop.f32.mrb[0].mxu0
  %v1101 = vpop.f32.mrb[0].mxu0
  %v1102 = vadd.f32 %v1037, %v1101
  %v1103 = vpop.f32.mrb[0].mxu0
  %1104 = vmatprep.mubr.bf16.mxu0 0
  %1105 = vmatmul.mubr.bf16.gmra.mrb[0].mxu0 %v209
  %v1106 = vpop.f32.mrb[0].mxu0
  %v1107 = vadd.f32 %v1042, %v1106
  %v1108 = vpop.f32.mrb[0].mxu0
  %v1109 = vpop.f32.mrb[0].mxu0
  %v1110 = vadd.f32 %v1045, %v1109
  %v1111 = vpop.f32.mrb[0].mxu0
  %1112 = vdwg.mxu0
  %v1113 = vld [vmem:[%s2] sm:$0x1]
  %v1115 = vlaneseq
  %v1116 = vshrl.u32 %v1115, 7
  %v1117 = vsub.s32 0, %v1116
  %v1118 = vrot.slane %v1113, %v1117
  %v1120 = vmul.f32 %v1083, %v1118
  %v1121 = vmul.f32 %v1086, %v1118
  %v1122 = vmul.f32 %v1091, %v1118
  %v1123 = vmul.f32 %v1094, %v1118
  %v1124 = vmul.f32 %v1099, %v1118
  %v1125 = vmul.f32 %v1102, %v1118
  %v1126 = vmul.f32 %v1107, %v1118
  %v1127 = vmul.f32 %v1110, %v1118
  %v1128 = vld [vmem:[%s3] sm:$0x1]
  %v1130 = vlaneseq
  %v1131 = vshrl.u32 %v1130, 7
  %v1132 = vsub.s32 0, %v1131
  %v1133 = vrot.slane %v1128, %v1132
  %v1135 = vadd.f32 %v1120, %v1133
  %v1136 = vadd.f32 %v1121, %v1133
  %v1137 = vadd.f32 %v1122, %v1133
  %v1138 = vadd.f32 %v1123, %v1133
  %v1139 = vadd.f32 %v1124, %v1133
  %v1140 = vadd.f32 %v1125, %v1133
  %v1141 = vadd.f32 %v1126, %v1133
  %v1142 = vadd.f32 %v1127, %v1133
  %v1143 = vld [vmem:[%s5] sm:$0xf]
  %v1144 = vld [vmem:[%s5 + $0x4] sm:$0xf]
  %v1145 = vld [vmem:[%s5 + $0x8] sm:$0xf]
  %v1146 = vld [vmem:[%s5 + $0xc] sm:$0xf]
  %v1147 = vld [vmem:[%s5 + $0x10] sm:$0xf]
  %v1148 = vld [vmem:[%s5 + $0x14] sm:$0xf]
  %v1149 = vld [vmem:[%s5 + $0x18] sm:$0xf]
  %v1150 = vld [vmem:[%s5 + $0x1c] sm:$0xf]
  %v1151 = vunpack.c.l.bf16 %v1143
  %v1152 = vunpack.c.l.bf16 %v1144
  %v1153 = vunpack.c.l.bf16 %v1145
  %v1154 = vunpack.c.l.bf16 %v1146
  %v1155 = vunpack.c.l.bf16 %v1147
  %v1156 = vunpack.c.l.bf16 %v1148
  %v1157 = vunpack.c.l.bf16 %v1149
  %v1158 = vunpack.c.l.bf16 %v1150
  %v1159 = vadd.f32 %v1135, %v1151
  %v1160 = vadd.f32 %v1136, %v1152
  %v1161 = vadd.f32 %v1137, %v1153
  %v1162 = vadd.f32 %v1138, %v1154
  %v1163 = vadd.f32 %v1139, %v1155
  %v1164 = vadd.f32 %v1140, %v1156
  %v1165 = vadd.f32 %v1141, %v1157
  %v1166 = vadd.f32 %v1142, %v1158
  %v1167 = vmax.f32 %v1159, 0.0
  %v1168 = vmax.f32 %v1160, 0.0
  %v1169 = vmax.f32 %v1161, 0.0
  %v1170 = vmax.f32 %v1162, 0.0
  %v1171 = vmax.f32 %v1163, 0.0
  %v1172 = vmax.f32 %v1164, 0.0
  %v1173 = vmax.f32 %v1165, 0.0
  %v1174 = vmax.f32 %v1166, 0.0
  %v1175 = vld [vmem:[%s4] sm:$0xff]
  %v1176 = vld [vmem:[%s4 + $0x8] sm:$0xff]
  %v1177 = vld [vmem:[%s4 + $0x10] sm:$0xff]
  %v1178 = vld [vmem:[%s4 + $0x18] sm:$0xff]
  %v1179 = vld [vmem:[%s4 + $0x20] sm:$0xff]
  %v1180 = vld [vmem:[%s4 + $0x28] sm:$0xff]
  %v1181 = vld [vmem:[%s4 + $0x30] sm:$0xff]
  %v1182 = vld [vmem:[%s4 + $0x38] sm:$0xff]
  %1184 = vset.pattern.permute.xlu0 0
  %1185 = vperm.xlu0 %1184, %v1175
  %v1186 = vpop.permute.xlu0 %1185
  %1189 = vset.pattern.permute.xlu0 0
  %1190 = vperm.xlu0 %1189, %v1176
  %v1191 = vpop.permute.xlu0 %1190
  %1194 = vset.pattern.permute.xlu0 0
  %1195 = vperm.xlu0 %1194, %v1177
  %v1196 = vpop.permute.xlu0 %1195
  %1199 = vset.pattern.permute.xlu0 0
  %1200 = vperm.xlu0 %1199, %v1178
  %v1201 = vpop.permute.xlu0 %1200
  %1204 = vset.pattern.permute.xlu0 0
  %1205 = vperm.xlu0 %1204, %v1179
  %v1206 = vpop.permute.xlu0 %1205
  %1209 = vset.pattern.permute.xlu0 0
  %1210 = vperm.xlu0 %1209, %v1180
  %v1211 = vpop.permute.xlu0 %1210
  %1214 = vset.pattern.permute.xlu0 0
  %1215 = vperm.xlu0 %1214, %v1181
  %v1216 = vpop.permute.xlu0 %1215
  %1219 = vset.pattern.permute.xlu0 0
  %1220 = vperm.xlu0 %1219, %v1182
  %v1221 = vpop.permute.xlu0 %1220
  %v1223 = vmul.f32 %v1167, %v1186
  %v1224 = vmul.f32 %v1168, %v1191
  %v1225 = vmul.f32 %v1169, %v1196
  %v1226 = vmul.f32 %v1170, %v1201
  %v1227 = vmul.f32 %v1171, %v1206
  %v1228 = vmul.f32 %v1172, %v1211
  %v1229 = vmul.f32 %v1173, %v1216
  %v1230 = vmul.f32 %v1174, %v1221
  %v1231 = vpack.c.bf16 %v1224, %v1223
  %v1232 = vpack.c.bf16 %v1226, %v1225
  %v1233 = vpack.c.bf16 %v1228, %v1227
  %v1234 = vpack.c.bf16 %v1230, %v1229
  %v1239 = vunpack.c.l.b16 %v1231
  %v1240 = vunpack.c.h.b16 %v1231
  %v1241 = vunpack.c.l.b16 %v1232
  %v1242 = vunpack.c.h.b16 %v1232
  %v1243 = vunpack.c.l.b16 %v1233
  %v1244 = vunpack.c.h.b16 %v1233
  %v1245 = vunpack.c.l.b16 %v1234
  %v1246 = vunpack.c.h.b16 %v1234
  %v1247 = vpack.c.b16 %v1239, %v1239
  %v1248 = vpack.c.b16 %v1240, %v1240
  %v1249 = vpack.c.b16 %v1241, %v1241
  %v1250 = vpack.c.b16 %v1242, %v1242
  %v1251 = vpack.c.b16 %v1243, %v1243
  %v1252 = vpack.c.b16 %v1244, %v1244
  %v1253 = vpack.c.b16 %v1245, %v1245
  %v1254 = vpack.c.b16 %v1246, %v1246
  %1263 = vst [vmem:[%s6] sm:$0xf] %v1247
  %1264 = vst [vmem:[%s6 + $0x4] sm:$0xf] %v1248
  %1265 = vst [vmem:[%s6 + $0x8] sm:$0xf] %v1249
  %1266 = vst [vmem:[%s6 + $0xc] sm:$0xf] %v1250
  %1267 = vst [vmem:[%s6 + $0x10] sm:$0xf] %v1251
  %1268 = vst [vmem:[%s6 + $0x14] sm:$0xf] %v1252
  %1269 = vst [vmem:[%s6 + $0x18] sm:$0xf] %v1253
  %1270 = vst [vmem:[%s6 + $0x1c] sm:$0xf] %v1254
  // Predicated region
  $region26: #{resnet_embedding_forward.17} parent=0 // pred_check
    _
  $region27: #{resnet_embedding_forward.17} parent=0 // pred_check_branch
    %1272 = sbr.rel (0) target = $region29
  $region28: #{resnet_embedding_forward.17} parent=0 // pred_region
    _
  $region29: #{resnet_embedding_forward.17} parent=0 // pred_fallthru
    _
  // Predicated region
  $region30: #{resnet_embedding_forward.17} parent=0 // pred_check
    _
  $region31: #{resnet_embedding_forward.17} parent=0 // pred_check_branch
    %1274 = sbr.rel (0) target = $region33
  $region32: #{resnet_embedding_forward.17} parent=0 // pred_region
    _
  $region33: #{resnet_embedding_forward.17} parent=0 // pred_fallthru
    _

// kernel: resnet_embedding_forward.19
$region0: #{resnet_embedding_forward.19}
  #allocation0 [shape = 'u32[]', space=smem, size = 0x4, offset = 0x4, fixed_abs, tag = 'smem constant byte address 0x4 - core index']
  #allocation1 [shape = 'u32[144,128]{1,0:T(1,128)}', space=vmem, size = 0x12000, scoped, tag = 'internal scratch']
  %s0 = inlined_call_operand.vmem [shape: bf16[72,128], index: 0, kind: input, shape index: {}]
  %s1 = inlined_call_operand.vmem [shape: bf16[1152,128], index: 1, kind: input, shape index: {}]
  %s2 = inlined_call_operand.vmem [shape: f32[1,128], index: 2, kind: input, shape index: {}]
  %s3 = inlined_call_operand.vmem [shape: f32[1,128], index: 3, kind: input, shape index: {}]
  %s4 = inlined_call_operand.vmem [shape: f32[48,1], index: 4, kind: input, shape index: {}]
  %s5 = inlined_call_operand.vmem [shape: bf16[48,128], index: 5, kind: input, shape index: {}]
  %s6 = inlined_call_operand.vmem [shape: bf16[48,128], index: 6, kind: output, shape index: {}]
  %s7 = sld [smem:[#allocation0]]
  $region34: #{resnet_embedding_forward.19} parent=0
    _
  %s9 = ssub.s32 1, %s7
  %s10 = scalar_select 0, %s9, %s7
  // Predicated region
  $region2: #{resnet_embedding_forward.19} parent=0 // pred_check
    _
  $region3: #{resnet_embedding_forward.19} parent=0 // pred_check_branch
    %12 = sbr.rel (0) target = $region5
  $region4: #{resnet_embedding_forward.19} parent=0 // pred_region
    _
  $region5: #{resnet_embedding_forward.19} parent=0 // pred_fallthru
    _
  // Predicated region
  $region6: #{resnet_embedding_forward.19} parent=0 // pred_check
    _
  $region7: #{resnet_embedding_forward.19} parent=0 // pred_check_branch
    %14 = sbr.rel (0) target = $region9
  $region8: #{resnet_embedding_forward.19} parent=0 // pred_region
    _
  $region9: #{resnet_embedding_forward.19} parent=0 // pred_fallthru
    _
  // Predicated region
  $region10: #{resnet_embedding_forward.19} parent=0 // pred_check
    _
  $region11: #{resnet_embedding_forward.19} parent=0 // pred_check_branch
    %16 = sbr.rel (0) target = $region13
  $region12: #{resnet_embedding_forward.19} parent=0 // pred_region
    _
  $region13: #{resnet_embedding_forward.19} parent=0 // pred_fallthru
    _
  // Predicated region
  $region14: #{resnet_embedding_forward.19} parent=0 // pred_check
    _
  $region15: #{resnet_embedding_forward.19} parent=0 // pred_check_branch
    %18 = sbr.rel (0) target = $region17
  $region16: #{resnet_embedding_forward.19} parent=0 // pred_region
    _
  $region17: #{resnet_embedding_forward.19} parent=0 // pred_fallthru
    _
  // Predicated region
  $region18: #{resnet_embedding_forward.19} parent=0 // pred_check
    _
  $region19: #{resnet_embedding_forward.19} parent=0 // pred_check_branch
    %20 = sbr.rel (0) target = $region21
  $region20: #{resnet_embedding_forward.19} parent=0 // pred_region
    _
  $region21: #{resnet_embedding_forward.19} parent=0 // pred_fallthru
    _
  // Predicated region
  $region22: #{resnet_embedding_forward.19} parent=0 // pred_check
    _
  $region23: #{resnet_embedding_forward.19} parent=0 // pred_check_branch
    %22 = sbr.rel (0) target = $region25
  $region24: #{resnet_embedding_forward.19} parent=0 // pred_region
    _
  $region25: #{resnet_embedding_forward.19} parent=0 // pred_fallthru
    _
  %s24 = smul.u32 0, 48
  %s25 = sshra.s32 %s24, 3
  %s26 = sand.u32 %s24, 7
  %s27 = smul.addr %s25, 4
  %s28 = scalar_lea.vmem %s0, %s27
  %v29 = vld [vmem:[%s28] sm:$0xf]
  %v30 = vld [vmem:[%s28 + $0x4] sm:$0xf]
  %v31 = vld [vmem:[%s28 + $0x8] sm:$0xf]
  %v32 = vld [vmem:[%s28 + $0xc] sm:$0xf]
  %v33 = vld [vmem:[%s28 + $0x10] sm:$0xf]
  %v34 = vld [vmem:[%s28 + $0x14] sm:$0xf]
  %v35 = vld [vmem:[%s28 + $0x18] sm:$0xf]
  %v36 = vld [vmem:[%s28 + $0x1c] sm:$0xf]
  %v37 = vld [vmem:[%s28 + $0x20] sm:$0xf]
  %v44 = vunpack.c.l.b16 %v29
  %v45 = vunpack.c.l.b16 %v30
  %v46 = vunpack.c.l.b16 %v31
  %v47 = vunpack.c.l.b16 %v32
  %v48 = vunpack.c.l.b16 %v33
  %v49 = vunpack.c.l.b16 %v34
  %v50 = vpack.c.b16 %v45, %v44
  %v51 = vpack.c.b16 %v47, %v46
  %v52 = vpack.c.b16 %v49, %v48
  %v57 = vunpack.c.l.b16 %v35
  %v58 = vpack.c.b16 %v57, %v57
  %vm59 = vsmask.f32 7424
  %v61 = vshrl.u32 %v50, 16
  %v63 = vshll.u32 %v50, 16
  %v65 = vrot.slane %v63, 1
  %v66 = vor.u32 %v61, %v65
  %v68 = vshll.u32 %v51, 16
  %v70 = vrot.slane %v68, 1
  %v71 = vsel %vm59, %v66, %v70
  %v72 = vshrl.u32 %v51, 16
  %v74 = vor.u32 %v72, %v70
  %v76 = vshll.u32 %v52, 16
  %v78 = vrot.slane %v76, 1
  %v79 = vsel %vm59, %v74, %v78
  %v80 = vshrl.u32 %v52, 16
  %v82 = vor.u32 %v80, %v78
  %v84 = vshll.u32 %v58, 16
  %v86 = vrot.slane %v84, 1
  %v87 = vsel %vm59, %v82, %v86
  %vm91 = vcmask 1046528
  %v92 = vrot.slane %v50, 1
  %v93 = vrot.slane %v51, 1
  %v94 = vsel %vm91, %v92, %v93
  %v95 = vrot.slane %v52, 1
  %v96 = vsel %vm91, %v93, %v95
  %v97 = vrot.slane %v58, 1
  %v98 = vsel %vm91, %v95, %v97
  %v102 = vpack.c.b16 %v46, %v45
  %v103 = vpack.c.b16 %v48, %v47
  %v104 = vpack.c.b16 %v57, %v49
  %v109 = vunpack.c.l.b16 %v36
  %v110 = vpack.c.b16 %v109, %v109
  %v112 = vshrl.u32 %v102, 16
  %v114 = vshll.u32 %v102, 16
  %v116 = vrot.slane %v114, 1
  %v117 = vor.u32 %v112, %v116
  %v119 = vshll.u32 %v103, 16
  %v121 = vrot.slane %v119, 1
  %v122 = vsel %vm59, %v117, %v121
  %v123 = vshrl.u32 %v103, 16
  %v125 = vor.u32 %v123, %v121
  %v127 = vshll.u32 %v104, 16
  %v129 = vrot.slane %v127, 1
  %v130 = vsel %vm59, %v125, %v129
  %v131 = vshrl.u32 %v104, 16
  %v133 = vor.u32 %v131, %v129
  %v135 = vshll.u32 %v110, 16
  %v137 = vrot.slane %v135, 1
  %v138 = vsel %vm59, %v133, %v137
  %v142 = vrot.slane %v102, 1
  %v143 = vrot.slane %v103, 1
  %v144 = vsel %vm91, %v142, %v143
  %v145 = vrot.slane %v104, 1
  %v146 = vsel %vm91, %v143, %v145
  %v147 = vrot.slane %v110, 1
  %v148 = vsel %vm91, %v145, %v147
  %v152 = vpack.c.b16 %v109, %v57
  %v155 = vunpack.c.l.b16 %v37
  %v156 = vpack.c.b16 %v155, %v155
  %v158 = vshll.u32 %v152, 16
  %v160 = vrot.slane %v158, 1
  %v161 = vsel %vm59, %v82, %v160
  %v162 = vshrl.u32 %v152, 16
  %v164 = vor.u32 %v162, %v160
  %v166 = vshll.u32 %v156, 16
  %v168 = vrot.slane %v166, 1
  %v169 = vsel %vm59, %v164, %v168
  %v172 = vrot.slane %v152, 1
  %v173 = vsel %vm91, %v95, %v172
  %v174 = vrot.slane %v156, 1
  %v175 = vsel %vm91, %v172, %v174
  %v178 = vld [vmem:[%s1] sm:$0xf]
  %v179 = vld [vmem:[%s1 + $0x4] sm:$0xf]
  %v180 = vld [vmem:[%s1 + $0x8] sm:$0xf]
  %v181 = vld [vmem:[%s1 + $0xc] sm:$0xf]
  %v182 = vld [vmem:[%s1 + $0x10] sm:$0xf]
  %v183 = vld [vmem:[%s1 + $0x14] sm:$0xf]
  %v184 = vld [vmem:[%s1 + $0x18] sm:$0xf]
  %v185 = vld [vmem:[%s1 + $0x1c] sm:$0xf]
  %v186 = vld [vmem:[%s1 + $0x20] sm:$0xf]
  %v187 = vld [vmem:[%s1 + $0x24] sm:$0xf]
  %v188 = vld [vmem:[%s1 + $0x28] sm:$0xf]
  %v189 = vld [vmem:[%s1 + $0x2c] sm:$0xf]
  %v190 = vld [vmem:[%s1 + $0x30] sm:$0xf]
  %v191 = vld [vmem:[%s1 + $0x34] sm:$0xf]
  %v192 = vld [vmem:[%s1 + $0x38] sm:$0xf]
  %v193 = vld [vmem:[%s1 + $0x3c] sm:$0xf]
  %v194 = vld [vmem:[%s1 + $0x40] sm:$0xf]
  %v195 = vld [vmem:[%s1 + $0x44] sm:$0xf]
  %v196 = vld [vmem:[%s1 + $0x48] sm:$0xf]
  %v197 = vld [vmem:[%s1 + $0x4c] sm:$0xf]
  %v198 = vld [vmem:[%s1 + $0x50] sm:$0xf]
  %v199 = vld [vmem:[%s1 + $0x54] sm:$0xf]
  %v200 = vld [vmem:[%s1 + $0x58] sm:$0xf]
  %v201 = vld [vmem:[%s1 + $0x5c] sm:$0xf]
  %v202 = vld [vmem:[%s1 + $0x60] sm:$0xf]
  %v203 = vld [vmem:[%s1 + $0x64] sm:$0xf]
  %v204 = vld [vmem:[%s1 + $0x68] sm:$0xf]
  %v205 = vld [vmem:[%s1 + $0x6c] sm:$0xf]
  %v206 = vld [vmem:[%s1 + $0x70] sm:$0xf]
  %v207 = vld [vmem:[%s1 + $0x74] sm:$0xf]
  %v208 = vld [vmem:[%s1 + $0x78] sm:$0xf]
  %v209 = vld [vmem:[%s1 + $0x7c] sm:$0xf]
  %v210 = vld [vmem:[%s1 + $0x80] sm:$0xf]
  %v211 = vld [vmem:[%s1 + $0x84] sm:$0xf]
  %v212 = vld [vmem:[%s1 + $0x88] sm:$0xf]
  %v213 = vld [vmem:[%s1 + $0x8c] sm:$0xf]
  %v214 = vld [vmem:[%s1 + $0x90] sm:$0xf]
  %v215 = vld [vmem:[%s1 + $0x94] sm:$0xf]
  %v216 = vld [vmem:[%s1 + $0x98] sm:$0xf]
  %v217 = vld [vmem:[%s1 + $0x9c] sm:$0xf]
  %v218 = vld [vmem:[%s1 + $0xa0] sm:$0xf]
  %v219 = vld [vmem:[%s1 + $0xa4] sm:$0xf]
  %v220 = vld [vmem:[%s1 + $0xa8] sm:$0xf]
  %v221 = vld [vmem:[%s1 + $0xac] sm:$0xf]
  %v222 = vld [vmem:[%s1 + $0xb0] sm:$0xf]
  %v223 = vld [vmem:[%s1 + $0xb4] sm:$0xf]
  %v224 = vld [vmem:[%s1 + $0xb8] sm:$0xf]
  %v225 = vld [vmem:[%s1 + $0xbc] sm:$0xf]
  %v226 = vld [vmem:[%s1 + $0xc0] sm:$0xf]
  %v227 = vld [vmem:[%s1 + $0xc4] sm:$0xf]
  %v228 = vld [vmem:[%s1 + $0xc8] sm:$0xf]
  %v229 = vld [vmem:[%s1 + $0xcc] sm:$0xf]
  %v230 = vld [vmem:[%s1 + $0xd0] sm:$0xf]
  %v231 = vld [vmem:[%s1 + $0xd4] sm:$0xf]
  %v232 = vld [vmem:[%s1 + $0xd8] sm:$0xf]
  %v233 = vld [vmem:[%s1 + $0xdc] sm:$0xf]
  %v234 = vld [vmem:[%s1 + $0xe0] sm:$0xf]
  %v235 = vld [vmem:[%s1 + $0xe4] sm:$0xf]
  %v236 = vld [vmem:[%s1 + $0xe8] sm:$0xf]
  %v237 = vld [vmem:[%s1 + $0xec] sm:$0xf]
  %v238 = vld [vmem:[%s1 + $0xf0] sm:$0xf]
  %v239 = vld [vmem:[%s1 + $0xf4] sm:$0xf]
  %v240 = vld [vmem:[%s1 + $0xf8] sm:$0xf]
  %v241 = vld [vmem:[%s1 + $0xfc] sm:$0xf]
  %v242 = vld [vmem:[%s1 + $0x100] sm:$0xf]
  %v243 = vld [vmem:[%s1 + $0x104] sm:$0xf]
  %v244 = vld [vmem:[%s1 + $0x108] sm:$0xf]
  %v245 = vld [vmem:[%s1 + $0x10c] sm:$0xf]
  %v246 = vld [vmem:[%s1 + $0x110] sm:$0xf]
  %v247 = vld [vmem:[%s1 + $0x114] sm:$0xf]
  %v248 = vld [vmem:[%s1 + $0x118] sm:$0xf]
  %v249 = vld [vmem:[%s1 + $0x11c] sm:$0xf]
  %v250 = vld [vmem:[%s1 + $0x120] sm:$0xf]
  %v251 = vld [vmem:[%s1 + $0x124] sm:$0xf]
  %v252 = vld [vmem:[%s1 + $0x128] sm:$0xf]
  %v253 = vld [vmem:[%s1 + $0x12c] sm:$0xf]
  %v254 = vld [vmem:[%s1 + $0x130] sm:$0xf]
  %v255 = vld [vmem:[%s1 + $0x134] sm:$0xf]
  %v256 = vld [vmem:[%s1 + $0x138] sm:$0xf]
  %v257 = vld [vmem:[%s1 + $0x13c] sm:$0xf]
  %v258 = vld [vmem:[%s1 + $0x140] sm:$0xf]
  %v259 = vld [vmem:[%s1 + $0x144] sm:$0xf]
  %v260 = vld [vmem:[%s1 + $0x148] sm:$0xf]
  %v261 = vld [vmem:[%s1 + $0x14c] sm:$0xf]
  %v262 = vld [vmem:[%s1 + $0x150] sm:$0xf]
  %v263 = vld [vmem:[%s1 + $0x154] sm:$0xf]
  %v264 = vld [vmem:[%s1 + $0x158] sm:$0xf]
  %v265 = vld [vmem:[%s1 + $0x15c] sm:$0xf]
  %v266 = vld [vmem:[%s1 + $0x160] sm:$0xf]
  %v267 = vld [vmem:[%s1 + $0x164] sm:$0xf]
  %v268 = vld [vmem:[%s1 + $0x168] sm:$0xf]
  %v269 = vld [vmem:[%s1 + $0x16c] sm:$0xf]
  %v270 = vld [vmem:[%s1 + $0x170] sm:$0xf]
  %v271 = vld [vmem:[%s1 + $0x174] sm:$0xf]
  %v272 = vld [vmem:[%s1 + $0x178] sm:$0xf]
  %v273 = vld [vmem:[%s1 + $0x17c] sm:$0xf]
  %v274 = vld [vmem:[%s1 + $0x180] sm:$0xf]
  %v275 = vld [vmem:[%s1 + $0x184] sm:$0xf]
  %v276 = vld [vmem:[%s1 + $0x188] sm:$0xf]
  %v277 = vld [vmem:[%s1 + $0x18c] sm:$0xf]
  %v278 = vld [vmem:[%s1 + $0x190] sm:$0xf]
  %v279 = vld [vmem:[%s1 + $0x194] sm:$0xf]
  %v280 = vld [vmem:[%s1 + $0x198] sm:$0xf]
  %v281 = vld [vmem:[%s1 + $0x19c] sm:$0xf]
  %v282 = vld [vmem:[%s1 + $0x1a0] sm:$0xf]
  %v283 = vld [vmem:[%s1 + $0x1a4] sm:$0xf]
  %v284 = vld [vmem:[%s1 + $0x1a8] sm:$0xf]
  %v285 = vld [vmem:[%s1 + $0x1ac] sm:$0xf]
  %v286 = vld [vmem:[%s1 + $0x1b0] sm:$0xf]
  %v287 = vld [vmem:[%s1 + $0x1b4] sm:$0xf]
  %v288 = vld [vmem:[%s1 + $0x1b8] sm:$0xf]
  %v289 = vld [vmem:[%s1 + $0x1bc] sm:$0xf]
  %v290 = vld [vmem:[%s1 + $0x1c0] sm:$0xf]
  %v291 = vld [vmem:[%s1 + $0x1c4] sm:$0xf]
  %v292 = vld [vmem:[%s1 + $0x1c8] sm:$0xf]
  %v293 = vld [vmem:[%s1 + $0x1cc] sm:$0xf]
  %v294 = vld [vmem:[%s1 + $0x1d0] sm:$0xf]
  %v295 = vld [vmem:[%s1 + $0x1d4] sm:$0xf]
  %v296 = vld [vmem:[%s1 + $0x1d8] sm:$0xf]
  %v297 = vld [vmem:[%s1 + $0x1dc] sm:$0xf]
  %v298 = vld [vmem:[%s1 + $0x1e0] sm:$0xf]
  %v299 = vld [vmem:[%s1 + $0x1e4] sm:$0xf]
  %v300 = vld [vmem:[%s1 + $0x1e8] sm:$0xf]
  %v301 = vld [vmem:[%s1 + $0x1ec] sm:$0xf]
  %v302 = vld [vmem:[%s1 + $0x1f0] sm:$0xf]
  %v303 = vld [vmem:[%s1 + $0x1f4] sm:$0xf]
  %v304 = vld [vmem:[%s1 + $0x1f8] sm:$0xf]
  %v305 = vld [vmem:[%s1 + $0x1fc] sm:$0xf]
  %v306 = vld [vmem:[%s1 + $0x200] sm:$0xf]
  %v307 = vld [vmem:[%s1 + $0x204] sm:$0xf]
  %v308 = vld [vmem:[%s1 + $0x208] sm:$0xf]
  %v309 = vld [vmem:[%s1 + $0x20c] sm:$0xf]
  %v310 = vld [vmem:[%s1 + $0x210] sm:$0xf]
  %v311 = vld [vmem:[%s1 + $0x214] sm:$0xf]
  %v312 = vld [vmem:[%s1 + $0x218] sm:$0xf]
  %v313 = vld [vmem:[%s1 + $0x21c] sm:$0xf]
  %v314 = vld [vmem:[%s1 + $0x220] sm:$0xf]
  %v315 = vld [vmem:[%s1 + $0x224] sm:$0xf]
  %v316 = vld [vmem:[%s1 + $0x228] sm:$0xf]
  %v317 = vld [vmem:[%s1 + $0x22c] sm:$0xf]
  %v318 = vld [vmem:[%s1 + $0x230] sm:$0xf]
  %v319 = vld [vmem:[%s1 + $0x234] sm:$0xf]
  %v320 = vld [vmem:[%s1 + $0x238] sm:$0xf]
  %v321 = vld [vmem:[%s1 + $0x23c] sm:$0xf]
  %v466 = vunpack.c.l.b16 %v178
  %v467 = vunpack.c.l.b16 %v179
  %v468 = vunpack.c.l.b16 %v180
  %v469 = vunpack.c.l.b16 %v181
  %v470 = vunpack.c.l.b16 %v182
  %v471 = vunpack.c.l.b16 %v183
  %v472 = vunpack.c.l.b16 %v184
  %v473 = vunpack.c.l.b16 %v185
  %v474 = vunpack.c.l.b16 %v186
  %v475 = vunpack.c.l.b16 %v187
  %v476 = vunpack.c.l.b16 %v188
  %v477 = vunpack.c.l.b16 %v189
  %v478 = vunpack.c.l.b16 %v190
  %v479 = vunpack.c.l.b16 %v191
  %v480 = vunpack.c.l.b16 %v192
  %v481 = vunpack.c.l.b16 %v193
  %v482 = vunpack.c.l.b16 %v194
  %v483 = vunpack.c.l.b16 %v195
  %v484 = vunpack.c.l.b16 %v196
  %v485 = vunpack.c.l.b16 %v197
  %v486 = vunpack.c.l.b16 %v198
  %v487 = vunpack.c.l.b16 %v199
  %v488 = vunpack.c.l.b16 %v200
  %v489 = vunpack.c.l.b16 %v201
  %v490 = vunpack.c.l.b16 %v202
  %v491 = vunpack.c.l.b16 %v203
  %v492 = vunpack.c.l.b16 %v204
  %v493 = vunpack.c.l.b16 %v205
  %v494 = vunpack.c.l.b16 %v206
  %v495 = vunpack.c.l.b16 %v207
  %v496 = vunpack.c.l.b16 %v208
  %v497 = vunpack.c.l.b16 %v209
  %v498 = vunpack.c.l.b16 %v210
  %v499 = vunpack.c.l.b16 %v211
  %v500 = vunpack.c.l.b16 %v212
  %v501 = vunpack.c.l.b16 %v213
  %v502 = vunpack.c.l.b16 %v214
  %v503 = vunpack.c.l.b16 %v215
  %v504 = vunpack.c.l.b16 %v216
  %v505 = vunpack.c.l.b16 %v217
  %v506 = vunpack.c.l.b16 %v218
  %v507 = vunpack.c.l.b16 %v219
  %v508 = vunpack.c.l.b16 %v220
  %v509 = vunpack.c.l.b16 %v221
  %v510 = vunpack.c.l.b16 %v222
  %v511 = vunpack.c.l.b16 %v223
  %v512 = vunpack.c.l.b16 %v224
  %v513 = vunpack.c.l.b16 %v225
  %v514 = vunpack.c.l.b16 %v226
  %v515 = vunpack.c.l.b16 %v227
  %v516 = vunpack.c.l.b16 %v228
  %v517 = vunpack.c.l.b16 %v229
  %v518 = vunpack.c.l.b16 %v230
  %v519 = vunpack.c.l.b16 %v231
  %v520 = vunpack.c.l.b16 %v232
  %v521 = vunpack.c.l.b16 %v233
  %v522 = vunpack.c.l.b16 %v234
  %v523 = vunpack.c.l.b16 %v235
  %v524 = vunpack.c.l.b16 %v236
  %v525 = vunpack.c.l.b16 %v237
  %v526 = vunpack.c.l.b16 %v238
  %v527 = vunpack.c.l.b16 %v239
  %v528 = vunpack.c.l.b16 %v240
  %v529 = vunpack.c.l.b16 %v241
  %v530 = vunpack.c.l.b16 %v242
  %v531 = vunpack.c.l.b16 %v243
  %v532 = vunpack.c.l.b16 %v244
  %v533 = vunpack.c.l.b16 %v245
  %v534 = vunpack.c.l.b16 %v246
  %v535 = vunpack.c.l.b16 %v247
  %v536 = vunpack.c.l.b16 %v248
  %v537 = vunpack.c.l.b16 %v249
  %v538 = vunpack.c.l.b16 %v250
  %v539 = vunpack.c.l.b16 %v251
  %v540 = vunpack.c.l.b16 %v252
  %v541 = vunpack.c.l.b16 %v253
  %v542 = vunpack.c.l.b16 %v254
  %v543 = vunpack.c.l.b16 %v255
  %v544 = vunpack.c.l.b16 %v256
  %v545 = vunpack.c.l.b16 %v257
  %v546 = vunpack.c.l.b16 %v258
  %v547 = vunpack.c.l.b16 %v259
  %v548 = vunpack.c.l.b16 %v260
  %v549 = vunpack.c.l.b16 %v261
  %v550 = vunpack.c.l.b16 %v262
  %v551 = vunpack.c.l.b16 %v263
  %v552 = vunpack.c.l.b16 %v264
  %v553 = vunpack.c.l.b16 %v265
  %v554 = vunpack.c.l.b16 %v266
  %v555 = vunpack.c.l.b16 %v267
  %v556 = vunpack.c.l.b16 %v268
  %v557 = vunpack.c.l.b16 %v269
  %v558 = vunpack.c.l.b16 %v270
  %v559 = vunpack.c.l.b16 %v271
  %v560 = vunpack.c.l.b16 %v272
  %v561 = vunpack.c.l.b16 %v273
  %v562 = vunpack.c.l.b16 %v274
  %v563 = vunpack.c.l.b16 %v275
  %v564 = vunpack.c.l.b16 %v276
  %v565 = vunpack.c.l.b16 %v277
  %v566 = vunpack.c.l.b16 %v278
  %v567 = vunpack.c.l.b16 %v279
  %v568 = vunpack.c.l.b16 %v280
  %v569 = vunpack.c.l.b16 %v281
  %v570 = vunpack.c.l.b16 %v282
  %v571 = vunpack.c.l.b16 %v283
  %v572 = vunpack.c.l.b16 %v284
  %v573 = vunpack.c.l.b16 %v285
  %v574 = vunpack.c.l.b16 %v286
  %v575 = vunpack.c.l.b16 %v287
  %v576 = vunpack.c.l.b16 %v288
  %v577 = vunpack.c.l.b16 %v289
  %v578 = vunpack.c.l.b16 %v290
  %v579 = vunpack.c.l.b16 %v291
  %v580 = vunpack.c.l.b16 %v292
  %v581 = vunpack.c.l.b16 %v293
  %v582 = vunpack.c.l.b16 %v294
  %v583 = vunpack.c.l.b16 %v295
  %v584 = vunpack.c.l.b16 %v296
  %v585 = vunpack.c.l.b16 %v297
  %v586 = vunpack.c.l.b16 %v298
  %v587 = vunpack.c.l.b16 %v299
  %v588 = vunpack.c.l.b16 %v300
  %v589 = vunpack.c.l.b16 %v301
  %v590 = vunpack.c.l.b16 %v302
  %v591 = vunpack.c.l.b16 %v303
  %v592 = vunpack.c.l.b16 %v304
  %v593 = vunpack.c.l.b16 %v305
  %v594 = vunpack.c.l.b16 %v306
  %v595 = vunpack.c.l.b16 %v307
  %v596 = vunpack.c.l.b16 %v308
  %v597 = vunpack.c.l.b16 %v309
  %v598 = vunpack.c.l.b16 %v310
  %v599 = vunpack.c.l.b16 %v311
  %v600 = vunpack.c.l.b16 %v312
  %v601 = vunpack.c.l.b16 %v313
  %v602 = vunpack.c.l.b16 %v314
  %v603 = vunpack.c.l.b16 %v315
  %v604 = vunpack.c.l.b16 %v316
  %v605 = vunpack.c.l.b16 %v317
  %v606 = vunpack.c.l.b16 %v318
  %v607 = vunpack.c.l.b16 %v319
  %v608 = vunpack.c.l.b16 %v320
  %v609 = vunpack.c.l.b16 %v321
  %v610 = vpack.c.b16 %v467, %v466
  %v611 = vpack.c.b16 %v469, %v468
  %v612 = vpack.c.b16 %v471, %v470
  %v613 = vpack.c.b16 %v473, %v472
  %v614 = vpack.c.b16 %v475, %v474
  %v615 = vpack.c.b16 %v477, %v476
  %v616 = vpack.c.b16 %v479, %v478
  %v617 = vpack.c.b16 %v481, %v480
  %v618 = vpack.c.b16 %v483, %v482
  %v619 = vpack.c.b16 %v485, %v484
  %v620 = vpack.c.b16 %v487, %v486
  %v621 = vpack.c.b16 %v489, %v488
  %v622 = vpack.c.b16 %v491, %v490
  %v623 = vpack.c.b16 %v493, %v492
  %v624 = vpack.c.b16 %v495, %v494
  %v625 = vpack.c.b16 %v497, %v496
  %v626 = vpack.c.b16 %v499, %v498
  %v627 = vpack.c.b16 %v501, %v500
  %v628 = vpack.c.b16 %v503, %v502
  %v629 = vpack.c.b16 %v505, %v504
  %v630 = vpack.c.b16 %v507, %v506
  %v631 = vpack.c.b16 %v509, %v508
  %v632 = vpack.c.b16 %v511, %v510
  %v633 = vpack.c.b16 %v513, %v512
  %v634 = vpack.c.b16 %v515, %v514
  %v635 = vpack.c.b16 %v517, %v516
  %v636 = vpack.c.b16 %v519, %v518
  %v637 = vpack.c.b16 %v521, %v520
  %v638 = vpack.c.b16 %v523, %v522
  %v639 = vpack.c.b16 %v525, %v524
  %v640 = vpack.c.b16 %v527, %v526
  %v641 = vpack.c.b16 %v529, %v528
  %v642 = vpack.c.b16 %v531, %v530
  %v643 = vpack.c.b16 %v533, %v532
  %v644 = vpack.c.b16 %v535, %v534
  %v645 = vpack.c.b16 %v537, %v536
  %v646 = vpack.c.b16 %v539, %v538
  %v647 = vpack.c.b16 %v541, %v540
  %v648 = vpack.c.b16 %v543, %v542
  %v649 = vpack.c.b16 %v545, %v544
  %v650 = vpack.c.b16 %v547, %v546
  %v651 = vpack.c.b16 %v549, %v548
  %v652 = vpack.c.b16 %v551, %v550
  %v653 = vpack.c.b16 %v553, %v552
  %v654 = vpack.c.b16 %v555, %v554
  %v655 = vpack.c.b16 %v557, %v556
  %v656 = vpack.c.b16 %v559, %v558
  %v657 = vpack.c.b16 %v561, %v560
  %v658 = vpack.c.b16 %v563, %v562
  %v659 = vpack.c.b16 %v565, %v564
  %v660 = vpack.c.b16 %v567, %v566
  %v661 = vpack.c.b16 %v569, %v568
  %v662 = vpack.c.b16 %v571, %v570
  %v663 = vpack.c.b16 %v573, %v572
  %v664 = vpack.c.b16 %v575, %v574
  %v665 = vpack.c.b16 %v577, %v576
  %v666 = vpack.c.b16 %v579, %v578
  %v667 = vpack.c.b16 %v581, %v580
  %v668 = vpack.c.b16 %v583, %v582
  %v669 = vpack.c.b16 %v585, %v584
  %v670 = vpack.c.b16 %v587, %v586
  %v671 = vpack.c.b16 %v589, %v588
  %v672 = vpack.c.b16 %v591, %v590
  %v673 = vpack.c.b16 %v593, %v592
  %v674 = vpack.c.b16 %v595, %v594
  %v675 = vpack.c.b16 %v597, %v596
  %v676 = vpack.c.b16 %v599, %v598
  %v677 = vpack.c.b16 %v601, %v600
  %v678 = vpack.c.b16 %v603, %v602
  %v679 = vpack.c.b16 %v605, %v604
  %v680 = vpack.c.b16 %v607, %v606
  %v681 = vpack.c.b16 %v609, %v608
  %754 = vmatprep.subr.bf16.mxu0 0
  %755 = vmatpush1.bf16.msra.mxu0 %v610
  %756 = vmatprep.subr.bf16.mxu0 0
  %757 = vmatpush1.bf16.msra.mxu0 %v611
  %758 = vmatprep.subr.bf16.mxu0 0
  %759 = vmatpush1.bf16.msra.mxu0 %v612
  %760 = vmatprep.subr.bf16.mxu0 0
  %761 = vmatpush1.bf16.msra.mxu0 %v613
  %762 = vmatprep.subr.bf16.mxu0 0
  %763 = vmatpush1.bf16.msra.mxu0 %v614
  %764 = vmatprep.subr.bf16.mxu0 0
  %765 = vmatpush1.bf16.msra.mxu0 %v615
  %766 = vmatprep.subr.bf16.mxu0 0
  %767 = vmatpush1.bf16.msra.mxu0 %v616
  %768 = vmatprep.subr.bf16.mxu0 0
  %769 = vmatpush1.bf16.msra.mxu0 %v617
  %770 = vmatprep.subr.bf16.mxu0 0
  %771 = vmatpush1.bf16.msra.mxu0 %v618
  %772 = vmatprep.subr.bf16.mxu0 0
  %773 = vmatpush1.bf16.msra.mxu0 %v619
  %774 = vmatprep.subr.bf16.mxu0 0
  %775 = vmatpush1.bf16.msra.mxu0 %v620
  %776 = vmatprep.subr.bf16.mxu0 0
  %777 = vmatpush1.bf16.msra.mxu0 %v621
  %778 = vmatprep.subr.bf16.mxu0 0
  %779 = vmatpush1.bf16.msra.mxu0 %v622
  %780 = vmatprep.subr.bf16.mxu0 0
  %781 = vmatpush1.bf16.msra.mxu0 %v623
  %782 = vmatprep.subr.bf16.mxu0 0
  %783 = vmatpush1.bf16.msra.mxu0 %v624
  %784 = vmatprep.subr.bf16.mxu0 0
  %785 = vmatpush1.bf16.msra.mxu0 %v625
  %786 = vmatprep.mubr.bf16.mxu0 %v71
  %787 = vmatmul.mubr.bf16.gmra.mrb[0].mxu0 %v50
  %v788 = vpop.f32.mrb[0].mxu0
  %v789 = vadd.f32 0.0, %v788
  %v790 = vpop.f32.mrb[0].mxu0
  %v791 = vpop.f32.mrb[0].mxu0
  %v792 = vadd.f32 0.0, %v791
  %v793 = vpop.f32.mrb[0].mxu0
  %794 = vmatprep.mubr.bf16.mxu0 %v79
  %795 = vmatmul.mubr.bf16.gmra.mrb[0].mxu0 %v51
  %v796 = vpop.f32.mrb[0].mxu0
  %v797 = vadd.f32 0.0, %v796
  %v798 = vpop.f32.mrb[0].mxu0
  %v799 = vpop.f32.mrb[0].mxu0
  %v800 = vadd.f32 0.0, %v799
  %v801 = vpop.f32.mrb[0].mxu0
  %802 = vmatprep.mubr.bf16.mxu0 %v87
  %803 = vmatmul.mubr.bf16.gmra.mrb[0].mxu0 %v52
  %v804 = vpop.f32.mrb[0].mxu0
  %v805 = vadd.f32 0.0, %v804
  %v806 = vpop.f32.mrb[0].mxu0
  %v807 = vpop.f32.mrb[0].mxu0
  %v808 = vadd.f32 0.0, %v807
  %v809 = vpop.f32.mrb[0].mxu0
  %810 = vdwg.mxu0
  %811 = vmatprep.subr.bf16.mxu0 0
  %812 = vmatpush1.bf16.msra.mxu0 %v626
  %813 = vmatprep.subr.bf16.mxu0 0
  %814 = vmatpush1.bf16.msra.mxu0 %v627
  %815 = vmatprep.subr.bf16.mxu0 0
  %816 = vmatpush1.bf16.msra.mxu0 %v628
  %817 = vmatprep.subr.bf16.mxu0 0
  %818 = vmatpush1.bf16.msra.mxu0 %v629
  %819 = vmatprep.subr.bf16.mxu0 0
  %820 = vmatpush1.bf16.msra.mxu0 %v630
  %821 = vmatprep.subr.bf16.mxu0 0
  %822 = vmatpush1.bf16.msra.mxu0 %v631
  %823 = vmatprep.subr.bf16.mxu0 0
  %824 = vmatpush1.bf16.msra.mxu0 %v632
  %825 = vmatprep.subr.bf16.mxu0 0
  %826 = vmatpush1.bf16.msra.mxu0 %v633
  %827 = vmatprep.subr.bf16.mxu0 0
  %828 = vmatpush1.bf16.msra.mxu0 %v634
  %829 = vmatprep.subr.bf16.mxu0 0
  %830 = vmatpush1.bf16.msra.mxu0 %v635
  %831 = vmatprep.subr.bf16.mxu0 0
  %832 = vmatpush1.bf16.msra.mxu0 %v636
  %833 = vmatprep.subr.bf16.mxu0 0
  %834 = vmatpush1.bf16.msra.mxu0 %v637
  %835 = vmatprep.subr.bf16.mxu0 0
  %836 = vmatpush1.bf16.msra.mxu0 %v638
  %837 = vmatprep.subr.bf16.mxu0 0
  %838 = vmatpush1.bf16.msra.mxu0 %v639
  %839 = vmatprep.subr.bf16.mxu0 0
  %840 = vmatpush1.bf16.msra.mxu0 %v640
  %841 = vmatprep.subr.bf16.mxu0 0
  %842 = vmatpush1.bf16.msra.mxu0 %v641
  %843 = vmatprep.mubr.bf16.mxu0 %v102
  %844 = vmatmul.mubr.bf16.gmra.mrb[0].mxu0 %v94
  %v845 = vpop.f32.mrb[0].mxu0
  %v846 = vadd.f32 %v789, %v845
  %v847 = vpop.f32.mrb[0].mxu0
  %v848 = vpop.f32.mrb[0].mxu0
  %v849 = vadd.f32 %v792, %v848
  %v850 = vpop.f32.mrb[0].mxu0
  %851 = vmatprep.mubr.bf16.mxu0 %v103
  %852 = vmatmul.mubr.bf16.gmra.mrb[0].mxu0 %v96
  %v853 = vpop.f32.mrb[0].mxu0
  %v854 = vadd.f32 %v797, %v853
  %v855 = vpop.f32.mrb[0].mxu0
  %v856 = vpop.f32.mrb[0].mxu0
  %v857 = vadd.f32 %v800, %v856
  %v858 = vpop.f32.mrb[0].mxu0
  %859 = vmatprep.mubr.bf16.mxu0 %v104
  %860 = vmatmul.mubr.bf16.gmra.mrb[0].mxu0 %v98
  %v861 = vpop.f32.mrb[0].mxu0
  %v862 = vadd.f32 %v805, %v861
  %v863 = vpop.f32.mrb[0].mxu0
  %v864 = vpop.f32.mrb[0].mxu0
  %v865 = vadd.f32 %v808, %v864
  %v866 = vpop.f32.mrb[0].mxu0
  %867 = vdwg.mxu0
  %868 = vmatprep.subr.bf16.mxu0 0
  %869 = vmatpush1.bf16.msra.mxu0 %v642
  %870 = vmatprep.subr.bf16.mxu0 0
  %871 = vmatpush1.bf16.msra.mxu0 %v643
  %872 = vmatprep.subr.bf16.mxu0 0
  %873 = vmatpush1.bf16.msra.mxu0 %v644
  %874 = vmatprep.subr.bf16.mxu0 0
  %875 = vmatpush1.bf16.msra.mxu0 %v645
  %876 = vmatprep.subr.bf16.mxu0 0
  %877 = vmatpush1.bf16.msra.mxu0 %v646
  %878 = vmatprep.subr.bf16.mxu0 0
  %879 = vmatpush1.bf16.msra.mxu0 %v647
  %880 = vmatprep.subr.bf16.mxu0 0
  %881 = vmatpush1.bf16.msra.mxu0 %v648
  %882 = vmatprep.subr.bf16.mxu0 0
  %883 = vmatpush1.bf16.msra.mxu0 %v649
  %884 = vmatprep.subr.bf16.mxu0 0
  %885 = vmatpush1.bf16.msra.mxu0 %v650
  %886 = vmatprep.subr.bf16.mxu0 0
  %887 = vmatpush1.bf16.msra.mxu0 %v651
  %888 = vmatprep.subr.bf16.mxu0 0
  %889 = vmatpush1.bf16.msra.mxu0 %v652
  %890 = vmatprep.subr.bf16.mxu0 0
  %891 = vmatpush1.bf16.msra.mxu0 %v653
  %892 = vmatprep.subr.bf16.mxu0 0
  %893 = vmatpush1.bf16.msra.mxu0 %v654
  %894 = vmatprep.subr.bf16.mxu0 0
  %895 = vmatpush1.bf16.msra.mxu0 %v655
  %896 = vmatprep.subr.bf16.mxu0 0
  %897 = vmatpush1.bf16.msra.mxu0 %v656
  %898 = vmatprep.subr.bf16.mxu0 0
  %899 = vmatpush1.bf16.msra.mxu0 %v657
  %900 = vmatprep.mubr.bf16.mxu0 %v144
  %901 = vmatmul.mubr.bf16.gmra.mrb[0].mxu0 %v122
  %v902 = vpop.f32.mrb[0].mxu0
  %v903 = vadd.f32 %v846, %v902
  %v904 = vpop.f32.mrb[0].mxu0
  %v905 = vpop.f32.mrb[0].mxu0
  %v906 = vadd.f32 %v849, %v905
  %v907 = vpop.f32.mrb[0].mxu0
  %908 = vmatprep.mubr.bf16.mxu0 %v146
  %909 = vmatmul.mubr.bf16.gmra.mrb[0].mxu0 %v130
  %v910 = vpop.f32.mrb[0].mxu0
  %v911 = vadd.f32 %v854, %v910
  %v912 = vpop.f32.mrb[0].mxu0
  %v913 = vpop.f32.mrb[0].mxu0
  %v914 = vadd.f32 %v857, %v913
  %v915 = vpop.f32.mrb[0].mxu0
  %916 = vmatprep.mubr.bf16.mxu0 %v148
  %917 = vmatmul.mubr.bf16.gmra.mrb[0].mxu0 %v138
  %v918 = vpop.f32.mrb[0].mxu0
  %v919 = vadd.f32 %v862, %v918
  %v920 = vpop.f32.mrb[0].mxu0
  %v921 = vpop.f32.mrb[0].mxu0
  %v922 = vadd.f32 %v865, %v921
  %v923 = vpop.f32.mrb[0].mxu0
  %924 = vdwg.mxu0
  %925 = vmatprep.subr.bf16.mxu0 0
  %926 = vmatpush1.bf16.msra.mxu0 %v658
  %927 = vmatprep.subr.bf16.mxu0 0
  %928 = vmatpush1.bf16.msra.mxu0 %v659
  %929 = vmatprep.subr.bf16.mxu0 0
  %930 = vmatpush1.bf16.msra.mxu0 %v660
  %931 = vmatprep.subr.bf16.mxu0 0
  %932 = vmatpush1.bf16.msra.mxu0 %v661
  %933 = vmatprep.subr.bf16.mxu0 0
  %934 = vmatpush1.bf16.msra.mxu0 %v662
  %935 = vmatprep.subr.bf16.mxu0 0
  %936 = vmatpush1.bf16.msra.mxu0 %v663
  %937 = vmatprep.subr.bf16.mxu0 0
  %938 = vmatpush1.bf16.msra.mxu0 %v664
  %939 = vmatprep.subr.bf16.mxu0 0
  %940 = vmatpush1.bf16.msra.mxu0 %v665
  %941 = vmatprep.subr.bf16.mxu0 0
  %942 = vmatpush1.bf16.msra.mxu0 %v666
  %943 = vmatprep.subr.bf16.mxu0 0
  %944 = vmatpush1.bf16.msra.mxu0 %v667
  %945 = vmatprep.subr.bf16.mxu0 0
  %946 = vmatpush1.bf16.msra.mxu0 %v668
  %947 = vmatprep.subr.bf16.mxu0 0
  %948 = vmatpush1.bf16.msra.mxu0 %v669
  %949 = vmatprep.subr.bf16.mxu0 0
  %950 = vmatpush1.bf16.msra.mxu0 %v670
  %951 = vmatprep.subr.bf16.mxu0 0
  %952 = vmatpush1.bf16.msra.mxu0 %v671
  %953 = vmatprep.subr.bf16.mxu0 0
  %954 = vmatpush1.bf16.msra.mxu0 %v672
  %955 = vmatprep.subr.bf16.mxu0 0
  %956 = vmatpush1.bf16.msra.mxu0 %v673
  %957 = vmatprep.mubr.bf16.mxu0 %v79
  %958 = vmatmul.mubr.bf16.gmra.mrb[0].mxu0 %v51
  %v959 = vpop.f32.mrb[0].mxu0
  %v960 = vadd.f32 %v903, %v959
  %v961 = vpop.f32.mrb[0].mxu0
  %v962 = vpop.f32.mrb[0].mxu0
  %v963 = vadd.f32 %v906, %v962
  %v964 = vpop.f32.mrb[0].mxu0
  %965 = vmatprep.mubr.bf16.mxu0 %v161
  %966 = vmatmul.mubr.bf16.gmra.mrb[0].mxu0 %v52
  %v967 = vpop.f32.mrb[0].mxu0
  %v968 = vadd.f32 %v911, %v967
  %v969 = vpop.f32.mrb[0].mxu0
  %v970 = vpop.f32.mrb[0].mxu0
  %v971 = vadd.f32 %v914, %v970
  %v972 = vpop.f32.mrb[0].mxu0
  %973 = vmatprep.mubr.bf16.mxu0 %v169
  %974 = vmatmul.mubr.bf16.gmra.mrb[0].mxu0 %v152
  %v975 = vpop.f32.mrb[0].mxu0
  %v976 = vadd.f32 %v919, %v975
  %v977 = vpop.f32.mrb[0].mxu0
  %v978 = vpop.f32.mrb[0].mxu0
  %v979 = vadd.f32 %v922, %v978
  %v980 = vpop.f32.mrb[0].mxu0
  %981 = vdwg.mxu0
  %982 = vmatprep.subr.bf16.mxu0 0
  %983 = vmatpush1.bf16.msra.mxu0 %v674
  %984 = vmatprep.subr.bf16.mxu0 0
  %985 = vmatpush1.bf16.msra.mxu0 %v675
  %986 = vmatprep.subr.bf16.mxu0 0
  %987 = vmatpush1.bf16.msra.mxu0 %v676
  %988 = vmatprep.subr.bf16.mxu0 0
  %989 = vmatpush1.bf16.msra.mxu0 %v677
  %990 = vmatprep.subr.bf16.mxu0 0
  %991 = vmatpush1.bf16.msra.mxu0 %v678
  %992 = vmatprep.subr.bf16.mxu0 0
  %993 = vmatpush1.bf16.msra.mxu0 %v679
  %994 = vmatprep.subr.bf16.mxu0 0
  %995 = vmatpush1.bf16.msra.mxu0 %v680
  %996 = vmatprep.subr.bf16.mxu0 0
  %997 = vmatpush1.bf16.msra.mxu0 %v681
  %998 = vmatprep.subr.bf16.mxu0 0
  %999 = vmatpush1.bf16.msra.mxu0 0
  %1000 = vmatprep.subr.bf16.mxu0 0
  %1001 = vmatpush1.bf16.msra.mxu0 0
  %1002 = vmatprep.subr.bf16.mxu0 0
  %1003 = vmatpush1.bf16.msra.mxu0 0
  %1004 = vmatprep.subr.bf16.mxu0 0
  %1005 = vmatpush1.bf16.msra.mxu0 0
  %1006 = vmatprep.subr.bf16.mxu0 0
  %1007 = vmatpush1.bf16.msra.mxu0 0
  %1008 = vmatprep.subr.bf16.mxu0 0
  %1009 = vmatpush1.bf16.msra.mxu0 0
  %1010 = vmatprep.subr.bf16.mxu0 0
  %1011 = vmatpush1.bf16.msra.mxu0 0
  %1012 = vmatprep.subr.bf16.mxu0 0
  %1013 = vmatpush1.bf16.msra.mxu0 0
  %1014 = vmatprep.mubr.bf16.mxu0 0
  %1015 = vmatmul.mubr.bf16.gmra.mrb[0].mxu0 %v96
  %v1016 = vpop.f32.mrb[0].mxu0
  %v1017 = vadd.f32 %v960, %v1016
  %v1018 = vpop.f32.mrb[0].mxu0
  %v1019 = vpop.f32.mrb[0].mxu0
  %v1020 = vadd.f32 %v963, %v1019
  %v1021 = vpop.f32.mrb[0].mxu0
  %1022 = vmatprep.mubr.bf16.mxu0 0
  %1023 = vmatmul.mubr.bf16.gmra.mrb[0].mxu0 %v173
  %v1024 = vpop.f32.mrb[0].mxu0
  %v1025 = vadd.f32 %v968, %v1024
  %v1026 = vpop.f32.mrb[0].mxu0
  %v1027 = vpop.f32.mrb[0].mxu0
  %v1028 = vadd.f32 %v971, %v1027
  %v1029 = vpop.f32.mrb[0].mxu0
  %1030 = vmatprep.mubr.bf16.mxu0 0
  %1031 = vmatmul.mubr.bf16.gmra.mrb[0].mxu0 %v175
  %v1032 = vpop.f32.mrb[0].mxu0
  %v1033 = vadd.f32 %v976, %v1032
  %v1034 = vpop.f32.mrb[0].mxu0
  %v1035 = vpop.f32.mrb[0].mxu0
  %v1036 = vadd.f32 %v979, %v1035
  %v1037 = vpop.f32.mrb[0].mxu0
  %1038 = vdwg.mxu0
  %v1039 = vld [vmem:[%s2] sm:$0x1]
  %v1041 = vlaneseq
  %v1042 = vshrl.u32 %v1041, 7
  %v1043 = vsub.s32 0, %v1042
  %v1044 = vrot.slane %v1039, %v1043
  %v1046 = vmul.f32 %v1017, %v1044
  %v1047 = vmul.f32 %v1020, %v1044
  %v1048 = vmul.f32 %v1025, %v1044
  %v1049 = vmul.f32 %v1028, %v1044
  %v1050 = vmul.f32 %v1033, %v1044
  %v1051 = vmul.f32 %v1036, %v1044
  %v1052 = vld [vmem:[%s3] sm:$0x1]
  %v1054 = vlaneseq
  %v1055 = vshrl.u32 %v1054, 7
  %v1056 = vsub.s32 0, %v1055
  %v1057 = vrot.slane %v1052, %v1056
  %v1059 = vadd.f32 %v1046, %v1057
  %v1060 = vadd.f32 %v1047, %v1057
  %v1061 = vadd.f32 %v1048, %v1057
  %v1062 = vadd.f32 %v1049, %v1057
  %v1063 = vadd.f32 %v1050, %v1057
  %v1064 = vadd.f32 %v1051, %v1057
  %v1065 = vld [vmem:[%s5] sm:$0xf]
  %v1066 = vld [vmem:[%s5 + $0x4] sm:$0xf]
  %v1067 = vld [vmem:[%s5 + $0x8] sm:$0xf]
  %v1068 = vld [vmem:[%s5 + $0xc] sm:$0xf]
  %v1069 = vld [vmem:[%s5 + $0x10] sm:$0xf]
  %v1070 = vld [vmem:[%s5 + $0x14] sm:$0xf]
  %v1071 = vunpack.c.l.bf16 %v1065
  %v1072 = vunpack.c.l.bf16 %v1066
  %v1073 = vunpack.c.l.bf16 %v1067
  %v1074 = vunpack.c.l.bf16 %v1068
  %v1075 = vunpack.c.l.bf16 %v1069
  %v1076 = vunpack.c.l.bf16 %v1070
  %v1077 = vadd.f32 %v1059, %v1071
  %v1078 = vadd.f32 %v1060, %v1072
  %v1079 = vadd.f32 %v1061, %v1073
  %v1080 = vadd.f32 %v1062, %v1074
  %v1081 = vadd.f32 %v1063, %v1075
  %v1082 = vadd.f32 %v1064, %v1076
  %v1083 = vmax.f32 %v1077, 0.0
  %v1084 = vmax.f32 %v1078, 0.0
  %v1085 = vmax.f32 %v1079, 0.0
  %v1086 = vmax.f32 %v1080, 0.0
  %v1087 = vmax.f32 %v1081, 0.0
  %v1088 = vmax.f32 %v1082, 0.0
  %v1089 = vld [vmem:[%s4] sm:$0xff]
  %v1090 = vld [vmem:[%s4 + $0x8] sm:$0xff]
  %v1091 = vld [vmem:[%s4 + $0x10] sm:$0xff]
  %v1092 = vld [vmem:[%s4 + $0x18] sm:$0xff]
  %v1093 = vld [vmem:[%s4 + $0x20] sm:$0xff]
  %v1094 = vld [vmem:[%s4 + $0x28] sm:$0xff]
  %1096 = vset.pattern.permute.xlu0 0
  %1097 = vperm.xlu0 %1096, %v1089
  %v1098 = vpop.permute.xlu0 %1097
  %1101 = vset.pattern.permute.xlu0 0
  %1102 = vperm.xlu0 %1101, %v1090
  %v1103 = vpop.permute.xlu0 %1102
  %1106 = vset.pattern.permute.xlu0 0
  %1107 = vperm.xlu0 %1106, %v1091
  %v1108 = vpop.permute.xlu0 %1107
  %1111 = vset.pattern.permute.xlu0 0
  %1112 = vperm.xlu0 %1111, %v1092
  %v1113 = vpop.permute.xlu0 %1112
  %1116 = vset.pattern.permute.xlu0 0
  %1117 = vperm.xlu0 %1116, %v1093
  %v1118 = vpop.permute.xlu0 %1117
  %1121 = vset.pattern.permute.xlu0 0
  %1122 = vperm.xlu0 %1121, %v1094
  %v1123 = vpop.permute.xlu0 %1122
  %v1125 = vmul.f32 %v1083, %v1098
  %v1126 = vmul.f32 %v1084, %v1103
  %v1127 = vmul.f32 %v1085, %v1108
  %v1128 = vmul.f32 %v1086, %v1113
  %v1129 = vmul.f32 %v1087, %v1118
  %v1130 = vmul.f32 %v1088, %v1123
  %v1131 = vpack.c.bf16 %v1126, %v1125
  %v1132 = vpack.c.bf16 %v1128, %v1127
  %v1133 = vpack.c.bf16 %v1130, %v1129
  %v1137 = vunpack.c.l.b16 %v1131
  %v1138 = vunpack.c.h.b16 %v1131
  %v1139 = vunpack.c.l.b16 %v1132
  %v1140 = vunpack.c.h.b16 %v1132
  %v1141 = vunpack.c.l.b16 %v1133
  %v1142 = vunpack.c.h.b16 %v1133
  %v1143 = vpack.c.b16 %v1137, %v1137
  %v1144 = vpack.c.b16 %v1138, %v1138
  %v1145 = vpack.c.b16 %v1139, %v1139
  %v1146 = vpack.c.b16 %v1140, %v1140
  %v1147 = vpack.c.b16 %v1141, %v1141
  %v1148 = vpack.c.b16 %v1142, %v1142
  %1155 = vst [vmem:[%s6] sm:$0xf] %v1143
  %1156 = vst [vmem:[%s6 + $0x4] sm:$0xf] %v1144
  %1157 = vst [vmem:[%s6 + $0x8] sm:$0xf] %v1145
  %1158 = vst [vmem:[%s6 + $0xc] sm:$0xf] %v1146
  %1159 = vst [vmem:[%s6 + $0x10] sm:$0xf] %v1147
  %1160 = vst [vmem:[%s6 + $0x14] sm:$0xf] %v1148
  // Predicated region
  $region26: #{resnet_embedding_forward.19} parent=0 // pred_check
    _
  $region27: #{resnet_embedding_forward.19} parent=0 // pred_check_branch
    %1162 = sbr.rel (0) target = $region29
  $region28: #{resnet_embedding_forward.19} parent=0 // pred_region
    _
  $region29: #{resnet_embedding_forward.19} parent=0 // pred_fallthru
    _
  // Predicated region
  $region30: #{resnet_embedding_forward.19} parent=0 // pred_check
    _
  $region31: #{resnet_embedding_forward.19} parent=0 // pred_check_branch
    %1164 = sbr.rel (0) target = $region33
  $region32: #{resnet_embedding_forward.19} parent=0 // pred_region
    _
  $region33: #{resnet_embedding_forward.19} parent=0 // pred_fallthru
    _

</llo_original>
